<compile_context>
chip_gen: v6e
topology: v6e:2x2x1
jax: 0.10.0
libtpu: 0.0.40
codegen_flags: <defaults>
</compile_context>

<pallas_src>
import numpy as np
import jax
import jax.numpy as jnp
from jax.experimental import pallas as pl
from jax.experimental.pallas import tpu as pltpu

EPS = 1e-5      # BatchNorm2d default eps
LEAKY = 0.05    # leaky_relu negative slope used by D2


def _bn_leaky(y, gamma, beta):
    """Training-mode BatchNorm (biased batch stats over rows) + LeakyReLU(0.05)."""
    m = y.shape[0]
    inv_m = 1.0 / float(m)
    mean = jnp.sum(y, axis=0, keepdims=True) * inv_m
    mean_sq = jnp.sum(y * y, axis=0, keepdims=True) * inv_m
    var = jnp.maximum(mean_sq - mean * mean, 0.0)
    scale = jax.lax.rsqrt(var + EPS) * gamma
    shift = beta - mean * scale
    y = y * scale + shift
    return jnp.where(y > 0, y, LEAKY * y)


def _d2_kernel(p1_ref, w1_ref, w2_ref, g2_ref, b2_ref, w3_ref, g3_ref, b3_ref,
               perm_ref, wf_ref, sel_ref, out_ref, fs2, fs3, ps2, ps3):
    f32 = jnp.float32
    bf16 = jnp.bfloat16
    n = sel_ref.shape[0]                      # batch
    c1 = w1_ref.shape[1]                      # conv1 out channels
    c2 = w2_ref.shape[1]                      # conv2 out channels
    c3 = w3_ref.shape[1]                      # conv3 out channels
    ho2, wo2n, _ = ps2.shape                  # conv2 output: H, W*n
    ho3, wo3n, _ = ps3.shape                  # conv3 output: H, W*n

    # Folded scratches start as zeros: untouched entries are the conv zero-pads.
    fs2[...] = jnp.zeros_like(fs2)
    fs3[...] = jnp.zeros_like(fs3)

    # ---- stage 1: conv1 (no BN) + leaky_relu, scattered into fs2 -------------
    # p1 rows are pre-ordered by the (r, s) output-parity groups that stage 2's
    # space-to-depth fold needs, so the result regroups with plain row slices.
    y1 = jnp.dot(p1_ref[...], w1_ref[...], preferred_element_type=f32)
    y1 = jnp.where(y1 > 0, y1, LEAKY * y1)
    gsz1 = ho2 * wo2n
    for r in range(2):
        for s in range(2):
            g = r * 2 + s
            blk = y1[g * gsz1:(g + 1) * gsz1, :].reshape(ho2, wo2n, c1)
            fs2[1 - r, 1 - s, r:r + ho2, s * n:s * n + wo2n, :] = blk

    # ---- stage 2: conv2 + BatchNorm + leaky_relu, regrouped into fs3 ---------
    for kh in range(4):
        for kw in range(4):
            k = kh * 4 + kw
            tap = fs2[kh % 2, kw % 2,
                      kh // 2:kh // 2 + ho2,
                      (kw // 2) * n:(kw // 2) * n + wo2n, :]
            ps2[:, :, k * c1:(k + 1) * c1] = tap
    pat2 = ps2[...].reshape(ho2 * wo2n, 16 * c1).astype(bf16)
    y2 = jnp.dot(pat2, w2_ref[...], preferred_element_type=f32)   # (M2, c2)
    y2 = _bn_leaky(y2, g2_ref[...], b2_ref[...])
    # 0/1 permutation matmul groups rows by output parity for the next fold.
    y2 = jnp.dot(perm_ref[...], y2, preferred_element_type=f32)
    gsz2 = ho3 * wo3n
    for r in range(2):
        for s in range(2):
            g = r * 2 + s
            blk = y2[g * gsz2:(g + 1) * gsz2, :].reshape(ho3, wo3n, c2)
            fs3[1 - r, 1 - s, r:r + ho3, s * n:s * n + wo3n, :] = blk

    # ---- stage 3: conv3 + BatchNorm + leaky_relu + fused 4x4 fc head ---------
    for kh in range(4):
        for kw in range(4):
            k = kh * 4 + kw
            tap = fs3[kh % 2, kw % 2,
                      kh // 2:kh // 2 + ho3,
                      (kw // 2) * n:(kw // 2) * n + wo3n, :]
            ps3[:, :, k * c2:(k + 1) * c2] = tap
    pat3 = ps3[...].reshape(ho3 * wo3n, 16 * c2).astype(bf16)
    y3 = jnp.dot(pat3, w3_ref[...], preferred_element_type=f32)   # (M3, c3)
    y3 = _bn_leaky(y3, g3_ref[...], b3_ref[...])
    # fc head: per-sample full contraction of h3 against the 4x4 fc weight.
    prod = y3 * wf_ref[...]                                       # (M3, c3)
    per_sample = jnp.dot(sel_ref[...], prod, preferred_element_type=f32)  # (n, c3)
    out_ref[...] = jnp.sum(per_sample, axis=1, keepdims=True)     # (n, 1)


# ----------------------------------------------------------------------------
# Wrapper-side constants (static-shape layout plumbing).
# ----------------------------------------------------------------------------
def _regroup_perm(ho, wo, n):
    """Permutation mapping rows ordered (oh, ow, n) -> ((r, s) parity, i2, j2, n)."""
    m = ho * wo * n
    perm = np.zeros((m, m), dtype=np.float32)
    dst = 0
    for r in range(2):
        for s in range(2):
            for i2 in range(ho // 2):
                for j2 in range(wo // 2):
                    for nn in range(n):
                        src = ((2 * i2 + r) * wo + (2 * j2 + s)) * n + nn
                        perm[dst, src] = 1.0
                        dst += 1
    return perm


def _sample_select(n, rows):
    """0/1 matrix selecting the rows (ordered (oh, ow, n)) of each sample."""
    sel = np.zeros((n, rows), dtype=np.float32)
    for row in range(rows):
        sel[row % n, row] = 1.0
    return sel


@jax.jit
def d2_forward(x_nchw, params):
    """x_nchw: (N, 3, H, W) f32.  Returns (N,) — matches D2.forward(x).squeeze()."""
    w1, w2, g2, b2, w3, g3, b3, wf = params
    bf16 = jnp.bfloat16
    n, cin, h, w = x_nchw.shape
    ho1, wo1 = h // 2, w // 2            # conv1 output spatial
    ho2, wo2 = ho1 // 2, wo1 // 2        # conv2 output spatial
    ho3, wo3 = ho2 // 2, wo2 // 2        # conv3 output spatial
    c1, c2, c3 = w1.shape[-1], w2.shape[-1], w3.shape[-1]

    # Stage-1 im2col (tiny input, one-time XLA transform).  Rows are pre-grouped
    # by the output parity required by stage 2's in-kernel fold; K padded to 128.
    x = jnp.transpose(x_nchw, (0, 2, 3, 1))                        # NCHW -> NHWC
    xp = jnp.pad(x, ((0, 0), (1, 1), (1, 1), (0, 0)))
    taps = [xp[:, kh:kh + 2 * ho1:2, kw:kw + 2 * wo1:2, :]
            for kh in range(4) for kw in range(4)]
    p1 = jnp.concatenate(taps, axis=-1)                            # (n, ho1, wo1, 16*cin)
    p1 = p1.reshape(n, ho1 // 2, 2, wo1 // 2, 2, 16 * cin)
    p1 = jnp.transpose(p1, (2, 4, 1, 3, 0, 5))                     # (r, s, i2, j2, n, k)
    p1 = p1.reshape(4 * (ho1 // 2) * (wo1 // 2) * n, 16 * cin)
    kpad = max(0, 128 - 16 * cin)
    p1 = jnp.pad(p1, ((0, 0), (0, kpad))).astype(bf16)

    w1p = jnp.pad(w1.reshape(16 * cin, c1), ((0, kpad), (0, 0))).astype(bf16)
    w2r = w2.reshape(16 * c1, c2).astype(bf16)
    w3r = w3.reshape(16 * c2, c3).astype(bf16)
    g2r = g2.reshape(1, c2).astype(jnp.float32)
    b2r = b2.reshape(1, c2).astype(jnp.float32)
    g3r = g3.reshape(1, c3).astype(jnp.float32)
    b3r = b3.reshape(1, c3).astype(jnp.float32)
    perm = jnp.asarray(_regroup_perm(ho2, wo2, n))                 # (M2, M2) f32
    wfm = jnp.repeat(wf.reshape(ho3 * wo3, c3), n, axis=0).astype(jnp.float32)
    sel = jnp.asarray(_sample_select(n, ho3 * wo3 * n))            # (n, M3) f32

    vmem = pl.BlockSpec(memory_space=pltpu.MemorySpace.VMEM)
    out = pl.pallas_call(
        _d2_kernel,
        out_shape=jax.ShapeDtypeStruct((n, 1), jnp.float32),
        in_specs=[vmem] * 11,
        out_specs=vmem,
        scratch_shapes=[
            pltpu.VMEM((2, 2, ho2 + 1, (wo2 + 1) * n, c1), jnp.float32),  # folded h1
            pltpu.VMEM((2, 2, ho3 + 1, (wo3 + 1) * n, c2), jnp.float32),  # folded h2
            pltpu.VMEM((ho2, wo2 * n, 16 * c1), jnp.float32),             # conv2 patches
            pltpu.VMEM((ho3, wo3 * n, 16 * c2), jnp.float32),             # conv3 patches
        ],
    )(p1, w1p, w2r, g2r, b2r, w3r, g3r, b3r, perm, wfm, sel)
    return out.reshape(-1)                                          # .squeeze()


# ----------------------------------------------------------------------------
# Plain-JAX f32 reference for correctness checking.
# ----------------------------------------------------------------------------
def _reference_forward(x_nchw, params):
    w1, w2, g2, b2, w3, g3, b3, wf = params
    x = jnp.transpose(x_nchw, (0, 2, 3, 1))

    def conv(x, w, stride, pad):
        return jax.lax.conv_general_dilated(
            x, w, window_strides=(stride, stride),
            padding=[(pad, pad), (pad, pad)],
            dimension_numbers=("NHWC", "HWIO", "NHWC"))

    def bn(x, g, b):
        mean = jnp.mean(x, axis=(0, 1, 2), keepdims=True)
        var = jnp.mean((x - mean) ** 2, axis=(0, 1, 2), keepdims=True)
        return (x - mean) / jnp.sqrt(var + EPS) * g + b

    def lrelu(x):
        return jnp.where(x > 0, x, LEAKY * x)

    h = lrelu(conv(x, w1, 2, 1))
    h = lrelu(bn(conv(h, w2, 2, 1), g2, b2))
    h = lrelu(bn(conv(h, w3, 2, 1), g3, b3))
    return conv(h, wf, 1, 0).reshape(-1)


if __name__ == "__main__":
    # SVHN-sized input implied by the module: 3x32x32, conv_dim=64.
    N, C, H, W = 2, 3, 32, 32
    conv_dim = 64
    key = jax.random.PRNGKey(0)
    ks = jax.random.split(key, 9)

    def conv_w(k, shape):
        fan_in = shape[0] * shape[1] * shape[2]
        bound = 1.0 / (fan_in ** 0.5)
        return jax.random.uniform(k, shape, jnp.float32, -bound, bound)

    x = jax.random.normal(ks[0], (N, C, H, W), jnp.float32)
    w1 = conv_w(ks[1], (4, 4, C, conv_dim))                      # conv1 (no BN)
    w2 = conv_w(ks[2], (4, 4, conv_dim, conv_dim * 2))           # conv2
    g2 = 1.0 + 0.1 * jax.random.normal(ks[3], (conv_dim * 2,), jnp.float32)
    b2 = 0.1 * jax.random.normal(ks[4], (conv_dim * 2,), jnp.float32)
    w3 = conv_w(ks[5], (4, 4, conv_dim * 2, conv_dim * 4))       # conv3
    g3 = 1.0 + 0.1 * jax.random.normal(ks[6], (conv_dim * 4,), jnp.float32)
    b3 = 0.1 * jax.random.normal(ks[7], (conv_dim * 4,), jnp.float32)
    wf = conv_w(ks[8], (4, 4, conv_dim * 4, 1))                  # fc (4x4 valid conv)

    params = (w1, w2, g2, b2, w3, g3, b3, wf)

    out = d2_forward(x, params)
    out = jax.block_until_ready(out)

    ref = _reference_forward(x, params)
    assert out.shape == (N,), out.shape
    max_err = float(jnp.max(jnp.abs(out.astype(jnp.float32) - ref)))
    assert max_err < 5e-2, f"mismatch vs reference: {max_err}"

    print("KERNEL_OK")
</pallas_src>

<mosaic_0001>
module attributes {stable_mosaic.version = 11 : i64} {
  func.func @_d2_kernel(%arg0: memref<512x128xbf16, #tpu.memory_space<vmem>>, %arg1: memref<128x64xbf16, #tpu.memory_space<vmem>>, %arg2: memref<1024x128xbf16, #tpu.memory_space<vmem>>, %arg3: memref<1x128xf32, #tpu.memory_space<vmem>>, %arg4: memref<1x128xf32, #tpu.memory_space<vmem>>, %arg5: memref<2048x256xbf16, #tpu.memory_space<vmem>>, %arg6: memref<1x256xf32, #tpu.memory_space<vmem>>, %arg7: memref<1x256xf32, #tpu.memory_space<vmem>>, %arg8: memref<128x128xf32, #tpu.memory_space<vmem>>, %arg9: memref<32x256xf32, #tpu.memory_space<vmem>>, %arg10: memref<2x32xf32, #tpu.memory_space<vmem>>, %arg11: memref<2x1xf32, #tpu.memory_space<vmem>>, %arg12: memref<2x2x9x18x64xf32, #tpu.memory_space<vmem>>, %arg13: memref<2x2x5x10x128xf32, #tpu.memory_space<vmem>>, %arg14: memref<8x16x1024xf32, #tpu.memory_space<vmem>>, %arg15: memref<4x8x2048xf32, #tpu.memory_space<vmem>>) attributes {dimension_semantics = [], scalar_prefetch = 0 : i64, scratch_operands = 4 : i64, tpu.core_type = #tpu.core_type<tc>} {
    %cst = arith.constant 0.000000e+00 : f32
    %0 = vector.broadcast %cst : f32 to vector<2x2x9x18x64xf32>
    %c0 = arith.constant 0 : index
    %c0_0 = arith.constant 0 : index
    %c0_1 = arith.constant 0 : index
    %c0_2 = arith.constant 0 : index
    %c0_3 = arith.constant 0 : index
    %1 = vector.load %arg12[%c0, %c0_0, %c0_1, %c0_2, %c0_3] : memref<2x2x9x18x64xf32, #tpu.memory_space<vmem>>, vector<2x2x9x18x64xf32>
    tpu.vector_store %arg12[%c0, %c0_0, %c0_1, %c0_2, %c0_3], %0 {strides = array<i32>} : memref<2x2x9x18x64xf32, #tpu.memory_space<vmem>>, vector<2x2x9x18x64xf32>,
    %cst_4 = arith.constant 0.000000e+00 : f32
    %2 = vector.broadcast %cst_4 : f32 to vector<2x2x5x10x128xf32>
    %c0_5 = arith.constant 0 : index
    %c0_6 = arith.constant 0 : index
    %c0_7 = arith.constant 0 : index
    %c0_8 = arith.constant 0 : index
    %c0_9 = arith.constant 0 : index
    %3 = vector.load %arg13[%c0_5, %c0_6, %c0_7, %c0_8, %c0_9] : memref<2x2x5x10x128xf32, #tpu.memory_space<vmem>>, vector<2x2x5x10x128xf32>
    tpu.vector_store %arg13[%c0_5, %c0_6, %c0_7, %c0_8, %c0_9], %2 {strides = array<i32>} : memref<2x2x5x10x128xf32, #tpu.memory_space<vmem>>, vector<2x2x5x10x128xf32>,
    %c0_10 = arith.constant 0 : index
    %c0_11 = arith.constant 0 : index
    %4 = vector.load %arg0[%c0_10, %c0_11] : memref<512x128xbf16, #tpu.memory_space<vmem>>, vector<512x128xbf16>
    %c0_12 = arith.constant 0 : index
    %c0_13 = arith.constant 0 : index
    %5 = vector.load %arg1[%c0_12, %c0_13] : memref<128x64xbf16, #tpu.memory_space<vmem>>, vector<128x64xbf16>
    %cst_14 = arith.constant dense<0.000000e+00> : vector<512x64xf32>
    %6 = tpu.matmul %4, %5, %cst_14 {dimension_numbers = #tpu.dot_dimension_numbers<[1], [0], [0], [1], [0, 0, 1, 1], [], []>} : vector<512x128xbf16>, vector<128x64xbf16>, vector<512x64xf32> -> vector<512x64xf32>
    %cst_15 = arith.constant 0.000000e+00 : f32
    %7 = vector.broadcast %cst_15 : f32 to vector<512x64xf32>
    %8 = arith.cmpf ogt, %6, %7 : vector<512x64xf32>
    %cst_16 = arith.constant 5.000000e-02 : f32
    %9 = vector.broadcast %cst_16 : f32 to vector<512x64xf32>
    %10 = arith.mulf %9, %6 : vector<512x64xf32>
    %11 = arith.select %8, %6, %10 : vector<512x64xi1>, vector<512x64xf32>
    %12 = vector.extract_strided_slice %11 {offsets = [0, 0], sizes = [128, 64], strides = [1, 1]} : vector<512x64xf32> to vector<128x64xf32>
    %13 = vector.shape_cast %12 : vector<128x64xf32> to vector<8x16x64xf32>
    %c1 = arith.constant 1 : index
    %c1_17 = arith.constant 1 : index
    %c0_18 = arith.constant 0 : index
    %c0_19 = arith.constant 0 : index
    %c0_20 = arith.constant 0 : index
    %14 = vector.load %arg12[%c1, %c1_17, %c0_18, %c0_19, %c0_20] : memref<2x2x9x18x64xf32, #tpu.memory_space<vmem>>, vector<1x1x8x16x64xf32>
    %15 = vector.shape_cast %14 : vector<1x1x8x16x64xf32> to vector<8x16x64xf32>
    %16 = vector.shape_cast %13 : vector<8x16x64xf32> to vector<1x1x8x16x64xf32>
    tpu.vector_store %arg12[%c1, %c1_17, %c0_18, %c0_19, %c0_20], %16 {strides = array<i32>} : memref<2x2x9x18x64xf32, #tpu.memory_space<vmem>>, vector<1x1x8x16x64xf32>,
    %17 = vector.extract_strided_slice %11 {offsets = [128, 0], sizes = [128, 64], strides = [1, 1]} : vector<512x64xf32> to vector<128x64xf32>
    %18 = vector.shape_cast %17 : vector<128x64xf32> to vector<8x16x64xf32>
    %c1_21 = arith.constant 1 : index
    %c0_22 = arith.constant 0 : index
    %c0_23 = arith.constant 0 : index
    %c2 = arith.constant 2 : index
    %c0_24 = arith.constant 0 : index
    %19 = vector.load %arg12[%c1_21, %c0_22, %c0_23, %c2, %c0_24] : memref<2x2x9x18x64xf32, #tpu.memory_space<vmem>>, vector<1x1x8x16x64xf32>
    %20 = vector.shape_cast %19 : vector<1x1x8x16x64xf32> to vector<8x16x64xf32>
    %21 = vector.shape_cast %18 : vector<8x16x64xf32> to vector<1x1x8x16x64xf32>
    tpu.vector_store %arg12[%c1_21, %c0_22, %c0_23, %c2, %c0_24], %21 {strides = array<i32>} : memref<2x2x9x18x64xf32, #tpu.memory_space<vmem>>, vector<1x1x8x16x64xf32>,
    %22 = vector.extract_strided_slice %11 {offsets = [256, 0], sizes = [128, 64], strides = [1, 1]} : vector<512x64xf32> to vector<128x64xf32>
    %23 = vector.shape_cast %22 : vector<128x64xf32> to vector<8x16x64xf32>
    %c0_25 = arith.constant 0 : index
    %c1_26 = arith.constant 1 : index
    %c1_27 = arith.constant 1 : index
    %c0_28 = arith.constant 0 : index
    %c0_29 = arith.constant 0 : index
    %24 = vector.load %arg12[%c0_25, %c1_26, %c1_27, %c0_28, %c0_29] : memref<2x2x9x18x64xf32, #tpu.memory_space<vmem>>, vector<1x1x8x16x64xf32>
    %25 = vector.shape_cast %24 : vector<1x1x8x16x64xf32> to vector<8x16x64xf32>
    %26 = vector.shape_cast %23 : vector<8x16x64xf32> to vector<1x1x8x16x64xf32>
    tpu.vector_store %arg12[%c0_25, %c1_26, %c1_27, %c0_28, %c0_29], %26 {strides = array<i32>} : memref<2x2x9x18x64xf32, #tpu.memory_space<vmem>>, vector<1x1x8x16x64xf32>,
    %27 = vector.extract_strided_slice %11 {offsets = [384, 0], sizes = [128, 64], strides = [1, 1]} : vector<512x64xf32> to vector<128x64xf32>
    %28 = vector.shape_cast %27 : vector<128x64xf32> to vector<8x16x64xf32>
    %c0_30 = arith.constant 0 : index
    %c0_31 = arith.constant 0 : index
    %c1_32 = arith.constant 1 : index
    %c2_33 = arith.constant 2 : index
    %c0_34 = arith.constant 0 : index
    %29 = vector.load %arg12[%c0_30, %c0_31, %c1_32, %c2_33, %c0_34] : memref<2x2x9x18x64xf32, #tpu.memory_space<vmem>>, vector<1x1x8x16x64xf32>
    %30 = vector.shape_cast %29 : vector<1x1x8x16x64xf32> to vector<8x16x64xf32>
    %31 = vector.shape_cast %28 : vector<8x16x64xf32> to vector<1x1x8x16x64xf32>
    tpu.vector_store %arg12[%c0_30, %c0_31, %c1_32, %c2_33, %c0_34], %31 {strides = array<i32>} : memref<2x2x9x18x64xf32, #tpu.memory_space<vmem>>, vector<1x1x8x16x64xf32>,
    %c0_35 = arith.constant 0 : index
    %c0_36 = arith.constant 0 : index
    %c0_37 = arith.constant 0 : index
    %c0_38 = arith.constant 0 : index
    %c0_39 = arith.constant 0 : index
    %32 = vector.load %arg12[%c0_35, %c0_36, %c0_37, %c0_38, %c0_39] : memref<2x2x9x18x64xf32, #tpu.memory_space<vmem>>, vector<1x1x8x16x64xf32>
    %33 = vector.shape_cast %32 : vector<1x1x8x16x64xf32> to vector<8x16x64xf32>
    %c0_40 = arith.constant 0 : index
    %c0_41 = arith.constant 0 : index
    %c0_42 = arith.constant 0 : index
    %34 = vector.load %arg14[%c0_40, %c0_41, %c0_42] : memref<8x16x1024xf32, #tpu.memory_space<vmem>>, vector<8x16x64xf32>
    tpu.vector_store %arg14[%c0_40, %c0_41, %c0_42], %33 {strides = array<i32>} : memref<8x16x1024xf32, #tpu.memory_space<vmem>>, vector<8x16x64xf32>,
    %c0_43 = arith.constant 0 : index
    %c1_44 = arith.constant 1 : index
    %c0_45 = arith.constant 0 : index
    %c0_46 = arith.constant 0 : index
    %c0_47 = arith.constant 0 : index
    %35 = vector.load %arg12[%c0_43, %c1_44, %c0_45, %c0_46, %c0_47] : memref<2x2x9x18x64xf32, #tpu.memory_space<vmem>>, vector<1x1x8x16x64xf32>
    %36 = vector.shape_cast %35 : vector<1x1x8x16x64xf32> to vector<8x16x64xf32>
    %c0_48 = arith.constant 0 : index
    %c0_49 = arith.constant 0 : index
    %c64 = arith.constant 64 : index
    %37 = vector.load %arg14[%c0_48, %c0_49, %c64] : memref<8x16x1024xf32, #tpu.memory_space<vmem>>, vector<8x16x64xf32>
    tpu.vector_store %arg14[%c0_48, %c0_49, %c64], %36 {strides = array<i32>} : memref<8x16x1024xf32, #tpu.memory_space<vmem>>, vector<8x16x64xf32>,
    %c0_50 = arith.constant 0 : index
    %c0_51 = arith.constant 0 : index
    %c0_52 = arith.constant 0 : index
    %c2_53 = arith.constant 2 : index
    %c0_54 = arith.constant 0 : index
    %38 = vector.load %arg12[%c0_50, %c0_51, %c0_52, %c2_53, %c0_54] : memref<2x2x9x18x64xf32, #tpu.memory_space<vmem>>, vector<1x1x8x16x64xf32>
    %39 = vector.shape_cast %38 : vector<1x1x8x16x64xf32> to vector<8x16x64xf32>
    %c0_55 = arith.constant 0 : index
    %c0_56 = arith.constant 0 : index
    %c128 = arith.constant 128 : index
    %40 = vector.load %arg14[%c0_55, %c0_56, %c128] : memref<8x16x1024xf32, #tpu.memory_space<vmem>>, vector<8x16x64xf32>
    tpu.vector_store %arg14[%c0_55, %c0_56, %c128], %39 {strides = array<i32>} : memref<8x16x1024xf32, #tpu.memory_space<vmem>>, vector<8x16x64xf32>,
    %c0_57 = arith.constant 0 : index
    %c1_58 = arith.constant 1 : index
    %c0_59 = arith.constant 0 : index
    %c2_60 = arith.constant 2 : index
    %c0_61 = arith.constant 0 : index
    %41 = vector.load %arg12[%c0_57, %c1_58, %c0_59, %c2_60, %c0_61] : memref<2x2x9x18x64xf32, #tpu.memory_space<vmem>>, vector<1x1x8x16x64xf32>
    %42 = vector.shape_cast %41 : vector<1x1x8x16x64xf32> to vector<8x16x64xf32>
    %c0_62 = arith.constant 0 : index
    %c0_63 = arith.constant 0 : index
    %c192 = arith.constant 192 : index
    %43 = vector.load %arg14[%c0_62, %c0_63, %c192] : memref<8x16x1024xf32, #tpu.memory_space<vmem>>, vector<8x16x64xf32>
    tpu.vector_store %arg14[%c0_62, %c0_63, %c192], %42 {strides = array<i32>} : memref<8x16x1024xf32, #tpu.memory_space<vmem>>, vector<8x16x64xf32>,
    %c1_64 = arith.constant 1 : index
    %c0_65 = arith.constant 0 : index
    %c0_66 = arith.constant 0 : index
    %c0_67 = arith.constant 0 : index
    %c0_68 = arith.constant 0 : index
    %44 = vector.load %arg12[%c1_64, %c0_65, %c0_66, %c0_67, %c0_68] : memref<2x2x9x18x64xf32, #tpu.memory_space<vmem>>, vector<1x1x8x16x64xf32>
    %45 = vector.shape_cast %44 : vector<1x1x8x16x64xf32> to vector<8x16x64xf32>
    %c0_69 = arith.constant 0 : index
    %c0_70 = arith.constant 0 : index
    %c256 = arith.constant 256 : index
    %46 = vector.load %arg14[%c0_69, %c0_70, %c256] : memref<8x16x1024xf32, #tpu.memory_space<vmem>>, vector<8x16x64xf32>
    tpu.vector_store %arg14[%c0_69, %c0_70, %c256], %45 {strides = array<i32>} : memref<8x16x1024xf32, #tpu.memory_space<vmem>>, vector<8x16x64xf32>,
    %c1_71 = arith.constant 1 : index
    %c1_72 = arith.constant 1 : index
    %c0_73 = arith.constant 0 : index
    %c0_74 = arith.constant 0 : index
    %c0_75 = arith.constant 0 : index
    %47 = vector.load %arg12[%c1_71, %c1_72, %c0_73, %c0_74, %c0_75] : memref<2x2x9x18x64xf32, #tpu.memory_space<vmem>>, vector<1x1x8x16x64xf32>
    %48 = vector.shape_cast %47 : vector<1x1x8x16x64xf32> to vector<8x16x64xf32>
    %c0_76 = arith.constant 0 : index
    %c0_77 = arith.constant 0 : index
    %c320 = arith.constant 320 : index
    %49 = vector.load %arg14[%c0_76, %c0_77, %c320] : memref<8x16x1024xf32, #tpu.memory_space<vmem>>, vector<8x16x64xf32>
    tpu.vector_store %arg14[%c0_76, %c0_77, %c320], %48 {strides = array<i32>} : memref<8x16x1024xf32, #tpu.memory_space<vmem>>, vector<8x16x64xf32>,
    %c1_78 = arith.constant 1 : index
    %c0_79 = arith.constant 0 : index
    %c0_80 = arith.constant 0 : index
    %c2_81 = arith.constant 2 : index
    %c0_82 = arith.constant 0 : index
    %50 = vector.load %arg12[%c1_78, %c0_79, %c0_80, %c2_81, %c0_82] : memref<2x2x9x18x64xf32, #tpu.memory_space<vmem>>, vector<1x1x8x16x64xf32>
    %51 = vector.shape_cast %50 : vector<1x1x8x16x64xf32> to vector<8x16x64xf32>
    %c0_83 = arith.constant 0 : index
    %c0_84 = arith.constant 0 : index
    %c384 = arith.constant 384 : index
    %52 = vector.load %arg14[%c0_83, %c0_84, %c384] : memref<8x16x1024xf32, #tpu.memory_space<vmem>>, vector<8x16x64xf32>
    tpu.vector_store %arg14[%c0_83, %c0_84, %c384], %51 {strides = array<i32>} : memref<8x16x1024xf32, #tpu.memory_space<vmem>>, vector<8x16x64xf32>,
    %c1_85 = arith.constant 1 : index
    %c1_86 = arith.constant 1 : index
    %c0_87 = arith.constant 0 : index
    %c2_88 = arith.constant 2 : index
    %c0_89 = arith.constant 0 : index
    %53 = vector.load %arg12[%c1_85, %c1_86, %c0_87, %c2_88, %c0_89] : memref<2x2x9x18x64xf32, #tpu.memory_space<vmem>>, vector<1x1x8x16x64xf32>
    %54 = vector.shape_cast %53 : vector<1x1x8x16x64xf32> to vector<8x16x64xf32>
    %c0_90 = arith.constant 0 : index
    %c0_91 = arith.constant 0 : index
    %c448 = arith.constant 448 : index
    %55 = vector.load %arg14[%c0_90, %c0_91, %c448] : memref<8x16x1024xf32, #tpu.memory_space<vmem>>, vector<8x16x64xf32>
    tpu.vector_store %arg14[%c0_90, %c0_91, %c448], %54 {strides = array<i32>} : memref<8x16x1024xf32, #tpu.memory_space<vmem>>, vector<8x16x64xf32>,
    %c0_92 = arith.constant 0 : index
    %c0_93 = arith.constant 0 : index
    %c1_94 = arith.constant 1 : index
    %c0_95 = arith.constant 0 : index
    %c0_96 = arith.constant 0 : index
    %56 = vector.load %arg12[%c0_92, %c0_93, %c1_94, %c0_95, %c0_96] : memref<2x2x9x18x64xf32, #tpu.memory_space<vmem>>, vector<1x1x8x16x64xf32>
    %57 = vector.shape_cast %56 : vector<1x1x8x16x64xf32> to vector<8x16x64xf32>
    %c0_97 = arith.constant 0 : index
    %c0_98 = arith.constant 0 : index
    %c512 = arith.constant 512 : index
    %58 = vector.load %arg14[%c0_97, %c0_98, %c512] : memref<8x16x1024xf32, #tpu.memory_space<vmem>>, vector<8x16x64xf32>
    tpu.vector_store %arg14[%c0_97, %c0_98, %c512], %57 {strides = array<i32>} : memref<8x16x1024xf32, #tpu.memory_space<vmem>>, vector<8x16x64xf32>,
    %c0_99 = arith.constant 0 : index
    %c1_100 = arith.constant 1 : index
    %c1_101 = arith.constant 1 : index
    %c0_102 = arith.constant 0 : index
    %c0_103 = arith.constant 0 : index
    %59 = vector.load %arg12[%c0_99, %c1_100, %c1_101, %c0_102, %c0_103] : memref<2x2x9x18x64xf32, #tpu.memory_space<vmem>>, vector<1x1x8x16x64xf32>
    %60 = vector.shape_cast %59 : vector<1x1x8x16x64xf32> to vector<8x16x64xf32>
    %c0_104 = arith.constant 0 : index
    %c0_105 = arith.constant 0 : index
    %c576 = arith.constant 576 : index
    %61 = vector.load %arg14[%c0_104, %c0_105, %c576] : memref<8x16x1024xf32, #tpu.memory_space<vmem>>, vector<8x16x64xf32>
    tpu.vector_store %arg14[%c0_104, %c0_105, %c576], %60 {strides = array<i32>} : memref<8x16x1024xf32, #tpu.memory_space<vmem>>, vector<8x16x64xf32>,
    %c0_106 = arith.constant 0 : index
    %c0_107 = arith.constant 0 : index
    %c1_108 = arith.constant 1 : index
    %c2_109 = arith.constant 2 : index
    %c0_110 = arith.constant 0 : index
    %62 = vector.load %arg12[%c0_106, %c0_107, %c1_108, %c2_109, %c0_110] : memref<2x2x9x18x64xf32, #tpu.memory_space<vmem>>, vector<1x1x8x16x64xf32>
    %63 = vector.shape_cast %62 : vector<1x1x8x16x64xf32> to vector<8x16x64xf32>
    %c0_111 = arith.constant 0 : index
    %c0_112 = arith.constant 0 : index
    %c640 = arith.constant 640 : index
    %64 = vector.load %arg14[%c0_111, %c0_112, %c640] : memref<8x16x1024xf32, #tpu.memory_space<vmem>>, vector<8x16x64xf32>
    tpu.vector_store %arg14[%c0_111, %c0_112, %c640], %63 {strides = array<i32>} : memref<8x16x1024xf32, #tpu.memory_space<vmem>>, vector<8x16x64xf32>,
    %c0_113 = arith.constant 0 : index
    %c1_114 = arith.constant 1 : index
    %c1_115 = arith.constant 1 : index
    %c2_116 = arith.constant 2 : index
    %c0_117 = arith.constant 0 : index
    %65 = vector.load %arg12[%c0_113, %c1_114, %c1_115, %c2_116, %c0_117] : memref<2x2x9x18x64xf32, #tpu.memory_space<vmem>>, vector<1x1x8x16x64xf32>
    %66 = vector.shape_cast %65 : vector<1x1x8x16x64xf32> to vector<8x16x64xf32>
    %c0_118 = arith.constant 0 : index
    %c0_119 = arith.constant 0 : index
    %c704 = arith.constant 704 : index
    %67 = vector.load %arg14[%c0_118, %c0_119, %c704] : memref<8x16x1024xf32, #tpu.memory_space<vmem>>, vector<8x16x64xf32>
    tpu.vector_store %arg14[%c0_118, %c0_119, %c704], %66 {strides = array<i32>} : memref<8x16x1024xf32, #tpu.memory_space<vmem>>, vector<8x16x64xf32>,
    %c1_120 = arith.constant 1 : index
    %c0_121 = arith.constant 0 : index
    %c1_122 = arith.constant 1 : index
    %c0_123 = arith.constant 0 : index
    %c0_124 = arith.constant 0 : index
    %68 = vector.load %arg12[%c1_120, %c0_121, %c1_122, %c0_123, %c0_124] : memref<2x2x9x18x64xf32, #tpu.memory_space<vmem>>, vector<1x1x8x16x64xf32>
    %69 = vector.shape_cast %68 : vector<1x1x8x16x64xf32> to vector<8x16x64xf32>
    %c0_125 = arith.constant 0 : index
    %c0_126 = arith.constant 0 : index
    %c768 = arith.constant 768 : index
    %70 = vector.load %arg14[%c0_125, %c0_126, %c768] : memref<8x16x1024xf32, #tpu.memory_space<vmem>>, vector<8x16x64xf32>
    tpu.vector_store %arg14[%c0_125, %c0_126, %c768], %69 {strides = array<i32>} : memref<8x16x1024xf32, #tpu.memory_space<vmem>>, vector<8x16x64xf32>,
    %c1_127 = arith.constant 1 : index
    %c1_128 = arith.constant 1 : index
    %c1_129 = arith.constant 1 : index
    %c0_130 = arith.constant 0 : index
    %c0_131 = arith.constant 0 : index
    %71 = vector.load %arg12[%c1_127, %c1_128, %c1_129, %c0_130, %c0_131] : memref<2x2x9x18x64xf32, #tpu.memory_space<vmem>>, vector<1x1x8x16x64xf32>
    %72 = vector.shape_cast %71 : vector<1x1x8x16x64xf32> to vector<8x16x64xf32>
    %c0_132 = arith.constant 0 : index
    %c0_133 = arith.constant 0 : index
    %c832 = arith.constant 832 : index
    %73 = vector.load %arg14[%c0_132, %c0_133, %c832] : memref<8x16x1024xf32, #tpu.memory_space<vmem>>, vector<8x16x64xf32>
    tpu.vector_store %arg14[%c0_132, %c0_133, %c832], %72 {strides = array<i32>} : memref<8x16x1024xf32, #tpu.memory_space<vmem>>, vector<8x16x64xf32>,
    %c1_134 = arith.constant 1 : index
    %c0_135 = arith.constant 0 : index
    %c1_136 = arith.constant 1 : index
    %c2_137 = arith.constant 2 : index
    %c0_138 = arith.constant 0 : index
    %74 = vector.load %arg12[%c1_134, %c0_135, %c1_136, %c2_137, %c0_138] : memref<2x2x9x18x64xf32, #tpu.memory_space<vmem>>, vector<1x1x8x16x64xf32>
    %75 = vector.shape_cast %74 : vector<1x1x8x16x64xf32> to vector<8x16x64xf32>
    %c0_139 = arith.constant 0 : index
    %c0_140 = arith.constant 0 : index
    %c896 = arith.constant 896 : index
    %76 = vector.load %arg14[%c0_139, %c0_140, %c896] : memref<8x16x1024xf32, #tpu.memory_space<vmem>>, vector<8x16x64xf32>
    tpu.vector_store %arg14[%c0_139, %c0_140, %c896], %75 {strides = array<i32>} : memref<8x16x1024xf32, #tpu.memory_space<vmem>>, vector<8x16x64xf32>,
    %c1_141 = arith.constant 1 : index
    %c1_142 = arith.constant 1 : index
    %c1_143 = arith.constant 1 : index
    %c2_144 = arith.constant 2 : index
    %c0_145 = arith.constant 0 : index
    %77 = vector.load %arg12[%c1_141, %c1_142, %c1_143, %c2_144, %c0_145] : memref<2x2x9x18x64xf32, #tpu.memory_space<vmem>>, vector<1x1x8x16x64xf32>
    %78 = vector.shape_cast %77 : vector<1x1x8x16x64xf32> to vector<8x16x64xf32>
    %c0_146 = arith.constant 0 : index
    %c0_147 = arith.constant 0 : index
    %c960 = arith.constant 960 : index
    %79 = vector.load %arg14[%c0_146, %c0_147, %c960] : memref<8x16x1024xf32, #tpu.memory_space<vmem>>, vector<8x16x64xf32>
    tpu.vector_store %arg14[%c0_146, %c0_147, %c960], %78 {strides = array<i32>} : memref<8x16x1024xf32, #tpu.memory_space<vmem>>, vector<8x16x64xf32>,
    %c0_148 = arith.constant 0 : index
    %c0_149 = arith.constant 0 : index
    %c0_150 = arith.constant 0 : index
    %80 = vector.load %arg14[%c0_148, %c0_149, %c0_150] : memref<8x16x1024xf32, #tpu.memory_space<vmem>>, vector<8x16x1024xf32>
    %81 = vector.shape_cast %80 : vector<8x16x1024xf32> to vector<128x1024xf32>
    %82 = arith.truncf %81 : vector<128x1024xf32> to vector<128x1024xbf16>
    %c0_151 = arith.constant 0 : index
    %c0_152 = arith.constant 0 : index
    %83 = vector.load %arg2[%c0_151, %c0_152] : memref<1024x128xbf16, #tpu.memory_space<vmem>>, vector<1024x128xbf16>
    %cst_153 = arith.constant dense<0.000000e+00> : vector<128x128xf32>
    %84 = tpu.matmul %82, %83, %cst_153 {dimension_numbers = #tpu.dot_dimension_numbers<[1], [0], [0], [1], [0, 0, 1, 1], [], []>} : vector<128x1024xbf16>, vector<1024x128xbf16>, vector<128x128xf32> -> vector<128x128xf32>
    %c0_154 = arith.constant 0 : index
    %c0_155 = arith.constant 0 : index
    %85 = vector.load %arg3[%c0_154, %c0_155] : memref<1x128xf32, #tpu.memory_space<vmem>>, vector<1x128xf32>
    %c0_156 = arith.constant 0 : index
    %c0_157 = arith.constant 0 : index
    %86 = vector.load %arg4[%c0_156, %c0_157] : memref<1x128xf32, #tpu.memory_space<vmem>>, vector<1x128xf32>
    %cst_158 = arith.constant dense<0.000000e+00> : vector<128xf32>
    %87 = vector.multi_reduction <add>, %84, %cst_158 [0] : vector<128x128xf32> to vector<128xf32>
    %88 = vector.shape_cast %87 : vector<128xf32> to vector<1x128xf32>
    %cst_159 = arith.constant 7.812500e-03 : f32
    %89 = vector.broadcast %cst_159 : f32 to vector<1x128xf32>
    %90 = arith.mulf %88, %89 : vector<1x128xf32>
    %91 = arith.mulf %84, %84 : vector<128x128xf32>
    %cst_160 = arith.constant dense<0.000000e+00> : vector<128xf32>
    %92 = vector.multi_reduction <add>, %91, %cst_160 [0] : vector<128x128xf32> to vector<128xf32>
    %93 = vector.shape_cast %92 : vector<128xf32> to vector<1x128xf32>
    %cst_161 = arith.constant 7.812500e-03 : f32
    %94 = vector.broadcast %cst_161 : f32 to vector<1x128xf32>
    %95 = arith.mulf %93, %94 : vector<1x128xf32>
    %96 = arith.mulf %90, %90 : vector<1x128xf32>
    %97 = arith.subf %95, %96 : vector<1x128xf32>
    %cst_162 = arith.constant 0.000000e+00 : f32
    %98 = vector.broadcast %cst_162 : f32 to vector<1x128xf32>
    %99 = arith.maximumf %97, %98 : vector<1x128xf32>
    %cst_163 = arith.constant 9.99999974E-6 : f32
    %100 = vector.broadcast %cst_163 : f32 to vector<1x128xf32>
    %101 = arith.addf %99, %100 : vector<1x128xf32>
    %102 = math.rsqrt %101 : vector<1x128xf32>
    %103 = arith.mulf %102, %85 : vector<1x128xf32>
    %104 = arith.mulf %90, %103 : vector<1x128xf32>
    %105 = arith.subf %86, %104 : vector<1x128xf32>
    %106 = vector.broadcast %103 : vector<1x128xf32> to vector<128x128xf32>
    %107 = arith.mulf %84, %106 : vector<128x128xf32>
    %108 = vector.broadcast %105 : vector<1x128xf32> to vector<128x128xf32>
    %109 = arith.addf %107, %108 : vector<128x128xf32>
    %cst_164 = arith.constant 0.000000e+00 : f32
    %110 = vector.broadcast %cst_164 : f32 to vector<128x128xf32>
    %111 = arith.cmpf ogt, %109, %110 : vector<128x128xf32>
    %cst_165 = arith.constant 5.000000e-02 : f32
    %112 = vector.broadcast %cst_165 : f32 to vector<128x128xf32>
    %113 = arith.mulf %112, %109 : vector<128x128xf32>
    %114 = arith.select %111, %109, %113 : vector<128x128xi1>, vector<128x128xf32>
    %c0_166 = arith.constant 0 : index
    %c0_167 = arith.constant 0 : index
    %115 = vector.load %arg8[%c0_166, %c0_167] : memref<128x128xf32, #tpu.memory_space<vmem>>, vector<128x128xf32>
    %cst_168 = arith.constant dense<0.000000e+00> : vector<128x128xf32>
    %116 = tpu.matmul %115, %114, %cst_168 {dimension_numbers = #tpu.dot_dimension_numbers<[1], [0], [0], [1], [0, 0, 1, 1], [], []>} : vector<128x128xf32>, vector<128x128xf32>, vector<128x128xf32> -> vector<128x128xf32>
    %117 = vector.extract_strided_slice %116 {offsets = [0, 0], sizes = [32, 128], strides = [1, 1]} : vector<128x128xf32> to vector<32x128xf32>
    %118 = vector.shape_cast %117 : vector<32x128xf32> to vector<4x8x128xf32>
    %c1_169 = arith.constant 1 : index
    %c1_170 = arith.constant 1 : index
    %c0_171 = arith.constant 0 : index
    %c0_172 = arith.constant 0 : index
    %c0_173 = arith.constant 0 : index
    %119 = vector.load %arg13[%c1_169, %c1_170, %c0_171, %c0_172, %c0_173] : memref<2x2x5x10x128xf32, #tpu.memory_space<vmem>>, vector<1x1x4x8x128xf32>
    %120 = vector.shape_cast %119 : vector<1x1x4x8x128xf32> to vector<4x8x128xf32>
    %121 = vector.shape_cast %118 : vector<4x8x128xf32> to vector<1x1x4x8x128xf32>
    tpu.vector_store %arg13[%c1_169, %c1_170, %c0_171, %c0_172, %c0_173], %121 {strides = array<i32>} : memref<2x2x5x10x128xf32, #tpu.memory_space<vmem>>, vector<1x1x4x8x128xf32>,
    %122 = vector.extract_strided_slice %116 {offsets = [32, 0], sizes = [32, 128], strides = [1, 1]} : vector<128x128xf32> to vector<32x128xf32>
    %123 = vector.shape_cast %122 : vector<32x128xf32> to vector<4x8x128xf32>
    %c1_174 = arith.constant 1 : index
    %c0_175 = arith.constant 0 : index
    %c0_176 = arith.constant 0 : index
    %c2_177 = arith.constant 2 : index
    %c0_178 = arith.constant 0 : index
    %124 = vector.load %arg13[%c1_174, %c0_175, %c0_176, %c2_177, %c0_178] : memref<2x2x5x10x128xf32, #tpu.memory_space<vmem>>, vector<1x1x4x8x128xf32>
    %125 = vector.shape_cast %124 : vector<1x1x4x8x128xf32> to vector<4x8x128xf32>
    %126 = vector.shape_cast %123 : vector<4x8x128xf32> to vector<1x1x4x8x128xf32>
    tpu.vector_store %arg13[%c1_174, %c0_175, %c0_176, %c2_177, %c0_178], %126 {strides = array<i32>} : memref<2x2x5x10x128xf32, #tpu.memory_space<vmem>>, vector<1x1x4x8x128xf32>,
    %127 = vector.extract_strided_slice %116 {offsets = [64, 0], sizes = [32, 128], strides = [1, 1]} : vector<128x128xf32> to vector<32x128xf32>
    %128 = vector.shape_cast %127 : vector<32x128xf32> to vector<4x8x128xf32>
    %c0_179 = arith.constant 0 : index
    %c1_180 = arith.constant 1 : index
    %c1_181 = arith.constant 1 : index
    %c0_182 = arith.constant 0 : index
    %c0_183 = arith.constant 0 : index
    %129 = vector.load %arg13[%c0_179, %c1_180, %c1_181, %c0_182, %c0_183] : memref<2x2x5x10x128xf32, #tpu.memory_space<vmem>>, vector<1x1x4x8x128xf32>
    %130 = vector.shape_cast %129 : vector<1x1x4x8x128xf32> to vector<4x8x128xf32>
    %131 = vector.shape_cast %128 : vector<4x8x128xf32> to vector<1x1x4x8x128xf32>
    tpu.vector_store %arg13[%c0_179, %c1_180, %c1_181, %c0_182, %c0_183], %131 {strides = array<i32>} : memref<2x2x5x10x128xf32, #tpu.memory_space<vmem>>, vector<1x1x4x8x128xf32>,
    %132 = vector.extract_strided_slice %116 {offsets = [96, 0], sizes = [32, 128], strides = [1, 1]} : vector<128x128xf32> to vector<32x128xf32>
    %133 = vector.shape_cast %132 : vector<32x128xf32> to vector<4x8x128xf32>
    %c0_184 = arith.constant 0 : index
    %c0_185 = arith.constant 0 : index
    %c1_186 = arith.constant 1 : index
    %c2_187 = arith.constant 2 : index
    %c0_188 = arith.constant 0 : index
    %134 = vector.load %arg13[%c0_184, %c0_185, %c1_186, %c2_187, %c0_188] : memref<2x2x5x10x128xf32, #tpu.memory_space<vmem>>, vector<1x1x4x8x128xf32>
    %135 = vector.shape_cast %134 : vector<1x1x4x8x128xf32> to vector<4x8x128xf32>
    %136 = vector.shape_cast %133 : vector<4x8x128xf32> to vector<1x1x4x8x128xf32>
    tpu.vector_store %arg13[%c0_184, %c0_185, %c1_186, %c2_187, %c0_188], %136 {strides = array<i32>} : memref<2x2x5x10x128xf32, #tpu.memory_space<vmem>>, vector<1x1x4x8x128xf32>,
    %c0_189 = arith.constant 0 : index
    %c0_190 = arith.constant 0 : index
    %c0_191 = arith.constant 0 : index
    %c0_192 = arith.constant 0 : index
    %c0_193 = arith.constant 0 : index
    %137 = vector.load %arg13[%c0_189, %c0_190, %c0_191, %c0_192, %c0_193] : memref<2x2x5x10x128xf32, #tpu.memory_space<vmem>>, vector<1x1x4x8x128xf32>
    %138 = vector.shape_cast %137 : vector<1x1x4x8x128xf32> to vector<4x8x128xf32>
    %c0_194 = arith.constant 0 : index
    %c0_195 = arith.constant 0 : index
    %c0_196 = arith.constant 0 : index
    %139 = vector.load %arg15[%c0_194, %c0_195, %c0_196] : memref<4x8x2048xf32, #tpu.memory_space<vmem>>, vector<4x8x128xf32>
    tpu.vector_store %arg15[%c0_194, %c0_195, %c0_196], %138 {strides = array<i32>} : memref<4x8x2048xf32, #tpu.memory_space<vmem>>, vector<4x8x128xf32>,
    %c0_197 = arith.constant 0 : index
    %c1_198 = arith.constant 1 : index
    %c0_199 = arith.constant 0 : index
    %c0_200 = arith.constant 0 : index
    %c0_201 = arith.constant 0 : index
    %140 = vector.load %arg13[%c0_197, %c1_198, %c0_199, %c0_200, %c0_201] : memref<2x2x5x10x128xf32, #tpu.memory_space<vmem>>, vector<1x1x4x8x128xf32>
    %141 = vector.shape_cast %140 : vector<1x1x4x8x128xf32> to vector<4x8x128xf32>
    %c0_202 = arith.constant 0 : index
    %c0_203 = arith.constant 0 : index
    %c128_204 = arith.constant 128 : index
    %142 = vector.load %arg15[%c0_202, %c0_203, %c128_204] : memref<4x8x2048xf32, #tpu.memory_space<vmem>>, vector<4x8x128xf32>
    tpu.vector_store %arg15[%c0_202, %c0_203, %c128_204], %141 {strides = array<i32>} : memref<4x8x2048xf32, #tpu.memory_space<vmem>>, vector<4x8x128xf32>,
    %c0_205 = arith.constant 0 : index
    %c0_206 = arith.constant 0 : index
    %c0_207 = arith.constant 0 : index
    %c2_208 = arith.constant 2 : index
    %c0_209 = arith.constant 0 : index
    %143 = vector.load %arg13[%c0_205, %c0_206, %c0_207, %c2_208, %c0_209] : memref<2x2x5x10x128xf32, #tpu.memory_space<vmem>>, vector<1x1x4x8x128xf32>
    %144 = vector.shape_cast %143 : vector<1x1x4x8x128xf32> to vector<4x8x128xf32>
    %c0_210 = arith.constant 0 : index
    %c0_211 = arith.constant 0 : index
    %c256_212 = arith.constant 256 : index
    %145 = vector.load %arg15[%c0_210, %c0_211, %c256_212] : memref<4x8x2048xf32, #tpu.memory_space<vmem>>, vector<4x8x128xf32>
    tpu.vector_store %arg15[%c0_210, %c0_211, %c256_212], %144 {strides = array<i32>} : memref<4x8x2048xf32, #tpu.memory_space<vmem>>, vector<4x8x128xf32>,
    %c0_213 = arith.constant 0 : index
    %c1_214 = arith.constant 1 : index
    %c0_215 = arith.constant 0 : index
    %c2_216 = arith.constant 2 : index
    %c0_217 = arith.constant 0 : index
    %146 = vector.load %arg13[%c0_213, %c1_214, %c0_215, %c2_216, %c0_217] : memref<2x2x5x10x128xf32, #tpu.memory_space<vmem>>, vector<1x1x4x8x128xf32>
    %147 = vector.shape_cast %146 : vector<1x1x4x8x128xf32> to vector<4x8x128xf32>
    %c0_218 = arith.constant 0 : index
    %c0_219 = arith.constant 0 : index
    %c384_220 = arith.constant 384 : index
    %148 = vector.load %arg15[%c0_218, %c0_219, %c384_220] : memref<4x8x2048xf32, #tpu.memory_space<vmem>>, vector<4x8x128xf32>
    tpu.vector_store %arg15[%c0_218, %c0_219, %c384_220], %147 {strides = array<i32>} : memref<4x8x2048xf32, #tpu.memory_space<vmem>>, vector<4x8x128xf32>,
    %c1_221 = arith.constant 1 : index
    %c0_222 = arith.constant 0 : index
    %c0_223 = arith.constant 0 : index
    %c0_224 = arith.constant 0 : index
    %c0_225 = arith.constant 0 : index
    %149 = vector.load %arg13[%c1_221, %c0_222, %c0_223, %c0_224, %c0_225] : memref<2x2x5x10x128xf32, #tpu.memory_space<vmem>>, vector<1x1x4x8x128xf32>
    %150 = vector.shape_cast %149 : vector<1x1x4x8x128xf32> to vector<4x8x128xf32>
    %c0_226 = arith.constant 0 : index
    %c0_227 = arith.constant 0 : index
    %c512_228 = arith.constant 512 : index
    %151 = vector.load %arg15[%c0_226, %c0_227, %c512_228] : memref<4x8x2048xf32, #tpu.memory_space<vmem>>, vector<4x8x128xf32>
    tpu.vector_store %arg15[%c0_226, %c0_227, %c512_228], %150 {strides = array<i32>} : memref<4x8x2048xf32, #tpu.memory_space<vmem>>, vector<4x8x128xf32>,
    %c1_229 = arith.constant 1 : index
    %c1_230 = arith.constant 1 : index
    %c0_231 = arith.constant 0 : index
    %c0_232 = arith.constant 0 : index
    %c0_233 = arith.constant 0 : index
    %152 = vector.load %arg13[%c1_229, %c1_230, %c0_231, %c0_232, %c0_233] : memref<2x2x5x10x128xf32, #tpu.memory_space<vmem>>, vector<1x1x4x8x128xf32>
    %153 = vector.shape_cast %152 : vector<1x1x4x8x128xf32> to vector<4x8x128xf32>
    %c0_234 = arith.constant 0 : index
    %c0_235 = arith.constant 0 : index
    %c640_236 = arith.constant 640 : index
    %154 = vector.load %arg15[%c0_234, %c0_235, %c640_236] : memref<4x8x2048xf32, #tpu.memory_space<vmem>>, vector<4x8x128xf32>
    tpu.vector_store %arg15[%c0_234, %c0_235, %c640_236], %153 {strides = array<i32>} : memref<4x8x2048xf32, #tpu.memory_space<vmem>>, vector<4x8x128xf32>,
    %c1_237 = arith.constant 1 : index
    %c0_238 = arith.constant 0 : index
    %c0_239 = arith.constant 0 : index
    %c2_240 = arith.constant 2 : index
    %c0_241 = arith.constant 0 : index
    %155 = vector.load %arg13[%c1_237, %c0_238, %c0_239, %c2_240, %c0_241] : memref<2x2x5x10x128xf32, #tpu.memory_space<vmem>>, vector<1x1x4x8x128xf32>
    %156 = vector.shape_cast %155 : vector<1x1x4x8x128xf32> to vector<4x8x128xf32>
    %c0_242 = arith.constant 0 : index
    %c0_243 = arith.constant 0 : index
    %c768_244 = arith.constant 768 : index
    %157 = vector.load %arg15[%c0_242, %c0_243, %c768_244] : memref<4x8x2048xf32, #tpu.memory_space<vmem>>, vector<4x8x128xf32>
    tpu.vector_store %arg15[%c0_242, %c0_243, %c768_244], %156 {strides = array<i32>} : memref<4x8x2048xf32, #tpu.memory_space<vmem>>, vector<4x8x128xf32>,
    %c1_245 = arith.constant 1 : index
    %c1_246 = arith.constant 1 : index
    %c0_247 = arith.constant 0 : index
    %c2_248 = arith.constant 2 : index
    %c0_249 = arith.constant 0 : index
    %158 = vector.load %arg13[%c1_245, %c1_246, %c0_247, %c2_248, %c0_249] : memref<2x2x5x10x128xf32, #tpu.memory_space<vmem>>, vector<1x1x4x8x128xf32>
    %159 = vector.shape_cast %158 : vector<1x1x4x8x128xf32> to vector<4x8x128xf32>
    %c0_250 = arith.constant 0 : index
    %c0_251 = arith.constant 0 : index
    %c896_252 = arith.constant 896 : index
    %160 = vector.load %arg15[%c0_250, %c0_251, %c896_252] : memref<4x8x2048xf32, #tpu.memory_space<vmem>>, vector<4x8x128xf32>
    tpu.vector_store %arg15[%c0_250, %c0_251, %c896_252], %159 {strides = array<i32>} : memref<4x8x2048xf32, #tpu.memory_space<vmem>>, vector<4x8x128xf32>,
    %c0_253 = arith.constant 0 : index
    %c0_254 = arith.constant 0 : index
    %c1_255 = arith.constant 1 : index
    %c0_256 = arith.constant 0 : index
    %c0_257 = arith.constant 0 : index
    %161 = vector.load %arg13[%c0_253, %c0_254, %c1_255, %c0_256, %c0_257] : memref<2x2x5x10x128xf32, #tpu.memory_space<vmem>>, vector<1x1x4x8x128xf32>
    %162 = vector.shape_cast %161 : vector<1x1x4x8x128xf32> to vector<4x8x128xf32>
    %c0_258 = arith.constant 0 : index
    %c0_259 = arith.constant 0 : index
    %c1024 = arith.constant 1024 : index
    %163 = vector.load %arg15[%c0_258, %c0_259, %c1024] : memref<4x8x2048xf32, #tpu.memory_space<vmem>>, vector<4x8x128xf32>
    tpu.vector_store %arg15[%c0_258, %c0_259, %c1024], %162 {strides = array<i32>} : memref<4x8x2048xf32, #tpu.memory_space<vmem>>, vector<4x8x128xf32>,
    %c0_260 = arith.constant 0 : index
    %c1_261 = arith.constant 1 : index
    %c1_262 = arith.constant 1 : index
    %c0_263 = arith.constant 0 : index
    %c0_264 = arith.constant 0 : index
    %164 = vector.load %arg13[%c0_260, %c1_261, %c1_262, %c0_263, %c0_264] : memref<2x2x5x10x128xf32, #tpu.memory_space<vmem>>, vector<1x1x4x8x128xf32>
    %165 = vector.shape_cast %164 : vector<1x1x4x8x128xf32> to vector<4x8x128xf32>
    %c0_265 = arith.constant 0 : index
    %c0_266 = arith.constant 0 : index
    %c1152 = arith.constant 1152 : index
    %166 = vector.load %arg15[%c0_265, %c0_266, %c1152] : memref<4x8x2048xf32, #tpu.memory_space<vmem>>, vector<4x8x128xf32>
    tpu.vector_store %arg15[%c0_265, %c0_266, %c1152], %165 {strides = array<i32>} : memref<4x8x2048xf32, #tpu.memory_space<vmem>>, vector<4x8x128xf32>,
    %c0_267 = arith.constant 0 : index
    %c0_268 = arith.constant 0 : index
    %c1_269 = arith.constant 1 : index
    %c2_270 = arith.constant 2 : index
    %c0_271 = arith.constant 0 : index
    %167 = vector.load %arg13[%c0_267, %c0_268, %c1_269, %c2_270, %c0_271] : memref<2x2x5x10x128xf32, #tpu.memory_space<vmem>>, vector<1x1x4x8x128xf32>
    %168 = vector.shape_cast %167 : vector<1x1x4x8x128xf32> to vector<4x8x128xf32>
    %c0_272 = arith.constant 0 : index
    %c0_273 = arith.constant 0 : index
    %c1280 = arith.constant 1280 : index
    %169 = vector.load %arg15[%c0_272, %c0_273, %c1280] : memref<4x8x2048xf32, #tpu.memory_space<vmem>>, vector<4x8x128xf32>
    tpu.vector_store %arg15[%c0_272, %c0_273, %c1280], %168 {strides = array<i32>} : memref<4x8x2048xf32, #tpu.memory_space<vmem>>, vector<4x8x128xf32>,
    %c0_274 = arith.constant 0 : index
    %c1_275 = arith.constant 1 : index
    %c1_276 = arith.constant 1 : index
    %c2_277 = arith.constant 2 : index
    %c0_278 = arith.constant 0 : index
    %170 = vector.load %arg13[%c0_274, %c1_275, %c1_276, %c2_277, %c0_278] : memref<2x2x5x10x128xf32, #tpu.memory_space<vmem>>, vector<1x1x4x8x128xf32>
    %171 = vector.shape_cast %170 : vector<1x1x4x8x128xf32> to vector<4x8x128xf32>
    %c0_279 = arith.constant 0 : index
    %c0_280 = arith.constant 0 : index
    %c1408 = arith.constant 1408 : index
    %172 = vector.load %arg15[%c0_279, %c0_280, %c1408] : memref<4x8x2048xf32, #tpu.memory_space<vmem>>, vector<4x8x128xf32>
    tpu.vector_store %arg15[%c0_279, %c0_280, %c1408], %171 {strides = array<i32>} : memref<4x8x2048xf32, #tpu.memory_space<vmem>>, vector<4x8x128xf32>,
    %c1_281 = arith.constant 1 : index
    %c0_282 = arith.constant 0 : index
    %c1_283 = arith.constant 1 : index
    %c0_284 = arith.constant 0 : index
    %c0_285 = arith.constant 0 : index
    %173 = vector.load %arg13[%c1_281, %c0_282, %c1_283, %c0_284, %c0_285] : memref<2x2x5x10x128xf32, #tpu.memory_space<vmem>>, vector<1x1x4x8x128xf32>
    %174 = vector.shape_cast %173 : vector<1x1x4x8x128xf32> to vector<4x8x128xf32>
    %c0_286 = arith.constant 0 : index
    %c0_287 = arith.constant 0 : index
    %c1536 = arith.constant 1536 : index
    %175 = vector.load %arg15[%c0_286, %c0_287, %c1536] : memref<4x8x2048xf32, #tpu.memory_space<vmem>>, vector<4x8x128xf32>
    tpu.vector_store %arg15[%c0_286, %c0_287, %c1536], %174 {strides = array<i32>} : memref<4x8x2048xf32, #tpu.memory_space<vmem>>, vector<4x8x128xf32>,
    %c1_288 = arith.constant 1 : index
    %c1_289 = arith.constant 1 : index
    %c1_290 = arith.constant 1 : index
    %c0_291 = arith.constant 0 : index
    %c0_292 = arith.constant 0 : index
    %176 = vector.load %arg13[%c1_288, %c1_289, %c1_290, %c0_291, %c0_292] : memref<2x2x5x10x128xf32, #tpu.memory_space<vmem>>, vector<1x1x4x8x128xf32>
    %177 = vector.shape_cast %176 : vector<1x1x4x8x128xf32> to vector<4x8x128xf32>
    %c0_293 = arith.constant 0 : index
    %c0_294 = arith.constant 0 : index
    %c1664 = arith.constant 1664 : index
    %178 = vector.load %arg15[%c0_293, %c0_294, %c1664] : memref<4x8x2048xf32, #tpu.memory_space<vmem>>, vector<4x8x128xf32>
    tpu.vector_store %arg15[%c0_293, %c0_294, %c1664], %177 {strides = array<i32>} : memref<4x8x2048xf32, #tpu.memory_space<vmem>>, vector<4x8x128xf32>,
    %c1_295 = arith.constant 1 : index
    %c0_296 = arith.constant 0 : index
    %c1_297 = arith.constant 1 : index
    %c2_298 = arith.constant 2 : index
    %c0_299 = arith.constant 0 : index
    %179 = vector.load %arg13[%c1_295, %c0_296, %c1_297, %c2_298, %c0_299] : memref<2x2x5x10x128xf32, #tpu.memory_space<vmem>>, vector<1x1x4x8x128xf32>
    %180 = vector.shape_cast %179 : vector<1x1x4x8x128xf32> to vector<4x8x128xf32>
    %c0_300 = arith.constant 0 : index
    %c0_301 = arith.constant 0 : index
    %c1792 = arith.constant 1792 : index
    %181 = vector.load %arg15[%c0_300, %c0_301, %c1792] : memref<4x8x2048xf32, #tpu.memory_space<vmem>>, vector<4x8x128xf32>
    tpu.vector_store %arg15[%c0_300, %c0_301, %c1792], %180 {strides = array<i32>} : memref<4x8x2048xf32, #tpu.memory_space<vmem>>, vector<4x8x128xf32>,
    %c1_302 = arith.constant 1 : index
    %c1_303 = arith.constant 1 : index
    %c1_304 = arith.constant 1 : index
    %c2_305 = arith.constant 2 : index
    %c0_306 = arith.constant 0 : index
    %182 = vector.load %arg13[%c1_302, %c1_303, %c1_304, %c2_305, %c0_306] : memref<2x2x5x10x128xf32, #tpu.memory_space<vmem>>, vector<1x1x4x8x128xf32>
    %183 = vector.shape_cast %182 : vector<1x1x4x8x128xf32> to vector<4x8x128xf32>
    %c0_307 = arith.constant 0 : index
    %c0_308 = arith.constant 0 : index
    %c1920 = arith.constant 1920 : index
    %184 = vector.load %arg15[%c0_307, %c0_308, %c1920] : memref<4x8x2048xf32, #tpu.memory_space<vmem>>, vector<4x8x128xf32>
    tpu.vector_store %arg15[%c0_307, %c0_308, %c1920], %183 {strides = array<i32>} : memref<4x8x2048xf32, #tpu.memory_space<vmem>>, vector<4x8x128xf32>,
    %c0_309 = arith.constant 0 : index
    %c0_310 = arith.constant 0 : index
    %c0_311 = arith.constant 0 : index
    %185 = vector.load %arg15[%c0_309, %c0_310, %c0_311] : memref<4x8x2048xf32, #tpu.memory_space<vmem>>, vector<4x8x2048xf32>
    %186 = vector.shape_cast %185 : vector<4x8x2048xf32> to vector<32x2048xf32>
    %187 = arith.truncf %186 : vector<32x2048xf32> to vector<32x2048xbf16>
    %c0_312 = arith.constant 0 : index
    %c0_313 = arith.constant 0 : index
    %188 = vector.load %arg5[%c0_312, %c0_313] : memref<2048x256xbf16, #tpu.memory_space<vmem>>, vector<2048x256xbf16>
    %cst_314 = arith.constant dense<0.000000e+00> : vector<32x256xf32>
    %189 = tpu.matmul %187, %188, %cst_314 {dimension_numbers = #tpu.dot_dimension_numbers<[1], [0], [0], [1], [0, 0, 1, 1], [], []>} : vector<32x2048xbf16>, vector<2048x256xbf16>, vector<32x256xf32> -> vector<32x256xf32>
    %c0_315 = arith.constant 0 : index
    %c0_316 = arith.constant 0 : index
    %190 = vector.load %arg6[%c0_315, %c0_316] : memref<1x256xf32, #tpu.memory_space<vmem>>, vector<1x256xf32>
    %c0_317 = arith.constant 0 : index
    %c0_318 = arith.constant 0 : index
    %191 = vector.load %arg7[%c0_317, %c0_318] : memref<1x256xf32, #tpu.memory_space<vmem>>, vector<1x256xf32>
    %cst_319 = arith.constant dense<0.000000e+00> : vector<256xf32>
    %192 = vector.multi_reduction <add>, %189, %cst_319 [0] : vector<32x256xf32> to vector<256xf32>
    %193 = vector.shape_cast %192 : vector<256xf32> to vector<1x256xf32>
    %cst_320 = arith.constant 3.125000e-02 : f32
    %194 = vector.broadcast %cst_320 : f32 to vector<1x256xf32>
    %195 = arith.mulf %193, %194 : vector<1x256xf32>
    %196 = arith.mulf %189, %189 : vector<32x256xf32>
    %cst_321 = arith.constant dense<0.000000e+00> : vector<256xf32>
    %197 = vector.multi_reduction <add>, %196, %cst_321 [0] : vector<32x256xf32> to vector<256xf32>
    %198 = vector.shape_cast %197 : vector<256xf32> to vector<1x256xf32>
    %cst_322 = arith.constant 3.125000e-02 : f32
    %199 = vector.broadcast %cst_322 : f32 to vector<1x256xf32>
    %200 = arith.mulf %198, %199 : vector<1x256xf32>
    %201 = arith.mulf %195, %195 : vector<1x256xf32>
    %202 = arith.subf %200, %201 : vector<1x256xf32>
    %cst_323 = arith.constant 0.000000e+00 : f32
    %203 = vector.broadcast %cst_323 : f32 to vector<1x256xf32>
    %204 = arith.maximumf %202, %203 : vector<1x256xf32>
    %cst_324 = arith.constant 9.99999974E-6 : f32
    %205 = vector.broadcast %cst_324 : f32 to vector<1x256xf32>
    %206 = arith.addf %204, %205 : vector<1x256xf32>
    %207 = math.rsqrt %206 : vector<1x256xf32>
    %208 = arith.mulf %207, %190 : vector<1x256xf32>
    %209 = arith.mulf %195, %208 : vector<1x256xf32>
    %210 = arith.subf %191, %209 : vector<1x256xf32>
    %211 = vector.broadcast %208 : vector<1x256xf32> to vector<32x256xf32>
    %212 = arith.mulf %189, %211 : vector<32x256xf32>
    %213 = vector.broadcast %210 : vector<1x256xf32> to vector<32x256xf32>
    %214 = arith.addf %212, %213 : vector<32x256xf32>
    %cst_325 = arith.constant 0.000000e+00 : f32
    %215 = vector.broadcast %cst_325 : f32 to vector<32x256xf32>
    %216 = arith.cmpf ogt, %214, %215 : vector<32x256xf32>
    %cst_326 = arith.constant 5.000000e-02 : f32
    %217 = vector.broadcast %cst_326 : f32 to vector<32x256xf32>
    %218 = arith.mulf %217, %214 : vector<32x256xf32>
    %219 = arith.select %216, %214, %218 : vector<32x256xi1>, vector<32x256xf32>
    %c0_327 = arith.constant 0 : index
    %c0_328 = arith.constant 0 : index
    %220 = vector.load %arg9[%c0_327, %c0_328] : memref<32x256xf32, #tpu.memory_space<vmem>>, vector<32x256xf32>
    %221 = arith.mulf %219, %220 : vector<32x256xf32>
    %c0_329 = arith.constant 0 : index
    %c0_330 = arith.constant 0 : index
    %222 = vector.load %arg10[%c0_329, %c0_330] : memref<2x32xf32, #tpu.memory_space<vmem>>, vector<2x32xf32>
    %cst_331 = arith.constant dense<0.000000e+00> : vector<2x256xf32>
    %223 = tpu.matmul %222, %221, %cst_331 {dimension_numbers = #tpu.dot_dimension_numbers<[1], [0], [0], [1], [0, 0, 1, 1], [], []>} : vector<2x32xf32>, vector<32x256xf32>, vector<2x256xf32> -> vector<2x256xf32>
    %cst_332 = arith.constant dense<0.000000e+00> : vector<2xf32>
    %224 = vector.multi_reduction <add>, %223, %cst_332 [1] : vector<2x256xf32> to vector<2xf32>
    %225 = vector.shape_cast %224 : vector<2xf32> to vector<2x1xf32>
    %c0_333 = arith.constant 0 : index
    %c0_334 = arith.constant 0 : index
    %226 = vector.load %arg11[%c0_333, %c0_334] : memref<2x1xf32, #tpu.memory_space<vmem>>, vector<2x1xf32>
    tpu.vector_store %arg11[%c0_333, %c0_334], %225 {strides = array<i32>} : memref<2x1xf32, #tpu.memory_space<vmem>>, vector<2x1xf32>,
    return
  }
}

</mosaic_0001>

<llo_original>
// kernel: d2_forward.1
$region0: #{d2_forward.1}
  #allocation0 [shape = 'u32[]', space=smem, size = 0x4, offset = 0x4, fixed_abs, tag = 'smem constant byte address 0x4 - core index']
  #allocation1 [shape = 'u32[144,128]{1,0:T(1,128)}', space=vmem, size = 0x12000, scoped, tag = 'internal scratch']
  #allocation2 [shape = 'f32[2,2,9,18,64]{4,3,2,1,0:T(8,128)}', space=vmem, size = 0x6c000, scoped, tag = 'scratch operand']
  #allocation3 [shape = 'f32[2,2,5,10,128]{4,3,2,1,0:T(8,128)}', space=vmem, size = 0x28000, scoped, tag = 'scratch operand']
  #allocation4 [shape = 'f32[8,16,1024]{2,1,0:T(8,128)}', space=vmem, size = 0x80000, scoped, tag = 'scratch operand']
  #allocation5 [shape = 'f32[4,8,2048]{2,1,0:T(8,128)}', space=vmem, size = 0x40000, scoped, tag = 'scratch operand']
  %s0 = inlined_call_operand.vmem [shape: bf16[512,128], index: 0, kind: input, shape index: {}]
  %s1 = inlined_call_operand.vmem [shape: bf16[128,64], index: 1, kind: input, shape index: {}]
  %s2 = inlined_call_operand.vmem [shape: bf16[1024,128], index: 2, kind: input, shape index: {}]
  %s3 = inlined_call_operand.vmem [shape: f32[1,128], index: 3, kind: input, shape index: {}]
  %s4 = inlined_call_operand.vmem [shape: f32[1,128], index: 4, kind: input, shape index: {}]
  %s5 = inlined_call_operand.vmem [shape: bf16[2048,256], index: 5, kind: input, shape index: {}]
  %s6 = inlined_call_operand.vmem [shape: f32[1,256], index: 6, kind: input, shape index: {}]
  %s7 = inlined_call_operand.vmem [shape: f32[1,256], index: 7, kind: input, shape index: {}]
  %s8 = inlined_call_operand.vmem [shape: f32[128,128], index: 8, kind: input, shape index: {}]
  %s9 = inlined_call_operand.vmem [shape: f32[32,256], index: 9, kind: input, shape index: {}]
  %s10 = inlined_call_operand.vmem [shape: f32[2,32], index: 10, kind: input, shape index: {}]
  %s11 = inlined_call_operand.vmem [shape: f32[2,1], index: 11, kind: output, shape index: {}]
  %s12 = sld [smem:[#allocation0]]
  $region54: #{d2_forward.1} parent=0
    _
  %s14 = ssub.s32 1, %s12
  %s15 = scalar_select 0, %s14, %s12
  // Predicated region
  $region2: #{d2_forward.1} parent=0 // pred_check
    _
  $region3: #{d2_forward.1} parent=0 // pred_check_branch
    %17 = sbr.rel (0) target = $region5
  $region4: #{d2_forward.1} parent=0 // pred_region
    _
  $region5: #{d2_forward.1} parent=0 // pred_fallthru
    _
  // Predicated region
  $region6: #{d2_forward.1} parent=0 // pred_check
    _
  $region7: #{d2_forward.1} parent=0 // pred_check_branch
    %19 = sbr.rel (0) target = $region9
  $region8: #{d2_forward.1} parent=0 // pred_region
    _
  $region9: #{d2_forward.1} parent=0 // pred_fallthru
    _
  // Predicated region
  $region10: #{d2_forward.1} parent=0 // pred_check
    _
  $region11: #{d2_forward.1} parent=0 // pred_check_branch
    %21 = sbr.rel (0) target = $region13
  $region12: #{d2_forward.1} parent=0 // pred_region
    _
  $region13: #{d2_forward.1} parent=0 // pred_fallthru
    _
  // Predicated region
  $region14: #{d2_forward.1} parent=0 // pred_check
    _
  $region15: #{d2_forward.1} parent=0 // pred_check_branch
    %23 = sbr.rel (0) target = $region17
  $region16: #{d2_forward.1} parent=0 // pred_region
    _
  $region17: #{d2_forward.1} parent=0 // pred_fallthru
    _
  // Predicated region
  $region18: #{d2_forward.1} parent=0 // pred_check
    _
  $region19: #{d2_forward.1} parent=0 // pred_check_branch
    %25 = sbr.rel (0) target = $region21
  $region20: #{d2_forward.1} parent=0 // pred_region
    _
  $region21: #{d2_forward.1} parent=0 // pred_fallthru
    _
  // Predicated region
  $region22: #{d2_forward.1} parent=0 // pred_check
    _
  $region23: #{d2_forward.1} parent=0 // pred_check_branch
    %27 = sbr.rel (0) target = $region25
  $region24: #{d2_forward.1} parent=0 // pred_region
    _
  $region25: #{d2_forward.1} parent=0 // pred_fallthru
    _
  // Predicated region
  $region26: #{d2_forward.1} parent=0 // pred_check
    _
  $region27: #{d2_forward.1} parent=0 // pred_check_branch
    %29 = sbr.rel (0) target = $region29
  $region28: #{d2_forward.1} parent=0 // pred_region
    _
  $region29: #{d2_forward.1} parent=0 // pred_fallthru
    _
  // Predicated region
  $region30: #{d2_forward.1} parent=0 // pred_check
    _
  $region31: #{d2_forward.1} parent=0 // pred_check_branch
    %31 = sbr.rel (0) target = $region33
  $region32: #{d2_forward.1} parent=0 // pred_region
    _
  $region33: #{d2_forward.1} parent=0 // pred_fallthru
    _
  // Predicated region
  $region34: #{d2_forward.1} parent=0 // pred_check
    _
  $region35: #{d2_forward.1} parent=0 // pred_check_branch
    %33 = sbr.rel (0) target = $region37
  $region36: #{d2_forward.1} parent=0 // pred_region
    _
  $region37: #{d2_forward.1} parent=0 // pred_fallthru
    _
  // Predicated region
  $region38: #{d2_forward.1} parent=0 // pred_check
    _
  $region39: #{d2_forward.1} parent=0 // pred_check_branch
    %35 = sbr.rel (0) target = $region41
  $region40: #{d2_forward.1} parent=0 // pred_region
    _
  $region41: #{d2_forward.1} parent=0 // pred_fallthru
    _
  // Predicated region
  $region42: #{d2_forward.1} parent=0 // pred_check
    _
  $region43: #{d2_forward.1} parent=0 // pred_check_branch
    %37 = sbr.rel (0) target = $region45
  $region44: #{d2_forward.1} parent=0 // pred_region
    _
  $region45: #{d2_forward.1} parent=0 // pred_fallthru
    _
  %vm39 = vcmask 523264
  %40 = vst.msk [vmem:[#allocation2] sm:$0xff] %vm39, 0.0
  %41 = vst.msk [vmem:[#allocation2 + $0x8] sm:$0xff] %vm39, 0.0
  %vm42 = vcmask 517120
  %43 = vst.msk [vmem:[#allocation2 + $0x10] sm:$0x3] %vm42, 0.0
  %44 = vst.msk [vmem:[#allocation2 + $0x18] sm:$0xff] %vm39, 0.0
  %45 = vst.msk [vmem:[#allocation2 + $0x20] sm:$0xff] %vm39, 0.0
  %46 = vst.msk [vmem:[#allocation2 + $0x28] sm:$0x3] %vm42, 0.0
  %47 = vst.msk [vmem:[#allocation2 + $0x30] sm:$0xff] %vm39, 0.0
  %48 = vst.msk [vmem:[#allocation2 + $0x38] sm:$0xff] %vm39, 0.0
  %49 = vst.msk [vmem:[#allocation2 + $0x40] sm:$0x3] %vm42, 0.0
  %50 = vst.msk [vmem:[#allocation2 + $0x48] sm:$0xff] %vm39, 0.0
  %51 = vst.msk [vmem:[#allocation2 + $0x50] sm:$0xff] %vm39, 0.0
  %52 = vst.msk [vmem:[#allocation2 + $0x58] sm:$0x3] %vm42, 0.0
  %53 = vst.msk [vmem:[#allocation2 + $0x60] sm:$0xff] %vm39, 0.0
  %54 = vst.msk [vmem:[#allocation2 + $0x68] sm:$0xff] %vm39, 0.0
  %55 = vst.msk [vmem:[#allocation2 + $0x70] sm:$0x3] %vm42, 0.0
  %56 = vst.msk [vmem:[#allocation2 + $0x78] sm:$0xff] %vm39, 0.0
  %57 = vst.msk [vmem:[#allocation2 + $0x80] sm:$0xff] %vm39, 0.0
  %58 = vst.msk [vmem:[#allocation2 + $0x88] sm:$0x3] %vm42, 0.0
  %59 = vst.msk [vmem:[#allocation2 + $0x90] sm:$0xff] %vm39, 0.0
  %60 = vst.msk [vmem:[#allocation2 + $0x98] sm:$0xff] %vm39, 0.0
  %61 = vst.msk [vmem:[#allocation2 + $0xa0] sm:$0x3] %vm42, 0.0
  %62 = vst.msk [vmem:[#allocation2 + $0xa8] sm:$0xff] %vm39, 0.0
  %63 = vst.msk [vmem:[#allocation2 + $0xb0] sm:$0xff] %vm39, 0.0
  %64 = vst.msk [vmem:[#allocation2 + $0xb8] sm:$0x3] %vm42, 0.0
  %65 = vst.msk [vmem:[#allocation2 + $0xc0] sm:$0xff] %vm39, 0.0
  %66 = vst.msk [vmem:[#allocation2 + $0xc8] sm:$0xff] %vm39, 0.0
  %67 = vst.msk [vmem:[#allocation2 + $0xd0] sm:$0x3] %vm42, 0.0
  %68 = vst.msk [vmem:[#allocation2 + $0xd8] sm:$0xff] %vm39, 0.0
  %69 = vst.msk [vmem:[#allocation2 + $0xe0] sm:$0xff] %vm39, 0.0
  %70 = vst.msk [vmem:[#allocation2 + $0xe8] sm:$0x3] %vm42, 0.0
  %71 = vst.msk [vmem:[#allocation2 + $0xf0] sm:$0xff] %vm39, 0.0
  %72 = vst.msk [vmem:[#allocation2 + $0xf8] sm:$0xff] %vm39, 0.0
  %73 = vst.msk [vmem:[#allocation2 + $0x100] sm:$0x3] %vm42, 0.0
  %74 = vst.msk [vmem:[#allocation2 + $0x108] sm:$0xff] %vm39, 0.0
  %75 = vst.msk [vmem:[#allocation2 + $0x110] sm:$0xff] %vm39, 0.0
  %76 = vst.msk [vmem:[#allocation2 + $0x118] sm:$0x3] %vm42, 0.0
  %77 = vst.msk [vmem:[#allocation2 + $0x120] sm:$0xff] %vm39, 0.0
  %78 = vst.msk [vmem:[#allocation2 + $0x128] sm:$0xff] %vm39, 0.0
  %79 = vst.msk [vmem:[#allocation2 + $0x130] sm:$0x3] %vm42, 0.0
  %80 = vst.msk [vmem:[#allocation2 + $0x138] sm:$0xff] %vm39, 0.0
  %81 = vst.msk [vmem:[#allocation2 + $0x140] sm:$0xff] %vm39, 0.0
  %82 = vst.msk [vmem:[#allocation2 + $0x148] sm:$0x3] %vm42, 0.0
  %83 = vst.msk [vmem:[#allocation2 + $0x150] sm:$0xff] %vm39, 0.0
  %84 = vst.msk [vmem:[#allocation2 + $0x158] sm:$0xff] %vm39, 0.0
  %85 = vst.msk [vmem:[#allocation2 + $0x160] sm:$0x3] %vm42, 0.0
  %86 = vst.msk [vmem:[#allocation2 + $0x168] sm:$0xff] %vm39, 0.0
  %87 = vst.msk [vmem:[#allocation2 + $0x170] sm:$0xff] %vm39, 0.0
  %88 = vst.msk [vmem:[#allocation2 + $0x178] sm:$0x3] %vm42, 0.0
  %89 = vst.msk [vmem:[#allocation2 + $0x180] sm:$0xff] %vm39, 0.0
  %90 = vst.msk [vmem:[#allocation2 + $0x188] sm:$0xff] %vm39, 0.0
  %91 = vst.msk [vmem:[#allocation2 + $0x190] sm:$0x3] %vm42, 0.0
  %92 = vst.msk [vmem:[#allocation2 + $0x198] sm:$0xff] %vm39, 0.0
  %93 = vst.msk [vmem:[#allocation2 + $0x1a0] sm:$0xff] %vm39, 0.0
  %94 = vst.msk [vmem:[#allocation2 + $0x1a8] sm:$0x3] %vm42, 0.0
  %95 = vst.msk [vmem:[#allocation2 + $0x1b0] sm:$0xff] %vm39, 0.0
  %96 = vst.msk [vmem:[#allocation2 + $0x1b8] sm:$0xff] %vm39, 0.0
  %97 = vst.msk [vmem:[#allocation2 + $0x1c0] sm:$0x3] %vm42, 0.0
  %98 = vst.msk [vmem:[#allocation2 + $0x1c8] sm:$0xff] %vm39, 0.0
  %99 = vst.msk [vmem:[#allocation2 + $0x1d0] sm:$0xff] %vm39, 0.0
  %100 = vst.msk [vmem:[#allocation2 + $0x1d8] sm:$0x3] %vm42, 0.0
  %101 = vst.msk [vmem:[#allocation2 + $0x1e0] sm:$0xff] %vm39, 0.0
  %102 = vst.msk [vmem:[#allocation2 + $0x1e8] sm:$0xff] %vm39, 0.0
  %103 = vst.msk [vmem:[#allocation2 + $0x1f0] sm:$0x3] %vm42, 0.0
  %104 = vst.msk [vmem:[#allocation2 + $0x1f8] sm:$0xff] %vm39, 0.0
  %105 = vst.msk [vmem:[#allocation2 + $0x200] sm:$0xff] %vm39, 0.0
  %106 = vst.msk [vmem:[#allocation2 + $0x208] sm:$0x3] %vm42, 0.0
  %107 = vst.msk [vmem:[#allocation2 + $0x210] sm:$0xff] %vm39, 0.0
  %108 = vst.msk [vmem:[#allocation2 + $0x218] sm:$0xff] %vm39, 0.0
  %109 = vst.msk [vmem:[#allocation2 + $0x220] sm:$0x3] %vm42, 0.0
  %110 = vst.msk [vmem:[#allocation2 + $0x228] sm:$0xff] %vm39, 0.0
  %111 = vst.msk [vmem:[#allocation2 + $0x230] sm:$0xff] %vm39, 0.0
  %112 = vst.msk [vmem:[#allocation2 + $0x238] sm:$0x3] %vm42, 0.0
  %113 = vst.msk [vmem:[#allocation2 + $0x240] sm:$0xff] %vm39, 0.0
  %114 = vst.msk [vmem:[#allocation2 + $0x248] sm:$0xff] %vm39, 0.0
  %115 = vst.msk [vmem:[#allocation2 + $0x250] sm:$0x3] %vm42, 0.0
  %116 = vst.msk [vmem:[#allocation2 + $0x258] sm:$0xff] %vm39, 0.0
  %117 = vst.msk [vmem:[#allocation2 + $0x260] sm:$0xff] %vm39, 0.0
  %118 = vst.msk [vmem:[#allocation2 + $0x268] sm:$0x3] %vm42, 0.0
  %119 = vst.msk [vmem:[#allocation2 + $0x270] sm:$0xff] %vm39, 0.0
  %120 = vst.msk [vmem:[#allocation2 + $0x278] sm:$0xff] %vm39, 0.0
  %121 = vst.msk [vmem:[#allocation2 + $0x280] sm:$0x3] %vm42, 0.0
  %122 = vst.msk [vmem:[#allocation2 + $0x288] sm:$0xff] %vm39, 0.0
  %123 = vst.msk [vmem:[#allocation2 + $0x290] sm:$0xff] %vm39, 0.0
  %124 = vst.msk [vmem:[#allocation2 + $0x298] sm:$0x3] %vm42, 0.0
  %125 = vst.msk [vmem:[#allocation2 + $0x2a0] sm:$0xff] %vm39, 0.0
  %126 = vst.msk [vmem:[#allocation2 + $0x2a8] sm:$0xff] %vm39, 0.0
  %127 = vst.msk [vmem:[#allocation2 + $0x2b0] sm:$0x3] %vm42, 0.0
  %128 = vst.msk [vmem:[#allocation2 + $0x2b8] sm:$0xff] %vm39, 0.0
  %129 = vst.msk [vmem:[#allocation2 + $0x2c0] sm:$0xff] %vm39, 0.0
  %130 = vst.msk [vmem:[#allocation2 + $0x2c8] sm:$0x3] %vm42, 0.0
  %131 = vst.msk [vmem:[#allocation2 + $0x2d0] sm:$0xff] %vm39, 0.0
  %132 = vst.msk [vmem:[#allocation2 + $0x2d8] sm:$0xff] %vm39, 0.0
  %133 = vst.msk [vmem:[#allocation2 + $0x2e0] sm:$0x3] %vm42, 0.0
  %134 = vst.msk [vmem:[#allocation2 + $0x2e8] sm:$0xff] %vm39, 0.0
  %135 = vst.msk [vmem:[#allocation2 + $0x2f0] sm:$0xff] %vm39, 0.0
  %136 = vst.msk [vmem:[#allocation2 + $0x2f8] sm:$0x3] %vm42, 0.0
  %137 = vst.msk [vmem:[#allocation2 + $0x300] sm:$0xff] %vm39, 0.0
  %138 = vst.msk [vmem:[#allocation2 + $0x308] sm:$0xff] %vm39, 0.0
  %139 = vst.msk [vmem:[#allocation2 + $0x310] sm:$0x3] %vm42, 0.0
  %140 = vst.msk [vmem:[#allocation2 + $0x318] sm:$0xff] %vm39, 0.0
  %141 = vst.msk [vmem:[#allocation2 + $0x320] sm:$0xff] %vm39, 0.0
  %142 = vst.msk [vmem:[#allocation2 + $0x328] sm:$0x3] %vm42, 0.0
  %143 = vst.msk [vmem:[#allocation2 + $0x330] sm:$0xff] %vm39, 0.0
  %144 = vst.msk [vmem:[#allocation2 + $0x338] sm:$0xff] %vm39, 0.0
  %145 = vst.msk [vmem:[#allocation2 + $0x340] sm:$0x3] %vm42, 0.0
  %146 = vst.msk [vmem:[#allocation2 + $0x348] sm:$0xff] %vm39, 0.0
  %147 = vst.msk [vmem:[#allocation2 + $0x350] sm:$0xff] %vm39, 0.0
  %148 = vst.msk [vmem:[#allocation2 + $0x358] sm:$0x3] %vm42, 0.0
  %149 = vst [vmem:[#allocation3] sm:$0xff] 0.0
  %150 = vst [vmem:[#allocation3 + $0x8] sm:$0x3] 0.0
  %151 = vst [vmem:[#allocation3 + $0x10] sm:$0xff] 0.0
  %152 = vst [vmem:[#allocation3 + $0x18] sm:$0x3] 0.0
  %153 = vst [vmem:[#allocation3 + $0x20] sm:$0xff] 0.0
  %154 = vst [vmem:[#allocation3 + $0x28] sm:$0x3] 0.0
  %155 = vst [vmem:[#allocation3 + $0x30] sm:$0xff] 0.0
  %156 = vst [vmem:[#allocation3 + $0x38] sm:$0x3] 0.0
  %157 = vst [vmem:[#allocation3 + $0x40] sm:$0xff] 0.0
  %158 = vst [vmem:[#allocation3 + $0x48] sm:$0x3] 0.0
  %159 = vst [vmem:[#allocation3 + $0x50] sm:$0xff] 0.0
  %160 = vst [vmem:[#allocation3 + $0x58] sm:$0x3] 0.0
  %161 = vst [vmem:[#allocation3 + $0x60] sm:$0xff] 0.0
  %162 = vst [vmem:[#allocation3 + $0x68] sm:$0x3] 0.0
  %163 = vst [vmem:[#allocation3 + $0x70] sm:$0xff] 0.0
  %164 = vst [vmem:[#allocation3 + $0x78] sm:$0x3] 0.0
  %165 = vst [vmem:[#allocation3 + $0x80] sm:$0xff] 0.0
  %166 = vst [vmem:[#allocation3 + $0x88] sm:$0x3] 0.0
  %167 = vst [vmem:[#allocation3 + $0x90] sm:$0xff] 0.0
  %168 = vst [vmem:[#allocation3 + $0x98] sm:$0x3] 0.0
  %169 = vst [vmem:[#allocation3 + $0xa0] sm:$0xff] 0.0
  %170 = vst [vmem:[#allocation3 + $0xa8] sm:$0x3] 0.0
  %171 = vst [vmem:[#allocation3 + $0xb0] sm:$0xff] 0.0
  %172 = vst [vmem:[#allocation3 + $0xb8] sm:$0x3] 0.0
  %173 = vst [vmem:[#allocation3 + $0xc0] sm:$0xff] 0.0
  %174 = vst [vmem:[#allocation3 + $0xc8] sm:$0x3] 0.0
  %175 = vst [vmem:[#allocation3 + $0xd0] sm:$0xff] 0.0
  %176 = vst [vmem:[#allocation3 + $0xd8] sm:$0x3] 0.0
  %177 = vst [vmem:[#allocation3 + $0xe0] sm:$0xff] 0.0
  %178 = vst [vmem:[#allocation3 + $0xe8] sm:$0x3] 0.0
  %179 = vst [vmem:[#allocation3 + $0xf0] sm:$0xff] 0.0
  %180 = vst [vmem:[#allocation3 + $0xf8] sm:$0x3] 0.0
  %181 = vst [vmem:[#allocation3 + $0x100] sm:$0xff] 0.0
  %182 = vst [vmem:[#allocation3 + $0x108] sm:$0x3] 0.0
  %183 = vst [vmem:[#allocation3 + $0x110] sm:$0xff] 0.0
  %184 = vst [vmem:[#allocation3 + $0x118] sm:$0x3] 0.0
  %185 = vst [vmem:[#allocation3 + $0x120] sm:$0xff] 0.0
  %186 = vst [vmem:[#allocation3 + $0x128] sm:$0x3] 0.0
  %187 = vst [vmem:[#allocation3 + $0x130] sm:$0xff] 0.0
  %188 = vst [vmem:[#allocation3 + $0x138] sm:$0x3] 0.0
  %v189 = vld [vmem:[%s0] sm:$0xf]
  %v190 = vld [vmem:[%s0 + $0x4] sm:$0xf]
  %v191 = vld [vmem:[%s0 + $0x8] sm:$0xf]
  %v192 = vld [vmem:[%s0 + $0xc] sm:$0xf]
  %v193 = vld [vmem:[%s0 + $0x10] sm:$0xf]
  %v194 = vld [vmem:[%s0 + $0x14] sm:$0xf]
  %v195 = vld [vmem:[%s0 + $0x18] sm:$0xf]
  %v196 = vld [vmem:[%s0 + $0x1c] sm:$0xf]
  %v197 = vld [vmem:[%s0 + $0x20] sm:$0xf]
  %v198 = vld [vmem:[%s0 + $0x24] sm:$0xf]
  %v199 = vld [vmem:[%s0 + $0x28] sm:$0xf]
  %v200 = vld [vmem:[%s0 + $0x2c] sm:$0xf]
  %v201 = vld [vmem:[%s0 + $0x30] sm:$0xf]
  %v202 = vld [vmem:[%s0 + $0x34] sm:$0xf]
  %v203 = vld [vmem:[%s0 + $0x38] sm:$0xf]
  %v204 = vld [vmem:[%s0 + $0x3c] sm:$0xf]
  %v205 = vld [vmem:[%s0 + $0x40] sm:$0xf]
  %v206 = vld [vmem:[%s0 + $0x44] sm:$0xf]
  %v207 = vld [vmem:[%s0 + $0x48] sm:$0xf]
  %v208 = vld [vmem:[%s0 + $0x4c] sm:$0xf]
  %v209 = vld [vmem:[%s0 + $0x50] sm:$0xf]
  %v210 = vld [vmem:[%s0 + $0x54] sm:$0xf]
  %v211 = vld [vmem:[%s0 + $0x58] sm:$0xf]
  %v212 = vld [vmem:[%s0 + $0x5c] sm:$0xf]
  %v213 = vld [vmem:[%s0 + $0x60] sm:$0xf]
  %v214 = vld [vmem:[%s0 + $0x64] sm:$0xf]
  %v215 = vld [vmem:[%s0 + $0x68] sm:$0xf]
  %v216 = vld [vmem:[%s0 + $0x6c] sm:$0xf]
  %v217 = vld [vmem:[%s0 + $0x70] sm:$0xf]
  %v218 = vld [vmem:[%s0 + $0x74] sm:$0xf]
  %v219 = vld [vmem:[%s0 + $0x78] sm:$0xf]
  %v220 = vld [vmem:[%s0 + $0x7c] sm:$0xf]
  %v221 = vld [vmem:[%s0 + $0x80] sm:$0xf]
  %v222 = vld [vmem:[%s0 + $0x84] sm:$0xf]
  %v223 = vld [vmem:[%s0 + $0x88] sm:$0xf]
  %v224 = vld [vmem:[%s0 + $0x8c] sm:$0xf]
  %v225 = vld [vmem:[%s0 + $0x90] sm:$0xf]
  %v226 = vld [vmem:[%s0 + $0x94] sm:$0xf]
  %v227 = vld [vmem:[%s0 + $0x98] sm:$0xf]
  %v228 = vld [vmem:[%s0 + $0x9c] sm:$0xf]
  %v229 = vld [vmem:[%s0 + $0xa0] sm:$0xf]
  %v230 = vld [vmem:[%s0 + $0xa4] sm:$0xf]
  %v231 = vld [vmem:[%s0 + $0xa8] sm:$0xf]
  %v232 = vld [vmem:[%s0 + $0xac] sm:$0xf]
  %v233 = vld [vmem:[%s0 + $0xb0] sm:$0xf]
  %v234 = vld [vmem:[%s0 + $0xb4] sm:$0xf]
  %v235 = vld [vmem:[%s0 + $0xb8] sm:$0xf]
  %v236 = vld [vmem:[%s0 + $0xbc] sm:$0xf]
  %v237 = vld [vmem:[%s0 + $0xc0] sm:$0xf]
  %v238 = vld [vmem:[%s0 + $0xc4] sm:$0xf]
  %v239 = vld [vmem:[%s0 + $0xc8] sm:$0xf]
  %v240 = vld [vmem:[%s0 + $0xcc] sm:$0xf]
  %v241 = vld [vmem:[%s0 + $0xd0] sm:$0xf]
  %v242 = vld [vmem:[%s0 + $0xd4] sm:$0xf]
  %v243 = vld [vmem:[%s0 + $0xd8] sm:$0xf]
  %v244 = vld [vmem:[%s0 + $0xdc] sm:$0xf]
  %v245 = vld [vmem:[%s0 + $0xe0] sm:$0xf]
  %v246 = vld [vmem:[%s0 + $0xe4] sm:$0xf]
  %v247 = vld [vmem:[%s0 + $0xe8] sm:$0xf]
  %v248 = vld [vmem:[%s0 + $0xec] sm:$0xf]
  %v249 = vld [vmem:[%s0 + $0xf0] sm:$0xf]
  %v250 = vld [vmem:[%s0 + $0xf4] sm:$0xf]
  %v251 = vld [vmem:[%s0 + $0xf8] sm:$0xf]
  %v252 = vld [vmem:[%s0 + $0xfc] sm:$0xf]
  %v253 = vld [vmem:[%s1] sm:$0xf]
  %v254 = vld [vmem:[%s1 + $0x4] sm:$0xf]
  %v255 = vld [vmem:[%s1 + $0x8] sm:$0xf]
  %v256 = vld [vmem:[%s1 + $0xc] sm:$0xf]
  %v257 = vld [vmem:[%s1 + $0x10] sm:$0xf]
  %v258 = vld [vmem:[%s1 + $0x14] sm:$0xf]
  %v259 = vld [vmem:[%s1 + $0x18] sm:$0xf]
  %v260 = vld [vmem:[%s1 + $0x1c] sm:$0xf]
  %v261 = vld [vmem:[%s1 + $0x20] sm:$0xf]
  %v262 = vld [vmem:[%s1 + $0x24] sm:$0xf]
  %v263 = vld [vmem:[%s1 + $0x28] sm:$0xf]
  %v264 = vld [vmem:[%s1 + $0x2c] sm:$0xf]
  %v265 = vld [vmem:[%s1 + $0x30] sm:$0xf]
  %v266 = vld [vmem:[%s1 + $0x34] sm:$0xf]
  %v267 = vld [vmem:[%s1 + $0x38] sm:$0xf]
  %v268 = vld [vmem:[%s1 + $0x3c] sm:$0xf]
  %v333 = vunpack.c.l.b16 %v189
  %v334 = vunpack.c.l.b16 %v190
  %v335 = vunpack.c.l.b16 %v191
  %v336 = vunpack.c.l.b16 %v192
  %v337 = vunpack.c.l.b16 %v193
  %v338 = vunpack.c.l.b16 %v194
  %v339 = vunpack.c.l.b16 %v195
  %v340 = vunpack.c.l.b16 %v196
  %v341 = vunpack.c.l.b16 %v197
  %v342 = vunpack.c.l.b16 %v198
  %v343 = vunpack.c.l.b16 %v199
  %v344 = vunpack.c.l.b16 %v200
  %v345 = vunpack.c.l.b16 %v201
  %v346 = vunpack.c.l.b16 %v202
  %v347 = vunpack.c.l.b16 %v203
  %v348 = vunpack.c.l.b16 %v204
  %v349 = vunpack.c.l.b16 %v205
  %v350 = vunpack.c.l.b16 %v206
  %v351 = vunpack.c.l.b16 %v207
  %v352 = vunpack.c.l.b16 %v208
  %v353 = vunpack.c.l.b16 %v209
  %v354 = vunpack.c.l.b16 %v210
  %v355 = vunpack.c.l.b16 %v211
  %v356 = vunpack.c.l.b16 %v212
  %v357 = vunpack.c.l.b16 %v213
  %v358 = vunpack.c.l.b16 %v214
  %v359 = vunpack.c.l.b16 %v215
  %v360 = vunpack.c.l.b16 %v216
  %v361 = vunpack.c.l.b16 %v217
  %v362 = vunpack.c.l.b16 %v218
  %v363 = vunpack.c.l.b16 %v219
  %v364 = vunpack.c.l.b16 %v220
  %v365 = vunpack.c.l.b16 %v221
  %v366 = vunpack.c.l.b16 %v222
  %v367 = vunpack.c.l.b16 %v223
  %v368 = vunpack.c.l.b16 %v224
  %v369 = vunpack.c.l.b16 %v225
  %v370 = vunpack.c.l.b16 %v226
  %v371 = vunpack.c.l.b16 %v227
  %v372 = vunpack.c.l.b16 %v228
  %v373 = vunpack.c.l.b16 %v229
  %v374 = vunpack.c.l.b16 %v230
  %v375 = vunpack.c.l.b16 %v231
  %v376 = vunpack.c.l.b16 %v232
  %v377 = vunpack.c.l.b16 %v233
  %v378 = vunpack.c.l.b16 %v234
  %v379 = vunpack.c.l.b16 %v235
  %v380 = vunpack.c.l.b16 %v236
  %v381 = vunpack.c.l.b16 %v237
  %v382 = vunpack.c.l.b16 %v238
  %v383 = vunpack.c.l.b16 %v239
  %v384 = vunpack.c.l.b16 %v240
  %v385 = vunpack.c.l.b16 %v241
  %v386 = vunpack.c.l.b16 %v242
  %v387 = vunpack.c.l.b16 %v243
  %v388 = vunpack.c.l.b16 %v244
  %v389 = vunpack.c.l.b16 %v245
  %v390 = vunpack.c.l.b16 %v246
  %v391 = vunpack.c.l.b16 %v247
  %v392 = vunpack.c.l.b16 %v248
  %v393 = vunpack.c.l.b16 %v249
  %v394 = vunpack.c.l.b16 %v250
  %v395 = vunpack.c.l.b16 %v251
  %v396 = vunpack.c.l.b16 %v252
  %v397 = vpack.c.b16 %v334, %v333
  %v398 = vpack.c.b16 %v336, %v335
  %v399 = vpack.c.b16 %v338, %v337
  %v400 = vpack.c.b16 %v340, %v339
  %v401 = vpack.c.b16 %v342, %v341
  %v402 = vpack.c.b16 %v344, %v343
  %v403 = vpack.c.b16 %v346, %v345
  %v404 = vpack.c.b16 %v348, %v347
  %v405 = vpack.c.b16 %v350, %v349
  %v406 = vpack.c.b16 %v352, %v351
  %v407 = vpack.c.b16 %v354, %v353
  %v408 = vpack.c.b16 %v356, %v355
  %v409 = vpack.c.b16 %v358, %v357
  %v410 = vpack.c.b16 %v360, %v359
  %v411 = vpack.c.b16 %v362, %v361
  %v412 = vpack.c.b16 %v364, %v363
  %v413 = vpack.c.b16 %v366, %v365
  %v414 = vpack.c.b16 %v368, %v367
  %v415 = vpack.c.b16 %v370, %v369
  %v416 = vpack.c.b16 %v372, %v371
  %v417 = vpack.c.b16 %v374, %v373
  %v418 = vpack.c.b16 %v376, %v375
  %v419 = vpack.c.b16 %v378, %v377
  %v420 = vpack.c.b16 %v380, %v379
  %v421 = vpack.c.b16 %v382, %v381
  %v422 = vpack.c.b16 %v384, %v383
  %v423 = vpack.c.b16 %v386, %v385
  %v424 = vpack.c.b16 %v388, %v387
  %v425 = vpack.c.b16 %v390, %v389
  %v426 = vpack.c.b16 %v392, %v391
  %v427 = vpack.c.b16 %v394, %v393
  %v428 = vpack.c.b16 %v396, %v395
  %v477 = vunpack.c.l.b16 %v253
  %v478 = vunpack.c.l.b16 %v254
  %v479 = vunpack.c.l.b16 %v255
  %v480 = vunpack.c.l.b16 %v256
  %v481 = vunpack.c.l.b16 %v257
  %v482 = vunpack.c.l.b16 %v258
  %v483 = vunpack.c.l.b16 %v259
  %v484 = vunpack.c.l.b16 %v260
  %v485 = vunpack.c.l.b16 %v261
  %v486 = vunpack.c.l.b16 %v262
  %v487 = vunpack.c.l.b16 %v263
  %v488 = vunpack.c.l.b16 %v264
  %v489 = vunpack.c.l.b16 %v265
  %v490 = vunpack.c.l.b16 %v266
  %v491 = vunpack.c.l.b16 %v267
  %v492 = vunpack.c.l.b16 %v268
  %v493 = vpack.c.b16 %v478, %v477
  %v494 = vpack.c.b16 %v480, %v479
  %v495 = vpack.c.b16 %v482, %v481
  %v496 = vpack.c.b16 %v484, %v483
  %v497 = vpack.c.b16 %v486, %v485
  %v498 = vpack.c.b16 %v488, %v487
  %v499 = vpack.c.b16 %v490, %v489
  %v500 = vpack.c.b16 %v492, %v491
  %509 = vmatprep.subr.bf16.mxu0 0
  %510 = vmatpush1.bf16.msra.mxu0 %v500
  %511 = vmatprep.subr.bf16.mxu0 0
  %512 = vmatpush1.bf16.msra.mxu0 %v499
  %513 = vmatprep.subr.bf16.mxu0 0
  %514 = vmatpush1.bf16.msra.mxu0 %v498
  %515 = vmatprep.subr.bf16.mxu0 0
  %516 = vmatpush1.bf16.msra.mxu0 %v497
  %517 = vmatprep.subr.bf16.mxu0 0
  %518 = vmatpush1.bf16.msra.mxu0 %v496
  %519 = vmatprep.subr.bf16.mxu0 0
  %520 = vmatpush1.bf16.msra.mxu0 %v495
  %521 = vmatprep.subr.bf16.mxu0 0
  %522 = vmatpush1.bf16.msra.mxu0 %v494
  %523 = vmatprep.subr.bf16.mxu0 0
  %524 = vmatpush1.bf16.msra.mxu0 %v493
  %525 = vmatprep.subr.bf16.mxu0 0
  %526 = vmatpush2.bf16.msra.mxu0 0
  %527 = vmatprep.subr.bf16.mxu0 0
  %528 = vmatpush2.bf16.msra.mxu0 0
  %529 = vmatprep.subr.bf16.mxu0 0
  %530 = vmatpush2.bf16.msra.mxu0 0
  %531 = vmatprep.subr.bf16.mxu0 0
  %532 = vmatpush2.bf16.msra.mxu0 0
  %533 = vmatprep.subr.bf16.mxu0 0
  %534 = vmatpush2.bf16.msra.mxu0 0
  %535 = vmatprep.subr.bf16.mxu0 0
  %536 = vmatpush2.bf16.msra.mxu0 0
  %537 = vmatprep.subr.bf16.mxu0 0
  %538 = vmatpush2.bf16.msra.mxu0 0
  %539 = vmatprep.subr.bf16.mxu0 0
  %540 = vmatpush2.bf16.msra.mxu0 0
  %541 = vmatprep.mubr.bf16.mxu0 0
  %542 = vmatmul.mubr.bf16.gmra.mxu0 %v397
  %v543 = vpop.f32.mrf.mxu0
  %v544 = vadd.f32 0.0, %v543
  %v545 = vpop.f32.mrf.mxu0
  %v546 = vpop.f32.mrf.mxu0
  %v547 = vadd.f32 0.0, %v546
  %v548 = vpop.f32.mrf.mxu0
  %549 = vmatprep.mubr.bf16.mxu0 0
  %550 = vmatmul.mubr.bf16.gmra.mxu0 %v398
  %v551 = vpop.f32.mrf.mxu0
  %v552 = vadd.f32 0.0, %v551
  %v553 = vpop.f32.mrf.mxu0
  %v554 = vpop.f32.mrf.mxu0
  %v555 = vadd.f32 0.0, %v554
  %v556 = vpop.f32.mrf.mxu0
  %557 = vmatprep.mubr.bf16.mxu0 0
  %558 = vmatmul.mubr.bf16.gmra.mxu0 %v399
  %v559 = vpop.f32.mrf.mxu0
  %v560 = vadd.f32 0.0, %v559
  %v561 = vpop.f32.mrf.mxu0
  %v562 = vpop.f32.mrf.mxu0
  %v563 = vadd.f32 0.0, %v562
  %v564 = vpop.f32.mrf.mxu0
  %565 = vmatprep.mubr.bf16.mxu0 0
  %566 = vmatmul.mubr.bf16.gmra.mxu0 %v400
  %v567 = vpop.f32.mrf.mxu0
  %v568 = vadd.f32 0.0, %v567
  %v569 = vpop.f32.mrf.mxu0
  %v570 = vpop.f32.mrf.mxu0
  %v571 = vadd.f32 0.0, %v570
  %v572 = vpop.f32.mrf.mxu0
  %573 = vmatprep.mubr.bf16.mxu0 0
  %574 = vmatmul.mubr.bf16.gmra.mxu0 %v401
  %v575 = vpop.f32.mrf.mxu0
  %v576 = vadd.f32 0.0, %v575
  %v577 = vpop.f32.mrf.mxu0
  %v578 = vpop.f32.mrf.mxu0
  %v579 = vadd.f32 0.0, %v578
  %v580 = vpop.f32.mrf.mxu0
  %581 = vmatprep.mubr.bf16.mxu0 0
  %582 = vmatmul.mubr.bf16.gmra.mxu0 %v402
  %v583 = vpop.f32.mrf.mxu0
  %v584 = vadd.f32 0.0, %v583
  %v585 = vpop.f32.mrf.mxu0
  %v586 = vpop.f32.mrf.mxu0
  %v587 = vadd.f32 0.0, %v586
  %v588 = vpop.f32.mrf.mxu0
  %589 = vmatprep.mubr.bf16.mxu0 0
  %590 = vmatmul.mubr.bf16.gmra.mxu0 %v403
  %v591 = vpop.f32.mrf.mxu0
  %v592 = vadd.f32 0.0, %v591
  %v593 = vpop.f32.mrf.mxu0
  %v594 = vpop.f32.mrf.mxu0
  %v595 = vadd.f32 0.0, %v594
  %v596 = vpop.f32.mrf.mxu0
  %597 = vmatprep.mubr.bf16.mxu0 0
  %598 = vmatmul.mubr.bf16.gmra.mxu0 %v404
  %v599 = vpop.f32.mrf.mxu0
  %v600 = vadd.f32 0.0, %v599
  %v601 = vpop.f32.mrf.mxu0
  %v602 = vpop.f32.mrf.mxu0
  %v603 = vadd.f32 0.0, %v602
  %v604 = vpop.f32.mrf.mxu0
  %605 = vmatprep.mubr.bf16.mxu0 0
  %606 = vmatmul.mubr.bf16.gmra.mxu0 %v405
  %v607 = vpop.f32.mrf.mxu0
  %v608 = vadd.f32 0.0, %v607
  %v609 = vpop.f32.mrf.mxu0
  %v610 = vpop.f32.mrf.mxu0
  %v611 = vadd.f32 0.0, %v610
  %v612 = vpop.f32.mrf.mxu0
  %613 = vmatprep.mubr.bf16.mxu0 0
  %614 = vmatmul.mubr.bf16.gmra.mxu0 %v406
  %v615 = vpop.f32.mrf.mxu0
  %v616 = vadd.f32 0.0, %v615
  %v617 = vpop.f32.mrf.mxu0
  %v618 = vpop.f32.mrf.mxu0
  %v619 = vadd.f32 0.0, %v618
  %v620 = vpop.f32.mrf.mxu0
  %621 = vmatprep.mubr.bf16.mxu0 0
  %622 = vmatmul.mubr.bf16.gmra.mxu0 %v407
  %v623 = vpop.f32.mrf.mxu0
  %v624 = vadd.f32 0.0, %v623
  %v625 = vpop.f32.mrf.mxu0
  %v626 = vpop.f32.mrf.mxu0
  %v627 = vadd.f32 0.0, %v626
  %v628 = vpop.f32.mrf.mxu0
  %629 = vmatprep.mubr.bf16.mxu0 0
  %630 = vmatmul.mubr.bf16.gmra.mxu0 %v408
  %v631 = vpop.f32.mrf.mxu0
  %v632 = vadd.f32 0.0, %v631
  %v633 = vpop.f32.mrf.mxu0
  %v634 = vpop.f32.mrf.mxu0
  %v635 = vadd.f32 0.0, %v634
  %v636 = vpop.f32.mrf.mxu0
  %637 = vmatprep.mubr.bf16.mxu0 0
  %638 = vmatmul.mubr.bf16.gmra.mxu0 %v409
  %v639 = vpop.f32.mrf.mxu0
  %v640 = vadd.f32 0.0, %v639
  %v641 = vpop.f32.mrf.mxu0
  %v642 = vpop.f32.mrf.mxu0
  %v643 = vadd.f32 0.0, %v642
  %v644 = vpop.f32.mrf.mxu0
  %645 = vmatprep.mubr.bf16.mxu0 0
  %646 = vmatmul.mubr.bf16.gmra.mxu0 %v410
  %v647 = vpop.f32.mrf.mxu0
  %v648 = vadd.f32 0.0, %v647
  %v649 = vpop.f32.mrf.mxu0
  %v650 = vpop.f32.mrf.mxu0
  %v651 = vadd.f32 0.0, %v650
  %v652 = vpop.f32.mrf.mxu0
  %653 = vmatprep.mubr.bf16.mxu0 0
  %654 = vmatmul.mubr.bf16.gmra.mxu0 %v411
  %v655 = vpop.f32.mrf.mxu0
  %v656 = vadd.f32 0.0, %v655
  %v657 = vpop.f32.mrf.mxu0
  %v658 = vpop.f32.mrf.mxu0
  %v659 = vadd.f32 0.0, %v658
  %v660 = vpop.f32.mrf.mxu0
  %661 = vmatprep.mubr.bf16.mxu0 0
  %662 = vmatmul.mubr.bf16.gmra.mxu0 %v412
  %v663 = vpop.f32.mrf.mxu0
  %v664 = vadd.f32 0.0, %v663
  %v665 = vpop.f32.mrf.mxu0
  %v666 = vpop.f32.mrf.mxu0
  %v667 = vadd.f32 0.0, %v666
  %v668 = vpop.f32.mrf.mxu0
  %669 = vmatprep.mubr.bf16.mxu0 0
  %670 = vmatmul.mubr.bf16.gmra.mxu0 %v413
  %v671 = vpop.f32.mrf.mxu0
  %v672 = vadd.f32 0.0, %v671
  %v673 = vpop.f32.mrf.mxu0
  %v674 = vpop.f32.mrf.mxu0
  %v675 = vadd.f32 0.0, %v674
  %v676 = vpop.f32.mrf.mxu0
  %677 = vmatprep.mubr.bf16.mxu0 0
  %678 = vmatmul.mubr.bf16.gmra.mxu0 %v414
  %v679 = vpop.f32.mrf.mxu0
  %v680 = vadd.f32 0.0, %v679
  %v681 = vpop.f32.mrf.mxu0
  %v682 = vpop.f32.mrf.mxu0
  %v683 = vadd.f32 0.0, %v682
  %v684 = vpop.f32.mrf.mxu0
  %685 = vmatprep.mubr.bf16.mxu0 0
  %686 = vmatmul.mubr.bf16.gmra.mxu0 %v415
  %v687 = vpop.f32.mrf.mxu0
  %v688 = vadd.f32 0.0, %v687
  %v689 = vpop.f32.mrf.mxu0
  %v690 = vpop.f32.mrf.mxu0
  %v691 = vadd.f32 0.0, %v690
  %v692 = vpop.f32.mrf.mxu0
  %693 = vmatprep.mubr.bf16.mxu0 0
  %694 = vmatmul.mubr.bf16.gmra.mxu0 %v416
  %v695 = vpop.f32.mrf.mxu0
  %v696 = vadd.f32 0.0, %v695
  %v697 = vpop.f32.mrf.mxu0
  %v698 = vpop.f32.mrf.mxu0
  %v699 = vadd.f32 0.0, %v698
  %v700 = vpop.f32.mrf.mxu0
  %701 = vmatprep.mubr.bf16.mxu0 0
  %702 = vmatmul.mubr.bf16.gmra.mxu0 %v417
  %v703 = vpop.f32.mrf.mxu0
  %v704 = vadd.f32 0.0, %v703
  %v705 = vpop.f32.mrf.mxu0
  %v706 = vpop.f32.mrf.mxu0
  %v707 = vadd.f32 0.0, %v706
  %v708 = vpop.f32.mrf.mxu0
  %709 = vmatprep.mubr.bf16.mxu0 0
  %710 = vmatmul.mubr.bf16.gmra.mxu0 %v418
  %v711 = vpop.f32.mrf.mxu0
  %v712 = vadd.f32 0.0, %v711
  %v713 = vpop.f32.mrf.mxu0
  %v714 = vpop.f32.mrf.mxu0
  %v715 = vadd.f32 0.0, %v714
  %v716 = vpop.f32.mrf.mxu0
  %717 = vmatprep.mubr.bf16.mxu0 0
  %718 = vmatmul.mubr.bf16.gmra.mxu0 %v419
  %v719 = vpop.f32.mrf.mxu0
  %v720 = vadd.f32 0.0, %v719
  %v721 = vpop.f32.mrf.mxu0
  %v722 = vpop.f32.mrf.mxu0
  %v723 = vadd.f32 0.0, %v722
  %v724 = vpop.f32.mrf.mxu0
  %725 = vmatprep.mubr.bf16.mxu0 0
  %726 = vmatmul.mubr.bf16.gmra.mxu0 %v420
  %v727 = vpop.f32.mrf.mxu0
  %v728 = vadd.f32 0.0, %v727
  %v729 = vpop.f32.mrf.mxu0
  %v730 = vpop.f32.mrf.mxu0
  %v731 = vadd.f32 0.0, %v730
  %v732 = vpop.f32.mrf.mxu0
  %733 = vmatprep.mubr.bf16.mxu0 0
  %734 = vmatmul.mubr.bf16.gmra.mxu0 %v421
  %v735 = vpop.f32.mrf.mxu0
  %v736 = vadd.f32 0.0, %v735
  %v737 = vpop.f32.mrf.mxu0
  %v738 = vpop.f32.mrf.mxu0
  %v739 = vadd.f32 0.0, %v738
  %v740 = vpop.f32.mrf.mxu0
  %741 = vmatprep.mubr.bf16.mxu0 0
  %742 = vmatmul.mubr.bf16.gmra.mxu0 %v422
  %v743 = vpop.f32.mrf.mxu0
  %v744 = vadd.f32 0.0, %v743
  %v745 = vpop.f32.mrf.mxu0
  %v746 = vpop.f32.mrf.mxu0
  %v747 = vadd.f32 0.0, %v746
  %v748 = vpop.f32.mrf.mxu0
  %749 = vmatprep.mubr.bf16.mxu0 0
  %750 = vmatmul.mubr.bf16.gmra.mxu0 %v423
  %v751 = vpop.f32.mrf.mxu0
  %v752 = vadd.f32 0.0, %v751
  %v753 = vpop.f32.mrf.mxu0
  %v754 = vpop.f32.mrf.mxu0
  %v755 = vadd.f32 0.0, %v754
  %v756 = vpop.f32.mrf.mxu0
  %757 = vmatprep.mubr.bf16.mxu0 0
  %758 = vmatmul.mubr.bf16.gmra.mxu0 %v424
  %v759 = vpop.f32.mrf.mxu0
  %v760 = vadd.f32 0.0, %v759
  %v761 = vpop.f32.mrf.mxu0
  %v762 = vpop.f32.mrf.mxu0
  %v763 = vadd.f32 0.0, %v762
  %v764 = vpop.f32.mrf.mxu0
  %765 = vmatprep.mubr.bf16.mxu0 0
  %766 = vmatmul.mubr.bf16.gmra.mxu0 %v425
  %v767 = vpop.f32.mrf.mxu0
  %v768 = vadd.f32 0.0, %v767
  %v769 = vpop.f32.mrf.mxu0
  %v770 = vpop.f32.mrf.mxu0
  %v771 = vadd.f32 0.0, %v770
  %v772 = vpop.f32.mrf.mxu0
  %773 = vmatprep.mubr.bf16.mxu0 0
  %774 = vmatmul.mubr.bf16.gmra.mxu0 %v426
  %v775 = vpop.f32.mrf.mxu0
  %v776 = vadd.f32 0.0, %v775
  %v777 = vpop.f32.mrf.mxu0
  %v778 = vpop.f32.mrf.mxu0
  %v779 = vadd.f32 0.0, %v778
  %v780 = vpop.f32.mrf.mxu0
  %781 = vmatprep.mubr.bf16.mxu0 0
  %782 = vmatmul.mubr.bf16.gmra.mxu0 %v427
  %v783 = vpop.f32.mrf.mxu0
  %v784 = vadd.f32 0.0, %v783
  %v785 = vpop.f32.mrf.mxu0
  %v786 = vpop.f32.mrf.mxu0
  %v787 = vadd.f32 0.0, %v786
  %v788 = vpop.f32.mrf.mxu0
  %789 = vmatprep.mubr.bf16.mxu0 0
  %790 = vmatmul.mubr.bf16.gmra.mxu0 %v428
  %v791 = vpop.f32.mrf.mxu0
  %v792 = vadd.f32 0.0, %v791
  %v793 = vpop.f32.mrf.mxu0
  %v794 = vpop.f32.mrf.mxu0
  %v795 = vadd.f32 0.0, %v794
  %v796 = vpop.f32.mrf.mxu0
  %797 = vdwg.mxu0
  %vm798 = vcmp.gt.f32.partialorder %v544, 0.0
  %vm799 = vcmp.gt.f32.partialorder %v547, 0.0
  %vm800 = vcmp.gt.f32.partialorder %v552, 0.0
  %vm801 = vcmp.gt.f32.partialorder %v555, 0.0
  %vm802 = vcmp.gt.f32.partialorder %v560, 0.0
  %vm803 = vcmp.gt.f32.partialorder %v563, 0.0
  %vm804 = vcmp.gt.f32.partialorder %v568, 0.0
  %vm805 = vcmp.gt.f32.partialorder %v571, 0.0
  %vm806 = vcmp.gt.f32.partialorder %v576, 0.0
  %vm807 = vcmp.gt.f32.partialorder %v579, 0.0
  %vm808 = vcmp.gt.f32.partialorder %v584, 0.0
  %vm809 = vcmp.gt.f32.partialorder %v587, 0.0
  %vm810 = vcmp.gt.f32.partialorder %v592, 0.0
  %vm811 = vcmp.gt.f32.partialorder %v595, 0.0
  %vm812 = vcmp.gt.f32.partialorder %v600, 0.0
  %vm813 = vcmp.gt.f32.partialorder %v603, 0.0
  %vm814 = vcmp.gt.f32.partialorder %v608, 0.0
  %vm815 = vcmp.gt.f32.partialorder %v611, 0.0
  %vm816 = vcmp.gt.f32.partialorder %v616, 0.0
  %vm817 = vcmp.gt.f32.partialorder %v619, 0.0
  %vm818 = vcmp.gt.f32.partialorder %v624, 0.0
  %vm819 = vcmp.gt.f32.partialorder %v627, 0.0
  %vm820 = vcmp.gt.f32.partialorder %v632, 0.0
  %vm821 = vcmp.gt.f32.partialorder %v635, 0.0
  %vm822 = vcmp.gt.f32.partialorder %v640, 0.0
  %vm823 = vcmp.gt.f32.partialorder %v643, 0.0
  %vm824 = vcmp.gt.f32.partialorder %v648, 0.0
  %vm825 = vcmp.gt.f32.partialorder %v651, 0.0
  %vm826 = vcmp.gt.f32.partialorder %v656, 0.0
  %vm827 = vcmp.gt.f32.partialorder %v659, 0.0
  %vm828 = vcmp.gt.f32.partialorder %v664, 0.0
  %vm829 = vcmp.gt.f32.partialorder %v667, 0.0
  %vm830 = vcmp.gt.f32.partialorder %v672, 0.0
  %vm831 = vcmp.gt.f32.partialorder %v675, 0.0
  %vm832 = vcmp.gt.f32.partialorder %v680, 0.0
  %vm833 = vcmp.gt.f32.partialorder %v683, 0.0
  %vm834 = vcmp.gt.f32.partialorder %v688, 0.0
  %vm835 = vcmp.gt.f32.partialorder %v691, 0.0
  %vm836 = vcmp.gt.f32.partialorder %v696, 0.0
  %vm837 = vcmp.gt.f32.partialorder %v699, 0.0
  %vm838 = vcmp.gt.f32.partialorder %v704, 0.0
  %vm839 = vcmp.gt.f32.partialorder %v707, 0.0
  %vm840 = vcmp.gt.f32.partialorder %v712, 0.0
  %vm841 = vcmp.gt.f32.partialorder %v715, 0.0
  %vm842 = vcmp.gt.f32.partialorder %v720, 0.0
  %vm843 = vcmp.gt.f32.partialorder %v723, 0.0
  %vm844 = vcmp.gt.f32.partialorder %v728, 0.0
  %vm845 = vcmp.gt.f32.partialorder %v731, 0.0
  %vm846 = vcmp.gt.f32.partialorder %v736, 0.0
  %vm847 = vcmp.gt.f32.partialorder %v739, 0.0
  %vm848 = vcmp.gt.f32.partialorder %v744, 0.0
  %vm849 = vcmp.gt.f32.partialorder %v747, 0.0
  %vm850 = vcmp.gt.f32.partialorder %v752, 0.0
  %vm851 = vcmp.gt.f32.partialorder %v755, 0.0
  %vm852 = vcmp.gt.f32.partialorder %v760, 0.0
  %vm853 = vcmp.gt.f32.partialorder %v763, 0.0
  %vm854 = vcmp.gt.f32.partialorder %v768, 0.0
  %vm855 = vcmp.gt.f32.partialorder %v771, 0.0
  %vm856 = vcmp.gt.f32.partialorder %v776, 0.0
  %vm857 = vcmp.gt.f32.partialorder %v779, 0.0
  %vm858 = vcmp.gt.f32.partialorder %v784, 0.0
  %vm859 = vcmp.gt.f32.partialorder %v787, 0.0
  %vm860 = vcmp.gt.f32.partialorder %v792, 0.0
  %vm861 = vcmp.gt.f32.partialorder %v795, 0.0
  %v862 = vmul.f32 %v544, 0.05
  %v863 = vmul.f32 %v547, 0.05
  %v864 = vmul.f32 %v552, 0.05
  %v865 = vmul.f32 %v555, 0.05
  %v866 = vmul.f32 %v560, 0.05
  %v867 = vmul.f32 %v563, 0.05
  %v868 = vmul.f32 %v568, 0.05
  %v869 = vmul.f32 %v571, 0.05
  %v870 = vmul.f32 %v576, 0.05
  %v871 = vmul.f32 %v579, 0.05
  %v872 = vmul.f32 %v584, 0.05
  %v873 = vmul.f32 %v587, 0.05
  %v874 = vmul.f32 %v592, 0.05
  %v875 = vmul.f32 %v595, 0.05
  %v876 = vmul.f32 %v600, 0.05
  %v877 = vmul.f32 %v603, 0.05
  %v878 = vmul.f32 %v608, 0.05
  %v879 = vmul.f32 %v611, 0.05
  %v880 = vmul.f32 %v616, 0.05
  %v881 = vmul.f32 %v619, 0.05
  %v882 = vmul.f32 %v624, 0.05
  %v883 = vmul.f32 %v627, 0.05
  %v884 = vmul.f32 %v632, 0.05
  %v885 = vmul.f32 %v635, 0.05
  %v886 = vmul.f32 %v640, 0.05
  %v887 = vmul.f32 %v643, 0.05
  %v888 = vmul.f32 %v648, 0.05
  %v889 = vmul.f32 %v651, 0.05
  %v890 = vmul.f32 %v656, 0.05
  %v891 = vmul.f32 %v659, 0.05
  %v892 = vmul.f32 %v664, 0.05
  %v893 = vmul.f32 %v667, 0.05
  %v894 = vmul.f32 %v672, 0.05
  %v895 = vmul.f32 %v675, 0.05
  %v896 = vmul.f32 %v680, 0.05
  %v897 = vmul.f32 %v683, 0.05
  %v898 = vmul.f32 %v688, 0.05
  %v899 = vmul.f32 %v691, 0.05
  %v900 = vmul.f32 %v696, 0.05
  %v901 = vmul.f32 %v699, 0.05
  %v902 = vmul.f32 %v704, 0.05
  %v903 = vmul.f32 %v707, 0.05
  %v904 = vmul.f32 %v712, 0.05
  %v905 = vmul.f32 %v715, 0.05
  %v906 = vmul.f32 %v720, 0.05
  %v907 = vmul.f32 %v723, 0.05
  %v908 = vmul.f32 %v728, 0.05
  %v909 = vmul.f32 %v731, 0.05
  %v910 = vmul.f32 %v736, 0.05
  %v911 = vmul.f32 %v739, 0.05
  %v912 = vmul.f32 %v744, 0.05
  %v913 = vmul.f32 %v747, 0.05
  %v914 = vmul.f32 %v752, 0.05
  %v915 = vmul.f32 %v755, 0.05
  %v916 = vmul.f32 %v760, 0.05
  %v917 = vmul.f32 %v763, 0.05
  %v918 = vmul.f32 %v768, 0.05
  %v919 = vmul.f32 %v771, 0.05
  %v920 = vmul.f32 %v776, 0.05
  %v921 = vmul.f32 %v779, 0.05
  %v922 = vmul.f32 %v784, 0.05
  %v923 = vmul.f32 %v787, 0.05
  %v924 = vmul.f32 %v792, 0.05
  %v925 = vmul.f32 %v795, 0.05
  %v926 = vsel %vm798, %v544, %v862
  %v927 = vsel %vm799, %v547, %v863
  %v928 = vsel %vm800, %v552, %v864
  %v929 = vsel %vm801, %v555, %v865
  %v930 = vsel %vm802, %v560, %v866
  %v931 = vsel %vm803, %v563, %v867
  %v932 = vsel %vm804, %v568, %v868
  %v933 = vsel %vm805, %v571, %v869
  %v934 = vsel %vm806, %v576, %v870
  %v935 = vsel %vm807, %v579, %v871
  %v936 = vsel %vm808, %v584, %v872
  %v937 = vsel %vm809, %v587, %v873
  %v938 = vsel %vm810, %v592, %v874
  %v939 = vsel %vm811, %v595, %v875
  %v940 = vsel %vm812, %v600, %v876
  %v941 = vsel %vm813, %v603, %v877
  %v942 = vsel %vm814, %v608, %v878
  %v943 = vsel %vm815, %v611, %v879
  %v944 = vsel %vm816, %v616, %v880
  %v945 = vsel %vm817, %v619, %v881
  %v946 = vsel %vm818, %v624, %v882
  %v947 = vsel %vm819, %v627, %v883
  %v948 = vsel %vm820, %v632, %v884
  %v949 = vsel %vm821, %v635, %v885
  %v950 = vsel %vm822, %v640, %v886
  %v951 = vsel %vm823, %v643, %v887
  %v952 = vsel %vm824, %v648, %v888
  %v953 = vsel %vm825, %v651, %v889
  %v954 = vsel %vm826, %v656, %v890
  %v955 = vsel %vm827, %v659, %v891
  %v956 = vsel %vm828, %v664, %v892
  %v957 = vsel %vm829, %v667, %v893
  %v958 = vsel %vm830, %v672, %v894
  %v959 = vsel %vm831, %v675, %v895
  %v960 = vsel %vm832, %v680, %v896
  %v961 = vsel %vm833, %v683, %v897
  %v962 = vsel %vm834, %v688, %v898
  %v963 = vsel %vm835, %v691, %v899
  %v964 = vsel %vm836, %v696, %v900
  %v965 = vsel %vm837, %v699, %v901
  %v966 = vsel %vm838, %v704, %v902
  %v967 = vsel %vm839, %v707, %v903
  %v968 = vsel %vm840, %v712, %v904
  %v969 = vsel %vm841, %v715, %v905
  %v970 = vsel %vm842, %v720, %v906
  %v971 = vsel %vm843, %v723, %v907
  %v972 = vsel %vm844, %v728, %v908
  %v973 = vsel %vm845, %v731, %v909
  %v974 = vsel %vm846, %v736, %v910
  %v975 = vsel %vm847, %v739, %v911
  %v976 = vsel %vm848, %v744, %v912
  %v977 = vsel %vm849, %v747, %v913
  %v978 = vsel %vm850, %v752, %v914
  %v979 = vsel %vm851, %v755, %v915
  %v980 = vsel %vm852, %v760, %v916
  %v981 = vsel %vm853, %v763, %v917
  %v982 = vsel %vm854, %v768, %v918
  %v983 = vsel %vm855, %v771, %v919
  %v984 = vsel %vm856, %v776, %v920
  %v985 = vsel %vm857, %v779, %v921
  %v986 = vsel %vm858, %v784, %v922
  %v987 = vsel %vm859, %v787, %v923
  %v988 = vsel %vm860, %v792, %v924
  %v989 = vsel %vm861, %v795, %v925
  %s990 = scalar_lea.vmem [#allocation2], 648
  %991 = vst.msk [vmem:[%s990] sm:$0xff] %vm39, %v926
  %992 = vst.msk [vmem:[%s990 + $0x8] sm:$0xff] %vm39, %v927
  %993 = vst.msk [vmem:[%s990 + $0x18] sm:$0xff] %vm39, %v928
  %994 = vst.msk [vmem:[%s990 + $0x20] sm:$0xff] %vm39, %v929
  %995 = vst.msk [vmem:[%s990 + $0x30] sm:$0xff] %vm39, %v930
  %996 = vst.msk [vmem:[%s990 + $0x38] sm:$0xff] %vm39, %v931
  %997 = vst.msk [vmem:[%s990 + $0x48] sm:$0xff] %vm39, %v932
  %998 = vst.msk [vmem:[%s990 + $0x50] sm:$0xff] %vm39, %v933
  %999 = vst.msk [vmem:[%s990 + $0x60] sm:$0xff] %vm39, %v934
  %1000 = vst.msk [vmem:[%s990 + $0x68] sm:$0xff] %vm39, %v935
  %1001 = vst.msk [vmem:[%s990 + $0x78] sm:$0xff] %vm39, %v936
  %1002 = vst.msk [vmem:[%s990 + $0x80] sm:$0xff] %vm39, %v937
  %1003 = vst.msk [vmem:[%s990 + $0x90] sm:$0xff] %vm39, %v938
  %1004 = vst.msk [vmem:[%s990 + $0x98] sm:$0xff] %vm39, %v939
  %1005 = vst.msk [vmem:[%s990 + $0xa8] sm:$0xff] %vm39, %v940
  %1006 = vst.msk [vmem:[%s990 + $0xb0] sm:$0xff] %vm39, %v941
  %s1007 = scalar_lea.vmem [#allocation2], 432
  %1008 = vst.msk [vmem:[%s1007 + $0x2] sm:$0xff] %vm39, %v942
  %1009 = vst.msk [vmem:[%s1007 + $0xa] sm:$0xff] %vm39, %v943
  %1010 = vst.msk [vmem:[%s1007 + $0x1a] sm:$0xff] %vm39, %v944
  %1011 = vst.msk [vmem:[%s1007 + $0x22] sm:$0xff] %vm39, %v945
  %1012 = vst.msk [vmem:[%s1007 + $0x32] sm:$0xff] %vm39, %v946
  %1013 = vst.msk [vmem:[%s1007 + $0x3a] sm:$0xff] %vm39, %v947
  %1014 = vst.msk [vmem:[%s1007 + $0x4a] sm:$0xff] %vm39, %v948
  %1015 = vst.msk [vmem:[%s1007 + $0x52] sm:$0xff] %vm39, %v949
  %1016 = vst.msk [vmem:[%s1007 + $0x62] sm:$0xff] %vm39, %v950
  %1017 = vst.msk [vmem:[%s1007 + $0x6a] sm:$0xff] %vm39, %v951
  %1018 = vst.msk [vmem:[%s1007 + $0x7a] sm:$0xff] %vm39, %v952
  %1019 = vst.msk [vmem:[%s1007 + $0x82] sm:$0xff] %vm39, %v953
  %1020 = vst.msk [vmem:[%s1007 + $0x92] sm:$0xff] %vm39, %v954
  %1021 = vst.msk [vmem:[%s1007 + $0x9a] sm:$0xff] %vm39, %v955
  %1022 = vst.msk [vmem:[%s1007 + $0xaa] sm:$0xff] %vm39, %v956
  %1023 = vst.msk [vmem:[%s1007 + $0xb2] sm:$0xff] %vm39, %v957
  %s1024 = scalar_lea.vmem [#allocation2], 240
  %1025 = vst.msk [vmem:[%s1024] sm:$0xff] %vm39, %v958
  %1026 = vst.msk [vmem:[%s1024 + $0x8] sm:$0xff] %vm39, %v959
  %1027 = vst.msk [vmem:[%s1024 + $0x18] sm:$0xff] %vm39, %v960
  %1028 = vst.msk [vmem:[%s1024 + $0x20] sm:$0xff] %vm39, %v961
  %1029 = vst.msk [vmem:[%s1024 + $0x30] sm:$0xff] %vm39, %v962
  %1030 = vst.msk [vmem:[%s1024 + $0x38] sm:$0xff] %vm39, %v963
  %1031 = vst.msk [vmem:[%s1024 + $0x48] sm:$0xff] %vm39, %v964
  %1032 = vst.msk [vmem:[%s1024 + $0x50] sm:$0xff] %vm39, %v965
  %1033 = vst.msk [vmem:[%s1024 + $0x60] sm:$0xff] %vm39, %v966
  %1034 = vst.msk [vmem:[%s1024 + $0x68] sm:$0xff] %vm39, %v967
  %1035 = vst.msk [vmem:[%s1024 + $0x78] sm:$0xff] %vm39, %v968
  %1036 = vst.msk [vmem:[%s1024 + $0x80] sm:$0xff] %vm39, %v969
  %1037 = vst.msk [vmem:[%s1024 + $0x90] sm:$0xff] %vm39, %v970
  %1038 = vst.msk [vmem:[%s1024 + $0x98] sm:$0xff] %vm39, %v971
  %1039 = vst.msk [vmem:[%s1024 + $0xa8] sm:$0xff] %vm39, %v972
  %1040 = vst.msk [vmem:[%s1024 + $0xb0] sm:$0xff] %vm39, %v973
  %s1041 = scalar_lea.vmem [#allocation2], 24
  %1042 = vst.msk [vmem:[%s1041 + $0x2] sm:$0xff] %vm39, %v974
  %1043 = vst.msk [vmem:[%s1041 + $0xa] sm:$0xff] %vm39, %v975
  %1044 = vst.msk [vmem:[%s1041 + $0x1a] sm:$0xff] %vm39, %v976
  %1045 = vst.msk [vmem:[%s1041 + $0x22] sm:$0xff] %vm39, %v977
  %1046 = vst.msk [vmem:[%s1041 + $0x32] sm:$0xff] %vm39, %v978
  %1047 = vst.msk [vmem:[%s1041 + $0x3a] sm:$0xff] %vm39, %v979
  %1048 = vst.msk [vmem:[%s1041 + $0x4a] sm:$0xff] %vm39, %v980
  %1049 = vst.msk [vmem:[%s1041 + $0x52] sm:$0xff] %vm39, %v981
  %1050 = vst.msk [vmem:[%s1041 + $0x62] sm:$0xff] %vm39, %v982
  %1051 = vst.msk [vmem:[%s1041 + $0x6a] sm:$0xff] %vm39, %v983
  %1052 = vst.msk [vmem:[%s1041 + $0x7a] sm:$0xff] %vm39, %v984
  %1053 = vst.msk [vmem:[%s1041 + $0x82] sm:$0xff] %vm39, %v985
  %1054 = vst.msk [vmem:[%s1041 + $0x92] sm:$0xff] %vm39, %v986
  %1055 = vst.msk [vmem:[%s1041 + $0x9a] sm:$0xff] %vm39, %v987
  %1056 = vst.msk [vmem:[%s1041 + $0xaa] sm:$0xff] %vm39, %v988
  %1057 = vst.msk [vmem:[%s1041 + $0xb2] sm:$0xff] %vm39, %v989
  %v1058 = vld [vmem:[#allocation2] sm:$0xff]
  %v1059 = vld [vmem:[#allocation2 + $0x8] sm:$0xff]
  %v1060 = vld [vmem:[#allocation2 + $0x18] sm:$0xff]
  %v1061 = vld [vmem:[#allocation2 + $0x20] sm:$0xff]
  %v1062 = vld [vmem:[#allocation2 + $0x30] sm:$0xff]
  %v1063 = vld [vmem:[#allocation2 + $0x38] sm:$0xff]
  %v1064 = vld [vmem:[#allocation2 + $0x48] sm:$0xff]
  %v1065 = vld [vmem:[#allocation2 + $0x50] sm:$0xff]
  %v1066 = vld [vmem:[#allocation2 + $0x60] sm:$0xff]
  %v1067 = vld [vmem:[#allocation2 + $0x68] sm:$0xff]
  %v1068 = vld [vmem:[#allocation2 + $0x78] sm:$0xff]
  %v1069 = vld [vmem:[#allocation2 + $0x80] sm:$0xff]
  %v1070 = vld [vmem:[#allocation2 + $0x90] sm:$0xff]
  %v1071 = vld [vmem:[#allocation2 + $0x98] sm:$0xff]
  %v1072 = vld [vmem:[#allocation2 + $0xa8] sm:$0xff]
  %v1073 = vld [vmem:[#allocation2 + $0xb0] sm:$0xff]
  %1074 = vst.msk [vmem:[#allocation4] sm:$0xff] %vm39, %v1058
  %1075 = vst.msk [vmem:[#allocation4 + $0x40] sm:$0xff] %vm39, %v1059
  %1076 = vst.msk [vmem:[#allocation4 + $0x80] sm:$0xff] %vm39, %v1060
  %1077 = vst.msk [vmem:[#allocation4 + $0xc0] sm:$0xff] %vm39, %v1061
  %1078 = vst.msk [vmem:[#allocation4 + $0x100] sm:$0xff] %vm39, %v1062
  %1079 = vst.msk [vmem:[#allocation4 + $0x140] sm:$0xff] %vm39, %v1063
  %1080 = vst.msk [vmem:[#allocation4 + $0x180] sm:$0xff] %vm39, %v1064
  %1081 = vst.msk [vmem:[#allocation4 + $0x1c0] sm:$0xff] %vm39, %v1065
  %1082 = vst.msk [vmem:[#allocation4 + $0x200] sm:$0xff] %vm39, %v1066
  %1083 = vst.msk [vmem:[#allocation4 + $0x240] sm:$0xff] %vm39, %v1067
  %1084 = vst.msk [vmem:[#allocation4 + $0x280] sm:$0xff] %vm39, %v1068
  %1085 = vst.msk [vmem:[#allocation4 + $0x2c0] sm:$0xff] %vm39, %v1069
  %1086 = vst.msk [vmem:[#allocation4 + $0x300] sm:$0xff] %vm39, %v1070
  %1087 = vst.msk [vmem:[#allocation4 + $0x340] sm:$0xff] %vm39, %v1071
  %1088 = vst.msk [vmem:[#allocation4 + $0x380] sm:$0xff] %vm39, %v1072
  %1089 = vst.msk [vmem:[#allocation4 + $0x3c0] sm:$0xff] %vm39, %v1073
  %s1090 = scalar_lea.vmem [#allocation2], 216
  %v1091 = vld [vmem:[%s1090] sm:$0xff]
  %v1092 = vld [vmem:[%s1090 + $0x8] sm:$0xff]
  %v1093 = vld [vmem:[%s1090 + $0x18] sm:$0xff]
  %v1094 = vld [vmem:[%s1090 + $0x20] sm:$0xff]
  %v1095 = vld [vmem:[%s1090 + $0x30] sm:$0xff]
  %v1096 = vld [vmem:[%s1090 + $0x38] sm:$0xff]
  %v1097 = vld [vmem:[%s1090 + $0x48] sm:$0xff]
  %v1098 = vld [vmem:[%s1090 + $0x50] sm:$0xff]
  %v1099 = vld [vmem:[%s1090 + $0x60] sm:$0xff]
  %v1100 = vld [vmem:[%s1090 + $0x68] sm:$0xff]
  %v1101 = vld [vmem:[%s1090 + $0x78] sm:$0xff]
  %v1102 = vld [vmem:[%s1090 + $0x80] sm:$0xff]
  %v1103 = vld [vmem:[%s1090 + $0x90] sm:$0xff]
  %v1104 = vld [vmem:[%s1090 + $0x98] sm:$0xff]
  %v1105 = vld [vmem:[%s1090 + $0xa8] sm:$0xff]
  %v1106 = vld [vmem:[%s1090 + $0xb0] sm:$0xff]
  %1123 = vrot.lane.b32.xlu0 %v1091, 64
  %v1124 = vpop.permute.xlu0 %1123
  %1125 = vrot.lane.b32.xlu0 %v1092, 64
  %v1126 = vpop.permute.xlu0 %1125
  %1127 = vrot.lane.b32.xlu0 %v1093, 64
  %v1128 = vpop.permute.xlu0 %1127
  %1129 = vrot.lane.b32.xlu0 %v1094, 64
  %v1130 = vpop.permute.xlu0 %1129
  %1131 = vrot.lane.b32.xlu0 %v1095, 64
  %v1132 = vpop.permute.xlu0 %1131
  %1133 = vrot.lane.b32.xlu0 %v1096, 64
  %v1134 = vpop.permute.xlu0 %1133
  %1135 = vrot.lane.b32.xlu0 %v1097, 64
  %v1136 = vpop.permute.xlu0 %1135
  %1137 = vrot.lane.b32.xlu0 %v1098, 64
  %v1138 = vpop.permute.xlu0 %1137
  %1139 = vrot.lane.b32.xlu0 %v1099, 64
  %v1140 = vpop.permute.xlu0 %1139
  %1141 = vrot.lane.b32.xlu0 %v1100, 64
  %v1142 = vpop.permute.xlu0 %1141
  %1143 = vrot.lane.b32.xlu0 %v1101, 64
  %v1144 = vpop.permute.xlu0 %1143
  %1145 = vrot.lane.b32.xlu0 %v1102, 64
  %v1146 = vpop.permute.xlu0 %1145
  %1147 = vrot.lane.b32.xlu0 %v1103, 64
  %v1148 = vpop.permute.xlu0 %1147
  %1149 = vrot.lane.b32.xlu0 %v1104, 64
  %v1150 = vpop.permute.xlu0 %1149
  %1151 = vrot.lane.b32.xlu0 %v1105, 64
  %v1152 = vpop.permute.xlu0 %1151
  %1153 = vrot.lane.b32.xlu0 %v1106, 64
  %v1154 = vpop.permute.xlu0 %1153
  %vm1171 = vcmask 1048064
  %1172 = vst.msk [vmem:[#allocation4] sm:$0xff] %vm1171, %v1124
  %1173 = vst.msk [vmem:[#allocation4 + $0x40] sm:$0xff] %vm1171, %v1126
  %1174 = vst.msk [vmem:[#allocation4 + $0x80] sm:$0xff] %vm1171, %v1128
  %1175 = vst.msk [vmem:[#allocation4 + $0xc0] sm:$0xff] %vm1171, %v1130
  %1176 = vst.msk [vmem:[#allocation4 + $0x100] sm:$0xff] %vm1171, %v1132
  %1177 = vst.msk [vmem:[#allocation4 + $0x140] sm:$0xff] %vm1171, %v1134
  %1178 = vst.msk [vmem:[#allocation4 + $0x180] sm:$0xff] %vm1171, %v1136
  %1179 = vst.msk [vmem:[#allocation4 + $0x1c0] sm:$0xff] %vm1171, %v1138
  %1180 = vst.msk [vmem:[#allocation4 + $0x200] sm:$0xff] %vm1171, %v1140
  %1181 = vst.msk [vmem:[#allocation4 + $0x240] sm:$0xff] %vm1171, %v1142
  %1182 = vst.msk [vmem:[#allocation4 + $0x280] sm:$0xff] %vm1171, %v1144
  %1183 = vst.msk [vmem:[#allocation4 + $0x2c0] sm:$0xff] %vm1171, %v1146
  %1184 = vst.msk [vmem:[#allocation4 + $0x300] sm:$0xff] %vm1171, %v1148
  %1185 = vst.msk [vmem:[#allocation4 + $0x340] sm:$0xff] %vm1171, %v1150
  %1186 = vst.msk [vmem:[#allocation4 + $0x380] sm:$0xff] %vm1171, %v1152
  %1187 = vst.msk [vmem:[#allocation4 + $0x3c0] sm:$0xff] %vm1171, %v1154
  %v1188 = vld [vmem:[#allocation2 + $0x2] sm:$0xff]
  %v1189 = vld [vmem:[#allocation2 + $0xa] sm:$0xff]
  %v1190 = vld [vmem:[#allocation2 + $0x1a] sm:$0xff]
  %v1191 = vld [vmem:[#allocation2 + $0x22] sm:$0xff]
  %v1192 = vld [vmem:[#allocation2 + $0x32] sm:$0xff]
  %v1193 = vld [vmem:[#allocation2 + $0x3a] sm:$0xff]
  %v1194 = vld [vmem:[#allocation2 + $0x4a] sm:$0xff]
  %v1195 = vld [vmem:[#allocation2 + $0x52] sm:$0xff]
  %v1196 = vld [vmem:[#allocation2 + $0x62] sm:$0xff]
  %v1197 = vld [vmem:[#allocation2 + $0x6a] sm:$0xff]
  %v1198 = vld [vmem:[#allocation2 + $0x7a] sm:$0xff]
  %v1199 = vld [vmem:[#allocation2 + $0x82] sm:$0xff]
  %v1200 = vld [vmem:[#allocation2 + $0x92] sm:$0xff]
  %v1201 = vld [vmem:[#allocation2 + $0x9a] sm:$0xff]
  %v1202 = vld [vmem:[#allocation2 + $0xaa] sm:$0xff]
  %v1203 = vld [vmem:[#allocation2 + $0xb2] sm:$0xff]
  %1204 = vst.msk [vmem:[#allocation4 + $0x8] sm:$0xff] %vm39, %v1188
  %1205 = vst.msk [vmem:[#allocation4 + $0x48] sm:$0xff] %vm39, %v1189
  %1206 = vst.msk [vmem:[#allocation4 + $0x88] sm:$0xff] %vm39, %v1190
  %1207 = vst.msk [vmem:[#allocation4 + $0xc8] sm:$0xff] %vm39, %v1191
  %1208 = vst.msk [vmem:[#allocation4 + $0x108] sm:$0xff] %vm39, %v1192
  %1209 = vst.msk [vmem:[#allocation4 + $0x148] sm:$0xff] %vm39, %v1193
  %1210 = vst.msk [vmem:[#allocation4 + $0x188] sm:$0xff] %vm39, %v1194
  %1211 = vst.msk [vmem:[#allocation4 + $0x1c8] sm:$0xff] %vm39, %v1195
  %1212 = vst.msk [vmem:[#allocation4 + $0x208] sm:$0xff] %vm39, %v1196
  %1213 = vst.msk [vmem:[#allocation4 + $0x248] sm:$0xff] %vm39, %v1197
  %1214 = vst.msk [vmem:[#allocation4 + $0x288] sm:$0xff] %vm39, %v1198
  %1215 = vst.msk [vmem:[#allocation4 + $0x2c8] sm:$0xff] %vm39, %v1199
  %1216 = vst.msk [vmem:[#allocation4 + $0x308] sm:$0xff] %vm39, %v1200
  %1217 = vst.msk [vmem:[#allocation4 + $0x348] sm:$0xff] %vm39, %v1201
  %1218 = vst.msk [vmem:[#allocation4 + $0x388] sm:$0xff] %vm39, %v1202
  %1219 = vst.msk [vmem:[#allocation4 + $0x3c8] sm:$0xff] %vm39, %v1203
  %v1220 = vld [vmem:[%s1090 + $0x2] sm:$0xff]
  %v1221 = vld [vmem:[%s1090 + $0xa] sm:$0xff]
  %v1222 = vld [vmem:[%s1090 + $0x1a] sm:$0xff]
  %v1223 = vld [vmem:[%s1090 + $0x22] sm:$0xff]
  %v1224 = vld [vmem:[%s1090 + $0x32] sm:$0xff]
  %v1225 = vld [vmem:[%s1090 + $0x3a] sm:$0xff]
  %v1226 = vld [vmem:[%s1090 + $0x4a] sm:$0xff]
  %v1227 = vld [vmem:[%s1090 + $0x52] sm:$0xff]
  %v1228 = vld [vmem:[%s1090 + $0x62] sm:$0xff]
  %v1229 = vld [vmem:[%s1090 + $0x6a] sm:$0xff]
  %v1230 = vld [vmem:[%s1090 + $0x7a] sm:$0xff]
  %v1231 = vld [vmem:[%s1090 + $0x82] sm:$0xff]
  %v1232 = vld [vmem:[%s1090 + $0x92] sm:$0xff]
  %v1233 = vld [vmem:[%s1090 + $0x9a] sm:$0xff]
  %v1234 = vld [vmem:[%s1090 + $0xaa] sm:$0xff]
  %v1235 = vld [vmem:[%s1090 + $0xb2] sm:$0xff]
  %1252 = vrot.lane.b32.xlu0 %v1220, 64
  %v1253 = vpop.permute.xlu0 %1252
  %1254 = vrot.lane.b32.xlu0 %v1221, 64
  %v1255 = vpop.permute.xlu0 %1254
  %1256 = vrot.lane.b32.xlu0 %v1222, 64
  %v1257 = vpop.permute.xlu0 %1256
  %1258 = vrot.lane.b32.xlu0 %v1223, 64
  %v1259 = vpop.permute.xlu0 %1258
  %1260 = vrot.lane.b32.xlu0 %v1224, 64
  %v1261 = vpop.permute.xlu0 %1260
  %1262 = vrot.lane.b32.xlu0 %v1225, 64
  %v1263 = vpop.permute.xlu0 %1262
  %1264 = vrot.lane.b32.xlu0 %v1226, 64
  %v1265 = vpop.permute.xlu0 %1264
  %1266 = vrot.lane.b32.xlu0 %v1227, 64
  %v1267 = vpop.permute.xlu0 %1266
  %1268 = vrot.lane.b32.xlu0 %v1228, 64
  %v1269 = vpop.permute.xlu0 %1268
  %1270 = vrot.lane.b32.xlu0 %v1229, 64
  %v1271 = vpop.permute.xlu0 %1270
  %1272 = vrot.lane.b32.xlu0 %v1230, 64
  %v1273 = vpop.permute.xlu0 %1272
  %1274 = vrot.lane.b32.xlu0 %v1231, 64
  %v1275 = vpop.permute.xlu0 %1274
  %1276 = vrot.lane.b32.xlu0 %v1232, 64
  %v1277 = vpop.permute.xlu0 %1276
  %1278 = vrot.lane.b32.xlu0 %v1233, 64
  %v1279 = vpop.permute.xlu0 %1278
  %1280 = vrot.lane.b32.xlu0 %v1234, 64
  %v1281 = vpop.permute.xlu0 %1280
  %1282 = vrot.lane.b32.xlu0 %v1235, 64
  %v1283 = vpop.permute.xlu0 %1282
  %1300 = vst.msk [vmem:[#allocation4 + $0x8] sm:$0xff] %vm1171, %v1253
  %1301 = vst.msk [vmem:[#allocation4 + $0x48] sm:$0xff] %vm1171, %v1255
  %1302 = vst.msk [vmem:[#allocation4 + $0x88] sm:$0xff] %vm1171, %v1257
  %1303 = vst.msk [vmem:[#allocation4 + $0xc8] sm:$0xff] %vm1171, %v1259
  %1304 = vst.msk [vmem:[#allocation4 + $0x108] sm:$0xff] %vm1171, %v1261
  %1305 = vst.msk [vmem:[#allocation4 + $0x148] sm:$0xff] %vm1171, %v1263
  %1306 = vst.msk [vmem:[#allocation4 + $0x188] sm:$0xff] %vm1171, %v1265
  %1307 = vst.msk [vmem:[#allocation4 + $0x1c8] sm:$0xff] %vm1171, %v1267
  %1308 = vst.msk [vmem:[#allocation4 + $0x208] sm:$0xff] %vm1171, %v1269
  %1309 = vst.msk [vmem:[#allocation4 + $0x248] sm:$0xff] %vm1171, %v1271
  %1310 = vst.msk [vmem:[#allocation4 + $0x288] sm:$0xff] %vm1171, %v1273
  %1311 = vst.msk [vmem:[#allocation4 + $0x2c8] sm:$0xff] %vm1171, %v1275
  %1312 = vst.msk [vmem:[#allocation4 + $0x308] sm:$0xff] %vm1171, %v1277
  %1313 = vst.msk [vmem:[#allocation4 + $0x348] sm:$0xff] %vm1171, %v1279
  %1314 = vst.msk [vmem:[#allocation4 + $0x388] sm:$0xff] %vm1171, %v1281
  %1315 = vst.msk [vmem:[#allocation4 + $0x3c8] sm:$0xff] %vm1171, %v1283
  %v1316 = vld [vmem:[%s1007] sm:$0xff]
  %v1317 = vld [vmem:[%s1007 + $0x8] sm:$0xff]
  %v1318 = vld [vmem:[%s1007 + $0x18] sm:$0xff]
  %v1319 = vld [vmem:[%s1007 + $0x20] sm:$0xff]
  %v1320 = vld [vmem:[%s1007 + $0x30] sm:$0xff]
  %v1321 = vld [vmem:[%s1007 + $0x38] sm:$0xff]
  %v1322 = vld [vmem:[%s1007 + $0x48] sm:$0xff]
  %v1323 = vld [vmem:[%s1007 + $0x50] sm:$0xff]
  %v1324 = vld [vmem:[%s1007 + $0x60] sm:$0xff]
  %v1325 = vld [vmem:[%s1007 + $0x68] sm:$0xff]
  %v1326 = vld [vmem:[%s1007 + $0x78] sm:$0xff]
  %v1327 = vld [vmem:[%s1007 + $0x80] sm:$0xff]
  %v1328 = vld [vmem:[%s1007 + $0x90] sm:$0xff]
  %v1329 = vld [vmem:[%s1007 + $0x98] sm:$0xff]
  %v1330 = vld [vmem:[%s1007 + $0xa8] sm:$0xff]
  %v1331 = vld [vmem:[%s1007 + $0xb0] sm:$0xff]
  %1332 = vst.msk [vmem:[#allocation4 + $0x10] sm:$0xff] %vm39, %v1316
  %1333 = vst.msk [vmem:[#allocation4 + $0x50] sm:$0xff] %vm39, %v1317
  %1334 = vst.msk [vmem:[#allocation4 + $0x90] sm:$0xff] %vm39, %v1318
  %1335 = vst.msk [vmem:[#allocation4 + $0xd0] sm:$0xff] %vm39, %v1319
  %1336 = vst.msk [vmem:[#allocation4 + $0x110] sm:$0xff] %vm39, %v1320
  %1337 = vst.msk [vmem:[#allocation4 + $0x150] sm:$0xff] %vm39, %v1321
  %1338 = vst.msk [vmem:[#allocation4 + $0x190] sm:$0xff] %vm39, %v1322
  %1339 = vst.msk [vmem:[#allocation4 + $0x1d0] sm:$0xff] %vm39, %v1323
  %1340 = vst.msk [vmem:[#allocation4 + $0x210] sm:$0xff] %vm39, %v1324
  %1341 = vst.msk [vmem:[#allocation4 + $0x250] sm:$0xff] %vm39, %v1325
  %1342 = vst.msk [vmem:[#allocation4 + $0x290] sm:$0xff] %vm39, %v1326
  %1343 = vst.msk [vmem:[#allocation4 + $0x2d0] sm:$0xff] %vm39, %v1327
  %1344 = vst.msk [vmem:[#allocation4 + $0x310] sm:$0xff] %vm39, %v1328
  %1345 = vst.msk [vmem:[#allocation4 + $0x350] sm:$0xff] %vm39, %v1329
  %1346 = vst.msk [vmem:[#allocation4 + $0x390] sm:$0xff] %vm39, %v1330
  %1347 = vst.msk [vmem:[#allocation4 + $0x3d0] sm:$0xff] %vm39, %v1331
  %v1348 = vld [vmem:[%s990] sm:$0xff]
  %v1349 = vld [vmem:[%s990 + $0x8] sm:$0xff]
  %v1350 = vld [vmem:[%s990 + $0x18] sm:$0xff]
  %v1351 = vld [vmem:[%s990 + $0x20] sm:$0xff]
  %v1352 = vld [vmem:[%s990 + $0x30] sm:$0xff]
  %v1353 = vld [vmem:[%s990 + $0x38] sm:$0xff]
  %v1354 = vld [vmem:[%s990 + $0x48] sm:$0xff]
  %v1355 = vld [vmem:[%s990 + $0x50] sm:$0xff]
  %v1356 = vld [vmem:[%s990 + $0x60] sm:$0xff]
  %v1357 = vld [vmem:[%s990 + $0x68] sm:$0xff]
  %v1358 = vld [vmem:[%s990 + $0x78] sm:$0xff]
  %v1359 = vld [vmem:[%s990 + $0x80] sm:$0xff]
  %v1360 = vld [vmem:[%s990 + $0x90] sm:$0xff]
  %v1361 = vld [vmem:[%s990 + $0x98] sm:$0xff]
  %v1362 = vld [vmem:[%s990 + $0xa8] sm:$0xff]
  %v1363 = vld [vmem:[%s990 + $0xb0] sm:$0xff]
  %1380 = vrot.lane.b32.xlu0 %v1348, 64
  %v1381 = vpop.permute.xlu0 %1380
  %1382 = vrot.lane.b32.xlu0 %v1349, 64
  %v1383 = vpop.permute.xlu0 %1382
  %1384 = vrot.lane.b32.xlu0 %v1350, 64
  %v1385 = vpop.permute.xlu0 %1384
  %1386 = vrot.lane.b32.xlu0 %v1351, 64
  %v1387 = vpop.permute.xlu0 %1386
  %1388 = vrot.lane.b32.xlu0 %v1352, 64
  %v1389 = vpop.permute.xlu0 %1388
  %1390 = vrot.lane.b32.xlu0 %v1353, 64
  %v1391 = vpop.permute.xlu0 %1390
  %1392 = vrot.lane.b32.xlu0 %v1354, 64
  %v1393 = vpop.permute.xlu0 %1392
  %1394 = vrot.lane.b32.xlu0 %v1355, 64
  %v1395 = vpop.permute.xlu0 %1394
  %1396 = vrot.lane.b32.xlu0 %v1356, 64
  %v1397 = vpop.permute.xlu0 %1396
  %1398 = vrot.lane.b32.xlu0 %v1357, 64
  %v1399 = vpop.permute.xlu0 %1398
  %1400 = vrot.lane.b32.xlu0 %v1358, 64
  %v1401 = vpop.permute.xlu0 %1400
  %1402 = vrot.lane.b32.xlu0 %v1359, 64
  %v1403 = vpop.permute.xlu0 %1402
  %1404 = vrot.lane.b32.xlu0 %v1360, 64
  %v1405 = vpop.permute.xlu0 %1404
  %1406 = vrot.lane.b32.xlu0 %v1361, 64
  %v1407 = vpop.permute.xlu0 %1406
  %1408 = vrot.lane.b32.xlu0 %v1362, 64
  %v1409 = vpop.permute.xlu0 %1408
  %1410 = vrot.lane.b32.xlu0 %v1363, 64
  %v1411 = vpop.permute.xlu0 %1410
  %1428 = vst.msk [vmem:[#allocation4 + $0x10] sm:$0xff] %vm1171, %v1381
  %1429 = vst.msk [vmem:[#allocation4 + $0x50] sm:$0xff] %vm1171, %v1383
  %1430 = vst.msk [vmem:[#allocation4 + $0x90] sm:$0xff] %vm1171, %v1385
  %1431 = vst.msk [vmem:[#allocation4 + $0xd0] sm:$0xff] %vm1171, %v1387
  %1432 = vst.msk [vmem:[#allocation4 + $0x110] sm:$0xff] %vm1171, %v1389
  %1433 = vst.msk [vmem:[#allocation4 + $0x150] sm:$0xff] %vm1171, %v1391
  %1434 = vst.msk [vmem:[#allocation4 + $0x190] sm:$0xff] %vm1171, %v1393
  %1435 = vst.msk [vmem:[#allocation4 + $0x1d0] sm:$0xff] %vm1171, %v1395
  %1436 = vst.msk [vmem:[#allocation4 + $0x210] sm:$0xff] %vm1171, %v1397
  %1437 = vst.msk [vmem:[#allocation4 + $0x250] sm:$0xff] %vm1171, %v1399
  %1438 = vst.msk [vmem:[#allocation4 + $0x290] sm:$0xff] %vm1171, %v1401
  %1439 = vst.msk [vmem:[#allocation4 + $0x2d0] sm:$0xff] %vm1171, %v1403
  %1440 = vst.msk [vmem:[#allocation4 + $0x310] sm:$0xff] %vm1171, %v1405
  %1441 = vst.msk [vmem:[#allocation4 + $0x350] sm:$0xff] %vm1171, %v1407
  %1442 = vst.msk [vmem:[#allocation4 + $0x390] sm:$0xff] %vm1171, %v1409
  %1443 = vst.msk [vmem:[#allocation4 + $0x3d0] sm:$0xff] %vm1171, %v1411
  %v1444 = vld [vmem:[%s1007 + $0x2] sm:$0xff]
  %v1445 = vld [vmem:[%s1007 + $0xa] sm:$0xff]
  %v1446 = vld [vmem:[%s1007 + $0x1a] sm:$0xff]
  %v1447 = vld [vmem:[%s1007 + $0x22] sm:$0xff]
  %v1448 = vld [vmem:[%s1007 + $0x32] sm:$0xff]
  %v1449 = vld [vmem:[%s1007 + $0x3a] sm:$0xff]
  %v1450 = vld [vmem:[%s1007 + $0x4a] sm:$0xff]
  %v1451 = vld [vmem:[%s1007 + $0x52] sm:$0xff]
  %v1452 = vld [vmem:[%s1007 + $0x62] sm:$0xff]
  %v1453 = vld [vmem:[%s1007 + $0x6a] sm:$0xff]
  %v1454 = vld [vmem:[%s1007 + $0x7a] sm:$0xff]
  %v1455 = vld [vmem:[%s1007 + $0x82] sm:$0xff]
  %v1456 = vld [vmem:[%s1007 + $0x92] sm:$0xff]
  %v1457 = vld [vmem:[%s1007 + $0x9a] sm:$0xff]
  %v1458 = vld [vmem:[%s1007 + $0xaa] sm:$0xff]
  %v1459 = vld [vmem:[%s1007 + $0xb2] sm:$0xff]
  %1460 = vst.msk [vmem:[#allocation4 + $0x18] sm:$0xff] %vm39, %v1444
  %1461 = vst.msk [vmem:[#allocation4 + $0x58] sm:$0xff] %vm39, %v1445
  %1462 = vst.msk [vmem:[#allocation4 + $0x98] sm:$0xff] %vm39, %v1446
  %1463 = vst.msk [vmem:[#allocation4 + $0xd8] sm:$0xff] %vm39, %v1447
  %1464 = vst.msk [vmem:[#allocation4 + $0x118] sm:$0xff] %vm39, %v1448
  %1465 = vst.msk [vmem:[#allocation4 + $0x158] sm:$0xff] %vm39, %v1449
  %1466 = vst.msk [vmem:[#allocation4 + $0x198] sm:$0xff] %vm39, %v1450
  %1467 = vst.msk [vmem:[#allocation4 + $0x1d8] sm:$0xff] %vm39, %v1451
  %1468 = vst.msk [vmem:[#allocation4 + $0x218] sm:$0xff] %vm39, %v1452
  %1469 = vst.msk [vmem:[#allocation4 + $0x258] sm:$0xff] %vm39, %v1453
  %1470 = vst.msk [vmem:[#allocation4 + $0x298] sm:$0xff] %vm39, %v1454
  %1471 = vst.msk [vmem:[#allocation4 + $0x2d8] sm:$0xff] %vm39, %v1455
  %1472 = vst.msk [vmem:[#allocation4 + $0x318] sm:$0xff] %vm39, %v1456
  %1473 = vst.msk [vmem:[#allocation4 + $0x358] sm:$0xff] %vm39, %v1457
  %1474 = vst.msk [vmem:[#allocation4 + $0x398] sm:$0xff] %vm39, %v1458
  %1475 = vst.msk [vmem:[#allocation4 + $0x3d8] sm:$0xff] %vm39, %v1459
  %v1476 = vld [vmem:[%s990 + $0x2] sm:$0xff]
  %v1477 = vld [vmem:[%s990 + $0xa] sm:$0xff]
  %v1478 = vld [vmem:[%s990 + $0x1a] sm:$0xff]
  %v1479 = vld [vmem:[%s990 + $0x22] sm:$0xff]
  %v1480 = vld [vmem:[%s990 + $0x32] sm:$0xff]
  %v1481 = vld [vmem:[%s990 + $0x3a] sm:$0xff]
  %v1482 = vld [vmem:[%s990 + $0x4a] sm:$0xff]
  %v1483 = vld [vmem:[%s990 + $0x52] sm:$0xff]
  %v1484 = vld [vmem:[%s990 + $0x62] sm:$0xff]
  %v1485 = vld [vmem:[%s990 + $0x6a] sm:$0xff]
  %v1486 = vld [vmem:[%s990 + $0x7a] sm:$0xff]
  %v1487 = vld [vmem:[%s990 + $0x82] sm:$0xff]
  %v1488 = vld [vmem:[%s990 + $0x92] sm:$0xff]
  %v1489 = vld [vmem:[%s990 + $0x9a] sm:$0xff]
  %v1490 = vld [vmem:[%s990 + $0xaa] sm:$0xff]
  %v1491 = vld [vmem:[%s990 + $0xb2] sm:$0xff]
  %1508 = vrot.lane.b32.xlu0 %v1476, 64
  %v1509 = vpop.permute.xlu0 %1508
  %1510 = vrot.lane.b32.xlu0 %v1477, 64
  %v1511 = vpop.permute.xlu0 %1510
  %1512 = vrot.lane.b32.xlu0 %v1478, 64
  %v1513 = vpop.permute.xlu0 %1512
  %1514 = vrot.lane.b32.xlu0 %v1479, 64
  %v1515 = vpop.permute.xlu0 %1514
  %1516 = vrot.lane.b32.xlu0 %v1480, 64
  %v1517 = vpop.permute.xlu0 %1516
  %1518 = vrot.lane.b32.xlu0 %v1481, 64
  %v1519 = vpop.permute.xlu0 %1518
  %1520 = vrot.lane.b32.xlu0 %v1482, 64
  %v1521 = vpop.permute.xlu0 %1520
  %1522 = vrot.lane.b32.xlu0 %v1483, 64
  %v1523 = vpop.permute.xlu0 %1522
  %1524 = vrot.lane.b32.xlu0 %v1484, 64
  %v1525 = vpop.permute.xlu0 %1524
  %1526 = vrot.lane.b32.xlu0 %v1485, 64
  %v1527 = vpop.permute.xlu0 %1526
  %1528 = vrot.lane.b32.xlu0 %v1486, 64
  %v1529 = vpop.permute.xlu0 %1528
  %1530 = vrot.lane.b32.xlu0 %v1487, 64
  %v1531 = vpop.permute.xlu0 %1530
  %1532 = vrot.lane.b32.xlu0 %v1488, 64
  %v1533 = vpop.permute.xlu0 %1532
  %1534 = vrot.lane.b32.xlu0 %v1489, 64
  %v1535 = vpop.permute.xlu0 %1534
  %1536 = vrot.lane.b32.xlu0 %v1490, 64
  %v1537 = vpop.permute.xlu0 %1536
  %1538 = vrot.lane.b32.xlu0 %v1491, 64
  %v1539 = vpop.permute.xlu0 %1538
  %1556 = vst.msk [vmem:[#allocation4 + $0x18] sm:$0xff] %vm1171, %v1509
  %1557 = vst.msk [vmem:[#allocation4 + $0x58] sm:$0xff] %vm1171, %v1511
  %1558 = vst.msk [vmem:[#allocation4 + $0x98] sm:$0xff] %vm1171, %v1513
  %1559 = vst.msk [vmem:[#allocation4 + $0xd8] sm:$0xff] %vm1171, %v1515
  %1560 = vst.msk [vmem:[#allocation4 + $0x118] sm:$0xff] %vm1171, %v1517
  %1561 = vst.msk [vmem:[#allocation4 + $0x158] sm:$0xff] %vm1171, %v1519
  %1562 = vst.msk [vmem:[#allocation4 + $0x198] sm:$0xff] %vm1171, %v1521
  %1563 = vst.msk [vmem:[#allocation4 + $0x1d8] sm:$0xff] %vm1171, %v1523
  %1564 = vst.msk [vmem:[#allocation4 + $0x218] sm:$0xff] %vm1171, %v1525
  %1565 = vst.msk [vmem:[#allocation4 + $0x258] sm:$0xff] %vm1171, %v1527
  %1566 = vst.msk [vmem:[#allocation4 + $0x298] sm:$0xff] %vm1171, %v1529
  %1567 = vst.msk [vmem:[#allocation4 + $0x2d8] sm:$0xff] %vm1171, %v1531
  %1568 = vst.msk [vmem:[#allocation4 + $0x318] sm:$0xff] %vm1171, %v1533
  %1569 = vst.msk [vmem:[#allocation4 + $0x358] sm:$0xff] %vm1171, %v1535
  %1570 = vst.msk [vmem:[#allocation4 + $0x398] sm:$0xff] %vm1171, %v1537
  %1571 = vst.msk [vmem:[#allocation4 + $0x3d8] sm:$0xff] %vm1171, %v1539
  %v1572 = vld [vmem:[%s1041] sm:$0xff]
  %v1573 = vld [vmem:[%s1041 + $0x8] sm:$0xff]
  %v1574 = vld [vmem:[%s1041 + $0x18] sm:$0xff]
  %v1575 = vld [vmem:[%s1041 + $0x20] sm:$0xff]
  %v1576 = vld [vmem:[%s1041 + $0x30] sm:$0xff]
  %v1577 = vld [vmem:[%s1041 + $0x38] sm:$0xff]
  %v1578 = vld [vmem:[%s1041 + $0x48] sm:$0xff]
  %v1579 = vld [vmem:[%s1041 + $0x50] sm:$0xff]
  %v1580 = vld [vmem:[%s1041 + $0x60] sm:$0xff]
  %v1581 = vld [vmem:[%s1041 + $0x68] sm:$0xff]
  %v1582 = vld [vmem:[%s1041 + $0x78] sm:$0xff]
  %v1583 = vld [vmem:[%s1041 + $0x80] sm:$0xff]
  %v1584 = vld [vmem:[%s1041 + $0x90] sm:$0xff]
  %v1585 = vld [vmem:[%s1041 + $0x98] sm:$0xff]
  %v1586 = vld [vmem:[%s1041 + $0xa8] sm:$0xff]
  %v1587 = vld [vmem:[%s1041 + $0xb0] sm:$0xff]
  %1588 = vst.msk [vmem:[#allocation4 + $0x20] sm:$0xff] %vm39, %v1572
  %1589 = vst.msk [vmem:[#allocation4 + $0x60] sm:$0xff] %vm39, %v1573
  %1590 = vst.msk [vmem:[#allocation4 + $0xa0] sm:$0xff] %vm39, %v1574
  %1591 = vst.msk [vmem:[#allocation4 + $0xe0] sm:$0xff] %vm39, %v1575
  %1592 = vst.msk [vmem:[#allocation4 + $0x120] sm:$0xff] %vm39, %v1576
  %1593 = vst.msk [vmem:[#allocation4 + $0x160] sm:$0xff] %vm39, %v1577
  %1594 = vst.msk [vmem:[#allocation4 + $0x1a0] sm:$0xff] %vm39, %v1578
  %1595 = vst.msk [vmem:[#allocation4 + $0x1e0] sm:$0xff] %vm39, %v1579
  %1596 = vst.msk [vmem:[#allocation4 + $0x220] sm:$0xff] %vm39, %v1580
  %1597 = vst.msk [vmem:[#allocation4 + $0x260] sm:$0xff] %vm39, %v1581
  %1598 = vst.msk [vmem:[#allocation4 + $0x2a0] sm:$0xff] %vm39, %v1582
  %1599 = vst.msk [vmem:[#allocation4 + $0x2e0] sm:$0xff] %vm39, %v1583
  %1600 = vst.msk [vmem:[#allocation4 + $0x320] sm:$0xff] %vm39, %v1584
  %1601 = vst.msk [vmem:[#allocation4 + $0x360] sm:$0xff] %vm39, %v1585
  %1602 = vst.msk [vmem:[#allocation4 + $0x3a0] sm:$0xff] %vm39, %v1586
  %1603 = vst.msk [vmem:[#allocation4 + $0x3e0] sm:$0xff] %vm39, %v1587
  %v1604 = vld [vmem:[%s1024] sm:$0xff]
  %v1605 = vld [vmem:[%s1024 + $0x8] sm:$0xff]
  %v1606 = vld [vmem:[%s1024 + $0x18] sm:$0xff]
  %v1607 = vld [vmem:[%s1024 + $0x20] sm:$0xff]
  %v1608 = vld [vmem:[%s1024 + $0x30] sm:$0xff]
  %v1609 = vld [vmem:[%s1024 + $0x38] sm:$0xff]
  %v1610 = vld [vmem:[%s1024 + $0x48] sm:$0xff]
  %v1611 = vld [vmem:[%s1024 + $0x50] sm:$0xff]
  %v1612 = vld [vmem:[%s1024 + $0x60] sm:$0xff]
  %v1613 = vld [vmem:[%s1024 + $0x68] sm:$0xff]
  %v1614 = vld [vmem:[%s1024 + $0x78] sm:$0xff]
  %v1615 = vld [vmem:[%s1024 + $0x80] sm:$0xff]
  %v1616 = vld [vmem:[%s1024 + $0x90] sm:$0xff]
  %v1617 = vld [vmem:[%s1024 + $0x98] sm:$0xff]
  %v1618 = vld [vmem:[%s1024 + $0xa8] sm:$0xff]
  %v1619 = vld [vmem:[%s1024 + $0xb0] sm:$0xff]
  %1636 = vrot.lane.b32.xlu0 %v1604, 64
  %v1637 = vpop.permute.xlu0 %1636
  %1638 = vrot.lane.b32.xlu0 %v1605, 64
  %v1639 = vpop.permute.xlu0 %1638
  %1640 = vrot.lane.b32.xlu0 %v1606, 64
  %v1641 = vpop.permute.xlu0 %1640
  %1642 = vrot.lane.b32.xlu0 %v1607, 64
  %v1643 = vpop.permute.xlu0 %1642
  %1644 = vrot.lane.b32.xlu0 %v1608, 64
  %v1645 = vpop.permute.xlu0 %1644
  %1646 = vrot.lane.b32.xlu0 %v1609, 64
  %v1647 = vpop.permute.xlu0 %1646
  %1648 = vrot.lane.b32.xlu0 %v1610, 64
  %v1649 = vpop.permute.xlu0 %1648
  %1650 = vrot.lane.b32.xlu0 %v1611, 64
  %v1651 = vpop.permute.xlu0 %1650
  %1652 = vrot.lane.b32.xlu0 %v1612, 64
  %v1653 = vpop.permute.xlu0 %1652
  %1654 = vrot.lane.b32.xlu0 %v1613, 64
  %v1655 = vpop.permute.xlu0 %1654
  %1656 = vrot.lane.b32.xlu0 %v1614, 64
  %v1657 = vpop.permute.xlu0 %1656
  %1658 = vrot.lane.b32.xlu0 %v1615, 64
  %v1659 = vpop.permute.xlu0 %1658
  %1660 = vrot.lane.b32.xlu0 %v1616, 64
  %v1661 = vpop.permute.xlu0 %1660
  %1662 = vrot.lane.b32.xlu0 %v1617, 64
  %v1663 = vpop.permute.xlu0 %1662
  %1664 = vrot.lane.b32.xlu0 %v1618, 64
  %v1665 = vpop.permute.xlu0 %1664
  %1666 = vrot.lane.b32.xlu0 %v1619, 64
  %v1667 = vpop.permute.xlu0 %1666
  %1684 = vst.msk [vmem:[#allocation4 + $0x20] sm:$0xff] %vm1171, %v1637
  %1685 = vst.msk [vmem:[#allocation4 + $0x60] sm:$0xff] %vm1171, %v1639
  %1686 = vst.msk [vmem:[#allocation4 + $0xa0] sm:$0xff] %vm1171, %v1641
  %1687 = vst.msk [vmem:[#allocation4 + $0xe0] sm:$0xff] %vm1171, %v1643
  %1688 = vst.msk [vmem:[#allocation4 + $0x120] sm:$0xff] %vm1171, %v1645
  %1689 = vst.msk [vmem:[#allocation4 + $0x160] sm:$0xff] %vm1171, %v1647
  %1690 = vst.msk [vmem:[#allocation4 + $0x1a0] sm:$0xff] %vm1171, %v1649
  %1691 = vst.msk [vmem:[#allocation4 + $0x1e0] sm:$0xff] %vm1171, %v1651
  %1692 = vst.msk [vmem:[#allocation4 + $0x220] sm:$0xff] %vm1171, %v1653
  %1693 = vst.msk [vmem:[#allocation4 + $0x260] sm:$0xff] %vm1171, %v1655
  %1694 = vst.msk [vmem:[#allocation4 + $0x2a0] sm:$0xff] %vm1171, %v1657
  %1695 = vst.msk [vmem:[#allocation4 + $0x2e0] sm:$0xff] %vm1171, %v1659
  %1696 = vst.msk [vmem:[#allocation4 + $0x320] sm:$0xff] %vm1171, %v1661
  %1697 = vst.msk [vmem:[#allocation4 + $0x360] sm:$0xff] %vm1171, %v1663
  %1698 = vst.msk [vmem:[#allocation4 + $0x3a0] sm:$0xff] %vm1171, %v1665
  %1699 = vst.msk [vmem:[#allocation4 + $0x3e0] sm:$0xff] %vm1171, %v1667
  %v1700 = vld [vmem:[%s1041 + $0x2] sm:$0xff]
  %v1701 = vld [vmem:[%s1041 + $0xa] sm:$0xff]
  %v1702 = vld [vmem:[%s1041 + $0x1a] sm:$0xff]
  %v1703 = vld [vmem:[%s1041 + $0x22] sm:$0xff]
  %v1704 = vld [vmem:[%s1041 + $0x32] sm:$0xff]
  %v1705 = vld [vmem:[%s1041 + $0x3a] sm:$0xff]
  %v1706 = vld [vmem:[%s1041 + $0x4a] sm:$0xff]
  %v1707 = vld [vmem:[%s1041 + $0x52] sm:$0xff]
  %v1708 = vld [vmem:[%s1041 + $0x62] sm:$0xff]
  %v1709 = vld [vmem:[%s1041 + $0x6a] sm:$0xff]
  %v1710 = vld [vmem:[%s1041 + $0x7a] sm:$0xff]
  %v1711 = vld [vmem:[%s1041 + $0x82] sm:$0xff]
  %v1712 = vld [vmem:[%s1041 + $0x92] sm:$0xff]
  %v1713 = vld [vmem:[%s1041 + $0x9a] sm:$0xff]
  %v1714 = vld [vmem:[%s1041 + $0xaa] sm:$0xff]
  %v1715 = vld [vmem:[%s1041 + $0xb2] sm:$0xff]
  %1716 = vst.msk [vmem:[#allocation4 + $0x28] sm:$0xff] %vm39, %v1700
  %1717 = vst.msk [vmem:[#allocation4 + $0x68] sm:$0xff] %vm39, %v1701
  %1718 = vst.msk [vmem:[#allocation4 + $0xa8] sm:$0xff] %vm39, %v1702
  %1719 = vst.msk [vmem:[#allocation4 + $0xe8] sm:$0xff] %vm39, %v1703
  %1720 = vst.msk [vmem:[#allocation4 + $0x128] sm:$0xff] %vm39, %v1704
  %1721 = vst.msk [vmem:[#allocation4 + $0x168] sm:$0xff] %vm39, %v1705
  %1722 = vst.msk [vmem:[#allocation4 + $0x1a8] sm:$0xff] %vm39, %v1706
  %1723 = vst.msk [vmem:[#allocation4 + $0x1e8] sm:$0xff] %vm39, %v1707
  %1724 = vst.msk [vmem:[#allocation4 + $0x228] sm:$0xff] %vm39, %v1708
  %1725 = vst.msk [vmem:[#allocation4 + $0x268] sm:$0xff] %vm39, %v1709
  %1726 = vst.msk [vmem:[#allocation4 + $0x2a8] sm:$0xff] %vm39, %v1710
  %1727 = vst.msk [vmem:[#allocation4 + $0x2e8] sm:$0xff] %vm39, %v1711
  %1728 = vst.msk [vmem:[#allocation4 + $0x328] sm:$0xff] %vm39, %v1712
  %1729 = vst.msk [vmem:[#allocation4 + $0x368] sm:$0xff] %vm39, %v1713
  %1730 = vst.msk [vmem:[#allocation4 + $0x3a8] sm:$0xff] %vm39, %v1714
  %1731 = vst.msk [vmem:[#allocation4 + $0x3e8] sm:$0xff] %vm39, %v1715
  %v1732 = vld [vmem:[%s1024 + $0x2] sm:$0xff]
  %v1733 = vld [vmem:[%s1024 + $0xa] sm:$0xff]
  %v1734 = vld [vmem:[%s1024 + $0x1a] sm:$0xff]
  %v1735 = vld [vmem:[%s1024 + $0x22] sm:$0xff]
  %v1736 = vld [vmem:[%s1024 + $0x32] sm:$0xff]
  %v1737 = vld [vmem:[%s1024 + $0x3a] sm:$0xff]
  %v1738 = vld [vmem:[%s1024 + $0x4a] sm:$0xff]
  %v1739 = vld [vmem:[%s1024 + $0x52] sm:$0xff]
  %v1740 = vld [vmem:[%s1024 + $0x62] sm:$0xff]
  %v1741 = vld [vmem:[%s1024 + $0x6a] sm:$0xff]
  %v1742 = vld [vmem:[%s1024 + $0x7a] sm:$0xff]
  %v1743 = vld [vmem:[%s1024 + $0x82] sm:$0xff]
  %v1744 = vld [vmem:[%s1024 + $0x92] sm:$0xff]
  %v1745 = vld [vmem:[%s1024 + $0x9a] sm:$0xff]
  %v1746 = vld [vmem:[%s1024 + $0xaa] sm:$0xff]
  %v1747 = vld [vmem:[%s1024 + $0xb2] sm:$0xff]
  %1764 = vrot.lane.b32.xlu0 %v1732, 64
  %v1765 = vpop.permute.xlu0 %1764
  %1766 = vrot.lane.b32.xlu0 %v1733, 64
  %v1767 = vpop.permute.xlu0 %1766
  %1768 = vrot.lane.b32.xlu0 %v1734, 64
  %v1769 = vpop.permute.xlu0 %1768
  %1770 = vrot.lane.b32.xlu0 %v1735, 64
  %v1771 = vpop.permute.xlu0 %1770
  %1772 = vrot.lane.b32.xlu0 %v1736, 64
  %v1773 = vpop.permute.xlu0 %1772
  %1774 = vrot.lane.b32.xlu0 %v1737, 64
  %v1775 = vpop.permute.xlu0 %1774
  %1776 = vrot.lane.b32.xlu0 %v1738, 64
  %v1777 = vpop.permute.xlu0 %1776
  %1778 = vrot.lane.b32.xlu0 %v1739, 64
  %v1779 = vpop.permute.xlu0 %1778
  %1780 = vrot.lane.b32.xlu0 %v1740, 64
  %v1781 = vpop.permute.xlu0 %1780
  %1782 = vrot.lane.b32.xlu0 %v1741, 64
  %v1783 = vpop.permute.xlu0 %1782
  %1784 = vrot.lane.b32.xlu0 %v1742, 64
  %v1785 = vpop.permute.xlu0 %1784
  %1786 = vrot.lane.b32.xlu0 %v1743, 64
  %v1787 = vpop.permute.xlu0 %1786
  %1788 = vrot.lane.b32.xlu0 %v1744, 64
  %v1789 = vpop.permute.xlu0 %1788
  %1790 = vrot.lane.b32.xlu0 %v1745, 64
  %v1791 = vpop.permute.xlu0 %1790
  %1792 = vrot.lane.b32.xlu0 %v1746, 64
  %v1793 = vpop.permute.xlu0 %1792
  %1794 = vrot.lane.b32.xlu0 %v1747, 64
  %v1795 = vpop.permute.xlu0 %1794
  %1812 = vst.msk [vmem:[#allocation4 + $0x28] sm:$0xff] %vm1171, %v1765
  %1813 = vst.msk [vmem:[#allocation4 + $0x68] sm:$0xff] %vm1171, %v1767
  %1814 = vst.msk [vmem:[#allocation4 + $0xa8] sm:$0xff] %vm1171, %v1769
  %1815 = vst.msk [vmem:[#allocation4 + $0xe8] sm:$0xff] %vm1171, %v1771
  %1816 = vst.msk [vmem:[#allocation4 + $0x128] sm:$0xff] %vm1171, %v1773
  %1817 = vst.msk [vmem:[#allocation4 + $0x168] sm:$0xff] %vm1171, %v1775
  %1818 = vst.msk [vmem:[#allocation4 + $0x1a8] sm:$0xff] %vm1171, %v1777
  %1819 = vst.msk [vmem:[#allocation4 + $0x1e8] sm:$0xff] %vm1171, %v1779
  %1820 = vst.msk [vmem:[#allocation4 + $0x228] sm:$0xff] %vm1171, %v1781
  %1821 = vst.msk [vmem:[#allocation4 + $0x268] sm:$0xff] %vm1171, %v1783
  %1822 = vst.msk [vmem:[#allocation4 + $0x2a8] sm:$0xff] %vm1171, %v1785
  %1823 = vst.msk [vmem:[#allocation4 + $0x2e8] sm:$0xff] %vm1171, %v1787
  %1824 = vst.msk [vmem:[#allocation4 + $0x328] sm:$0xff] %vm1171, %v1789
  %1825 = vst.msk [vmem:[#allocation4 + $0x368] sm:$0xff] %vm1171, %v1791
  %1826 = vst.msk [vmem:[#allocation4 + $0x3a8] sm:$0xff] %vm1171, %v1793
  %1827 = vst.msk [vmem:[#allocation4 + $0x3e8] sm:$0xff] %vm1171, %v1795
  %s1828 = scalar_lea.vmem [#allocation2], 456
  %v1829 = vld [vmem:[%s1828] sm:$0xff]
  %v1830 = vld [vmem:[%s1828 + $0x8] sm:$0xff]
  %v1831 = vld [vmem:[%s1828 + $0x18] sm:$0xff]
  %v1832 = vld [vmem:[%s1828 + $0x20] sm:$0xff]
  %v1833 = vld [vmem:[%s1828 + $0x30] sm:$0xff]
  %v1834 = vld [vmem:[%s1828 + $0x38] sm:$0xff]
  %v1835 = vld [vmem:[%s1828 + $0x48] sm:$0xff]
  %v1836 = vld [vmem:[%s1828 + $0x50] sm:$0xff]
  %v1837 = vld [vmem:[%s1828 + $0x60] sm:$0xff]
  %v1838 = vld [vmem:[%s1828 + $0x68] sm:$0xff]
  %v1839 = vld [vmem:[%s1828 + $0x78] sm:$0xff]
  %v1840 = vld [vmem:[%s1828 + $0x80] sm:$0xff]
  %v1841 = vld [vmem:[%s1828 + $0x90] sm:$0xff]
  %v1842 = vld [vmem:[%s1828 + $0x98] sm:$0xff]
  %v1843 = vld [vmem:[%s1828 + $0xa8] sm:$0xff]
  %v1844 = vld [vmem:[%s1828 + $0xb0] sm:$0xff]
  %1845 = vst.msk [vmem:[#allocation4 + $0x30] sm:$0xff] %vm39, %v1829
  %1846 = vst.msk [vmem:[#allocation4 + $0x70] sm:$0xff] %vm39, %v1830
  %1847 = vst.msk [vmem:[#allocation4 + $0xb0] sm:$0xff] %vm39, %v1831
  %1848 = vst.msk [vmem:[#allocation4 + $0xf0] sm:$0xff] %vm39, %v1832
  %1849 = vst.msk [vmem:[#allocation4 + $0x130] sm:$0xff] %vm39, %v1833
  %1850 = vst.msk [vmem:[#allocation4 + $0x170] sm:$0xff] %vm39, %v1834
  %1851 = vst.msk [vmem:[#allocation4 + $0x1b0] sm:$0xff] %vm39, %v1835
  %1852 = vst.msk [vmem:[#allocation4 + $0x1f0] sm:$0xff] %vm39, %v1836
  %1853 = vst.msk [vmem:[#allocation4 + $0x230] sm:$0xff] %vm39, %v1837
  %1854 = vst.msk [vmem:[#allocation4 + $0x270] sm:$0xff] %vm39, %v1838
  %1855 = vst.msk [vmem:[#allocation4 + $0x2b0] sm:$0xff] %vm39, %v1839
  %1856 = vst.msk [vmem:[#allocation4 + $0x2f0] sm:$0xff] %vm39, %v1840
  %1857 = vst.msk [vmem:[#allocation4 + $0x330] sm:$0xff] %vm39, %v1841
  %1858 = vst.msk [vmem:[#allocation4 + $0x370] sm:$0xff] %vm39, %v1842
  %1859 = vst.msk [vmem:[#allocation4 + $0x3b0] sm:$0xff] %vm39, %v1843
  %1860 = vst.msk [vmem:[#allocation4 + $0x3f0] sm:$0xff] %vm39, %v1844
  %s1861 = scalar_lea.vmem [#allocation2], 672
  %v1862 = vld [vmem:[%s1861] sm:$0xff]
  %v1863 = vld [vmem:[%s1861 + $0x8] sm:$0xff]
  %v1864 = vld [vmem:[%s1861 + $0x18] sm:$0xff]
  %v1865 = vld [vmem:[%s1861 + $0x20] sm:$0xff]
  %v1866 = vld [vmem:[%s1861 + $0x30] sm:$0xff]
  %v1867 = vld [vmem:[%s1861 + $0x38] sm:$0xff]
  %v1868 = vld [vmem:[%s1861 + $0x48] sm:$0xff]
  %v1869 = vld [vmem:[%s1861 + $0x50] sm:$0xff]
  %v1870 = vld [vmem:[%s1861 + $0x60] sm:$0xff]
  %v1871 = vld [vmem:[%s1861 + $0x68] sm:$0xff]
  %v1872 = vld [vmem:[%s1861 + $0x78] sm:$0xff]
  %v1873 = vld [vmem:[%s1861 + $0x80] sm:$0xff]
  %v1874 = vld [vmem:[%s1861 + $0x90] sm:$0xff]
  %v1875 = vld [vmem:[%s1861 + $0x98] sm:$0xff]
  %v1876 = vld [vmem:[%s1861 + $0xa8] sm:$0xff]
  %v1877 = vld [vmem:[%s1861 + $0xb0] sm:$0xff]
  %1894 = vrot.lane.b32.xlu0 %v1862, 64
  %v1895 = vpop.permute.xlu0 %1894
  %1896 = vrot.lane.b32.xlu0 %v1863, 64
  %v1897 = vpop.permute.xlu0 %1896
  %1898 = vrot.lane.b32.xlu0 %v1864, 64
  %v1899 = vpop.permute.xlu0 %1898
  %1900 = vrot.lane.b32.xlu0 %v1865, 64
  %v1901 = vpop.permute.xlu0 %1900
  %1902 = vrot.lane.b32.xlu0 %v1866, 64
  %v1903 = vpop.permute.xlu0 %1902
  %1904 = vrot.lane.b32.xlu0 %v1867, 64
  %v1905 = vpop.permute.xlu0 %1904
  %1906 = vrot.lane.b32.xlu0 %v1868, 64
  %v1907 = vpop.permute.xlu0 %1906
  %1908 = vrot.lane.b32.xlu0 %v1869, 64
  %v1909 = vpop.permute.xlu0 %1908
  %1910 = vrot.lane.b32.xlu0 %v1870, 64
  %v1911 = vpop.permute.xlu0 %1910
  %1912 = vrot.lane.b32.xlu0 %v1871, 64
  %v1913 = vpop.permute.xlu0 %1912
  %1914 = vrot.lane.b32.xlu0 %v1872, 64
  %v1915 = vpop.permute.xlu0 %1914
  %1916 = vrot.lane.b32.xlu0 %v1873, 64
  %v1917 = vpop.permute.xlu0 %1916
  %1918 = vrot.lane.b32.xlu0 %v1874, 64
  %v1919 = vpop.permute.xlu0 %1918
  %1920 = vrot.lane.b32.xlu0 %v1875, 64
  %v1921 = vpop.permute.xlu0 %1920
  %1922 = vrot.lane.b32.xlu0 %v1876, 64
  %v1923 = vpop.permute.xlu0 %1922
  %1924 = vrot.lane.b32.xlu0 %v1877, 64
  %v1925 = vpop.permute.xlu0 %1924
  %1942 = vst.msk [vmem:[#allocation4 + $0x30] sm:$0xff] %vm1171, %v1895
  %1943 = vst.msk [vmem:[#allocation4 + $0x70] sm:$0xff] %vm1171, %v1897
  %1944 = vst.msk [vmem:[#allocation4 + $0xb0] sm:$0xff] %vm1171, %v1899
  %1945 = vst.msk [vmem:[#allocation4 + $0xf0] sm:$0xff] %vm1171, %v1901
  %1946 = vst.msk [vmem:[#allocation4 + $0x130] sm:$0xff] %vm1171, %v1903
  %1947 = vst.msk [vmem:[#allocation4 + $0x170] sm:$0xff] %vm1171, %v1905
  %1948 = vst.msk [vmem:[#allocation4 + $0x1b0] sm:$0xff] %vm1171, %v1907
  %1949 = vst.msk [vmem:[#allocation4 + $0x1f0] sm:$0xff] %vm1171, %v1909
  %1950 = vst.msk [vmem:[#allocation4 + $0x230] sm:$0xff] %vm1171, %v1911
  %1951 = vst.msk [vmem:[#allocation4 + $0x270] sm:$0xff] %vm1171, %v1913
  %1952 = vst.msk [vmem:[#allocation4 + $0x2b0] sm:$0xff] %vm1171, %v1915
  %1953 = vst.msk [vmem:[#allocation4 + $0x2f0] sm:$0xff] %vm1171, %v1917
  %1954 = vst.msk [vmem:[#allocation4 + $0x330] sm:$0xff] %vm1171, %v1919
  %1955 = vst.msk [vmem:[#allocation4 + $0x370] sm:$0xff] %vm1171, %v1921
  %1956 = vst.msk [vmem:[#allocation4 + $0x3b0] sm:$0xff] %vm1171, %v1923
  %1957 = vst.msk [vmem:[#allocation4 + $0x3f0] sm:$0xff] %vm1171, %v1925
  %v1958 = vld [vmem:[%s1828 + $0x2] sm:$0xff]
  %v1959 = vld [vmem:[%s1828 + $0xa] sm:$0xff]
  %v1960 = vld [vmem:[%s1828 + $0x1a] sm:$0xff]
  %v1961 = vld [vmem:[%s1828 + $0x22] sm:$0xff]
  %v1962 = vld [vmem:[%s1828 + $0x32] sm:$0xff]
  %v1963 = vld [vmem:[%s1828 + $0x3a] sm:$0xff]
  %v1964 = vld [vmem:[%s1828 + $0x4a] sm:$0xff]
  %v1965 = vld [vmem:[%s1828 + $0x52] sm:$0xff]
  %v1966 = vld [vmem:[%s1828 + $0x62] sm:$0xff]
  %v1967 = vld [vmem:[%s1828 + $0x6a] sm:$0xff]
  %v1968 = vld [vmem:[%s1828 + $0x7a] sm:$0xff]
  %v1969 = vld [vmem:[%s1828 + $0x82] sm:$0xff]
  %v1970 = vld [vmem:[%s1828 + $0x92] sm:$0xff]
  %v1971 = vld [vmem:[%s1828 + $0x9a] sm:$0xff]
  %v1972 = vld [vmem:[%s1828 + $0xaa] sm:$0xff]
  %v1973 = vld [vmem:[%s1828 + $0xb2] sm:$0xff]
  %1974 = vst.msk [vmem:[#allocation4 + $0x38] sm:$0xff] %vm39, %v1958
  %1975 = vst.msk [vmem:[#allocation4 + $0x78] sm:$0xff] %vm39, %v1959
  %1976 = vst.msk [vmem:[#allocation4 + $0xb8] sm:$0xff] %vm39, %v1960
  %1977 = vst.msk [vmem:[#allocation4 + $0xf8] sm:$0xff] %vm39, %v1961
  %1978 = vst.msk [vmem:[#allocation4 + $0x138] sm:$0xff] %vm39, %v1962
  %1979 = vst.msk [vmem:[#allocation4 + $0x178] sm:$0xff] %vm39, %v1963
  %1980 = vst.msk [vmem:[#allocation4 + $0x1b8] sm:$0xff] %vm39, %v1964
  %1981 = vst.msk [vmem:[#allocation4 + $0x1f8] sm:$0xff] %vm39, %v1965
  %1982 = vst.msk [vmem:[#allocation4 + $0x238] sm:$0xff] %vm39, %v1966
  %1983 = vst.msk [vmem:[#allocation4 + $0x278] sm:$0xff] %vm39, %v1967
  %1984 = vst.msk [vmem:[#allocation4 + $0x2b8] sm:$0xff] %vm39, %v1968
  %1985 = vst.msk [vmem:[#allocation4 + $0x2f8] sm:$0xff] %vm39, %v1969
  %1986 = vst.msk [vmem:[#allocation4 + $0x338] sm:$0xff] %vm39, %v1970
  %1987 = vst.msk [vmem:[#allocation4 + $0x378] sm:$0xff] %vm39, %v1971
  %1988 = vst.msk [vmem:[#allocation4 + $0x3b8] sm:$0xff] %vm39, %v1972
  %1989 = vst.msk [vmem:[#allocation4 + $0x3f8] sm:$0xff] %vm39, %v1973
  %v1990 = vld [vmem:[%s1861 + $0x2] sm:$0xff]
  %v1991 = vld [vmem:[%s1861 + $0xa] sm:$0xff]
  %v1992 = vld [vmem:[%s1861 + $0x1a] sm:$0xff]
  %v1993 = vld [vmem:[%s1861 + $0x22] sm:$0xff]
  %v1994 = vld [vmem:[%s1861 + $0x32] sm:$0xff]
  %v1995 = vld [vmem:[%s1861 + $0x3a] sm:$0xff]
  %v1996 = vld [vmem:[%s1861 + $0x4a] sm:$0xff]
  %v1997 = vld [vmem:[%s1861 + $0x52] sm:$0xff]
  %v1998 = vld [vmem:[%s1861 + $0x62] sm:$0xff]
  %v1999 = vld [vmem:[%s1861 + $0x6a] sm:$0xff]
  %v2000 = vld [vmem:[%s1861 + $0x7a] sm:$0xff]
  %v2001 = vld [vmem:[%s1861 + $0x82] sm:$0xff]
  %v2002 = vld [vmem:[%s1861 + $0x92] sm:$0xff]
  %v2003 = vld [vmem:[%s1861 + $0x9a] sm:$0xff]
  %v2004 = vld [vmem:[%s1861 + $0xaa] sm:$0xff]
  %v2005 = vld [vmem:[%s1861 + $0xb2] sm:$0xff]
  %2022 = vrot.lane.b32.xlu0 %v1990, 64
  %v2023 = vpop.permute.xlu0 %2022
  %2024 = vrot.lane.b32.xlu0 %v1991, 64
  %v2025 = vpop.permute.xlu0 %2024
  %2026 = vrot.lane.b32.xlu0 %v1992, 64
  %v2027 = vpop.permute.xlu0 %2026
  %2028 = vrot.lane.b32.xlu0 %v1993, 64
  %v2029 = vpop.permute.xlu0 %2028
  %2030 = vrot.lane.b32.xlu0 %v1994, 64
  %v2031 = vpop.permute.xlu0 %2030
  %2032 = vrot.lane.b32.xlu0 %v1995, 64
  %v2033 = vpop.permute.xlu0 %2032
  %2034 = vrot.lane.b32.xlu0 %v1996, 64
  %v2035 = vpop.permute.xlu0 %2034
  %2036 = vrot.lane.b32.xlu0 %v1997, 64
  %v2037 = vpop.permute.xlu0 %2036
  %2038 = vrot.lane.b32.xlu0 %v1998, 64
  %v2039 = vpop.permute.xlu0 %2038
  %2040 = vrot.lane.b32.xlu0 %v1999, 64
  %v2041 = vpop.permute.xlu0 %2040
  %2042 = vrot.lane.b32.xlu0 %v2000, 64
  %v2043 = vpop.permute.xlu0 %2042
  %2044 = vrot.lane.b32.xlu0 %v2001, 64
  %v2045 = vpop.permute.xlu0 %2044
  %2046 = vrot.lane.b32.xlu0 %v2002, 64
  %v2047 = vpop.permute.xlu0 %2046
  %2048 = vrot.lane.b32.xlu0 %v2003, 64
  %v2049 = vpop.permute.xlu0 %2048
  %2050 = vrot.lane.b32.xlu0 %v2004, 64
  %v2051 = vpop.permute.xlu0 %2050
  %2052 = vrot.lane.b32.xlu0 %v2005, 64
  %v2053 = vpop.permute.xlu0 %2052
  %2070 = vst.msk [vmem:[#allocation4 + $0x38] sm:$0xff] %vm1171, %v2023
  %2071 = vst.msk [vmem:[#allocation4 + $0x78] sm:$0xff] %vm1171, %v2025
  %2072 = vst.msk [vmem:[#allocation4 + $0xb8] sm:$0xff] %vm1171, %v2027
  %2073 = vst.msk [vmem:[#allocation4 + $0xf8] sm:$0xff] %vm1171, %v2029
  %2074 = vst.msk [vmem:[#allocation4 + $0x138] sm:$0xff] %vm1171, %v2031
  %2075 = vst.msk [vmem:[#allocation4 + $0x178] sm:$0xff] %vm1171, %v2033
  %2076 = vst.msk [vmem:[#allocation4 + $0x1b8] sm:$0xff] %vm1171, %v2035
  %2077 = vst.msk [vmem:[#allocation4 + $0x1f8] sm:$0xff] %vm1171, %v2037
  %2078 = vst.msk [vmem:[#allocation4 + $0x238] sm:$0xff] %vm1171, %v2039
  %2079 = vst.msk [vmem:[#allocation4 + $0x278] sm:$0xff] %vm1171, %v2041
  %2080 = vst.msk [vmem:[#allocation4 + $0x2b8] sm:$0xff] %vm1171, %v2043
  %2081 = vst.msk [vmem:[#allocation4 + $0x2f8] sm:$0xff] %vm1171, %v2045
  %2082 = vst.msk [vmem:[#allocation4 + $0x338] sm:$0xff] %vm1171, %v2047
  %2083 = vst.msk [vmem:[#allocation4 + $0x378] sm:$0xff] %vm1171, %v2049
  %2084 = vst.msk [vmem:[#allocation4 + $0x3b8] sm:$0xff] %vm1171, %v2051
  %2085 = vst.msk [vmem:[#allocation4 + $0x3f8] sm:$0xff] %vm1171, %v2053
  %v2086 = vld [vmem:[#allocation4] sm:$0xff]
  %v2087 = vld [vmem:[#allocation4 + $0x8] sm:$0xff]
  %v2088 = vld [vmem:[#allocation4 + $0x10] sm:$0xff]
  %v2089 = vld [vmem:[#allocation4 + $0x18] sm:$0xff]
  %v2090 = vld [vmem:[#allocation4 + $0x20] sm:$0xff]
  %v2091 = vld [vmem:[#allocation4 + $0x28] sm:$0xff]
  %v2092 = vld [vmem:[#allocation4 + $0x30] sm:$0xff]
  %v2093 = vld [vmem:[#allocation4 + $0x38] sm:$0xff]
  %v2094 = vld [vmem:[#allocation4 + $0x40] sm:$0xff]
  %v2095 = vld [vmem:[#allocation4 + $0x48] sm:$0xff]
  %v2096 = vld [vmem:[#allocation4 + $0x50] sm:$0xff]
  %v2097 = vld [vmem:[#allocation4 + $0x58] sm:$0xff]
  %v2098 = vld [vmem:[#allocation4 + $0x60] sm:$0xff]
  %v2099 = vld [vmem:[#allocation4 + $0x68] sm:$0xff]
  %v2100 = vld [vmem:[#allocation4 + $0x70] sm:$0xff]
  %v2101 = vld [vmem:[#allocation4 + $0x78] sm:$0xff]
  %v2102 = vld [vmem:[#allocation4 + $0x80] sm:$0xff]
  %v2103 = vld [vmem:[#allocation4 + $0x88] sm:$0xff]
  %v2104 = vld [vmem:[#allocation4 + $0x90] sm:$0xff]
  %v2105 = vld [vmem:[#allocation4 + $0x98] sm:$0xff]
  %v2106 = vld [vmem:[#allocation4 + $0xa0] sm:$0xff]
  %v2107 = vld [vmem:[#allocation4 + $0xa8] sm:$0xff]
  %v2108 = vld [vmem:[#allocation4 + $0xb0] sm:$0xff]
  %v2109 = vld [vmem:[#allocation4 + $0xb8] sm:$0xff]
  %v2110 = vld [vmem:[#allocation4 + $0xc0] sm:$0xff]
  %v2111 = vld [vmem:[#allocation4 + $0xc8] sm:$0xff]
  %v2112 = vld [vmem:[#allocation4 + $0xd0] sm:$0xff]
  %v2113 = vld [vmem:[#allocation4 + $0xd8] sm:$0xff]
  %v2114 = vld [vmem:[#allocation4 + $0xe0] sm:$0xff]
  %v2115 = vld [vmem:[#allocation4 + $0xe8] sm:$0xff]
  %v2116 = vld [vmem:[#allocation4 + $0xf0] sm:$0xff]
  %v2117 = vld [vmem:[#allocation4 + $0xf8] sm:$0xff]
  %v2118 = vld [vmem:[#allocation4 + $0x100] sm:$0xff]
  %v2119 = vld [vmem:[#allocation4 + $0x108] sm:$0xff]
  %v2120 = vld [vmem:[#allocation4 + $0x110] sm:$0xff]
  %v2121 = vld [vmem:[#allocation4 + $0x118] sm:$0xff]
  %v2122 = vld [vmem:[#allocation4 + $0x120] sm:$0xff]
  %v2123 = vld [vmem:[#allocation4 + $0x128] sm:$0xff]
  %v2124 = vld [vmem:[#allocation4 + $0x130] sm:$0xff]
  %v2125 = vld [vmem:[#allocation4 + $0x138] sm:$0xff]
  %v2126 = vld [vmem:[#allocation4 + $0x140] sm:$0xff]
  %v2127 = vld [vmem:[#allocation4 + $0x148] sm:$0xff]
  %v2128 = vld [vmem:[#allocation4 + $0x150] sm:$0xff]
  %v2129 = vld [vmem:[#allocation4 + $0x158] sm:$0xff]
  %v2130 = vld [vmem:[#allocation4 + $0x160] sm:$0xff]
  %v2131 = vld [vmem:[#allocation4 + $0x168] sm:$0xff]
  %v2132 = vld [vmem:[#allocation4 + $0x170] sm:$0xff]
  %v2133 = vld [vmem:[#allocation4 + $0x178] sm:$0xff]
  %v2134 = vld [vmem:[#allocation4 + $0x180] sm:$0xff]
  %v2135 = vld [vmem:[#allocation4 + $0x188] sm:$0xff]
  %v2136 = vld [vmem:[#allocation4 + $0x190] sm:$0xff]
  %v2137 = vld [vmem:[#allocation4 + $0x198] sm:$0xff]
  %v2138 = vld [vmem:[#allocation4 + $0x1a0] sm:$0xff]
  %v2139 = vld [vmem:[#allocation4 + $0x1a8] sm:$0xff]
  %v2140 = vld [vmem:[#allocation4 + $0x1b0] sm:$0xff]
  %v2141 = vld [vmem:[#allocation4 + $0x1b8] sm:$0xff]
  %v2142 = vld [vmem:[#allocation4 + $0x1c0] sm:$0xff]
  %v2143 = vld [vmem:[#allocation4 + $0x1c8] sm:$0xff]
  %v2144 = vld [vmem:[#allocation4 + $0x1d0] sm:$0xff]
  %v2145 = vld [vmem:[#allocation4 + $0x1d8] sm:$0xff]
  %v2146 = vld [vmem:[#allocation4 + $0x1e0] sm:$0xff]
  %v2147 = vld [vmem:[#allocation4 + $0x1e8] sm:$0xff]
  %v2148 = vld [vmem:[#allocation4 + $0x1f0] sm:$0xff]
  %v2149 = vld [vmem:[#allocation4 + $0x1f8] sm:$0xff]
  %v2150 = vld [vmem:[#allocation4 + $0x200] sm:$0xff]
  %v2151 = vld [vmem:[#allocation4 + $0x208] sm:$0xff]
  %v2152 = vld [vmem:[#allocation4 + $0x210] sm:$0xff]
  %v2153 = vld [vmem:[#allocation4 + $0x218] sm:$0xff]
  %v2154 = vld [vmem:[#allocation4 + $0x220] sm:$0xff]
  %v2155 = vld [vmem:[#allocation4 + $0x228] sm:$0xff]
  %v2156 = vld [vmem:[#allocation4 + $0x230] sm:$0xff]
  %v2157 = vld [vmem:[#allocation4 + $0x238] sm:$0xff]
  %v2158 = vld [vmem:[#allocation4 + $0x240] sm:$0xff]
  %v2159 = vld [vmem:[#allocation4 + $0x248] sm:$0xff]
  %v2160 = vld [vmem:[#allocation4 + $0x250] sm:$0xff]
  %v2161 = vld [vmem:[#allocation4 + $0x258] sm:$0xff]
  %v2162 = vld [vmem:[#allocation4 + $0x260] sm:$0xff]
  %v2163 = vld [vmem:[#allocation4 + $0x268] sm:$0xff]
  %v2164 = vld [vmem:[#allocation4 + $0x270] sm:$0xff]
  %v2165 = vld [vmem:[#allocation4 + $0x278] sm:$0xff]
  %v2166 = vld [vmem:[#allocation4 + $0x280] sm:$0xff]
  %v2167 = vld [vmem:[#allocation4 + $0x288] sm:$0xff]
  %v2168 = vld [vmem:[#allocation4 + $0x290] sm:$0xff]
  %v2169 = vld [vmem:[#allocation4 + $0x298] sm:$0xff]
  %v2170 = vld [vmem:[#allocation4 + $0x2a0] sm:$0xff]
  %v2171 = vld [vmem:[#allocation4 + $0x2a8] sm:$0xff]
  %v2172 = vld [vmem:[#allocation4 + $0x2b0] sm:$0xff]
  %v2173 = vld [vmem:[#allocation4 + $0x2b8] sm:$0xff]
  %v2174 = vld [vmem:[#allocation4 + $0x2c0] sm:$0xff]
  %v2175 = vld [vmem:[#allocation4 + $0x2c8] sm:$0xff]
  %v2176 = vld [vmem:[#allocation4 + $0x2d0] sm:$0xff]
  %v2177 = vld [vmem:[#allocation4 + $0x2d8] sm:$0xff]
  %v2178 = vld [vmem:[#allocation4 + $0x2e0] sm:$0xff]
  %v2179 = vld [vmem:[#allocation4 + $0x2e8] sm:$0xff]
  %v2180 = vld [vmem:[#allocation4 + $0x2f0] sm:$0xff]
  %v2181 = vld [vmem:[#allocation4 + $0x2f8] sm:$0xff]
  %v2182 = vld [vmem:[#allocation4 + $0x300] sm:$0xff]
  %v2183 = vld [vmem:[#allocation4 + $0x308] sm:$0xff]
  %v2184 = vld [vmem:[#allocation4 + $0x310] sm:$0xff]
  %v2185 = vld [vmem:[#allocation4 + $0x318] sm:$0xff]
  %v2186 = vld [vmem:[#allocation4 + $0x320] sm:$0xff]
  %v2187 = vld [vmem:[#allocation4 + $0x328] sm:$0xff]
  %v2188 = vld [vmem:[#allocation4 + $0x330] sm:$0xff]
  %v2189 = vld [vmem:[#allocation4 + $0x338] sm:$0xff]
  %v2190 = vld [vmem:[#allocation4 + $0x340] sm:$0xff]
  %v2191 = vld [vmem:[#allocation4 + $0x348] sm:$0xff]
  %v2192 = vld [vmem:[#allocation4 + $0x350] sm:$0xff]
  %v2193 = vld [vmem:[#allocation4 + $0x358] sm:$0xff]
  %v2194 = vld [vmem:[#allocation4 + $0x360] sm:$0xff]
  %v2195 = vld [vmem:[#allocation4 + $0x368] sm:$0xff]
  %v2196 = vld [vmem:[#allocation4 + $0x370] sm:$0xff]
  %v2197 = vld [vmem:[#allocation4 + $0x378] sm:$0xff]
  %v2198 = vld [vmem:[#allocation4 + $0x380] sm:$0xff]
  %v2199 = vld [vmem:[#allocation4 + $0x388] sm:$0xff]
  %v2200 = vld [vmem:[#allocation4 + $0x390] sm:$0xff]
  %v2201 = vld [vmem:[#allocation4 + $0x398] sm:$0xff]
  %v2202 = vld [vmem:[#allocation4 + $0x3a0] sm:$0xff]
  %v2203 = vld [vmem:[#allocation4 + $0x3a8] sm:$0xff]
  %v2204 = vld [vmem:[#allocation4 + $0x3b0] sm:$0xff]
  %v2205 = vld [vmem:[#allocation4 + $0x3b8] sm:$0xff]
  %v2206 = vld [vmem:[#allocation4 + $0x3c0] sm:$0xff]
  %v2207 = vld [vmem:[#allocation4 + $0x3c8] sm:$0xff]
  %v2208 = vld [vmem:[#allocation4 + $0x3d0] sm:$0xff]
  %v2209 = vld [vmem:[#allocation4 + $0x3d8] sm:$0xff]
  %v2210 = vld [vmem:[#allocation4 + $0x3e0] sm:$0xff]
  %v2211 = vld [vmem:[#allocation4 + $0x3e8] sm:$0xff]
  %v2212 = vld [vmem:[#allocation4 + $0x3f0] sm:$0xff]
  %v2213 = vld [vmem:[#allocation4 + $0x3f8] sm:$0xff]
  %v2214 = vpack.c.bf16 %v2094, %v2086
  %v2215 = vpack.c.bf16 %v2095, %v2087
  %v2216 = vpack.c.bf16 %v2096, %v2088
  %v2217 = vpack.c.bf16 %v2097, %v2089
  %v2218 = vpack.c.bf16 %v2098, %v2090
  %v2219 = vpack.c.bf16 %v2099, %v2091
  %v2220 = vpack.c.bf16 %v2100, %v2092
  %v2221 = vpack.c.bf16 %v2101, %v2093
  %v2222 = vpack.c.bf16 %v2110, %v2102
  %v2223 = vpack.c.bf16 %v2111, %v2103
  %v2224 = vpack.c.bf16 %v2112, %v2104
  %v2225 = vpack.c.bf16 %v2113, %v2105
  %v2226 = vpack.c.bf16 %v2114, %v2106
  %v2227 = vpack.c.bf16 %v2115, %v2107
  %v2228 = vpack.c.bf16 %v2116, %v2108
  %v2229 = vpack.c.bf16 %v2117, %v2109
  %v2230 = vpack.c.bf16 %v2126, %v2118
  %v2231 = vpack.c.bf16 %v2127, %v2119
  %v2232 = vpack.c.bf16 %v2128, %v2120
  %v2233 = vpack.c.bf16 %v2129, %v2121
  %v2234 = vpack.c.bf16 %v2130, %v2122
  %v2235 = vpack.c.bf16 %v2131, %v2123
  %v2236 = vpack.c.bf16 %v2132, %v2124
  %v2237 = vpack.c.bf16 %v2133, %v2125
  %v2238 = vpack.c.bf16 %v2142, %v2134
  %v2239 = vpack.c.bf16 %v2143, %v2135
  %v2240 = vpack.c.bf16 %v2144, %v2136
  %v2241 = vpack.c.bf16 %v2145, %v2137
  %v2242 = vpack.c.bf16 %v2146, %v2138
  %v2243 = vpack.c.bf16 %v2147, %v2139
  %v2244 = vpack.c.bf16 %v2148, %v2140
  %v2245 = vpack.c.bf16 %v2149, %v2141
  %v2246 = vpack.c.bf16 %v2158, %v2150
  %v2247 = vpack.c.bf16 %v2159, %v2151
  %v2248 = vpack.c.bf16 %v2160, %v2152
  %v2249 = vpack.c.bf16 %v2161, %v2153
  %v2250 = vpack.c.bf16 %v2162, %v2154
  %v2251 = vpack.c.bf16 %v2163, %v2155
  %v2252 = vpack.c.bf16 %v2164, %v2156
  %v2253 = vpack.c.bf16 %v2165, %v2157
  %v2254 = vpack.c.bf16 %v2174, %v2166
  %v2255 = vpack.c.bf16 %v2175, %v2167
  %v2256 = vpack.c.bf16 %v2176, %v2168
  %v2257 = vpack.c.bf16 %v2177, %v2169
  %v2258 = vpack.c.bf16 %v2178, %v2170
  %v2259 = vpack.c.bf16 %v2179, %v2171
  %v2260 = vpack.c.bf16 %v2180, %v2172
  %v2261 = vpack.c.bf16 %v2181, %v2173
  %v2262 = vpack.c.bf16 %v2190, %v2182
  %v2263 = vpack.c.bf16 %v2191, %v2183
  %v2264 = vpack.c.bf16 %v2192, %v2184
  %v2265 = vpack.c.bf16 %v2193, %v2185
  %v2266 = vpack.c.bf16 %v2194, %v2186
  %v2267 = vpack.c.bf16 %v2195, %v2187
  %v2268 = vpack.c.bf16 %v2196, %v2188
  %v2269 = vpack.c.bf16 %v2197, %v2189
  %v2270 = vpack.c.bf16 %v2206, %v2198
  %v2271 = vpack.c.bf16 %v2207, %v2199
  %v2272 = vpack.c.bf16 %v2208, %v2200
  %v2273 = vpack.c.bf16 %v2209, %v2201
  %v2274 = vpack.c.bf16 %v2210, %v2202
  %v2275 = vpack.c.bf16 %v2211, %v2203
  %v2276 = vpack.c.bf16 %v2212, %v2204
  %v2277 = vpack.c.bf16 %v2213, %v2205
  %v2278 = vld [vmem:[%s2] sm:$0xf]
  %v2279 = vld [vmem:[%s2 + $0x4] sm:$0xf]
  %v2280 = vld [vmem:[%s2 + $0x8] sm:$0xf]
  %v2281 = vld [vmem:[%s2 + $0xc] sm:$0xf]
  %v2282 = vld [vmem:[%s2 + $0x10] sm:$0xf]
  %v2283 = vld [vmem:[%s2 + $0x14] sm:$0xf]
  %v2284 = vld [vmem:[%s2 + $0x18] sm:$0xf]
  %v2285 = vld [vmem:[%s2 + $0x1c] sm:$0xf]
  %v2286 = vld [vmem:[%s2 + $0x20] sm:$0xf]
  %v2287 = vld [vmem:[%s2 + $0x24] sm:$0xf]
  %v2288 = vld [vmem:[%s2 + $0x28] sm:$0xf]
  %v2289 = vld [vmem:[%s2 + $0x2c] sm:$0xf]
  %v2290 = vld [vmem:[%s2 + $0x30] sm:$0xf]
  %v2291 = vld [vmem:[%s2 + $0x34] sm:$0xf]
  %v2292 = vld [vmem:[%s2 + $0x38] sm:$0xf]
  %v2293 = vld [vmem:[%s2 + $0x3c] sm:$0xf]
  %v2294 = vld [vmem:[%s2 + $0x40] sm:$0xf]
  %v2295 = vld [vmem:[%s2 + $0x44] sm:$0xf]
  %v2296 = vld [vmem:[%s2 + $0x48] sm:$0xf]
  %v2297 = vld [vmem:[%s2 + $0x4c] sm:$0xf]
  %v2298 = vld [vmem:[%s2 + $0x50] sm:$0xf]
  %v2299 = vld [vmem:[%s2 + $0x54] sm:$0xf]
  %v2300 = vld [vmem:[%s2 + $0x58] sm:$0xf]
  %v2301 = vld [vmem:[%s2 + $0x5c] sm:$0xf]
  %v2302 = vld [vmem:[%s2 + $0x60] sm:$0xf]
  %v2303 = vld [vmem:[%s2 + $0x64] sm:$0xf]
  %v2304 = vld [vmem:[%s2 + $0x68] sm:$0xf]
  %v2305 = vld [vmem:[%s2 + $0x6c] sm:$0xf]
  %v2306 = vld [vmem:[%s2 + $0x70] sm:$0xf]
  %v2307 = vld [vmem:[%s2 + $0x74] sm:$0xf]
  %v2308 = vld [vmem:[%s2 + $0x78] sm:$0xf]
  %v2309 = vld [vmem:[%s2 + $0x7c] sm:$0xf]
  %v2310 = vld [vmem:[%s2 + $0x80] sm:$0xf]
  %v2311 = vld [vmem:[%s2 + $0x84] sm:$0xf]
  %v2312 = vld [vmem:[%s2 + $0x88] sm:$0xf]
  %v2313 = vld [vmem:[%s2 + $0x8c] sm:$0xf]
  %v2314 = vld [vmem:[%s2 + $0x90] sm:$0xf]
  %v2315 = vld [vmem:[%s2 + $0x94] sm:$0xf]
  %v2316 = vld [vmem:[%s2 + $0x98] sm:$0xf]
  %v2317 = vld [vmem:[%s2 + $0x9c] sm:$0xf]
  %v2318 = vld [vmem:[%s2 + $0xa0] sm:$0xf]
  %v2319 = vld [vmem:[%s2 + $0xa4] sm:$0xf]
  %v2320 = vld [vmem:[%s2 + $0xa8] sm:$0xf]
  %v2321 = vld [vmem:[%s2 + $0xac] sm:$0xf]
  %v2322 = vld [vmem:[%s2 + $0xb0] sm:$0xf]
  %v2323 = vld [vmem:[%s2 + $0xb4] sm:$0xf]
  %v2324 = vld [vmem:[%s2 + $0xb8] sm:$0xf]
  %v2325 = vld [vmem:[%s2 + $0xbc] sm:$0xf]
  %v2326 = vld [vmem:[%s2 + $0xc0] sm:$0xf]
  %v2327 = vld [vmem:[%s2 + $0xc4] sm:$0xf]
  %v2328 = vld [vmem:[%s2 + $0xc8] sm:$0xf]
  %v2329 = vld [vmem:[%s2 + $0xcc] sm:$0xf]
  %v2330 = vld [vmem:[%s2 + $0xd0] sm:$0xf]
  %v2331 = vld [vmem:[%s2 + $0xd4] sm:$0xf]
  %v2332 = vld [vmem:[%s2 + $0xd8] sm:$0xf]
  %v2333 = vld [vmem:[%s2 + $0xdc] sm:$0xf]
  %v2334 = vld [vmem:[%s2 + $0xe0] sm:$0xf]
  %v2335 = vld [vmem:[%s2 + $0xe4] sm:$0xf]
  %v2336 = vld [vmem:[%s2 + $0xe8] sm:$0xf]
  %v2337 = vld [vmem:[%s2 + $0xec] sm:$0xf]
  %v2338 = vld [vmem:[%s2 + $0xf0] sm:$0xf]
  %v2339 = vld [vmem:[%s2 + $0xf4] sm:$0xf]
  %v2340 = vld [vmem:[%s2 + $0xf8] sm:$0xf]
  %v2341 = vld [vmem:[%s2 + $0xfc] sm:$0xf]
  %v2342 = vld [vmem:[%s2 + $0x100] sm:$0xf]
  %v2343 = vld [vmem:[%s2 + $0x104] sm:$0xf]
  %v2344 = vld [vmem:[%s2 + $0x108] sm:$0xf]
  %v2345 = vld [vmem:[%s2 + $0x10c] sm:$0xf]
  %v2346 = vld [vmem:[%s2 + $0x110] sm:$0xf]
  %v2347 = vld [vmem:[%s2 + $0x114] sm:$0xf]
  %v2348 = vld [vmem:[%s2 + $0x118] sm:$0xf]
  %v2349 = vld [vmem:[%s2 + $0x11c] sm:$0xf]
  %v2350 = vld [vmem:[%s2 + $0x120] sm:$0xf]
  %v2351 = vld [vmem:[%s2 + $0x124] sm:$0xf]
  %v2352 = vld [vmem:[%s2 + $0x128] sm:$0xf]
  %v2353 = vld [vmem:[%s2 + $0x12c] sm:$0xf]
  %v2354 = vld [vmem:[%s2 + $0x130] sm:$0xf]
  %v2355 = vld [vmem:[%s2 + $0x134] sm:$0xf]
  %v2356 = vld [vmem:[%s2 + $0x138] sm:$0xf]
  %v2357 = vld [vmem:[%s2 + $0x13c] sm:$0xf]
  %v2358 = vld [vmem:[%s2 + $0x140] sm:$0xf]
  %v2359 = vld [vmem:[%s2 + $0x144] sm:$0xf]
  %v2360 = vld [vmem:[%s2 + $0x148] sm:$0xf]
  %v2361 = vld [vmem:[%s2 + $0x14c] sm:$0xf]
  %v2362 = vld [vmem:[%s2 + $0x150] sm:$0xf]
  %v2363 = vld [vmem:[%s2 + $0x154] sm:$0xf]
  %v2364 = vld [vmem:[%s2 + $0x158] sm:$0xf]
  %v2365 = vld [vmem:[%s2 + $0x15c] sm:$0xf]
  %v2366 = vld [vmem:[%s2 + $0x160] sm:$0xf]
  %v2367 = vld [vmem:[%s2 + $0x164] sm:$0xf]
  %v2368 = vld [vmem:[%s2 + $0x168] sm:$0xf]
  %v2369 = vld [vmem:[%s2 + $0x16c] sm:$0xf]
  %v2370 = vld [vmem:[%s2 + $0x170] sm:$0xf]
  %v2371 = vld [vmem:[%s2 + $0x174] sm:$0xf]
  %v2372 = vld [vmem:[%s2 + $0x178] sm:$0xf]
  %v2373 = vld [vmem:[%s2 + $0x17c] sm:$0xf]
  %v2374 = vld [vmem:[%s2 + $0x180] sm:$0xf]
  %v2375 = vld [vmem:[%s2 + $0x184] sm:$0xf]
  %v2376 = vld [vmem:[%s2 + $0x188] sm:$0xf]
  %v2377 = vld [vmem:[%s2 + $0x18c] sm:$0xf]
  %v2378 = vld [vmem:[%s2 + $0x190] sm:$0xf]
  %v2379 = vld [vmem:[%s2 + $0x194] sm:$0xf]
  %v2380 = vld [vmem:[%s2 + $0x198] sm:$0xf]
  %v2381 = vld [vmem:[%s2 + $0x19c] sm:$0xf]
  %v2382 = vld [vmem:[%s2 + $0x1a0] sm:$0xf]
  %v2383 = vld [vmem:[%s2 + $0x1a4] sm:$0xf]
  %v2384 = vld [vmem:[%s2 + $0x1a8] sm:$0xf]
  %v2385 = vld [vmem:[%s2 + $0x1ac] sm:$0xf]
  %v2386 = vld [vmem:[%s2 + $0x1b0] sm:$0xf]
  %v2387 = vld [vmem:[%s2 + $0x1b4] sm:$0xf]
  %v2388 = vld [vmem:[%s2 + $0x1b8] sm:$0xf]
  %v2389 = vld [vmem:[%s2 + $0x1bc] sm:$0xf]
  %v2390 = vld [vmem:[%s2 + $0x1c0] sm:$0xf]
  %v2391 = vld [vmem:[%s2 + $0x1c4] sm:$0xf]
  %v2392 = vld [vmem:[%s2 + $0x1c8] sm:$0xf]
  %v2393 = vld [vmem:[%s2 + $0x1cc] sm:$0xf]
  %v2394 = vld [vmem:[%s2 + $0x1d0] sm:$0xf]
  %v2395 = vld [vmem:[%s2 + $0x1d4] sm:$0xf]
  %v2396 = vld [vmem:[%s2 + $0x1d8] sm:$0xf]
  %v2397 = vld [vmem:[%s2 + $0x1dc] sm:$0xf]
  %v2398 = vld [vmem:[%s2 + $0x1e0] sm:$0xf]
  %v2399 = vld [vmem:[%s2 + $0x1e4] sm:$0xf]
  %v2400 = vld [vmem:[%s2 + $0x1e8] sm:$0xf]
  %v2401 = vld [vmem:[%s2 + $0x1ec] sm:$0xf]
  %v2402 = vld [vmem:[%s2 + $0x1f0] sm:$0xf]
  %v2403 = vld [vmem:[%s2 + $0x1f4] sm:$0xf]
  %v2404 = vld [vmem:[%s2 + $0x1f8] sm:$0xf]
  %v2405 = vld [vmem:[%s2 + $0x1fc] sm:$0xf]
  %v2534 = vunpack.c.l.b16 %v2278
  %v2535 = vunpack.c.l.b16 %v2279
  %v2536 = vunpack.c.l.b16 %v2280
  %v2537 = vunpack.c.l.b16 %v2281
  %v2538 = vunpack.c.l.b16 %v2282
  %v2539 = vunpack.c.l.b16 %v2283
  %v2540 = vunpack.c.l.b16 %v2284
  %v2541 = vunpack.c.l.b16 %v2285
  %v2542 = vunpack.c.l.b16 %v2286
  %v2543 = vunpack.c.l.b16 %v2287
  %v2544 = vunpack.c.l.b16 %v2288
  %v2545 = vunpack.c.l.b16 %v2289
  %v2546 = vunpack.c.l.b16 %v2290
  %v2547 = vunpack.c.l.b16 %v2291
  %v2548 = vunpack.c.l.b16 %v2292
  %v2549 = vunpack.c.l.b16 %v2293
  %v2550 = vunpack.c.l.b16 %v2294
  %v2551 = vunpack.c.l.b16 %v2295
  %v2552 = vunpack.c.l.b16 %v2296
  %v2553 = vunpack.c.l.b16 %v2297
  %v2554 = vunpack.c.l.b16 %v2298
  %v2555 = vunpack.c.l.b16 %v2299
  %v2556 = vunpack.c.l.b16 %v2300
  %v2557 = vunpack.c.l.b16 %v2301
  %v2558 = vunpack.c.l.b16 %v2302
  %v2559 = vunpack.c.l.b16 %v2303
  %v2560 = vunpack.c.l.b16 %v2304
  %v2561 = vunpack.c.l.b16 %v2305
  %v2562 = vunpack.c.l.b16 %v2306
  %v2563 = vunpack.c.l.b16 %v2307
  %v2564 = vunpack.c.l.b16 %v2308
  %v2565 = vunpack.c.l.b16 %v2309
  %v2566 = vunpack.c.l.b16 %v2310
  %v2567 = vunpack.c.l.b16 %v2311
  %v2568 = vunpack.c.l.b16 %v2312
  %v2569 = vunpack.c.l.b16 %v2313
  %v2570 = vunpack.c.l.b16 %v2314
  %v2571 = vunpack.c.l.b16 %v2315
  %v2572 = vunpack.c.l.b16 %v2316
  %v2573 = vunpack.c.l.b16 %v2317
  %v2574 = vunpack.c.l.b16 %v2318
  %v2575 = vunpack.c.l.b16 %v2319
  %v2576 = vunpack.c.l.b16 %v2320
  %v2577 = vunpack.c.l.b16 %v2321
  %v2578 = vunpack.c.l.b16 %v2322
  %v2579 = vunpack.c.l.b16 %v2323
  %v2580 = vunpack.c.l.b16 %v2324
  %v2581 = vunpack.c.l.b16 %v2325
  %v2582 = vunpack.c.l.b16 %v2326
  %v2583 = vunpack.c.l.b16 %v2327
  %v2584 = vunpack.c.l.b16 %v2328
  %v2585 = vunpack.c.l.b16 %v2329
  %v2586 = vunpack.c.l.b16 %v2330
  %v2587 = vunpack.c.l.b16 %v2331
  %v2588 = vunpack.c.l.b16 %v2332
  %v2589 = vunpack.c.l.b16 %v2333
  %v2590 = vunpack.c.l.b16 %v2334
  %v2591 = vunpack.c.l.b16 %v2335
  %v2592 = vunpack.c.l.b16 %v2336
  %v2593 = vunpack.c.l.b16 %v2337
  %v2594 = vunpack.c.l.b16 %v2338
  %v2595 = vunpack.c.l.b16 %v2339
  %v2596 = vunpack.c.l.b16 %v2340
  %v2597 = vunpack.c.l.b16 %v2341
  %v2598 = vunpack.c.l.b16 %v2342
  %v2599 = vunpack.c.l.b16 %v2343
  %v2600 = vunpack.c.l.b16 %v2344
  %v2601 = vunpack.c.l.b16 %v2345
  %v2602 = vunpack.c.l.b16 %v2346
  %v2603 = vunpack.c.l.b16 %v2347
  %v2604 = vunpack.c.l.b16 %v2348
  %v2605 = vunpack.c.l.b16 %v2349
  %v2606 = vunpack.c.l.b16 %v2350
  %v2607 = vunpack.c.l.b16 %v2351
  %v2608 = vunpack.c.l.b16 %v2352
  %v2609 = vunpack.c.l.b16 %v2353
  %v2610 = vunpack.c.l.b16 %v2354
  %v2611 = vunpack.c.l.b16 %v2355
  %v2612 = vunpack.c.l.b16 %v2356
  %v2613 = vunpack.c.l.b16 %v2357
  %v2614 = vunpack.c.l.b16 %v2358
  %v2615 = vunpack.c.l.b16 %v2359
  %v2616 = vunpack.c.l.b16 %v2360
  %v2617 = vunpack.c.l.b16 %v2361
  %v2618 = vunpack.c.l.b16 %v2362
  %v2619 = vunpack.c.l.b16 %v2363
  %v2620 = vunpack.c.l.b16 %v2364
  %v2621 = vunpack.c.l.b16 %v2365
  %v2622 = vunpack.c.l.b16 %v2366
  %v2623 = vunpack.c.l.b16 %v2367
  %v2624 = vunpack.c.l.b16 %v2368
  %v2625 = vunpack.c.l.b16 %v2369
  %v2626 = vunpack.c.l.b16 %v2370
  %v2627 = vunpack.c.l.b16 %v2371
  %v2628 = vunpack.c.l.b16 %v2372
  %v2629 = vunpack.c.l.b16 %v2373
  %v2630 = vunpack.c.l.b16 %v2374
  %v2631 = vunpack.c.l.b16 %v2375
  %v2632 = vunpack.c.l.b16 %v2376
  %v2633 = vunpack.c.l.b16 %v2377
  %v2634 = vunpack.c.l.b16 %v2378
  %v2635 = vunpack.c.l.b16 %v2379
  %v2636 = vunpack.c.l.b16 %v2380
  %v2637 = vunpack.c.l.b16 %v2381
  %v2638 = vunpack.c.l.b16 %v2382
  %v2639 = vunpack.c.l.b16 %v2383
  %v2640 = vunpack.c.l.b16 %v2384
  %v2641 = vunpack.c.l.b16 %v2385
  %v2642 = vunpack.c.l.b16 %v2386
  %v2643 = vunpack.c.l.b16 %v2387
  %v2644 = vunpack.c.l.b16 %v2388
  %v2645 = vunpack.c.l.b16 %v2389
  %v2646 = vunpack.c.l.b16 %v2390
  %v2647 = vunpack.c.l.b16 %v2391
  %v2648 = vunpack.c.l.b16 %v2392
  %v2649 = vunpack.c.l.b16 %v2393
  %v2650 = vunpack.c.l.b16 %v2394
  %v2651 = vunpack.c.l.b16 %v2395
  %v2652 = vunpack.c.l.b16 %v2396
  %v2653 = vunpack.c.l.b16 %v2397
  %v2654 = vunpack.c.l.b16 %v2398
  %v2655 = vunpack.c.l.b16 %v2399
  %v2656 = vunpack.c.l.b16 %v2400
  %v2657 = vunpack.c.l.b16 %v2401
  %v2658 = vunpack.c.l.b16 %v2402
  %v2659 = vunpack.c.l.b16 %v2403
  %v2660 = vunpack.c.l.b16 %v2404
  %v2661 = vunpack.c.l.b16 %v2405
  %v2662 = vpack.c.b16 %v2535, %v2534
  %v2663 = vpack.c.b16 %v2537, %v2536
  %v2664 = vpack.c.b16 %v2539, %v2538
  %v2665 = vpack.c.b16 %v2541, %v2540
  %v2666 = vpack.c.b16 %v2543, %v2542
  %v2667 = vpack.c.b16 %v2545, %v2544
  %v2668 = vpack.c.b16 %v2547, %v2546
  %v2669 = vpack.c.b16 %v2549, %v2548
  %v2670 = vpack.c.b16 %v2551, %v2550
  %v2671 = vpack.c.b16 %v2553, %v2552
  %v2672 = vpack.c.b16 %v2555, %v2554
  %v2673 = vpack.c.b16 %v2557, %v2556
  %v2674 = vpack.c.b16 %v2559, %v2558
  %v2675 = vpack.c.b16 %v2561, %v2560
  %v2676 = vpack.c.b16 %v2563, %v2562
  %v2677 = vpack.c.b16 %v2565, %v2564
  %v2678 = vpack.c.b16 %v2567, %v2566
  %v2679 = vpack.c.b16 %v2569, %v2568
  %v2680 = vpack.c.b16 %v2571, %v2570
  %v2681 = vpack.c.b16 %v2573, %v2572
  %v2682 = vpack.c.b16 %v2575, %v2574
  %v2683 = vpack.c.b16 %v2577, %v2576
  %v2684 = vpack.c.b16 %v2579, %v2578
  %v2685 = vpack.c.b16 %v2581, %v2580
  %v2686 = vpack.c.b16 %v2583, %v2582
  %v2687 = vpack.c.b16 %v2585, %v2584
  %v2688 = vpack.c.b16 %v2587, %v2586
  %v2689 = vpack.c.b16 %v2589, %v2588
  %v2690 = vpack.c.b16 %v2591, %v2590
  %v2691 = vpack.c.b16 %v2593, %v2592
  %v2692 = vpack.c.b16 %v2595, %v2594
  %v2693 = vpack.c.b16 %v2597, %v2596
  %v2694 = vpack.c.b16 %v2599, %v2598
  %v2695 = vpack.c.b16 %v2601, %v2600
  %v2696 = vpack.c.b16 %v2603, %v2602
  %v2697 = vpack.c.b16 %v2605, %v2604
  %v2698 = vpack.c.b16 %v2607, %v2606
  %v2699 = vpack.c.b16 %v2609, %v2608
  %v2700 = vpack.c.b16 %v2611, %v2610
  %v2701 = vpack.c.b16 %v2613, %v2612
  %v2702 = vpack.c.b16 %v2615, %v2614
  %v2703 = vpack.c.b16 %v2617, %v2616
  %v2704 = vpack.c.b16 %v2619, %v2618
  %v2705 = vpack.c.b16 %v2621, %v2620
  %v2706 = vpack.c.b16 %v2623, %v2622
  %v2707 = vpack.c.b16 %v2625, %v2624
  %v2708 = vpack.c.b16 %v2627, %v2626
  %v2709 = vpack.c.b16 %v2629, %v2628
  %v2710 = vpack.c.b16 %v2631, %v2630
  %v2711 = vpack.c.b16 %v2633, %v2632
  %v2712 = vpack.c.b16 %v2635, %v2634
  %v2713 = vpack.c.b16 %v2637, %v2636
  %v2714 = vpack.c.b16 %v2639, %v2638
  %v2715 = vpack.c.b16 %v2641, %v2640
  %v2716 = vpack.c.b16 %v2643, %v2642
  %v2717 = vpack.c.b16 %v2645, %v2644
  %v2718 = vpack.c.b16 %v2647, %v2646
  %v2719 = vpack.c.b16 %v2649, %v2648
  %v2720 = vpack.c.b16 %v2651, %v2650
  %v2721 = vpack.c.b16 %v2653, %v2652
  %v2722 = vpack.c.b16 %v2655, %v2654
  %v2723 = vpack.c.b16 %v2657, %v2656
  %v2724 = vpack.c.b16 %v2659, %v2658
  %v2725 = vpack.c.b16 %v2661, %v2660
  %2790 = vmatprep.subr.bf16.mxu0 0
  %2791 = vmatpush1.bf16.msra.mxu0 %v2669
  %2792 = vmatprep.subr.bf16.mxu0 0
  %2793 = vmatpush1.bf16.msra.mxu0 %v2668
  %2794 = vmatprep.subr.bf16.mxu0 0
  %2795 = vmatpush1.bf16.msra.mxu0 %v2667
  %2796 = vmatprep.subr.bf16.mxu0 0
  %2797 = vmatpush1.bf16.msra.mxu0 %v2666
  %2798 = vmatprep.subr.bf16.mxu0 0
  %2799 = vmatpush1.bf16.msra.mxu0 %v2665
  %2800 = vmatprep.subr.bf16.mxu0 0
  %2801 = vmatpush1.bf16.msra.mxu0 %v2664
  %2802 = vmatprep.subr.bf16.mxu0 0
  %2803 = vmatpush1.bf16.msra.mxu0 %v2663
  %2804 = vmatprep.subr.bf16.mxu0 0
  %2805 = vmatpush1.bf16.msra.mxu0 %v2662
  %2806 = vmatprep.subr.bf16.mxu0 0
  %2807 = vmatpush2.bf16.msra.mxu0 %v2677
  %2808 = vmatprep.subr.bf16.mxu0 0
  %2809 = vmatpush2.bf16.msra.mxu0 %v2676
  %2810 = vmatprep.subr.bf16.mxu0 0
  %2811 = vmatpush2.bf16.msra.mxu0 %v2675
  %2812 = vmatprep.subr.bf16.mxu0 0
  %2813 = vmatpush2.bf16.msra.mxu0 %v2674
  %2814 = vmatprep.subr.bf16.mxu0 0
  %2815 = vmatpush2.bf16.msra.mxu0 %v2673
  %2816 = vmatprep.subr.bf16.mxu0 0
  %2817 = vmatpush2.bf16.msra.mxu0 %v2672
  %2818 = vmatprep.subr.bf16.mxu0 0
  %2819 = vmatpush2.bf16.msra.mxu0 %v2671
  %2820 = vmatprep.subr.bf16.mxu0 0
  %2821 = vmatpush2.bf16.msra.mxu0 %v2670
  %2822 = vmatprep.mubr.bf16.mxu0 %v2215
  %2823 = vmatmul.mubr.bf16.gmra.mxu0 %v2214
  %v2824 = vpop.f32.mrf.mxu0
  %v2825 = vadd.f32 0.0, %v2824
  %v2826 = vpop.f32.mrf.mxu0
  %v2827 = vpop.f32.mrf.mxu0
  %v2828 = vadd.f32 0.0, %v2827
  %v2829 = vpop.f32.mrf.mxu0
  %2830 = vmatprep.mubr.bf16.mxu0 %v2223
  %2831 = vmatmul.mubr.bf16.gmra.mxu0 %v2222
  %v2832 = vpop.f32.mrf.mxu0
  %v2833 = vadd.f32 0.0, %v2832
  %v2834 = vpop.f32.mrf.mxu0
  %v2835 = vpop.f32.mrf.mxu0
  %v2836 = vadd.f32 0.0, %v2835
  %v2837 = vpop.f32.mrf.mxu0
  %2838 = vmatprep.mubr.bf16.mxu0 %v2231
  %2839 = vmatmul.mubr.bf16.gmra.mxu0 %v2230
  %v2840 = vpop.f32.mrf.mxu0
  %v2841 = vadd.f32 0.0, %v2840
  %v2842 = vpop.f32.mrf.mxu0
  %v2843 = vpop.f32.mrf.mxu0
  %v2844 = vadd.f32 0.0, %v2843
  %v2845 = vpop.f32.mrf.mxu0
  %2846 = vmatprep.mubr.bf16.mxu0 %v2239
  %2847 = vmatmul.mubr.bf16.gmra.mxu0 %v2238
  %v2848 = vpop.f32.mrf.mxu0
  %v2849 = vadd.f32 0.0, %v2848
  %v2850 = vpop.f32.mrf.mxu0
  %v2851 = vpop.f32.mrf.mxu0
  %v2852 = vadd.f32 0.0, %v2851
  %v2853 = vpop.f32.mrf.mxu0
  %2854 = vmatprep.mubr.bf16.mxu0 %v2247
  %2855 = vmatmul.mubr.bf16.gmra.mxu0 %v2246
  %v2856 = vpop.f32.mrf.mxu0
  %v2857 = vadd.f32 0.0, %v2856
  %v2858 = vpop.f32.mrf.mxu0
  %v2859 = vpop.f32.mrf.mxu0
  %v2860 = vadd.f32 0.0, %v2859
  %v2861 = vpop.f32.mrf.mxu0
  %2862 = vmatprep.mubr.bf16.mxu0 %v2255
  %2863 = vmatmul.mubr.bf16.gmra.mxu0 %v2254
  %v2864 = vpop.f32.mrf.mxu0
  %v2865 = vadd.f32 0.0, %v2864
  %v2866 = vpop.f32.mrf.mxu0
  %v2867 = vpop.f32.mrf.mxu0
  %v2868 = vadd.f32 0.0, %v2867
  %v2869 = vpop.f32.mrf.mxu0
  %2870 = vmatprep.mubr.bf16.mxu0 %v2263
  %2871 = vmatmul.mubr.bf16.gmra.mxu0 %v2262
  %v2872 = vpop.f32.mrf.mxu0
  %v2873 = vadd.f32 0.0, %v2872
  %v2874 = vpop.f32.mrf.mxu0
  %v2875 = vpop.f32.mrf.mxu0
  %v2876 = vadd.f32 0.0, %v2875
  %v2877 = vpop.f32.mrf.mxu0
  %2878 = vmatprep.mubr.bf16.mxu0 %v2271
  %2879 = vmatmul.mubr.bf16.gmra.mxu0 %v2270
  %v2880 = vpop.f32.mrf.mxu0
  %v2881 = vadd.f32 0.0, %v2880
  %v2882 = vpop.f32.mrf.mxu0
  %v2883 = vpop.f32.mrf.mxu0
  %v2884 = vadd.f32 0.0, %v2883
  %v2885 = vpop.f32.mrf.mxu0
  %2886 = vdwg.mxu0
  %2887 = vmatprep.subr.bf16.mxu0 0
  %2888 = vmatpush1.bf16.msra.mxu0 %v2685
  %2889 = vmatprep.subr.bf16.mxu0 0
  %2890 = vmatpush1.bf16.msra.mxu0 %v2684
  %2891 = vmatprep.subr.bf16.mxu0 0
  %2892 = vmatpush1.bf16.msra.mxu0 %v2683
  %2893 = vmatprep.subr.bf16.mxu0 0
  %2894 = vmatpush1.bf16.msra.mxu0 %v2682
  %2895 = vmatprep.subr.bf16.mxu0 0
  %2896 = vmatpush1.bf16.msra.mxu0 %v2681
  %2897 = vmatprep.subr.bf16.mxu0 0
  %2898 = vmatpush1.bf16.msra.mxu0 %v2680
  %2899 = vmatprep.subr.bf16.mxu0 0
  %2900 = vmatpush1.bf16.msra.mxu0 %v2679
  %2901 = vmatprep.subr.bf16.mxu0 0
  %2902 = vmatpush1.bf16.msra.mxu0 %v2678
  %2903 = vmatprep.subr.bf16.mxu0 0
  %2904 = vmatpush2.bf16.msra.mxu0 %v2693
  %2905 = vmatprep.subr.bf16.mxu0 0
  %2906 = vmatpush2.bf16.msra.mxu0 %v2692
  %2907 = vmatprep.subr.bf16.mxu0 0
  %2908 = vmatpush2.bf16.msra.mxu0 %v2691
  %2909 = vmatprep.subr.bf16.mxu0 0
  %2910 = vmatpush2.bf16.msra.mxu0 %v2690
  %2911 = vmatprep.subr.bf16.mxu0 0
  %2912 = vmatpush2.bf16.msra.mxu0 %v2689
  %2913 = vmatprep.subr.bf16.mxu0 0
  %2914 = vmatpush2.bf16.msra.mxu0 %v2688
  %2915 = vmatprep.subr.bf16.mxu0 0
  %2916 = vmatpush2.bf16.msra.mxu0 %v2687
  %2917 = vmatprep.subr.bf16.mxu0 0
  %2918 = vmatpush2.bf16.msra.mxu0 %v2686
  %2919 = vmatprep.mubr.bf16.mxu0 %v2217
  %2920 = vmatmul.mubr.bf16.gmra.mxu0 %v2216
  %v2921 = vpop.f32.mrf.mxu0
  %v2922 = vadd.f32 %v2825, %v2921
  %v2923 = vpop.f32.mrf.mxu0
  %v2924 = vpop.f32.mrf.mxu0
  %v2925 = vadd.f32 %v2828, %v2924
  %v2926 = vpop.f32.mrf.mxu0
  %2927 = vmatprep.mubr.bf16.mxu0 %v2225
  %2928 = vmatmul.mubr.bf16.gmra.mxu0 %v2224
  %v2929 = vpop.f32.mrf.mxu0
  %v2930 = vadd.f32 %v2833, %v2929
  %v2931 = vpop.f32.mrf.mxu0
  %v2932 = vpop.f32.mrf.mxu0
  %v2933 = vadd.f32 %v2836, %v2932
  %v2934 = vpop.f32.mrf.mxu0
  %2935 = vmatprep.mubr.bf16.mxu0 %v2233
  %2936 = vmatmul.mubr.bf16.gmra.mxu0 %v2232
  %v2937 = vpop.f32.mrf.mxu0
  %v2938 = vadd.f32 %v2841, %v2937
  %v2939 = vpop.f32.mrf.mxu0
  %v2940 = vpop.f32.mrf.mxu0
  %v2941 = vadd.f32 %v2844, %v2940
  %v2942 = vpop.f32.mrf.mxu0
  %2943 = vmatprep.mubr.bf16.mxu0 %v2241
  %2944 = vmatmul.mubr.bf16.gmra.mxu0 %v2240
  %v2945 = vpop.f32.mrf.mxu0
  %v2946 = vadd.f32 %v2849, %v2945
  %v2947 = vpop.f32.mrf.mxu0
  %v2948 = vpop.f32.mrf.mxu0
  %v2949 = vadd.f32 %v2852, %v2948
  %v2950 = vpop.f32.mrf.mxu0
  %2951 = vmatprep.mubr.bf16.mxu0 %v2249
  %2952 = vmatmul.mubr.bf16.gmra.mxu0 %v2248
  %v2953 = vpop.f32.mrf.mxu0
  %v2954 = vadd.f32 %v2857, %v2953
  %v2955 = vpop.f32.mrf.mxu0
  %v2956 = vpop.f32.mrf.mxu0
  %v2957 = vadd.f32 %v2860, %v2956
  %v2958 = vpop.f32.mrf.mxu0
  %2959 = vmatprep.mubr.bf16.mxu0 %v2257
  %2960 = vmatmul.mubr.bf16.gmra.mxu0 %v2256
  %v2961 = vpop.f32.mrf.mxu0
  %v2962 = vadd.f32 %v2865, %v2961
  %v2963 = vpop.f32.mrf.mxu0
  %v2964 = vpop.f32.mrf.mxu0
  %v2965 = vadd.f32 %v2868, %v2964
  %v2966 = vpop.f32.mrf.mxu0
  %2967 = vmatprep.mubr.bf16.mxu0 %v2265
  %2968 = vmatmul.mubr.bf16.gmra.mxu0 %v2264
  %v2969 = vpop.f32.mrf.mxu0
  %v2970 = vadd.f32 %v2873, %v2969
  %v2971 = vpop.f32.mrf.mxu0
  %v2972 = vpop.f32.mrf.mxu0
  %v2973 = vadd.f32 %v2876, %v2972
  %v2974 = vpop.f32.mrf.mxu0
  %2975 = vmatprep.mubr.bf16.mxu0 %v2273
  %2976 = vmatmul.mubr.bf16.gmra.mxu0 %v2272
  %v2977 = vpop.f32.mrf.mxu0
  %v2978 = vadd.f32 %v2881, %v2977
  %v2979 = vpop.f32.mrf.mxu0
  %v2980 = vpop.f32.mrf.mxu0
  %v2981 = vadd.f32 %v2884, %v2980
  %v2982 = vpop.f32.mrf.mxu0
  %2983 = vdwg.mxu0
  %2984 = vmatprep.subr.bf16.mxu0 0
  %2985 = vmatpush1.bf16.msra.mxu0 %v2701
  %2986 = vmatprep.subr.bf16.mxu0 0
  %2987 = vmatpush1.bf16.msra.mxu0 %v2700
  %2988 = vmatprep.subr.bf16.mxu0 0
  %2989 = vmatpush1.bf16.msra.mxu0 %v2699
  %2990 = vmatprep.subr.bf16.mxu0 0
  %2991 = vmatpush1.bf16.msra.mxu0 %v2698
  %2992 = vmatprep.subr.bf16.mxu0 0
  %2993 = vmatpush1.bf16.msra.mxu0 %v2697
  %2994 = vmatprep.subr.bf16.mxu0 0
  %2995 = vmatpush1.bf16.msra.mxu0 %v2696
  %2996 = vmatprep.subr.bf16.mxu0 0
  %2997 = vmatpush1.bf16.msra.mxu0 %v2695
  %2998 = vmatprep.subr.bf16.mxu0 0
  %2999 = vmatpush1.bf16.msra.mxu0 %v2694
  %3000 = vmatprep.subr.bf16.mxu0 0
  %3001 = vmatpush2.bf16.msra.mxu0 %v2709
  %3002 = vmatprep.subr.bf16.mxu0 0
  %3003 = vmatpush2.bf16.msra.mxu0 %v2708
  %3004 = vmatprep.subr.bf16.mxu0 0
  %3005 = vmatpush2.bf16.msra.mxu0 %v2707
  %3006 = vmatprep.subr.bf16.mxu0 0
  %3007 = vmatpush2.bf16.msra.mxu0 %v2706
  %3008 = vmatprep.subr.bf16.mxu0 0
  %3009 = vmatpush2.bf16.msra.mxu0 %v2705
  %3010 = vmatprep.subr.bf16.mxu0 0
  %3011 = vmatpush2.bf16.msra.mxu0 %v2704
  %3012 = vmatprep.subr.bf16.mxu0 0
  %3013 = vmatpush2.bf16.msra.mxu0 %v2703
  %3014 = vmatprep.subr.bf16.mxu0 0
  %3015 = vmatpush2.bf16.msra.mxu0 %v2702
  %3016 = vmatprep.mubr.bf16.mxu0 %v2219
  %3017 = vmatmul.mubr.bf16.gmra.mxu0 %v2218
  %v3018 = vpop.f32.mrf.mxu0
  %v3019 = vadd.f32 %v2922, %v3018
  %v3020 = vpop.f32.mrf.mxu0
  %v3021 = vpop.f32.mrf.mxu0
  %v3022 = vadd.f32 %v2925, %v3021
  %v3023 = vpop.f32.mrf.mxu0
  %3024 = vmatprep.mubr.bf16.mxu0 %v2227
  %3025 = vmatmul.mubr.bf16.gmra.mxu0 %v2226
  %v3026 = vpop.f32.mrf.mxu0
  %v3027 = vadd.f32 %v2930, %v3026
  %v3028 = vpop.f32.mrf.mxu0
  %v3029 = vpop.f32.mrf.mxu0
  %v3030 = vadd.f32 %v2933, %v3029
  %v3031 = vpop.f32.mrf.mxu0
  %3032 = vmatprep.mubr.bf16.mxu0 %v2235
  %3033 = vmatmul.mubr.bf16.gmra.mxu0 %v2234
  %v3034 = vpop.f32.mrf.mxu0
  %v3035 = vadd.f32 %v2938, %v3034
  %v3036 = vpop.f32.mrf.mxu0
  %v3037 = vpop.f32.mrf.mxu0
  %v3038 = vadd.f32 %v2941, %v3037
  %v3039 = vpop.f32.mrf.mxu0
  %3040 = vmatprep.mubr.bf16.mxu0 %v2243
  %3041 = vmatmul.mubr.bf16.gmra.mxu0 %v2242
  %v3042 = vpop.f32.mrf.mxu0
  %v3043 = vadd.f32 %v2946, %v3042
  %v3044 = vpop.f32.mrf.mxu0
  %v3045 = vpop.f32.mrf.mxu0
  %v3046 = vadd.f32 %v2949, %v3045
  %v3047 = vpop.f32.mrf.mxu0
  %3048 = vmatprep.mubr.bf16.mxu0 %v2251
  %3049 = vmatmul.mubr.bf16.gmra.mxu0 %v2250
  %v3050 = vpop.f32.mrf.mxu0
  %v3051 = vadd.f32 %v2954, %v3050
  %v3052 = vpop.f32.mrf.mxu0
  %v3053 = vpop.f32.mrf.mxu0
  %v3054 = vadd.f32 %v2957, %v3053
  %v3055 = vpop.f32.mrf.mxu0
  %3056 = vmatprep.mubr.bf16.mxu0 %v2259
  %3057 = vmatmul.mubr.bf16.gmra.mxu0 %v2258
  %v3058 = vpop.f32.mrf.mxu0
  %v3059 = vadd.f32 %v2962, %v3058
  %v3060 = vpop.f32.mrf.mxu0
  %v3061 = vpop.f32.mrf.mxu0
  %v3062 = vadd.f32 %v2965, %v3061
  %v3063 = vpop.f32.mrf.mxu0
  %3064 = vmatprep.mubr.bf16.mxu0 %v2267
  %3065 = vmatmul.mubr.bf16.gmra.mxu0 %v2266
  %v3066 = vpop.f32.mrf.mxu0
  %v3067 = vadd.f32 %v2970, %v3066
  %v3068 = vpop.f32.mrf.mxu0
  %v3069 = vpop.f32.mrf.mxu0
  %v3070 = vadd.f32 %v2973, %v3069
  %v3071 = vpop.f32.mrf.mxu0
  %3072 = vmatprep.mubr.bf16.mxu0 %v2275
  %3073 = vmatmul.mubr.bf16.gmra.mxu0 %v2274
  %v3074 = vpop.f32.mrf.mxu0
  %v3075 = vadd.f32 %v2978, %v3074
  %v3076 = vpop.f32.mrf.mxu0
  %v3077 = vpop.f32.mrf.mxu0
  %v3078 = vadd.f32 %v2981, %v3077
  %v3079 = vpop.f32.mrf.mxu0
  %3080 = vdwg.mxu0
  %3081 = vmatprep.subr.bf16.mxu0 0
  %3082 = vmatpush1.bf16.msra.mxu0 %v2717
  %3083 = vmatprep.subr.bf16.mxu0 0
  %3084 = vmatpush1.bf16.msra.mxu0 %v2716
  %3085 = vmatprep.subr.bf16.mxu0 0
  %3086 = vmatpush1.bf16.msra.mxu0 %v2715
  %3087 = vmatprep.subr.bf16.mxu0 0
  %3088 = vmatpush1.bf16.msra.mxu0 %v2714
  %3089 = vmatprep.subr.bf16.mxu0 0
  %3090 = vmatpush1.bf16.msra.mxu0 %v2713
  %3091 = vmatprep.subr.bf16.mxu0 0
  %3092 = vmatpush1.bf16.msra.mxu0 %v2712
  %3093 = vmatprep.subr.bf16.mxu0 0
  %3094 = vmatpush1.bf16.msra.mxu0 %v2711
  %3095 = vmatprep.subr.bf16.mxu0 0
  %3096 = vmatpush1.bf16.msra.mxu0 %v2710
  %3097 = vmatprep.subr.bf16.mxu0 0
  %3098 = vmatpush2.bf16.msra.mxu0 %v2725
  %3099 = vmatprep.subr.bf16.mxu0 0
  %3100 = vmatpush2.bf16.msra.mxu0 %v2724
  %3101 = vmatprep.subr.bf16.mxu0 0
  %3102 = vmatpush2.bf16.msra.mxu0 %v2723
  %3103 = vmatprep.subr.bf16.mxu0 0
  %3104 = vmatpush2.bf16.msra.mxu0 %v2722
  %3105 = vmatprep.subr.bf16.mxu0 0
  %3106 = vmatpush2.bf16.msra.mxu0 %v2721
  %3107 = vmatprep.subr.bf16.mxu0 0
  %3108 = vmatpush2.bf16.msra.mxu0 %v2720
  %3109 = vmatprep.subr.bf16.mxu0 0
  %3110 = vmatpush2.bf16.msra.mxu0 %v2719
  %3111 = vmatprep.subr.bf16.mxu0 0
  %3112 = vmatpush2.bf16.msra.mxu0 %v2718
  %3113 = vmatprep.mubr.bf16.mxu0 %v2221
  %3114 = vmatmul.mubr.bf16.gmra.mxu0 %v2220
  %v3115 = vpop.f32.mrf.mxu0
  %v3116 = vadd.f32 %v3019, %v3115
  %v3117 = vpop.f32.mrf.mxu0
  %v3118 = vpop.f32.mrf.mxu0
  %v3119 = vadd.f32 %v3022, %v3118
  %v3120 = vpop.f32.mrf.mxu0
  %3121 = vmatprep.mubr.bf16.mxu0 %v2229
  %3122 = vmatmul.mubr.bf16.gmra.mxu0 %v2228
  %v3123 = vpop.f32.mrf.mxu0
  %v3124 = vadd.f32 %v3027, %v3123
  %v3125 = vpop.f32.mrf.mxu0
  %v3126 = vpop.f32.mrf.mxu0
  %v3127 = vadd.f32 %v3030, %v3126
  %v3128 = vpop.f32.mrf.mxu0
  %3129 = vmatprep.mubr.bf16.mxu0 %v2237
  %3130 = vmatmul.mubr.bf16.gmra.mxu0 %v2236
  %v3131 = vpop.f32.mrf.mxu0
  %v3132 = vadd.f32 %v3035, %v3131
  %v3133 = vpop.f32.mrf.mxu0
  %v3134 = vpop.f32.mrf.mxu0
  %v3135 = vadd.f32 %v3038, %v3134
  %v3136 = vpop.f32.mrf.mxu0
  %3137 = vmatprep.mubr.bf16.mxu0 %v2245
  %3138 = vmatmul.mubr.bf16.gmra.mxu0 %v2244
  %v3139 = vpop.f32.mrf.mxu0
  %v3140 = vadd.f32 %v3043, %v3139
  %v3141 = vpop.f32.mrf.mxu0
  %v3142 = vpop.f32.mrf.mxu0
  %v3143 = vadd.f32 %v3046, %v3142
  %v3144 = vpop.f32.mrf.mxu0
  %3145 = vmatprep.mubr.bf16.mxu0 %v2253
  %3146 = vmatmul.mubr.bf16.gmra.mxu0 %v2252
  %v3147 = vpop.f32.mrf.mxu0
  %v3148 = vadd.f32 %v3051, %v3147
  %v3149 = vpop.f32.mrf.mxu0
  %v3150 = vpop.f32.mrf.mxu0
  %v3151 = vadd.f32 %v3054, %v3150
  %v3152 = vpop.f32.mrf.mxu0
  %3153 = vmatprep.mubr.bf16.mxu0 %v2261
  %3154 = vmatmul.mubr.bf16.gmra.mxu0 %v2260
  %v3155 = vpop.f32.mrf.mxu0
  %v3156 = vadd.f32 %v3059, %v3155
  %v3157 = vpop.f32.mrf.mxu0
  %v3158 = vpop.f32.mrf.mxu0
  %v3159 = vadd.f32 %v3062, %v3158
  %v3160 = vpop.f32.mrf.mxu0
  %3161 = vmatprep.mubr.bf16.mxu0 %v2269
  %3162 = vmatmul.mubr.bf16.gmra.mxu0 %v2268
  %v3163 = vpop.f32.mrf.mxu0
  %v3164 = vadd.f32 %v3067, %v3163
  %v3165 = vpop.f32.mrf.mxu0
  %v3166 = vpop.f32.mrf.mxu0
  %v3167 = vadd.f32 %v3070, %v3166
  %v3168 = vpop.f32.mrf.mxu0
  %3169 = vmatprep.mubr.bf16.mxu0 %v2277
  %3170 = vmatmul.mubr.bf16.gmra.mxu0 %v2276
  %v3171 = vpop.f32.mrf.mxu0
  %v3172 = vadd.f32 %v3075, %v3171
  %v3173 = vpop.f32.mrf.mxu0
  %v3174 = vpop.f32.mrf.mxu0
  %v3175 = vadd.f32 %v3078, %v3174
  %v3176 = vpop.f32.mrf.mxu0
  %3177 = vdwg.mxu0
  %v3178 = vld [vmem:[%s3] sm:$0x1]
  %v3179 = vld [vmem:[%s4] sm:$0x1]
  %v3180 = vadd.f32 %v3116, %v3119
  %v3181 = vadd.f32 %v3180, %v3124
  %v3182 = vadd.f32 %v3181, %v3127
  %v3183 = vadd.f32 %v3182, %v3132
  %v3184 = vadd.f32 %v3183, %v3135
  %v3185 = vadd.f32 %v3184, %v3140
  %v3186 = vadd.f32 %v3185, %v3143
  %v3187 = vadd.f32 %v3186, %v3148
  %v3188 = vadd.f32 %v3187, %v3151
  %v3189 = vadd.f32 %v3188, %v3156
  %v3190 = vadd.f32 %v3189, %v3159
  %v3191 = vadd.f32 %v3190, %v3164
  %v3192 = vadd.f32 %v3191, %v3167
  %v3193 = vadd.f32 %v3192, %v3172
  %v3194 = vadd.f32 %v3193, %v3175
  %v3195 = vrot.slane %v3194, 4
  %v3196 = vadd.f32 %v3194, %v3195
  %v3197 = vrot.slane %v3196, 2
  %v3198 = vadd.f32 %v3196, %v3197
  %v3199 = vrot.slane %v3198, 1
  %v3200 = vadd.f32 %v3198, %v3199
  %v3201 = vmul.f32 %v3200, 0.0078125
  %v3202 = vmul.f32 %v3116, %v3116
  %v3203 = vmul.f32 %v3119, %v3119
  %v3204 = vmul.f32 %v3124, %v3124
  %v3205 = vmul.f32 %v3127, %v3127
  %v3206 = vmul.f32 %v3132, %v3132
  %v3207 = vmul.f32 %v3135, %v3135
  %v3208 = vmul.f32 %v3140, %v3140
  %v3209 = vmul.f32 %v3143, %v3143
  %v3210 = vmul.f32 %v3148, %v3148
  %v3211 = vmul.f32 %v3151, %v3151
  %v3212 = vmul.f32 %v3156, %v3156
  %v3213 = vmul.f32 %v3159, %v3159
  %v3214 = vmul.f32 %v3164, %v3164
  %v3215 = vmul.f32 %v3167, %v3167
  %v3216 = vmul.f32 %v3172, %v3172
  %v3217 = vmul.f32 %v3175, %v3175
  %v3218 = vadd.f32 %v3202, %v3203
  %v3219 = vadd.f32 %v3218, %v3204
  %v3220 = vadd.f32 %v3219, %v3205
  %v3221 = vadd.f32 %v3220, %v3206
  %v3222 = vadd.f32 %v3221, %v3207
  %v3223 = vadd.f32 %v3222, %v3208
  %v3224 = vadd.f32 %v3223, %v3209
  %v3225 = vadd.f32 %v3224, %v3210
  %v3226 = vadd.f32 %v3225, %v3211
  %v3227 = vadd.f32 %v3226, %v3212
  %v3228 = vadd.f32 %v3227, %v3213
  %v3229 = vadd.f32 %v3228, %v3214
  %v3230 = vadd.f32 %v3229, %v3215
  %v3231 = vadd.f32 %v3230, %v3216
  %v3232 = vadd.f32 %v3231, %v3217
  %v3233 = vrot.slane %v3232, 4
  %v3234 = vadd.f32 %v3232, %v3233
  %v3235 = vrot.slane %v3234, 2
  %v3236 = vadd.f32 %v3234, %v3235
  %v3237 = vrot.slane %v3236, 1
  %v3238 = vadd.f32 %v3236, %v3237
  %v3239 = vmul.f32 %v3238, 0.0078125
  %v3240 = vmul.f32 %v3201, %v3201
  %v3241 = vsub.f32 %v3239, %v3240
  %v3242 = vmax.f32 %v3241, 0.0
  %v3243 = vadd.f32 %v3242, 1e-05
  %v3244 = vrsqrt.pop %v3243
  %v3245 = vmul.f32 %v3244, %v3178
  %v3246 = vmul.f32 %v3201, %v3245
  %v3247 = vsub.f32 %v3179, %v3246
  %v3248 = vlaneseq
  %v3249 = vshrl.u32 %v3248, 7
  %v3250 = vsub.s32 0, %v3249
  %v3251 = vrot.slane %v3245, %v3250
  %v3252 = vmul.f32 %v3116, %v3251
  %v3253 = vmul.f32 %v3119, %v3251
  %v3254 = vmul.f32 %v3124, %v3251
  %v3255 = vmul.f32 %v3127, %v3251
  %v3256 = vmul.f32 %v3132, %v3251
  %v3257 = vmul.f32 %v3135, %v3251
  %v3258 = vmul.f32 %v3140, %v3251
  %v3259 = vmul.f32 %v3143, %v3251
  %v3260 = vmul.f32 %v3148, %v3251
  %v3261 = vmul.f32 %v3151, %v3251
  %v3262 = vmul.f32 %v3156, %v3251
  %v3263 = vmul.f32 %v3159, %v3251
  %v3264 = vmul.f32 %v3164, %v3251
  %v3265 = vmul.f32 %v3167, %v3251
  %v3266 = vmul.f32 %v3172, %v3251
  %v3267 = vmul.f32 %v3175, %v3251
  %v3269 = vlaneseq
  %v3270 = vshrl.u32 %v3269, 7
  %v3271 = vsub.s32 0, %v3270
  %v3272 = vrot.slane %v3247, %v3271
  %v3274 = vadd.f32 %v3252, %v3272
  %v3275 = vadd.f32 %v3253, %v3272
  %v3276 = vadd.f32 %v3254, %v3272
  %v3277 = vadd.f32 %v3255, %v3272
  %v3278 = vadd.f32 %v3256, %v3272
  %v3279 = vadd.f32 %v3257, %v3272
  %v3280 = vadd.f32 %v3258, %v3272
  %v3281 = vadd.f32 %v3259, %v3272
  %v3282 = vadd.f32 %v3260, %v3272
  %v3283 = vadd.f32 %v3261, %v3272
  %v3284 = vadd.f32 %v3262, %v3272
  %v3285 = vadd.f32 %v3263, %v3272
  %v3286 = vadd.f32 %v3264, %v3272
  %v3287 = vadd.f32 %v3265, %v3272
  %v3288 = vadd.f32 %v3266, %v3272
  %v3289 = vadd.f32 %v3267, %v3272
  %vm3290 = vcmp.gt.f32.partialorder %v3274, 0.0
  %vm3291 = vcmp.gt.f32.partialorder %v3275, 0.0
  %vm3292 = vcmp.gt.f32.partialorder %v3276, 0.0
  %vm3293 = vcmp.gt.f32.partialorder %v3277, 0.0
  %vm3294 = vcmp.gt.f32.partialorder %v3278, 0.0
  %vm3295 = vcmp.gt.f32.partialorder %v3279, 0.0
  %vm3296 = vcmp.gt.f32.partialorder %v3280, 0.0
  %vm3297 = vcmp.gt.f32.partialorder %v3281, 0.0
  %vm3298 = vcmp.gt.f32.partialorder %v3282, 0.0
  %vm3299 = vcmp.gt.f32.partialorder %v3283, 0.0
  %vm3300 = vcmp.gt.f32.partialorder %v3284, 0.0
  %vm3301 = vcmp.gt.f32.partialorder %v3285, 0.0
  %vm3302 = vcmp.gt.f32.partialorder %v3286, 0.0
  %vm3303 = vcmp.gt.f32.partialorder %v3287, 0.0
  %vm3304 = vcmp.gt.f32.partialorder %v3288, 0.0
  %vm3305 = vcmp.gt.f32.partialorder %v3289, 0.0
  %v3306 = vmul.f32 %v3274, 0.05
  %v3307 = vmul.f32 %v3275, 0.05
  %v3308 = vmul.f32 %v3276, 0.05
  %v3309 = vmul.f32 %v3277, 0.05
  %v3310 = vmul.f32 %v3278, 0.05
  %v3311 = vmul.f32 %v3279, 0.05
  %v3312 = vmul.f32 %v3280, 0.05
  %v3313 = vmul.f32 %v3281, 0.05
  %v3314 = vmul.f32 %v3282, 0.05
  %v3315 = vmul.f32 %v3283, 0.05
  %v3316 = vmul.f32 %v3284, 0.05
  %v3317 = vmul.f32 %v3285, 0.05
  %v3318 = vmul.f32 %v3286, 0.05
  %v3319 = vmul.f32 %v3287, 0.05
  %v3320 = vmul.f32 %v3288, 0.05
  %v3321 = vmul.f32 %v3289, 0.05
  %v3322 = vsel %vm3290, %v3274, %v3306
  %v3323 = vsel %vm3291, %v3275, %v3307
  %v3324 = vsel %vm3292, %v3276, %v3308
  %v3325 = vsel %vm3293, %v3277, %v3309
  %v3326 = vsel %vm3294, %v3278, %v3310
  %v3327 = vsel %vm3295, %v3279, %v3311
  %v3328 = vsel %vm3296, %v3280, %v3312
  %v3329 = vsel %vm3297, %v3281, %v3313
  %v3330 = vsel %vm3298, %v3282, %v3314
  %v3331 = vsel %vm3299, %v3283, %v3315
  %v3332 = vsel %vm3300, %v3284, %v3316
  %v3333 = vsel %vm3301, %v3285, %v3317
  %v3334 = vsel %vm3302, %v3286, %v3318
  %v3335 = vsel %vm3303, %v3287, %v3319
  %v3336 = vsel %vm3304, %v3288, %v3320
  %v3337 = vsel %vm3305, %v3289, %v3321
  %v3338 = vld [vmem:[%s8] sm:$0xff]
  %v3339 = vld [vmem:[%s8 + $0x8] sm:$0xff]
  %v3340 = vld [vmem:[%s8 + $0x10] sm:$0xff]
  %v3341 = vld [vmem:[%s8 + $0x18] sm:$0xff]
  %v3342 = vld [vmem:[%s8 + $0x20] sm:$0xff]
  %v3343 = vld [vmem:[%s8 + $0x28] sm:$0xff]
  %v3344 = vld [vmem:[%s8 + $0x30] sm:$0xff]
  %v3345 = vld [vmem:[%s8 + $0x38] sm:$0xff]
  %v3346 = vld [vmem:[%s8 + $0x40] sm:$0xff]
  %v3347 = vld [vmem:[%s8 + $0x48] sm:$0xff]
  %v3348 = vld [vmem:[%s8 + $0x50] sm:$0xff]
  %v3349 = vld [vmem:[%s8 + $0x58] sm:$0xff]
  %v3350 = vld [vmem:[%s8 + $0x60] sm:$0xff]
  %v3351 = vld [vmem:[%s8 + $0x68] sm:$0xff]
  %v3352 = vld [vmem:[%s8 + $0x70] sm:$0xff]
  %v3353 = vld [vmem:[%s8 + $0x78] sm:$0xff]
  %3354 = vmatprep.subr.mxu0 0.0
  %3355 = vmatpush1.msra.mxu0 %v3337
  %3356 = vmatprep.subr.mxu0 0.0
  %3357 = vmatpush1.msra.mxu0 %v3336
  %3358 = vmatprep.subr.mxu0 0.0
  %3359 = vmatpush1.msra.mxu0 %v3335
  %3360 = vmatprep.subr.mxu0 0.0
  %3361 = vmatpush1.msra.mxu0 %v3334
  %3362 = vmatprep.subr.mxu0 0.0
  %3363 = vmatpush1.msra.mxu0 %v3333
  %3364 = vmatprep.subr.mxu0 0.0
  %3365 = vmatpush1.msra.mxu0 %v3332
  %3366 = vmatprep.subr.mxu0 0.0
  %3367 = vmatpush1.msra.mxu0 %v3331
  %3368 = vmatprep.subr.mxu0 0.0
  %3369 = vmatpush1.msra.mxu0 %v3330
  %3370 = vmatprep.subr.mxu0 0.0
  %3371 = vmatpush1.msra.mxu0 %v3329
  %3372 = vmatprep.subr.mxu0 0.0
  %3373 = vmatpush1.msra.mxu0 %v3328
  %3374 = vmatprep.subr.mxu0 0.0
  %3375 = vmatpush1.msra.mxu0 %v3327
  %3376 = vmatprep.subr.mxu0 0.0
  %3377 = vmatpush1.msra.mxu0 %v3326
  %3378 = vmatprep.subr.mxu0 0.0
  %3379 = vmatpush1.msra.mxu0 %v3325
  %3380 = vmatprep.subr.mxu0 0.0
  %3381 = vmatpush1.msra.mxu0 %v3324
  %3382 = vmatprep.subr.mxu0 0.0
  %3383 = vmatpush1.msra.mxu0 %v3323
  %3384 = vmatprep.subr.mxu0 0.0
  %3385 = vmatpush1.msra.mxu0 %v3322
  %3386 = vmatprep.subr.mxu0 0.0
  %3387 = vmatpush2.msra.mxu0 0.0
  %3388 = vmatprep.subr.mxu0 0.0
  %3389 = vmatpush2.msra.mxu0 0.0
  %3390 = vmatprep.subr.mxu0 0.0
  %3391 = vmatpush2.msra.mxu0 0.0
  %3392 = vmatprep.subr.mxu0 0.0
  %3393 = vmatpush2.msra.mxu0 0.0
  %3394 = vmatprep.subr.mxu0 0.0
  %3395 = vmatpush2.msra.mxu0 0.0
  %3396 = vmatprep.subr.mxu0 0.0
  %3397 = vmatpush2.msra.mxu0 0.0
  %3398 = vmatprep.subr.mxu0 0.0
  %3399 = vmatpush2.msra.mxu0 0.0
  %3400 = vmatprep.subr.mxu0 0.0
  %3401 = vmatpush2.msra.mxu0 0.0
  %3402 = vmatprep.subr.mxu0 0.0
  %3403 = vmatpush2.msra.mxu0 0.0
  %3404 = vmatprep.subr.mxu0 0.0
  %3405 = vmatpush2.msra.mxu0 0.0
  %3406 = vmatprep.subr.mxu0 0.0
  %3407 = vmatpush2.msra.mxu0 0.0
  %3408 = vmatprep.subr.mxu0 0.0
  %3409 = vmatpush2.msra.mxu0 0.0
  %3410 = vmatprep.subr.mxu0 0.0
  %3411 = vmatpush2.msra.mxu0 0.0
  %3412 = vmatprep.subr.mxu0 0.0
  %3413 = vmatpush2.msra.mxu0 0.0
  %3414 = vmatprep.subr.mxu0 0.0
  %3415 = vmatpush2.msra.mxu0 0.0
  %3416 = vmatprep.subr.mxu0 0.0
  %3417 = vmatpush2.msra.mxu0 0.0
  %3418 = vmatprep.mubr.f32.mxu0 0.0
  %3419 = vmatmul.mubr.f32.gmra.mxu0 %v3338
  %v3420 = vpop.f32.mrf.mxu0
  %v3421 = vadd.f32 0.0, %v3420
  %v3422 = vpop.f32.mrf.mxu0
  %3423 = vmatprep.mubr.f32.mxu0 0.0
  %3424 = vmatmul.mubr.f32.gmra.mxu0 %v3339
  %v3425 = vpop.f32.mrf.mxu0
  %v3426 = vadd.f32 0.0, %v3425
  %v3427 = vpop.f32.mrf.mxu0
  %3428 = vmatprep.mubr.f32.mxu0 0.0
  %3429 = vmatmul.mubr.f32.gmra.mxu0 %v3340
  %v3430 = vpop.f32.mrf.mxu0
  %v3431 = vadd.f32 0.0, %v3430
  %v3432 = vpop.f32.mrf.mxu0
  %3433 = vmatprep.mubr.f32.mxu0 0.0
  %3434 = vmatmul.mubr.f32.gmra.mxu0 %v3341
  %v3435 = vpop.f32.mrf.mxu0
  %v3436 = vadd.f32 0.0, %v3435
  %v3437 = vpop.f32.mrf.mxu0
  %3438 = vmatprep.mubr.f32.mxu0 0.0
  %3439 = vmatmul.mubr.f32.gmra.mxu0 %v3342
  %v3440 = vpop.f32.mrf.mxu0
  %v3441 = vadd.f32 0.0, %v3440
  %v3442 = vpop.f32.mrf.mxu0
  %3443 = vmatprep.mubr.f32.mxu0 0.0
  %3444 = vmatmul.mubr.f32.gmra.mxu0 %v3343
  %v3445 = vpop.f32.mrf.mxu0
  %v3446 = vadd.f32 0.0, %v3445
  %v3447 = vpop.f32.mrf.mxu0
  %3448 = vmatprep.mubr.f32.mxu0 0.0
  %3449 = vmatmul.mubr.f32.gmra.mxu0 %v3344
  %v3450 = vpop.f32.mrf.mxu0
  %v3451 = vadd.f32 0.0, %v3450
  %v3452 = vpop.f32.mrf.mxu0
  %3453 = vmatprep.mubr.f32.mxu0 0.0
  %3454 = vmatmul.mubr.f32.gmra.mxu0 %v3345
  %v3455 = vpop.f32.mrf.mxu0
  %v3456 = vadd.f32 0.0, %v3455
  %v3457 = vpop.f32.mrf.mxu0
  %3458 = vmatprep.mubr.f32.mxu0 0.0
  %3459 = vmatmul.mubr.f32.gmra.mxu0 %v3346
  %v3460 = vpop.f32.mrf.mxu0
  %v3461 = vadd.f32 0.0, %v3460
  %v3462 = vpop.f32.mrf.mxu0
  %3463 = vmatprep.mubr.f32.mxu0 0.0
  %3464 = vmatmul.mubr.f32.gmra.mxu0 %v3347
  %v3465 = vpop.f32.mrf.mxu0
  %v3466 = vadd.f32 0.0, %v3465
  %v3467 = vpop.f32.mrf.mxu0
  %3468 = vmatprep.mubr.f32.mxu0 0.0
  %3469 = vmatmul.mubr.f32.gmra.mxu0 %v3348
  %v3470 = vpop.f32.mrf.mxu0
  %v3471 = vadd.f32 0.0, %v3470
  %v3472 = vpop.f32.mrf.mxu0
  %3473 = vmatprep.mubr.f32.mxu0 0.0
  %3474 = vmatmul.mubr.f32.gmra.mxu0 %v3349
  %v3475 = vpop.f32.mrf.mxu0
  %v3476 = vadd.f32 0.0, %v3475
  %v3477 = vpop.f32.mrf.mxu0
  %3478 = vmatprep.mubr.f32.mxu0 0.0
  %3479 = vmatmul.mubr.f32.gmra.mxu0 %v3350
  %v3480 = vpop.f32.mrf.mxu0
  %v3481 = vadd.f32 0.0, %v3480
  %v3482 = vpop.f32.mrf.mxu0
  %3483 = vmatprep.mubr.f32.mxu0 0.0
  %3484 = vmatmul.mubr.f32.gmra.mxu0 %v3351
  %v3485 = vpop.f32.mrf.mxu0
  %v3486 = vadd.f32 0.0, %v3485
  %v3487 = vpop.f32.mrf.mxu0
  %3488 = vmatprep.mubr.f32.mxu0 0.0
  %3489 = vmatmul.mubr.f32.gmra.mxu0 %v3352
  %v3490 = vpop.f32.mrf.mxu0
  %v3491 = vadd.f32 0.0, %v3490
  %v3492 = vpop.f32.mrf.mxu0
  %3493 = vmatprep.mubr.f32.mxu0 0.0
  %3494 = vmatmul.mubr.f32.gmra.mxu0 %v3353
  %v3495 = vpop.f32.mrf.mxu0
  %v3496 = vadd.f32 0.0, %v3495
  %v3497 = vpop.f32.mrf.mxu0
  %3498 = vdwg.mxu0
  %s3499 = scalar_lea.vmem [#allocation3], 240
  %3500 = vst [vmem:[%s3499] sm:$0xff] %v3421
  %3501 = vst [vmem:[%s3499 + $0x10] sm:$0xff] %v3426
  %3502 = vst [vmem:[%s3499 + $0x20] sm:$0xff] %v3431
  %3503 = vst [vmem:[%s3499 + $0x30] sm:$0xff] %v3436
  %s3504 = scalar_lea.vmem [#allocation3], 160
  %3505 = vst [vmem:[%s3504 + $0x2] sm:$0xff] %v3441
  %3506 = vst [vmem:[%s3504 + $0x12] sm:$0xff] %v3446
  %3507 = vst [vmem:[%s3504 + $0x22] sm:$0xff] %v3451
  %3508 = vst [vmem:[%s3504 + $0x32] sm:$0xff] %v3456
  %s3509 = scalar_lea.vmem [#allocation3], 96
  %3510 = vst [vmem:[%s3509] sm:$0xff] %v3461
  %3511 = vst [vmem:[%s3509 + $0x10] sm:$0xff] %v3466
  %3512 = vst [vmem:[%s3509 + $0x20] sm:$0xff] %v3471
  %3513 = vst [vmem:[%s3509 + $0x30] sm:$0xff] %v3476
  %s3514 = scalar_lea.vmem [#allocation3], 16
  %3515 = vst [vmem:[%s3514 + $0x2] sm:$0xff] %v3481
  %3516 = vst [vmem:[%s3514 + $0x12] sm:$0xff] %v3486
  %3517 = vst [vmem:[%s3514 + $0x22] sm:$0xff] %v3491
  %3518 = vst [vmem:[%s3514 + $0x32] sm:$0xff] %v3496
  %v3519 = vld [vmem:[#allocation3] sm:$0xff]
  %v3520 = vld [vmem:[#allocation3 + $0x10] sm:$0xff]
  %v3521 = vld [vmem:[#allocation3 + $0x20] sm:$0xff]
  %v3522 = vld [vmem:[#allocation3 + $0x30] sm:$0xff]
  %3523 = vst [vmem:[#allocation5] sm:$0xff] %v3519
  %3524 = vst [vmem:[#allocation5 + $0x80] sm:$0xff] %v3520
  %3525 = vst [vmem:[#allocation5 + $0x100] sm:$0xff] %v3521
  %3526 = vst [vmem:[#allocation5 + $0x180] sm:$0xff] %v3522
  %s3527 = scalar_lea.vmem [#allocation3], 80
  %v3528 = vld [vmem:[%s3527] sm:$0xff]
  %v3529 = vld [vmem:[%s3527 + $0x10] sm:$0xff]
  %v3530 = vld [vmem:[%s3527 + $0x20] sm:$0xff]
  %v3531 = vld [vmem:[%s3527 + $0x30] sm:$0xff]
  %3532 = vst [vmem:[#allocation5 + $0x8] sm:$0xff] %v3528
  %3533 = vst [vmem:[#allocation5 + $0x88] sm:$0xff] %v3529
  %3534 = vst [vmem:[#allocation5 + $0x108] sm:$0xff] %v3530
  %3535 = vst [vmem:[#allocation5 + $0x188] sm:$0xff] %v3531
  %v3536 = vld [vmem:[#allocation3 + $0x2] sm:$0xff]
  %v3537 = vld [vmem:[#allocation3 + $0x12] sm:$0xff]
  %v3538 = vld [vmem:[#allocation3 + $0x22] sm:$0xff]
  %v3539 = vld [vmem:[#allocation3 + $0x32] sm:$0xff]
  %3540 = vst [vmem:[#allocation5 + $0x10] sm:$0xff] %v3536
  %3541 = vst [vmem:[#allocation5 + $0x90] sm:$0xff] %v3537
  %3542 = vst [vmem:[#allocation5 + $0x110] sm:$0xff] %v3538
  %3543 = vst [vmem:[#allocation5 + $0x190] sm:$0xff] %v3539
  %v3544 = vld [vmem:[%s3527 + $0x2] sm:$0xff]
  %v3545 = vld [vmem:[%s3527 + $0x12] sm:$0xff]
  %v3546 = vld [vmem:[%s3527 + $0x22] sm:$0xff]
  %v3547 = vld [vmem:[%s3527 + $0x32] sm:$0xff]
  %3548 = vst [vmem:[#allocation5 + $0x18] sm:$0xff] %v3544
  %3549 = vst [vmem:[#allocation5 + $0x98] sm:$0xff] %v3545
  %3550 = vst [vmem:[#allocation5 + $0x118] sm:$0xff] %v3546
  %3551 = vst [vmem:[#allocation5 + $0x198] sm:$0xff] %v3547
  %v3552 = vld [vmem:[%s3504] sm:$0xff]
  %v3553 = vld [vmem:[%s3504 + $0x10] sm:$0xff]
  %v3554 = vld [vmem:[%s3504 + $0x20] sm:$0xff]
  %v3555 = vld [vmem:[%s3504 + $0x30] sm:$0xff]
  %3556 = vst [vmem:[#allocation5 + $0x20] sm:$0xff] %v3552
  %3557 = vst [vmem:[#allocation5 + $0xa0] sm:$0xff] %v3553
  %3558 = vst [vmem:[#allocation5 + $0x120] sm:$0xff] %v3554
  %3559 = vst [vmem:[#allocation5 + $0x1a0] sm:$0xff] %v3555
  %v3560 = vld [vmem:[%s3499] sm:$0xff]
  %v3561 = vld [vmem:[%s3499 + $0x10] sm:$0xff]
  %v3562 = vld [vmem:[%s3499 + $0x20] sm:$0xff]
  %v3563 = vld [vmem:[%s3499 + $0x30] sm:$0xff]
  %3564 = vst [vmem:[#allocation5 + $0x28] sm:$0xff] %v3560
  %3565 = vst [vmem:[#allocation5 + $0xa8] sm:$0xff] %v3561
  %3566 = vst [vmem:[#allocation5 + $0x128] sm:$0xff] %v3562
  %3567 = vst [vmem:[#allocation5 + $0x1a8] sm:$0xff] %v3563
  %v3568 = vld [vmem:[%s3504 + $0x2] sm:$0xff]
  %v3569 = vld [vmem:[%s3504 + $0x12] sm:$0xff]
  %v3570 = vld [vmem:[%s3504 + $0x22] sm:$0xff]
  %v3571 = vld [vmem:[%s3504 + $0x32] sm:$0xff]
  %3572 = vst [vmem:[#allocation5 + $0x30] sm:$0xff] %v3568
  %3573 = vst [vmem:[#allocation5 + $0xb0] sm:$0xff] %v3569
  %3574 = vst [vmem:[#allocation5 + $0x130] sm:$0xff] %v3570
  %3575 = vst [vmem:[#allocation5 + $0x1b0] sm:$0xff] %v3571
  %v3576 = vld [vmem:[%s3499 + $0x2] sm:$0xff]
  %v3577 = vld [vmem:[%s3499 + $0x12] sm:$0xff]
  %v3578 = vld [vmem:[%s3499 + $0x22] sm:$0xff]
  %v3579 = vld [vmem:[%s3499 + $0x32] sm:$0xff]
  %3580 = vst [vmem:[#allocation5 + $0x38] sm:$0xff] %v3576
  %3581 = vst [vmem:[#allocation5 + $0xb8] sm:$0xff] %v3577
  %3582 = vst [vmem:[#allocation5 + $0x138] sm:$0xff] %v3578
  %3583 = vst [vmem:[#allocation5 + $0x1b8] sm:$0xff] %v3579
  %v3584 = vld [vmem:[%s3514] sm:$0xff]
  %v3585 = vld [vmem:[%s3514 + $0x10] sm:$0xff]
  %v3586 = vld [vmem:[%s3514 + $0x20] sm:$0xff]
  %v3587 = vld [vmem:[%s3514 + $0x30] sm:$0xff]
  %3588 = vst [vmem:[#allocation5 + $0x40] sm:$0xff] %v3584
  %3589 = vst [vmem:[#allocation5 + $0xc0] sm:$0xff] %v3585
  %3590 = vst [vmem:[#allocation5 + $0x140] sm:$0xff] %v3586
  %3591 = vst [vmem:[#allocation5 + $0x1c0] sm:$0xff] %v3587
  %v3592 = vld [vmem:[%s3509] sm:$0xff]
  %v3593 = vld [vmem:[%s3509 + $0x10] sm:$0xff]
  %v3594 = vld [vmem:[%s3509 + $0x20] sm:$0xff]
  %v3595 = vld [vmem:[%s3509 + $0x30] sm:$0xff]
  %3596 = vst [vmem:[#allocation5 + $0x48] sm:$0xff] %v3592
  %3597 = vst [vmem:[#allocation5 + $0xc8] sm:$0xff] %v3593
  %3598 = vst [vmem:[#allocation5 + $0x148] sm:$0xff] %v3594
  %3599 = vst [vmem:[#allocation5 + $0x1c8] sm:$0xff] %v3595
  %v3600 = vld [vmem:[%s3514 + $0x2] sm:$0xff]
  %v3601 = vld [vmem:[%s3514 + $0x12] sm:$0xff]
  %v3602 = vld [vmem:[%s3514 + $0x22] sm:$0xff]
  %v3603 = vld [vmem:[%s3514 + $0x32] sm:$0xff]
  %3604 = vst [vmem:[#allocation5 + $0x50] sm:$0xff] %v3600
  %3605 = vst [vmem:[#allocation5 + $0xd0] sm:$0xff] %v3601
  %3606 = vst [vmem:[#allocation5 + $0x150] sm:$0xff] %v3602
  %3607 = vst [vmem:[#allocation5 + $0x1d0] sm:$0xff] %v3603
  %v3608 = vld [vmem:[%s3509 + $0x2] sm:$0xff]
  %v3609 = vld [vmem:[%s3509 + $0x12] sm:$0xff]
  %v3610 = vld [vmem:[%s3509 + $0x22] sm:$0xff]
  %v3611 = vld [vmem:[%s3509 + $0x32] sm:$0xff]
  %3612 = vst [vmem:[#allocation5 + $0x58] sm:$0xff] %v3608
  %3613 = vst [vmem:[#allocation5 + $0xd8] sm:$0xff] %v3609
  %3614 = vst [vmem:[#allocation5 + $0x158] sm:$0xff] %v3610
  %3615 = vst [vmem:[#allocation5 + $0x1d8] sm:$0xff] %v3611
  %s3616 = scalar_lea.vmem [#allocation3], 176
  %v3617 = vld [vmem:[%s3616] sm:$0xff]
  %v3618 = vld [vmem:[%s3616 + $0x10] sm:$0xff]
  %v3619 = vld [vmem:[%s3616 + $0x20] sm:$0xff]
  %v3620 = vld [vmem:[%s3616 + $0x30] sm:$0xff]
  %3621 = vst [vmem:[#allocation5 + $0x60] sm:$0xff] %v3617
  %3622 = vst [vmem:[#allocation5 + $0xe0] sm:$0xff] %v3618
  %3623 = vst [vmem:[#allocation5 + $0x160] sm:$0xff] %v3619
  %3624 = vst [vmem:[#allocation5 + $0x1e0] sm:$0xff] %v3620
  %s3625 = scalar_lea.vmem [#allocation3], 256
  %v3626 = vld [vmem:[%s3625] sm:$0xff]
  %v3627 = vld [vmem:[%s3625 + $0x10] sm:$0xff]
  %v3628 = vld [vmem:[%s3625 + $0x20] sm:$0xff]
  %v3629 = vld [vmem:[%s3625 + $0x30] sm:$0xff]
  %3630 = vst [vmem:[#allocation5 + $0x68] sm:$0xff] %v3626
  %3631 = vst [vmem:[#allocation5 + $0xe8] sm:$0xff] %v3627
  %3632 = vst [vmem:[#allocation5 + $0x168] sm:$0xff] %v3628
  %3633 = vst [vmem:[#allocation5 + $0x1e8] sm:$0xff] %v3629
  %v3634 = vld [vmem:[%s3616 + $0x2] sm:$0xff]
  %v3635 = vld [vmem:[%s3616 + $0x12] sm:$0xff]
  %v3636 = vld [vmem:[%s3616 + $0x22] sm:$0xff]
  %v3637 = vld [vmem:[%s3616 + $0x32] sm:$0xff]
  %3638 = vst [vmem:[#allocation5 + $0x70] sm:$0xff] %v3634
  %3639 = vst [vmem:[#allocation5 + $0xf0] sm:$0xff] %v3635
  %3640 = vst [vmem:[#allocation5 + $0x170] sm:$0xff] %v3636
  %3641 = vst [vmem:[#allocation5 + $0x1f0] sm:$0xff] %v3637
  %v3642 = vld [vmem:[%s3625 + $0x2] sm:$0xff]
  %v3643 = vld [vmem:[%s3625 + $0x12] sm:$0xff]
  %v3644 = vld [vmem:[%s3625 + $0x22] sm:$0xff]
  %v3645 = vld [vmem:[%s3625 + $0x32] sm:$0xff]
  %3646 = vst [vmem:[#allocation5 + $0x78] sm:$0xff] %v3642
  %3647 = vst [vmem:[#allocation5 + $0xf8] sm:$0xff] %v3643
  %3648 = vst [vmem:[#allocation5 + $0x178] sm:$0xff] %v3644
  %3649 = vst [vmem:[#allocation5 + $0x1f8] sm:$0xff] %v3645
  %v3650 = vld [vmem:[#allocation5] sm:$0xff]
  %v3651 = vld [vmem:[#allocation5 + $0x8] sm:$0xff]
  %v3652 = vld [vmem:[#allocation5 + $0x10] sm:$0xff]
  %v3653 = vld [vmem:[#allocation5 + $0x18] sm:$0xff]
  %v3654 = vld [vmem:[#allocation5 + $0x20] sm:$0xff]
  %v3655 = vld [vmem:[#allocation5 + $0x28] sm:$0xff]
  %v3656 = vld [vmem:[#allocation5 + $0x30] sm:$0xff]
  %v3657 = vld [vmem:[#allocation5 + $0x38] sm:$0xff]
  %v3658 = vld [vmem:[#allocation5 + $0x40] sm:$0xff]
  %v3659 = vld [vmem:[#allocation5 + $0x48] sm:$0xff]
  %v3660 = vld [vmem:[#allocation5 + $0x50] sm:$0xff]
  %v3661 = vld [vmem:[#allocation5 + $0x58] sm:$0xff]
  %v3662 = vld [vmem:[#allocation5 + $0x60] sm:$0xff]
  %v3663 = vld [vmem:[#allocation5 + $0x68] sm:$0xff]
  %v3664 = vld [vmem:[#allocation5 + $0x70] sm:$0xff]
  %v3665 = vld [vmem:[#allocation5 + $0x78] sm:$0xff]
  %v3666 = vld [vmem:[#allocation5 + $0x80] sm:$0xff]
  %v3667 = vld [vmem:[#allocation5 + $0x88] sm:$0xff]
  %v3668 = vld [vmem:[#allocation5 + $0x90] sm:$0xff]
  %v3669 = vld [vmem:[#allocation5 + $0x98] sm:$0xff]
  %v3670 = vld [vmem:[#allocation5 + $0xa0] sm:$0xff]
  %v3671 = vld [vmem:[#allocation5 + $0xa8] sm:$0xff]
  %v3672 = vld [vmem:[#allocation5 + $0xb0] sm:$0xff]
  %v3673 = vld [vmem:[#allocation5 + $0xb8] sm:$0xff]
  %v3674 = vld [vmem:[#allocation5 + $0xc0] sm:$0xff]
  %v3675 = vld [vmem:[#allocation5 + $0xc8] sm:$0xff]
  %v3676 = vld [vmem:[#allocation5 + $0xd0] sm:$0xff]
  %v3677 = vld [vmem:[#allocation5 + $0xd8] sm:$0xff]
  %v3678 = vld [vmem:[#allocation5 + $0xe0] sm:$0xff]
  %v3679 = vld [vmem:[#allocation5 + $0xe8] sm:$0xff]
  %v3680 = vld [vmem:[#allocation5 + $0xf0] sm:$0xff]
  %v3681 = vld [vmem:[#allocation5 + $0xf8] sm:$0xff]
  %v3682 = vld [vmem:[#allocation5 + $0x100] sm:$0xff]
  %v3683 = vld [vmem:[#allocation5 + $0x108] sm:$0xff]
  %v3684 = vld [vmem:[#allocation5 + $0x110] sm:$0xff]
  %v3685 = vld [vmem:[#allocation5 + $0x118] sm:$0xff]
  %v3686 = vld [vmem:[#allocation5 + $0x120] sm:$0xff]
  %v3687 = vld [vmem:[#allocation5 + $0x128] sm:$0xff]
  %v3688 = vld [vmem:[#allocation5 + $0x130] sm:$0xff]
  %v3689 = vld [vmem:[#allocation5 + $0x138] sm:$0xff]
  %v3690 = vld [vmem:[#allocation5 + $0x140] sm:$0xff]
  %v3691 = vld [vmem:[#allocation5 + $0x148] sm:$0xff]
  %v3692 = vld [vmem:[#allocation5 + $0x150] sm:$0xff]
  %v3693 = vld [vmem:[#allocation5 + $0x158] sm:$0xff]
  %v3694 = vld [vmem:[#allocation5 + $0x160] sm:$0xff]
  %v3695 = vld [vmem:[#allocation5 + $0x168] sm:$0xff]
  %v3696 = vld [vmem:[#allocation5 + $0x170] sm:$0xff]
  %v3697 = vld [vmem:[#allocation5 + $0x178] sm:$0xff]
  %v3698 = vld [vmem:[#allocation5 + $0x180] sm:$0xff]
  %v3699 = vld [vmem:[#allocation5 + $0x188] sm:$0xff]
  %v3700 = vld [vmem:[#allocation5 + $0x190] sm:$0xff]
  %v3701 = vld [vmem:[#allocation5 + $0x198] sm:$0xff]
  %v3702 = vld [vmem:[#allocation5 + $0x1a0] sm:$0xff]
  %v3703 = vld [vmem:[#allocation5 + $0x1a8] sm:$0xff]
  %v3704 = vld [vmem:[#allocation5 + $0x1b0] sm:$0xff]
  %v3705 = vld [vmem:[#allocation5 + $0x1b8] sm:$0xff]
  %v3706 = vld [vmem:[#allocation5 + $0x1c0] sm:$0xff]
  %v3707 = vld [vmem:[#allocation5 + $0x1c8] sm:$0xff]
  %v3708 = vld [vmem:[#allocation5 + $0x1d0] sm:$0xff]
  %v3709 = vld [vmem:[#allocation5 + $0x1d8] sm:$0xff]
  %v3710 = vld [vmem:[#allocation5 + $0x1e0] sm:$0xff]
  %v3711 = vld [vmem:[#allocation5 + $0x1e8] sm:$0xff]
  %v3712 = vld [vmem:[#allocation5 + $0x1f0] sm:$0xff]
  %v3713 = vld [vmem:[#allocation5 + $0x1f8] sm:$0xff]
  %v3714 = vpack.c.bf16 %v3666, %v3650
  %v3715 = vpack.c.bf16 %v3667, %v3651
  %v3716 = vpack.c.bf16 %v3668, %v3652
  %v3717 = vpack.c.bf16 %v3669, %v3653
  %v3718 = vpack.c.bf16 %v3670, %v3654
  %v3719 = vpack.c.bf16 %v3671, %v3655
  %v3720 = vpack.c.bf16 %v3672, %v3656
  %v3721 = vpack.c.bf16 %v3673, %v3657
  %v3722 = vpack.c.bf16 %v3674, %v3658
  %v3723 = vpack.c.bf16 %v3675, %v3659
  %v3724 = vpack.c.bf16 %v3676, %v3660
  %v3725 = vpack.c.bf16 %v3677, %v3661
  %v3726 = vpack.c.bf16 %v3678, %v3662
  %v3727 = vpack.c.bf16 %v3679, %v3663
  %v3728 = vpack.c.bf16 %v3680, %v3664
  %v3729 = vpack.c.bf16 %v3681, %v3665
  %v3730 = vpack.c.bf16 %v3698, %v3682
  %v3731 = vpack.c.bf16 %v3699, %v3683
  %v3732 = vpack.c.bf16 %v3700, %v3684
  %v3733 = vpack.c.bf16 %v3701, %v3685
  %v3734 = vpack.c.bf16 %v3702, %v3686
  %v3735 = vpack.c.bf16 %v3703, %v3687
  %v3736 = vpack.c.bf16 %v3704, %v3688
  %v3737 = vpack.c.bf16 %v3705, %v3689
  %v3738 = vpack.c.bf16 %v3706, %v3690
  %v3739 = vpack.c.bf16 %v3707, %v3691
  %v3740 = vpack.c.bf16 %v3708, %v3692
  %v3741 = vpack.c.bf16 %v3709, %v3693
  %v3742 = vpack.c.bf16 %v3710, %v3694
  %v3743 = vpack.c.bf16 %v3711, %v3695
  %v3744 = vpack.c.bf16 %v3712, %v3696
  %v3745 = vpack.c.bf16 %v3713, %v3697
  %v3746 = vld [vmem:[%s5] sm:$0xff]
  %v3747 = vld [vmem:[%s5 + $0x8] sm:$0xff]
  %v3748 = vld [vmem:[%s5 + $0x10] sm:$0xff]
  %v3749 = vld [vmem:[%s5 + $0x18] sm:$0xff]
  %v3750 = vld [vmem:[%s5 + $0x20] sm:$0xff]
  %v3751 = vld [vmem:[%s5 + $0x28] sm:$0xff]
  %v3752 = vld [vmem:[%s5 + $0x30] sm:$0xff]
  %v3753 = vld [vmem:[%s5 + $0x38] sm:$0xff]
  %v3754 = vld [vmem:[%s5 + $0x40] sm:$0xff]
  %v3755 = vld [vmem:[%s5 + $0x48] sm:$0xff]
  %v3756 = vld [vmem:[%s5 + $0x50] sm:$0xff]
  %v3757 = vld [vmem:[%s5 + $0x58] sm:$0xff]
  %v3758 = vld [vmem:[%s5 + $0x60] sm:$0xff]
  %v3759 = vld [vmem:[%s5 + $0x68] sm:$0xff]
  %v3760 = vld [vmem:[%s5 + $0x70] sm:$0xff]
  %v3761 = vld [vmem:[%s5 + $0x78] sm:$0xff]
  %v3762 = vld [vmem:[%s5 + $0x80] sm:$0xff]
  %v3763 = vld [vmem:[%s5 + $0x88] sm:$0xff]
  %v3764 = vld [vmem:[%s5 + $0x90] sm:$0xff]
  %v3765 = vld [vmem:[%s5 + $0x98] sm:$0xff]
  %v3766 = vld [vmem:[%s5 + $0xa0] sm:$0xff]
  %v3767 = vld [vmem:[%s5 + $0xa8] sm:$0xff]
  %v3768 = vld [vmem:[%s5 + $0xb0] sm:$0xff]
  %v3769 = vld [vmem:[%s5 + $0xb8] sm:$0xff]
  %v3770 = vld [vmem:[%s5 + $0xc0] sm:$0xff]
  %v3771 = vld [vmem:[%s5 + $0xc8] sm:$0xff]
  %v3772 = vld [vmem:[%s5 + $0xd0] sm:$0xff]
  %v3773 = vld [vmem:[%s5 + $0xd8] sm:$0xff]
  %v3774 = vld [vmem:[%s5 + $0xe0] sm:$0xff]
  %v3775 = vld [vmem:[%s5 + $0xe8] sm:$0xff]
  %v3776 = vld [vmem:[%s5 + $0xf0] sm:$0xff]
  %v3777 = vld [vmem:[%s5 + $0xf8] sm:$0xff]
  %v3778 = vld [vmem:[%s5 + $0x100] sm:$0xff]
  %v3779 = vld [vmem:[%s5 + $0x108] sm:$0xff]
  %v3780 = vld [vmem:[%s5 + $0x110] sm:$0xff]
  %v3781 = vld [vmem:[%s5 + $0x118] sm:$0xff]
  %v3782 = vld [vmem:[%s5 + $0x120] sm:$0xff]
  %v3783 = vld [vmem:[%s5 + $0x128] sm:$0xff]
  %v3784 = vld [vmem:[%s5 + $0x130] sm:$0xff]
  %v3785 = vld [vmem:[%s5 + $0x138] sm:$0xff]
  %v3786 = vld [vmem:[%s5 + $0x140] sm:$0xff]
  %v3787 = vld [vmem:[%s5 + $0x148] sm:$0xff]
  %v3788 = vld [vmem:[%s5 + $0x150] sm:$0xff]
  %v3789 = vld [vmem:[%s5 + $0x158] sm:$0xff]
  %v3790 = vld [vmem:[%s5 + $0x160] sm:$0xff]
  %v3791 = vld [vmem:[%s5 + $0x168] sm:$0xff]
  %v3792 = vld [vmem:[%s5 + $0x170] sm:$0xff]
  %v3793 = vld [vmem:[%s5 + $0x178] sm:$0xff]
  %v3794 = vld [vmem:[%s5 + $0x180] sm:$0xff]
  %v3795 = vld [vmem:[%s5 + $0x188] sm:$0xff]
  %v3796 = vld [vmem:[%s5 + $0x190] sm:$0xff]
  %v3797 = vld [vmem:[%s5 + $0x198] sm:$0xff]
  %v3798 = vld [vmem:[%s5 + $0x1a0] sm:$0xff]
  %v3799 = vld [vmem:[%s5 + $0x1a8] sm:$0xff]
  %v3800 = vld [vmem:[%s5 + $0x1b0] sm:$0xff]
  %v3801 = vld [vmem:[%s5 + $0x1b8] sm:$0xff]
  %v3802 = vld [vmem:[%s5 + $0x1c0] sm:$0xff]
  %v3803 = vld [vmem:[%s5 + $0x1c8] sm:$0xff]
  %v3804 = vld [vmem:[%s5 + $0x1d0] sm:$0xff]
  %v3805 = vld [vmem:[%s5 + $0x1d8] sm:$0xff]
  %v3806 = vld [vmem:[%s5 + $0x1e0] sm:$0xff]
  %v3807 = vld [vmem:[%s5 + $0x1e8] sm:$0xff]
  %v3808 = vld [vmem:[%s5 + $0x1f0] sm:$0xff]
  %v3809 = vld [vmem:[%s5 + $0x1f8] sm:$0xff]
  %v3810 = vld [vmem:[%s5 + $0x200] sm:$0xff]
  %v3811 = vld [vmem:[%s5 + $0x208] sm:$0xff]
  %v3812 = vld [vmem:[%s5 + $0x210] sm:$0xff]
  %v3813 = vld [vmem:[%s5 + $0x218] sm:$0xff]
  %v3814 = vld [vmem:[%s5 + $0x220] sm:$0xff]
  %v3815 = vld [vmem:[%s5 + $0x228] sm:$0xff]
  %v3816 = vld [vmem:[%s5 + $0x230] sm:$0xff]
  %v3817 = vld [vmem:[%s5 + $0x238] sm:$0xff]
  %v3818 = vld [vmem:[%s5 + $0x240] sm:$0xff]
  %v3819 = vld [vmem:[%s5 + $0x248] sm:$0xff]
  %v3820 = vld [vmem:[%s5 + $0x250] sm:$0xff]
  %v3821 = vld [vmem:[%s5 + $0x258] sm:$0xff]
  %v3822 = vld [vmem:[%s5 + $0x260] sm:$0xff]
  %v3823 = vld [vmem:[%s5 + $0x268] sm:$0xff]
  %v3824 = vld [vmem:[%s5 + $0x270] sm:$0xff]
  %v3825 = vld [vmem:[%s5 + $0x278] sm:$0xff]
  %v3826 = vld [vmem:[%s5 + $0x280] sm:$0xff]
  %v3827 = vld [vmem:[%s5 + $0x288] sm:$0xff]
  %v3828 = vld [vmem:[%s5 + $0x290] sm:$0xff]
  %v3829 = vld [vmem:[%s5 + $0x298] sm:$0xff]
  %v3830 = vld [vmem:[%s5 + $0x2a0] sm:$0xff]
  %v3831 = vld [vmem:[%s5 + $0x2a8] sm:$0xff]
  %v3832 = vld [vmem:[%s5 + $0x2b0] sm:$0xff]
  %v3833 = vld [vmem:[%s5 + $0x2b8] sm:$0xff]
  %v3834 = vld [vmem:[%s5 + $0x2c0] sm:$0xff]
  %v3835 = vld [vmem:[%s5 + $0x2c8] sm:$0xff]
  %v3836 = vld [vmem:[%s5 + $0x2d0] sm:$0xff]
  %v3837 = vld [vmem:[%s5 + $0x2d8] sm:$0xff]
  %v3838 = vld [vmem:[%s5 + $0x2e0] sm:$0xff]
  %v3839 = vld [vmem:[%s5 + $0x2e8] sm:$0xff]
  %v3840 = vld [vmem:[%s5 + $0x2f0] sm:$0xff]
  %v3841 = vld [vmem:[%s5 + $0x2f8] sm:$0xff]
  %v3842 = vld [vmem:[%s5 + $0x300] sm:$0xff]
  %v3843 = vld [vmem:[%s5 + $0x308] sm:$0xff]
  %v3844 = vld [vmem:[%s5 + $0x310] sm:$0xff]
  %v3845 = vld [vmem:[%s5 + $0x318] sm:$0xff]
  %v3846 = vld [vmem:[%s5 + $0x320] sm:$0xff]
  %v3847 = vld [vmem:[%s5 + $0x328] sm:$0xff]
  %v3848 = vld [vmem:[%s5 + $0x330] sm:$0xff]
  %v3849 = vld [vmem:[%s5 + $0x338] sm:$0xff]
  %v3850 = vld [vmem:[%s5 + $0x340] sm:$0xff]
  %v3851 = vld [vmem:[%s5 + $0x348] sm:$0xff]
  %v3852 = vld [vmem:[%s5 + $0x350] sm:$0xff]
  %v3853 = vld [vmem:[%s5 + $0x358] sm:$0xff]
  %v3854 = vld [vmem:[%s5 + $0x360] sm:$0xff]
  %v3855 = vld [vmem:[%s5 + $0x368] sm:$0xff]
  %v3856 = vld [vmem:[%s5 + $0x370] sm:$0xff]
  %v3857 = vld [vmem:[%s5 + $0x378] sm:$0xff]
  %v3858 = vld [vmem:[%s5 + $0x380] sm:$0xff]
  %v3859 = vld [vmem:[%s5 + $0x388] sm:$0xff]
  %v3860 = vld [vmem:[%s5 + $0x390] sm:$0xff]
  %v3861 = vld [vmem:[%s5 + $0x398] sm:$0xff]
  %v3862 = vld [vmem:[%s5 + $0x3a0] sm:$0xff]
  %v3863 = vld [vmem:[%s5 + $0x3a8] sm:$0xff]
  %v3864 = vld [vmem:[%s5 + $0x3b0] sm:$0xff]
  %v3865 = vld [vmem:[%s5 + $0x3b8] sm:$0xff]
  %v3866 = vld [vmem:[%s5 + $0x3c0] sm:$0xff]
  %v3867 = vld [vmem:[%s5 + $0x3c8] sm:$0xff]
  %v3868 = vld [vmem:[%s5 + $0x3d0] sm:$0xff]
  %v3869 = vld [vmem:[%s5 + $0x3d8] sm:$0xff]
  %v3870 = vld [vmem:[%s5 + $0x3e0] sm:$0xff]
  %v3871 = vld [vmem:[%s5 + $0x3e8] sm:$0xff]
  %v3872 = vld [vmem:[%s5 + $0x3f0] sm:$0xff]
  %v3873 = vld [vmem:[%s5 + $0x3f8] sm:$0xff]
  %v3874 = vld [vmem:[%s5 + $0x400] sm:$0xff]
  %v3875 = vld [vmem:[%s5 + $0x408] sm:$0xff]
  %v3876 = vld [vmem:[%s5 + $0x410] sm:$0xff]
  %v3877 = vld [vmem:[%s5 + $0x418] sm:$0xff]
  %v3878 = vld [vmem:[%s5 + $0x420] sm:$0xff]
  %v3879 = vld [vmem:[%s5 + $0x428] sm:$0xff]
  %v3880 = vld [vmem:[%s5 + $0x430] sm:$0xff]
  %v3881 = vld [vmem:[%s5 + $0x438] sm:$0xff]
  %v3882 = vld [vmem:[%s5 + $0x440] sm:$0xff]
  %v3883 = vld [vmem:[%s5 + $0x448] sm:$0xff]
  %v3884 = vld [vmem:[%s5 + $0x450] sm:$0xff]
  %v3885 = vld [vmem:[%s5 + $0x458] sm:$0xff]
  %v3886 = vld [vmem:[%s5 + $0x460] sm:$0xff]
  %v3887 = vld [vmem:[%s5 + $0x468] sm:$0xff]
  %v3888 = vld [vmem:[%s5 + $0x470] sm:$0xff]
  %v3889 = vld [vmem:[%s5 + $0x478] sm:$0xff]
  %v3890 = vld [vmem:[%s5 + $0x480] sm:$0xff]
  %v3891 = vld [vmem:[%s5 + $0x488] sm:$0xff]
  %v3892 = vld [vmem:[%s5 + $0x490] sm:$0xff]
  %v3893 = vld [vmem:[%s5 + $0x498] sm:$0xff]
  %v3894 = vld [vmem:[%s5 + $0x4a0] sm:$0xff]
  %v3895 = vld [vmem:[%s5 + $0x4a8] sm:$0xff]
  %v3896 = vld [vmem:[%s5 + $0x4b0] sm:$0xff]
  %v3897 = vld [vmem:[%s5 + $0x4b8] sm:$0xff]
  %v3898 = vld [vmem:[%s5 + $0x4c0] sm:$0xff]
  %v3899 = vld [vmem:[%s5 + $0x4c8] sm:$0xff]
  %v3900 = vld [vmem:[%s5 + $0x4d0] sm:$0xff]
  %v3901 = vld [vmem:[%s5 + $0x4d8] sm:$0xff]
  %v3902 = vld [vmem:[%s5 + $0x4e0] sm:$0xff]
  %v3903 = vld [vmem:[%s5 + $0x4e8] sm:$0xff]
  %v3904 = vld [vmem:[%s5 + $0x4f0] sm:$0xff]
  %v3905 = vld [vmem:[%s5 + $0x4f8] sm:$0xff]
  %v3906 = vld [vmem:[%s5 + $0x500] sm:$0xff]
  %v3907 = vld [vmem:[%s5 + $0x508] sm:$0xff]
  %v3908 = vld [vmem:[%s5 + $0x510] sm:$0xff]
  %v3909 = vld [vmem:[%s5 + $0x518] sm:$0xff]
  %v3910 = vld [vmem:[%s5 + $0x520] sm:$0xff]
  %v3911 = vld [vmem:[%s5 + $0x528] sm:$0xff]
  %v3912 = vld [vmem:[%s5 + $0x530] sm:$0xff]
  %v3913 = vld [vmem:[%s5 + $0x538] sm:$0xff]
  %v3914 = vld [vmem:[%s5 + $0x540] sm:$0xff]
  %v3915 = vld [vmem:[%s5 + $0x548] sm:$0xff]
  %v3916 = vld [vmem:[%s5 + $0x550] sm:$0xff]
  %v3917 = vld [vmem:[%s5 + $0x558] sm:$0xff]
  %v3918 = vld [vmem:[%s5 + $0x560] sm:$0xff]
  %v3919 = vld [vmem:[%s5 + $0x568] sm:$0xff]
  %v3920 = vld [vmem:[%s5 + $0x570] sm:$0xff]
  %v3921 = vld [vmem:[%s5 + $0x578] sm:$0xff]
  %v3922 = vld [vmem:[%s5 + $0x580] sm:$0xff]
  %v3923 = vld [vmem:[%s5 + $0x588] sm:$0xff]
  %v3924 = vld [vmem:[%s5 + $0x590] sm:$0xff]
  %v3925 = vld [vmem:[%s5 + $0x598] sm:$0xff]
  %v3926 = vld [vmem:[%s5 + $0x5a0] sm:$0xff]
  %v3927 = vld [vmem:[%s5 + $0x5a8] sm:$0xff]
  %v3928 = vld [vmem:[%s5 + $0x5b0] sm:$0xff]
  %v3929 = vld [vmem:[%s5 + $0x5b8] sm:$0xff]
  %v3930 = vld [vmem:[%s5 + $0x5c0] sm:$0xff]
  %v3931 = vld [vmem:[%s5 + $0x5c8] sm:$0xff]
  %v3932 = vld [vmem:[%s5 + $0x5d0] sm:$0xff]
  %v3933 = vld [vmem:[%s5 + $0x5d8] sm:$0xff]
  %v3934 = vld [vmem:[%s5 + $0x5e0] sm:$0xff]
  %v3935 = vld [vmem:[%s5 + $0x5e8] sm:$0xff]
  %v3936 = vld [vmem:[%s5 + $0x5f0] sm:$0xff]
  %v3937 = vld [vmem:[%s5 + $0x5f8] sm:$0xff]
  %v3938 = vld [vmem:[%s5 + $0x600] sm:$0xff]
  %v3939 = vld [vmem:[%s5 + $0x608] sm:$0xff]
  %v3940 = vld [vmem:[%s5 + $0x610] sm:$0xff]
  %v3941 = vld [vmem:[%s5 + $0x618] sm:$0xff]
  %v3942 = vld [vmem:[%s5 + $0x620] sm:$0xff]
  %v3943 = vld [vmem:[%s5 + $0x628] sm:$0xff]
  %v3944 = vld [vmem:[%s5 + $0x630] sm:$0xff]
  %v3945 = vld [vmem:[%s5 + $0x638] sm:$0xff]
  %v3946 = vld [vmem:[%s5 + $0x640] sm:$0xff]
  %v3947 = vld [vmem:[%s5 + $0x648] sm:$0xff]
  %v3948 = vld [vmem:[%s5 + $0x650] sm:$0xff]
  %v3949 = vld [vmem:[%s5 + $0x658] sm:$0xff]
  %v3950 = vld [vmem:[%s5 + $0x660] sm:$0xff]
  %v3951 = vld [vmem:[%s5 + $0x668] sm:$0xff]
  %v3952 = vld [vmem:[%s5 + $0x670] sm:$0xff]
  %v3953 = vld [vmem:[%s5 + $0x678] sm:$0xff]
  %v3954 = vld [vmem:[%s5 + $0x680] sm:$0xff]
  %v3955 = vld [vmem:[%s5 + $0x688] sm:$0xff]
  %v3956 = vld [vmem:[%s5 + $0x690] sm:$0xff]
  %v3957 = vld [vmem:[%s5 + $0x698] sm:$0xff]
  %v3958 = vld [vmem:[%s5 + $0x6a0] sm:$0xff]
  %v3959 = vld [vmem:[%s5 + $0x6a8] sm:$0xff]
  %v3960 = vld [vmem:[%s5 + $0x6b0] sm:$0xff]
  %v3961 = vld [vmem:[%s5 + $0x6b8] sm:$0xff]
  %v3962 = vld [vmem:[%s5 + $0x6c0] sm:$0xff]
  %v3963 = vld [vmem:[%s5 + $0x6c8] sm:$0xff]
  %v3964 = vld [vmem:[%s5 + $0x6d0] sm:$0xff]
  %v3965 = vld [vmem:[%s5 + $0x6d8] sm:$0xff]
  %v3966 = vld [vmem:[%s5 + $0x6e0] sm:$0xff]
  %v3967 = vld [vmem:[%s5 + $0x6e8] sm:$0xff]
  %v3968 = vld [vmem:[%s5 + $0x6f0] sm:$0xff]
  %v3969 = vld [vmem:[%s5 + $0x6f8] sm:$0xff]
  %v3970 = vld [vmem:[%s5 + $0x700] sm:$0xff]
  %v3971 = vld [vmem:[%s5 + $0x708] sm:$0xff]
  %v3972 = vld [vmem:[%s5 + $0x710] sm:$0xff]
  %v3973 = vld [vmem:[%s5 + $0x718] sm:$0xff]
  %v3974 = vld [vmem:[%s5 + $0x720] sm:$0xff]
  %v3975 = vld [vmem:[%s5 + $0x728] sm:$0xff]
  %v3976 = vld [vmem:[%s5 + $0x730] sm:$0xff]
  %v3977 = vld [vmem:[%s5 + $0x738] sm:$0xff]
  %v3978 = vld [vmem:[%s5 + $0x740] sm:$0xff]
  %v3979 = vld [vmem:[%s5 + $0x748] sm:$0xff]
  %v3980 = vld [vmem:[%s5 + $0x750] sm:$0xff]
  %v3981 = vld [vmem:[%s5 + $0x758] sm:$0xff]
  %v3982 = vld [vmem:[%s5 + $0x760] sm:$0xff]
  %v3983 = vld [vmem:[%s5 + $0x768] sm:$0xff]
  %v3984 = vld [vmem:[%s5 + $0x770] sm:$0xff]
  %v3985 = vld [vmem:[%s5 + $0x778] sm:$0xff]
  %v3986 = vld [vmem:[%s5 + $0x780] sm:$0xff]
  %v3987 = vld [vmem:[%s5 + $0x788] sm:$0xff]
  %v3988 = vld [vmem:[%s5 + $0x790] sm:$0xff]
  %v3989 = vld [vmem:[%s5 + $0x798] sm:$0xff]
  %v3990 = vld [vmem:[%s5 + $0x7a0] sm:$0xff]
  %v3991 = vld [vmem:[%s5 + $0x7a8] sm:$0xff]
  %v3992 = vld [vmem:[%s5 + $0x7b0] sm:$0xff]
  %v3993 = vld [vmem:[%s5 + $0x7b8] sm:$0xff]
  %v3994 = vld [vmem:[%s5 + $0x7c0] sm:$0xff]
  %v3995 = vld [vmem:[%s5 + $0x7c8] sm:$0xff]
  %v3996 = vld [vmem:[%s5 + $0x7d0] sm:$0xff]
  %v3997 = vld [vmem:[%s5 + $0x7d8] sm:$0xff]
  %v3998 = vld [vmem:[%s5 + $0x7e0] sm:$0xff]
  %v3999 = vld [vmem:[%s5 + $0x7e8] sm:$0xff]
  %v4000 = vld [vmem:[%s5 + $0x7f0] sm:$0xff]
  %v4001 = vld [vmem:[%s5 + $0x7f8] sm:$0xff]
  %v4258 = vunpack.c.l.b16 %v3746
  %v4259 = vunpack.c.h.b16 %v3746
  %v4260 = vunpack.c.l.b16 %v3747
  %v4261 = vunpack.c.h.b16 %v3747
  %v4262 = vunpack.c.l.b16 %v3748
  %v4263 = vunpack.c.h.b16 %v3748
  %v4264 = vunpack.c.l.b16 %v3749
  %v4265 = vunpack.c.h.b16 %v3749
  %v4266 = vunpack.c.l.b16 %v3750
  %v4267 = vunpack.c.h.b16 %v3750
  %v4268 = vunpack.c.l.b16 %v3751
  %v4269 = vunpack.c.h.b16 %v3751
  %v4270 = vunpack.c.l.b16 %v3752
  %v4271 = vunpack.c.h.b16 %v3752
  %v4272 = vunpack.c.l.b16 %v3753
  %v4273 = vunpack.c.h.b16 %v3753
  %v4274 = vunpack.c.l.b16 %v3754
  %v4275 = vunpack.c.h.b16 %v3754
  %v4276 = vunpack.c.l.b16 %v3755
  %v4277 = vunpack.c.h.b16 %v3755
  %v4278 = vunpack.c.l.b16 %v3756
  %v4279 = vunpack.c.h.b16 %v3756
  %v4280 = vunpack.c.l.b16 %v3757
  %v4281 = vunpack.c.h.b16 %v3757
  %v4282 = vunpack.c.l.b16 %v3758
  %v4283 = vunpack.c.h.b16 %v3758
  %v4284 = vunpack.c.l.b16 %v3759
  %v4285 = vunpack.c.h.b16 %v3759
  %v4286 = vunpack.c.l.b16 %v3760
  %v4287 = vunpack.c.h.b16 %v3760
  %v4288 = vunpack.c.l.b16 %v3761
  %v4289 = vunpack.c.h.b16 %v3761
  %v4290 = vunpack.c.l.b16 %v3762
  %v4291 = vunpack.c.h.b16 %v3762
  %v4292 = vunpack.c.l.b16 %v3763
  %v4293 = vunpack.c.h.b16 %v3763
  %v4294 = vunpack.c.l.b16 %v3764
  %v4295 = vunpack.c.h.b16 %v3764
  %v4296 = vunpack.c.l.b16 %v3765
  %v4297 = vunpack.c.h.b16 %v3765
  %v4298 = vunpack.c.l.b16 %v3766
  %v4299 = vunpack.c.h.b16 %v3766
  %v4300 = vunpack.c.l.b16 %v3767
  %v4301 = vunpack.c.h.b16 %v3767
  %v4302 = vunpack.c.l.b16 %v3768
  %v4303 = vunpack.c.h.b16 %v3768
  %v4304 = vunpack.c.l.b16 %v3769
  %v4305 = vunpack.c.h.b16 %v3769
  %v4306 = vunpack.c.l.b16 %v3770
  %v4307 = vunpack.c.h.b16 %v3770
  %v4308 = vunpack.c.l.b16 %v3771
  %v4309 = vunpack.c.h.b16 %v3771
  %v4310 = vunpack.c.l.b16 %v3772
  %v4311 = vunpack.c.h.b16 %v3772
  %v4312 = vunpack.c.l.b16 %v3773
  %v4313 = vunpack.c.h.b16 %v3773
  %v4314 = vunpack.c.l.b16 %v3774
  %v4315 = vunpack.c.h.b16 %v3774
  %v4316 = vunpack.c.l.b16 %v3775
  %v4317 = vunpack.c.h.b16 %v3775
  %v4318 = vunpack.c.l.b16 %v3776
  %v4319 = vunpack.c.h.b16 %v3776
  %v4320 = vunpack.c.l.b16 %v3777
  %v4321 = vunpack.c.h.b16 %v3777
  %v4322 = vunpack.c.l.b16 %v3778
  %v4323 = vunpack.c.h.b16 %v3778
  %v4324 = vunpack.c.l.b16 %v3779
  %v4325 = vunpack.c.h.b16 %v3779
  %v4326 = vunpack.c.l.b16 %v3780
  %v4327 = vunpack.c.h.b16 %v3780
  %v4328 = vunpack.c.l.b16 %v3781
  %v4329 = vunpack.c.h.b16 %v3781
  %v4330 = vunpack.c.l.b16 %v3782
  %v4331 = vunpack.c.h.b16 %v3782
  %v4332 = vunpack.c.l.b16 %v3783
  %v4333 = vunpack.c.h.b16 %v3783
  %v4334 = vunpack.c.l.b16 %v3784
  %v4335 = vunpack.c.h.b16 %v3784
  %v4336 = vunpack.c.l.b16 %v3785
  %v4337 = vunpack.c.h.b16 %v3785
  %v4338 = vunpack.c.l.b16 %v3786
  %v4339 = vunpack.c.h.b16 %v3786
  %v4340 = vunpack.c.l.b16 %v3787
  %v4341 = vunpack.c.h.b16 %v3787
  %v4342 = vunpack.c.l.b16 %v3788
  %v4343 = vunpack.c.h.b16 %v3788
  %v4344 = vunpack.c.l.b16 %v3789
  %v4345 = vunpack.c.h.b16 %v3789
  %v4346 = vunpack.c.l.b16 %v3790
  %v4347 = vunpack.c.h.b16 %v3790
  %v4348 = vunpack.c.l.b16 %v3791
  %v4349 = vunpack.c.h.b16 %v3791
  %v4350 = vunpack.c.l.b16 %v3792
  %v4351 = vunpack.c.h.b16 %v3792
  %v4352 = vunpack.c.l.b16 %v3793
  %v4353 = vunpack.c.h.b16 %v3793
  %v4354 = vunpack.c.l.b16 %v3794
  %v4355 = vunpack.c.h.b16 %v3794
  %v4356 = vunpack.c.l.b16 %v3795
  %v4357 = vunpack.c.h.b16 %v3795
  %v4358 = vunpack.c.l.b16 %v3796
  %v4359 = vunpack.c.h.b16 %v3796
  %v4360 = vunpack.c.l.b16 %v3797
  %v4361 = vunpack.c.h.b16 %v3797
  %v4362 = vunpack.c.l.b16 %v3798
  %v4363 = vunpack.c.h.b16 %v3798
  %v4364 = vunpack.c.l.b16 %v3799
  %v4365 = vunpack.c.h.b16 %v3799
  %v4366 = vunpack.c.l.b16 %v3800
  %v4367 = vunpack.c.h.b16 %v3800
  %v4368 = vunpack.c.l.b16 %v3801
  %v4369 = vunpack.c.h.b16 %v3801
  %v4370 = vunpack.c.l.b16 %v3802
  %v4371 = vunpack.c.h.b16 %v3802
  %v4372 = vunpack.c.l.b16 %v3803
  %v4373 = vunpack.c.h.b16 %v3803
  %v4374 = vunpack.c.l.b16 %v3804
  %v4375 = vunpack.c.h.b16 %v3804
  %v4376 = vunpack.c.l.b16 %v3805
  %v4377 = vunpack.c.h.b16 %v3805
  %v4378 = vunpack.c.l.b16 %v3806
  %v4379 = vunpack.c.h.b16 %v3806
  %v4380 = vunpack.c.l.b16 %v3807
  %v4381 = vunpack.c.h.b16 %v3807
  %v4382 = vunpack.c.l.b16 %v3808
  %v4383 = vunpack.c.h.b16 %v3808
  %v4384 = vunpack.c.l.b16 %v3809
  %v4385 = vunpack.c.h.b16 %v3809
  %v4386 = vunpack.c.l.b16 %v3810
  %v4387 = vunpack.c.h.b16 %v3810
  %v4388 = vunpack.c.l.b16 %v3811
  %v4389 = vunpack.c.h.b16 %v3811
  %v4390 = vunpack.c.l.b16 %v3812
  %v4391 = vunpack.c.h.b16 %v3812
  %v4392 = vunpack.c.l.b16 %v3813
  %v4393 = vunpack.c.h.b16 %v3813
  %v4394 = vunpack.c.l.b16 %v3814
  %v4395 = vunpack.c.h.b16 %v3814
  %v4396 = vunpack.c.l.b16 %v3815
  %v4397 = vunpack.c.h.b16 %v3815
  %v4398 = vunpack.c.l.b16 %v3816
  %v4399 = vunpack.c.h.b16 %v3816
  %v4400 = vunpack.c.l.b16 %v3817
  %v4401 = vunpack.c.h.b16 %v3817
  %v4402 = vunpack.c.l.b16 %v3818
  %v4403 = vunpack.c.h.b16 %v3818
  %v4404 = vunpack.c.l.b16 %v3819
  %v4405 = vunpack.c.h.b16 %v3819
  %v4406 = vunpack.c.l.b16 %v3820
  %v4407 = vunpack.c.h.b16 %v3820
  %v4408 = vunpack.c.l.b16 %v3821
  %v4409 = vunpack.c.h.b16 %v3821
  %v4410 = vunpack.c.l.b16 %v3822
  %v4411 = vunpack.c.h.b16 %v3822
  %v4412 = vunpack.c.l.b16 %v3823
  %v4413 = vunpack.c.h.b16 %v3823
  %v4414 = vunpack.c.l.b16 %v3824
  %v4415 = vunpack.c.h.b16 %v3824
  %v4416 = vunpack.c.l.b16 %v3825
  %v4417 = vunpack.c.h.b16 %v3825
  %v4418 = vunpack.c.l.b16 %v3826
  %v4419 = vunpack.c.h.b16 %v3826
  %v4420 = vunpack.c.l.b16 %v3827
  %v4421 = vunpack.c.h.b16 %v3827
  %v4422 = vunpack.c.l.b16 %v3828
  %v4423 = vunpack.c.h.b16 %v3828
  %v4424 = vunpack.c.l.b16 %v3829
  %v4425 = vunpack.c.h.b16 %v3829
  %v4426 = vunpack.c.l.b16 %v3830
  %v4427 = vunpack.c.h.b16 %v3830
  %v4428 = vunpack.c.l.b16 %v3831
  %v4429 = vunpack.c.h.b16 %v3831
  %v4430 = vunpack.c.l.b16 %v3832
  %v4431 = vunpack.c.h.b16 %v3832
  %v4432 = vunpack.c.l.b16 %v3833
  %v4433 = vunpack.c.h.b16 %v3833
  %v4434 = vunpack.c.l.b16 %v3834
  %v4435 = vunpack.c.h.b16 %v3834
  %v4436 = vunpack.c.l.b16 %v3835
  %v4437 = vunpack.c.h.b16 %v3835
  %v4438 = vunpack.c.l.b16 %v3836
  %v4439 = vunpack.c.h.b16 %v3836
  %v4440 = vunpack.c.l.b16 %v3837
  %v4441 = vunpack.c.h.b16 %v3837
  %v4442 = vunpack.c.l.b16 %v3838
  %v4443 = vunpack.c.h.b16 %v3838
  %v4444 = vunpack.c.l.b16 %v3839
  %v4445 = vunpack.c.h.b16 %v3839
  %v4446 = vunpack.c.l.b16 %v3840
  %v4447 = vunpack.c.h.b16 %v3840
  %v4448 = vunpack.c.l.b16 %v3841
  %v4449 = vunpack.c.h.b16 %v3841
  %v4450 = vunpack.c.l.b16 %v3842
  %v4451 = vunpack.c.h.b16 %v3842
  %v4452 = vunpack.c.l.b16 %v3843
  %v4453 = vunpack.c.h.b16 %v3843
  %v4454 = vunpack.c.l.b16 %v3844
  %v4455 = vunpack.c.h.b16 %v3844
  %v4456 = vunpack.c.l.b16 %v3845
  %v4457 = vunpack.c.h.b16 %v3845
  %v4458 = vunpack.c.l.b16 %v3846
  %v4459 = vunpack.c.h.b16 %v3846
  %v4460 = vunpack.c.l.b16 %v3847
  %v4461 = vunpack.c.h.b16 %v3847
  %v4462 = vunpack.c.l.b16 %v3848
  %v4463 = vunpack.c.h.b16 %v3848
  %v4464 = vunpack.c.l.b16 %v3849
  %v4465 = vunpack.c.h.b16 %v3849
  %v4466 = vunpack.c.l.b16 %v3850
  %v4467 = vunpack.c.h.b16 %v3850
  %v4468 = vunpack.c.l.b16 %v3851
  %v4469 = vunpack.c.h.b16 %v3851
  %v4470 = vunpack.c.l.b16 %v3852
  %v4471 = vunpack.c.h.b16 %v3852
  %v4472 = vunpack.c.l.b16 %v3853
  %v4473 = vunpack.c.h.b16 %v3853
  %v4474 = vunpack.c.l.b16 %v3854
  %v4475 = vunpack.c.h.b16 %v3854
  %v4476 = vunpack.c.l.b16 %v3855
  %v4477 = vunpack.c.h.b16 %v3855
  %v4478 = vunpack.c.l.b16 %v3856
  %v4479 = vunpack.c.h.b16 %v3856
  %v4480 = vunpack.c.l.b16 %v3857
  %v4481 = vunpack.c.h.b16 %v3857
  %v4482 = vunpack.c.l.b16 %v3858
  %v4483 = vunpack.c.h.b16 %v3858
  %v4484 = vunpack.c.l.b16 %v3859
  %v4485 = vunpack.c.h.b16 %v3859
  %v4486 = vunpack.c.l.b16 %v3860
  %v4487 = vunpack.c.h.b16 %v3860
  %v4488 = vunpack.c.l.b16 %v3861
  %v4489 = vunpack.c.h.b16 %v3861
  %v4490 = vunpack.c.l.b16 %v3862
  %v4491 = vunpack.c.h.b16 %v3862
  %v4492 = vunpack.c.l.b16 %v3863
  %v4493 = vunpack.c.h.b16 %v3863
  %v4494 = vunpack.c.l.b16 %v3864
  %v4495 = vunpack.c.h.b16 %v3864
  %v4496 = vunpack.c.l.b16 %v3865
  %v4497 = vunpack.c.h.b16 %v3865
  %v4498 = vunpack.c.l.b16 %v3866
  %v4499 = vunpack.c.h.b16 %v3866
  %v4500 = vunpack.c.l.b16 %v3867
  %v4501 = vunpack.c.h.b16 %v3867
  %v4502 = vunpack.c.l.b16 %v3868
  %v4503 = vunpack.c.h.b16 %v3868
  %v4504 = vunpack.c.l.b16 %v3869
  %v4505 = vunpack.c.h.b16 %v3869
  %v4506 = vunpack.c.l.b16 %v3870
  %v4507 = vunpack.c.h.b16 %v3870
  %v4508 = vunpack.c.l.b16 %v3871
  %v4509 = vunpack.c.h.b16 %v3871
  %v4510 = vunpack.c.l.b16 %v3872
  %v4511 = vunpack.c.h.b16 %v3872
  %v4512 = vunpack.c.l.b16 %v3873
  %v4513 = vunpack.c.h.b16 %v3873
  %v4514 = vunpack.c.l.b16 %v3874
  %v4515 = vunpack.c.h.b16 %v3874
  %v4516 = vunpack.c.l.b16 %v3875
  %v4517 = vunpack.c.h.b16 %v3875
  %v4518 = vunpack.c.l.b16 %v3876
  %v4519 = vunpack.c.h.b16 %v3876
  %v4520 = vunpack.c.l.b16 %v3877
  %v4521 = vunpack.c.h.b16 %v3877
  %v4522 = vunpack.c.l.b16 %v3878
  %v4523 = vunpack.c.h.b16 %v3878
  %v4524 = vunpack.c.l.b16 %v3879
  %v4525 = vunpack.c.h.b16 %v3879
  %v4526 = vunpack.c.l.b16 %v3880
  %v4527 = vunpack.c.h.b16 %v3880
  %v4528 = vunpack.c.l.b16 %v3881
  %v4529 = vunpack.c.h.b16 %v3881
  %v4530 = vunpack.c.l.b16 %v3882
  %v4531 = vunpack.c.h.b16 %v3882
  %v4532 = vunpack.c.l.b16 %v3883
  %v4533 = vunpack.c.h.b16 %v3883
  %v4534 = vunpack.c.l.b16 %v3884
  %v4535 = vunpack.c.h.b16 %v3884
  %v4536 = vunpack.c.l.b16 %v3885
  %v4537 = vunpack.c.h.b16 %v3885
  %v4538 = vunpack.c.l.b16 %v3886
  %v4539 = vunpack.c.h.b16 %v3886
  %v4540 = vunpack.c.l.b16 %v3887
  %v4541 = vunpack.c.h.b16 %v3887
  %v4542 = vunpack.c.l.b16 %v3888
  %v4543 = vunpack.c.h.b16 %v3888
  %v4544 = vunpack.c.l.b16 %v3889
  %v4545 = vunpack.c.h.b16 %v3889
  %v4546 = vunpack.c.l.b16 %v3890
  %v4547 = vunpack.c.h.b16 %v3890
  %v4548 = vunpack.c.l.b16 %v3891
  %v4549 = vunpack.c.h.b16 %v3891
  %v4550 = vunpack.c.l.b16 %v3892
  %v4551 = vunpack.c.h.b16 %v3892
  %v4552 = vunpack.c.l.b16 %v3893
  %v4553 = vunpack.c.h.b16 %v3893
  %v4554 = vunpack.c.l.b16 %v3894
  %v4555 = vunpack.c.h.b16 %v3894
  %v4556 = vunpack.c.l.b16 %v3895
  %v4557 = vunpack.c.h.b16 %v3895
  %v4558 = vunpack.c.l.b16 %v3896
  %v4559 = vunpack.c.h.b16 %v3896
  %v4560 = vunpack.c.l.b16 %v3897
  %v4561 = vunpack.c.h.b16 %v3897
  %v4562 = vunpack.c.l.b16 %v3898
  %v4563 = vunpack.c.h.b16 %v3898
  %v4564 = vunpack.c.l.b16 %v3899
  %v4565 = vunpack.c.h.b16 %v3899
  %v4566 = vunpack.c.l.b16 %v3900
  %v4567 = vunpack.c.h.b16 %v3900
  %v4568 = vunpack.c.l.b16 %v3901
  %v4569 = vunpack.c.h.b16 %v3901
  %v4570 = vunpack.c.l.b16 %v3902
  %v4571 = vunpack.c.h.b16 %v3902
  %v4572 = vunpack.c.l.b16 %v3903
  %v4573 = vunpack.c.h.b16 %v3903
  %v4574 = vunpack.c.l.b16 %v3904
  %v4575 = vunpack.c.h.b16 %v3904
  %v4576 = vunpack.c.l.b16 %v3905
  %v4577 = vunpack.c.h.b16 %v3905
  %v4578 = vunpack.c.l.b16 %v3906
  %v4579 = vunpack.c.h.b16 %v3906
  %v4580 = vunpack.c.l.b16 %v3907
  %v4581 = vunpack.c.h.b16 %v3907
  %v4582 = vunpack.c.l.b16 %v3908
  %v4583 = vunpack.c.h.b16 %v3908
  %v4584 = vunpack.c.l.b16 %v3909
  %v4585 = vunpack.c.h.b16 %v3909
  %v4586 = vunpack.c.l.b16 %v3910
  %v4587 = vunpack.c.h.b16 %v3910
  %v4588 = vunpack.c.l.b16 %v3911
  %v4589 = vunpack.c.h.b16 %v3911
  %v4590 = vunpack.c.l.b16 %v3912
  %v4591 = vunpack.c.h.b16 %v3912
  %v4592 = vunpack.c.l.b16 %v3913
  %v4593 = vunpack.c.h.b16 %v3913
  %v4594 = vunpack.c.l.b16 %v3914
  %v4595 = vunpack.c.h.b16 %v3914
  %v4596 = vunpack.c.l.b16 %v3915
  %v4597 = vunpack.c.h.b16 %v3915
  %v4598 = vunpack.c.l.b16 %v3916
  %v4599 = vunpack.c.h.b16 %v3916
  %v4600 = vunpack.c.l.b16 %v3917
  %v4601 = vunpack.c.h.b16 %v3917
  %v4602 = vunpack.c.l.b16 %v3918
  %v4603 = vunpack.c.h.b16 %v3918
  %v4604 = vunpack.c.l.b16 %v3919
  %v4605 = vunpack.c.h.b16 %v3919
  %v4606 = vunpack.c.l.b16 %v3920
  %v4607 = vunpack.c.h.b16 %v3920
  %v4608 = vunpack.c.l.b16 %v3921
  %v4609 = vunpack.c.h.b16 %v3921
  %v4610 = vunpack.c.l.b16 %v3922
  %v4611 = vunpack.c.h.b16 %v3922
  %v4612 = vunpack.c.l.b16 %v3923
  %v4613 = vunpack.c.h.b16 %v3923
  %v4614 = vunpack.c.l.b16 %v3924
  %v4615 = vunpack.c.h.b16 %v3924
  %v4616 = vunpack.c.l.b16 %v3925
  %v4617 = vunpack.c.h.b16 %v3925
  %v4618 = vunpack.c.l.b16 %v3926
  %v4619 = vunpack.c.h.b16 %v3926
  %v4620 = vunpack.c.l.b16 %v3927
  %v4621 = vunpack.c.h.b16 %v3927
  %v4622 = vunpack.c.l.b16 %v3928
  %v4623 = vunpack.c.h.b16 %v3928
  %v4624 = vunpack.c.l.b16 %v3929
  %v4625 = vunpack.c.h.b16 %v3929
  %v4626 = vunpack.c.l.b16 %v3930
  %v4627 = vunpack.c.h.b16 %v3930
  %v4628 = vunpack.c.l.b16 %v3931
  %v4629 = vunpack.c.h.b16 %v3931
  %v4630 = vunpack.c.l.b16 %v3932
  %v4631 = vunpack.c.h.b16 %v3932
  %v4632 = vunpack.c.l.b16 %v3933
  %v4633 = vunpack.c.h.b16 %v3933
  %v4634 = vunpack.c.l.b16 %v3934
  %v4635 = vunpack.c.h.b16 %v3934
  %v4636 = vunpack.c.l.b16 %v3935
  %v4637 = vunpack.c.h.b16 %v3935
  %v4638 = vunpack.c.l.b16 %v3936
  %v4639 = vunpack.c.h.b16 %v3936
  %v4640 = vunpack.c.l.b16 %v3937
  %v4641 = vunpack.c.h.b16 %v3937
  %v4642 = vunpack.c.l.b16 %v3938
  %v4643 = vunpack.c.h.b16 %v3938
  %v4644 = vunpack.c.l.b16 %v3939
  %v4645 = vunpack.c.h.b16 %v3939
  %v4646 = vunpack.c.l.b16 %v3940
  %v4647 = vunpack.c.h.b16 %v3940
  %v4648 = vunpack.c.l.b16 %v3941
  %v4649 = vunpack.c.h.b16 %v3941
  %v4650 = vunpack.c.l.b16 %v3942
  %v4651 = vunpack.c.h.b16 %v3942
  %v4652 = vunpack.c.l.b16 %v3943
  %v4653 = vunpack.c.h.b16 %v3943
  %v4654 = vunpack.c.l.b16 %v3944
  %v4655 = vunpack.c.h.b16 %v3944
  %v4656 = vunpack.c.l.b16 %v3945
  %v4657 = vunpack.c.h.b16 %v3945
  %v4658 = vunpack.c.l.b16 %v3946
  %v4659 = vunpack.c.h.b16 %v3946
  %v4660 = vunpack.c.l.b16 %v3947
  %v4661 = vunpack.c.h.b16 %v3947
  %v4662 = vunpack.c.l.b16 %v3948
  %v4663 = vunpack.c.h.b16 %v3948
  %v4664 = vunpack.c.l.b16 %v3949
  %v4665 = vunpack.c.h.b16 %v3949
  %v4666 = vunpack.c.l.b16 %v3950
  %v4667 = vunpack.c.h.b16 %v3950
  %v4668 = vunpack.c.l.b16 %v3951
  %v4669 = vunpack.c.h.b16 %v3951
  %v4670 = vunpack.c.l.b16 %v3952
  %v4671 = vunpack.c.h.b16 %v3952
  %v4672 = vunpack.c.l.b16 %v3953
  %v4673 = vunpack.c.h.b16 %v3953
  %v4674 = vunpack.c.l.b16 %v3954
  %v4675 = vunpack.c.h.b16 %v3954
  %v4676 = vunpack.c.l.b16 %v3955
  %v4677 = vunpack.c.h.b16 %v3955
  %v4678 = vunpack.c.l.b16 %v3956
  %v4679 = vunpack.c.h.b16 %v3956
  %v4680 = vunpack.c.l.b16 %v3957
  %v4681 = vunpack.c.h.b16 %v3957
  %v4682 = vunpack.c.l.b16 %v3958
  %v4683 = vunpack.c.h.b16 %v3958
  %v4684 = vunpack.c.l.b16 %v3959
  %v4685 = vunpack.c.h.b16 %v3959
  %v4686 = vunpack.c.l.b16 %v3960
  %v4687 = vunpack.c.h.b16 %v3960
  %v4688 = vunpack.c.l.b16 %v3961
  %v4689 = vunpack.c.h.b16 %v3961
  %v4690 = vunpack.c.l.b16 %v3962
  %v4691 = vunpack.c.h.b16 %v3962
  %v4692 = vunpack.c.l.b16 %v3963
  %v4693 = vunpack.c.h.b16 %v3963
  %v4694 = vunpack.c.l.b16 %v3964
  %v4695 = vunpack.c.h.b16 %v3964
  %v4696 = vunpack.c.l.b16 %v3965
  %v4697 = vunpack.c.h.b16 %v3965
  %v4698 = vunpack.c.l.b16 %v3966
  %v4699 = vunpack.c.h.b16 %v3966
  %v4700 = vunpack.c.l.b16 %v3967
  %v4701 = vunpack.c.h.b16 %v3967
  %v4702 = vunpack.c.l.b16 %v3968
  %v4703 = vunpack.c.h.b16 %v3968
  %v4704 = vunpack.c.l.b16 %v3969
  %v4705 = vunpack.c.h.b16 %v3969
  %v4706 = vunpack.c.l.b16 %v3970
  %v4707 = vunpack.c.h.b16 %v3970
  %v4708 = vunpack.c.l.b16 %v3971
  %v4709 = vunpack.c.h.b16 %v3971
  %v4710 = vunpack.c.l.b16 %v3972
  %v4711 = vunpack.c.h.b16 %v3972
  %v4712 = vunpack.c.l.b16 %v3973
  %v4713 = vunpack.c.h.b16 %v3973
  %v4714 = vunpack.c.l.b16 %v3974
  %v4715 = vunpack.c.h.b16 %v3974
  %v4716 = vunpack.c.l.b16 %v3975
  %v4717 = vunpack.c.h.b16 %v3975
  %v4718 = vunpack.c.l.b16 %v3976
  %v4719 = vunpack.c.h.b16 %v3976
  %v4720 = vunpack.c.l.b16 %v3977
  %v4721 = vunpack.c.h.b16 %v3977
  %v4722 = vunpack.c.l.b16 %v3978
  %v4723 = vunpack.c.h.b16 %v3978
  %v4724 = vunpack.c.l.b16 %v3979
  %v4725 = vunpack.c.h.b16 %v3979
  %v4726 = vunpack.c.l.b16 %v3980
  %v4727 = vunpack.c.h.b16 %v3980
  %v4728 = vunpack.c.l.b16 %v3981
  %v4729 = vunpack.c.h.b16 %v3981
  %v4730 = vunpack.c.l.b16 %v3982
  %v4731 = vunpack.c.h.b16 %v3982
  %v4732 = vunpack.c.l.b16 %v3983
  %v4733 = vunpack.c.h.b16 %v3983
  %v4734 = vunpack.c.l.b16 %v3984
  %v4735 = vunpack.c.h.b16 %v3984
  %v4736 = vunpack.c.l.b16 %v3985
  %v4737 = vunpack.c.h.b16 %v3985
  %v4738 = vunpack.c.l.b16 %v3986
  %v4739 = vunpack.c.h.b16 %v3986
  %v4740 = vunpack.c.l.b16 %v3987
  %v4741 = vunpack.c.h.b16 %v3987
  %v4742 = vunpack.c.l.b16 %v3988
  %v4743 = vunpack.c.h.b16 %v3988
  %v4744 = vunpack.c.l.b16 %v3989
  %v4745 = vunpack.c.h.b16 %v3989
  %v4746 = vunpack.c.l.b16 %v3990
  %v4747 = vunpack.c.h.b16 %v3990
  %v4748 = vunpack.c.l.b16 %v3991
  %v4749 = vunpack.c.h.b16 %v3991
  %v4750 = vunpack.c.l.b16 %v3992
  %v4751 = vunpack.c.h.b16 %v3992
  %v4752 = vunpack.c.l.b16 %v3993
  %v4753 = vunpack.c.h.b16 %v3993
  %v4754 = vunpack.c.l.b16 %v3994
  %v4755 = vunpack.c.h.b16 %v3994
  %v4756 = vunpack.c.l.b16 %v3995
  %v4757 = vunpack.c.h.b16 %v3995
  %v4758 = vunpack.c.l.b16 %v3996
  %v4759 = vunpack.c.h.b16 %v3996
  %v4760 = vunpack.c.l.b16 %v3997
  %v4761 = vunpack.c.h.b16 %v3997
  %v4762 = vunpack.c.l.b16 %v3998
  %v4763 = vunpack.c.h.b16 %v3998
  %v4764 = vunpack.c.l.b16 %v3999
  %v4765 = vunpack.c.h.b16 %v3999
  %v4766 = vunpack.c.l.b16 %v4000
  %v4767 = vunpack.c.h.b16 %v4000
  %v4768 = vunpack.c.l.b16 %v4001
  %v4769 = vunpack.c.h.b16 %v4001
  %v4770 = vpack.c.b16 %v4260, %v4258
  %v4771 = vpack.c.b16 %v4261, %v4259
  %v4772 = vpack.c.b16 %v4264, %v4262
  %v4773 = vpack.c.b16 %v4265, %v4263
  %v4774 = vpack.c.b16 %v4268, %v4266
  %v4775 = vpack.c.b16 %v4269, %v4267
  %v4776 = vpack.c.b16 %v4272, %v4270
  %v4777 = vpack.c.b16 %v4273, %v4271
  %v4778 = vpack.c.b16 %v4276, %v4274
  %v4779 = vpack.c.b16 %v4277, %v4275
  %v4780 = vpack.c.b16 %v4280, %v4278
  %v4781 = vpack.c.b16 %v4281, %v4279
  %v4782 = vpack.c.b16 %v4284, %v4282
  %v4783 = vpack.c.b16 %v4285, %v4283
  %v4784 = vpack.c.b16 %v4288, %v4286
  %v4785 = vpack.c.b16 %v4289, %v4287
  %v4786 = vpack.c.b16 %v4292, %v4290
  %v4787 = vpack.c.b16 %v4293, %v4291
  %v4788 = vpack.c.b16 %v4296, %v4294
  %v4789 = vpack.c.b16 %v4297, %v4295
  %v4790 = vpack.c.b16 %v4300, %v4298
  %v4791 = vpack.c.b16 %v4301, %v4299
  %v4792 = vpack.c.b16 %v4304, %v4302
  %v4793 = vpack.c.b16 %v4305, %v4303
  %v4794 = vpack.c.b16 %v4308, %v4306
  %v4795 = vpack.c.b16 %v4309, %v4307
  %v4796 = vpack.c.b16 %v4312, %v4310
  %v4797 = vpack.c.b16 %v4313, %v4311
  %v4798 = vpack.c.b16 %v4316, %v4314
  %v4799 = vpack.c.b16 %v4317, %v4315
  %v4800 = vpack.c.b16 %v4320, %v4318
  %v4801 = vpack.c.b16 %v4321, %v4319
  %v4802 = vpack.c.b16 %v4324, %v4322
  %v4803 = vpack.c.b16 %v4325, %v4323
  %v4804 = vpack.c.b16 %v4328, %v4326
  %v4805 = vpack.c.b16 %v4329, %v4327
  %v4806 = vpack.c.b16 %v4332, %v4330
  %v4807 = vpack.c.b16 %v4333, %v4331
  %v4808 = vpack.c.b16 %v4336, %v4334
  %v4809 = vpack.c.b16 %v4337, %v4335
  %v4810 = vpack.c.b16 %v4340, %v4338
  %v4811 = vpack.c.b16 %v4341, %v4339
  %v4812 = vpack.c.b16 %v4344, %v4342
  %v4813 = vpack.c.b16 %v4345, %v4343
  %v4814 = vpack.c.b16 %v4348, %v4346
  %v4815 = vpack.c.b16 %v4349, %v4347
  %v4816 = vpack.c.b16 %v4352, %v4350
  %v4817 = vpack.c.b16 %v4353, %v4351
  %v4818 = vpack.c.b16 %v4356, %v4354
  %v4819 = vpack.c.b16 %v4357, %v4355
  %v4820 = vpack.c.b16 %v4360, %v4358
  %v4821 = vpack.c.b16 %v4361, %v4359
  %v4822 = vpack.c.b16 %v4364, %v4362
  %v4823 = vpack.c.b16 %v4365, %v4363
  %v4824 = vpack.c.b16 %v4368, %v4366
  %v4825 = vpack.c.b16 %v4369, %v4367
  %v4826 = vpack.c.b16 %v4372, %v4370
  %v4827 = vpack.c.b16 %v4373, %v4371
  %v4828 = vpack.c.b16 %v4376, %v4374
  %v4829 = vpack.c.b16 %v4377, %v4375
  %v4830 = vpack.c.b16 %v4380, %v4378
  %v4831 = vpack.c.b16 %v4381, %v4379
  %v4832 = vpack.c.b16 %v4384, %v4382
  %v4833 = vpack.c.b16 %v4385, %v4383
  %v4834 = vpack.c.b16 %v4388, %v4386
  %v4835 = vpack.c.b16 %v4389, %v4387
  %v4836 = vpack.c.b16 %v4392, %v4390
  %v4837 = vpack.c.b16 %v4393, %v4391
  %v4838 = vpack.c.b16 %v4396, %v4394
  %v4839 = vpack.c.b16 %v4397, %v4395
  %v4840 = vpack.c.b16 %v4400, %v4398
  %v4841 = vpack.c.b16 %v4401, %v4399
  %v4842 = vpack.c.b16 %v4404, %v4402
  %v4843 = vpack.c.b16 %v4405, %v4403
  %v4844 = vpack.c.b16 %v4408, %v4406
  %v4845 = vpack.c.b16 %v4409, %v4407
  %v4846 = vpack.c.b16 %v4412, %v4410
  %v4847 = vpack.c.b16 %v4413, %v4411
  %v4848 = vpack.c.b16 %v4416, %v4414
  %v4849 = vpack.c.b16 %v4417, %v4415
  %v4850 = vpack.c.b16 %v4420, %v4418
  %v4851 = vpack.c.b16 %v4421, %v4419
  %v4852 = vpack.c.b16 %v4424, %v4422
  %v4853 = vpack.c.b16 %v4425, %v4423
  %v4854 = vpack.c.b16 %v4428, %v4426
  %v4855 = vpack.c.b16 %v4429, %v4427
  %v4856 = vpack.c.b16 %v4432, %v4430
  %v4857 = vpack.c.b16 %v4433, %v4431
  %v4858 = vpack.c.b16 %v4436, %v4434
  %v4859 = vpack.c.b16 %v4437, %v4435
  %v4860 = vpack.c.b16 %v4440, %v4438
  %v4861 = vpack.c.b16 %v4441, %v4439
  %v4862 = vpack.c.b16 %v4444, %v4442
  %v4863 = vpack.c.b16 %v4445, %v4443
  %v4864 = vpack.c.b16 %v4448, %v4446
  %v4865 = vpack.c.b16 %v4449, %v4447
  %v4866 = vpack.c.b16 %v4452, %v4450
  %v4867 = vpack.c.b16 %v4453, %v4451
  %v4868 = vpack.c.b16 %v4456, %v4454
  %v4869 = vpack.c.b16 %v4457, %v4455
  %v4870 = vpack.c.b16 %v4460, %v4458
  %v4871 = vpack.c.b16 %v4461, %v4459
  %v4872 = vpack.c.b16 %v4464, %v4462
  %v4873 = vpack.c.b16 %v4465, %v4463
  %v4874 = vpack.c.b16 %v4468, %v4466
  %v4875 = vpack.c.b16 %v4469, %v4467
  %v4876 = vpack.c.b16 %v4472, %v4470
  %v4877 = vpack.c.b16 %v4473, %v4471
  %v4878 = vpack.c.b16 %v4476, %v4474
  %v4879 = vpack.c.b16 %v4477, %v4475
  %v4880 = vpack.c.b16 %v4480, %v4478
  %v4881 = vpack.c.b16 %v4481, %v4479
  %v4882 = vpack.c.b16 %v4484, %v4482
  %v4883 = vpack.c.b16 %v4485, %v4483
  %v4884 = vpack.c.b16 %v4488, %v4486
  %v4885 = vpack.c.b16 %v4489, %v4487
  %v4886 = vpack.c.b16 %v4492, %v4490
  %v4887 = vpack.c.b16 %v4493, %v4491
  %v4888 = vpack.c.b16 %v4496, %v4494
  %v4889 = vpack.c.b16 %v4497, %v4495
  %v4890 = vpack.c.b16 %v4500, %v4498
  %v4891 = vpack.c.b16 %v4501, %v4499
  %v4892 = vpack.c.b16 %v4504, %v4502
  %v4893 = vpack.c.b16 %v4505, %v4503
  %v4894 = vpack.c.b16 %v4508, %v4506
  %v4895 = vpack.c.b16 %v4509, %v4507
  %v4896 = vpack.c.b16 %v4512, %v4510
  %v4897 = vpack.c.b16 %v4513, %v4511
  %v4898 = vpack.c.b16 %v4516, %v4514
  %v4899 = vpack.c.b16 %v4517, %v4515
  %v4900 = vpack.c.b16 %v4520, %v4518
  %v4901 = vpack.c.b16 %v4521, %v4519
  %v4902 = vpack.c.b16 %v4524, %v4522
  %v4903 = vpack.c.b16 %v4525, %v4523
  %v4904 = vpack.c.b16 %v4528, %v4526
  %v4905 = vpack.c.b16 %v4529, %v4527
  %v4906 = vpack.c.b16 %v4532, %v4530
  %v4907 = vpack.c.b16 %v4533, %v4531
  %v4908 = vpack.c.b16 %v4536, %v4534
  %v4909 = vpack.c.b16 %v4537, %v4535
  %v4910 = vpack.c.b16 %v4540, %v4538
  %v4911 = vpack.c.b16 %v4541, %v4539
  %v4912 = vpack.c.b16 %v4544, %v4542
  %v4913 = vpack.c.b16 %v4545, %v4543
  %v4914 = vpack.c.b16 %v4548, %v4546
  %v4915 = vpack.c.b16 %v4549, %v4547
  %v4916 = vpack.c.b16 %v4552, %v4550
  %v4917 = vpack.c.b16 %v4553, %v4551
  %v4918 = vpack.c.b16 %v4556, %v4554
  %v4919 = vpack.c.b16 %v4557, %v4555
  %v4920 = vpack.c.b16 %v4560, %v4558
  %v4921 = vpack.c.b16 %v4561, %v4559
  %v4922 = vpack.c.b16 %v4564, %v4562
  %v4923 = vpack.c.b16 %v4565, %v4563
  %v4924 = vpack.c.b16 %v4568, %v4566
  %v4925 = vpack.c.b16 %v4569, %v4567
  %v4926 = vpack.c.b16 %v4572, %v4570
  %v4927 = vpack.c.b16 %v4573, %v4571
  %v4928 = vpack.c.b16 %v4576, %v4574
  %v4929 = vpack.c.b16 %v4577, %v4575
  %v4930 = vpack.c.b16 %v4580, %v4578
  %v4931 = vpack.c.b16 %v4581, %v4579
  %v4932 = vpack.c.b16 %v4584, %v4582
  %v4933 = vpack.c.b16 %v4585, %v4583
  %v4934 = vpack.c.b16 %v4588, %v4586
  %v4935 = vpack.c.b16 %v4589, %v4587
  %v4936 = vpack.c.b16 %v4592, %v4590
  %v4937 = vpack.c.b16 %v4593, %v4591
  %v4938 = vpack.c.b16 %v4596, %v4594
  %v4939 = vpack.c.b16 %v4597, %v4595
  %v4940 = vpack.c.b16 %v4600, %v4598
  %v4941 = vpack.c.b16 %v4601, %v4599
  %v4942 = vpack.c.b16 %v4604, %v4602
  %v4943 = vpack.c.b16 %v4605, %v4603
  %v4944 = vpack.c.b16 %v4608, %v4606
  %v4945 = vpack.c.b16 %v4609, %v4607
  %v4946 = vpack.c.b16 %v4612, %v4610
  %v4947 = vpack.c.b16 %v4613, %v4611
  %v4948 = vpack.c.b16 %v4616, %v4614
  %v4949 = vpack.c.b16 %v4617, %v4615
  %v4950 = vpack.c.b16 %v4620, %v4618
  %v4951 = vpack.c.b16 %v4621, %v4619
  %v4952 = vpack.c.b16 %v4624, %v4622
  %v4953 = vpack.c.b16 %v4625, %v4623
  %v4954 = vpack.c.b16 %v4628, %v4626
  %v4955 = vpack.c.b16 %v4629, %v4627
  %v4956 = vpack.c.b16 %v4632, %v4630
  %v4957 = vpack.c.b16 %v4633, %v4631
  %v4958 = vpack.c.b16 %v4636, %v4634
  %v4959 = vpack.c.b16 %v4637, %v4635
  %v4960 = vpack.c.b16 %v4640, %v4638
  %v4961 = vpack.c.b16 %v4641, %v4639
  %v4962 = vpack.c.b16 %v4644, %v4642
  %v4963 = vpack.c.b16 %v4645, %v4643
  %v4964 = vpack.c.b16 %v4648, %v4646
  %v4965 = vpack.c.b16 %v4649, %v4647
  %v4966 = vpack.c.b16 %v4652, %v4650
  %v4967 = vpack.c.b16 %v4653, %v4651
  %v4968 = vpack.c.b16 %v4656, %v4654
  %v4969 = vpack.c.b16 %v4657, %v4655
  %v4970 = vpack.c.b16 %v4660, %v4658
  %v4971 = vpack.c.b16 %v4661, %v4659
  %v4972 = vpack.c.b16 %v4664, %v4662
  %v4973 = vpack.c.b16 %v4665, %v4663
  %v4974 = vpack.c.b16 %v4668, %v4666
  %v4975 = vpack.c.b16 %v4669, %v4667
  %v4976 = vpack.c.b16 %v4672, %v4670
  %v4977 = vpack.c.b16 %v4673, %v4671
  %v4978 = vpack.c.b16 %v4676, %v4674
  %v4979 = vpack.c.b16 %v4677, %v4675
  %v4980 = vpack.c.b16 %v4680, %v4678
  %v4981 = vpack.c.b16 %v4681, %v4679
  %v4982 = vpack.c.b16 %v4684, %v4682
  %v4983 = vpack.c.b16 %v4685, %v4683
  %v4984 = vpack.c.b16 %v4688, %v4686
  %v4985 = vpack.c.b16 %v4689, %v4687
  %v4986 = vpack.c.b16 %v4692, %v4690
  %v4987 = vpack.c.b16 %v4693, %v4691
  %v4988 = vpack.c.b16 %v4696, %v4694
  %v4989 = vpack.c.b16 %v4697, %v4695
  %v4990 = vpack.c.b16 %v4700, %v4698
  %v4991 = vpack.c.b16 %v4701, %v4699
  %v4992 = vpack.c.b16 %v4704, %v4702
  %v4993 = vpack.c.b16 %v4705, %v4703
  %v4994 = vpack.c.b16 %v4708, %v4706
  %v4995 = vpack.c.b16 %v4709, %v4707
  %v4996 = vpack.c.b16 %v4712, %v4710
  %v4997 = vpack.c.b16 %v4713, %v4711
  %v4998 = vpack.c.b16 %v4716, %v4714
  %v4999 = vpack.c.b16 %v4717, %v4715
  %v5000 = vpack.c.b16 %v4720, %v4718
  %v5001 = vpack.c.b16 %v4721, %v4719
  %v5002 = vpack.c.b16 %v4724, %v4722
  %v5003 = vpack.c.b16 %v4725, %v4723
  %v5004 = vpack.c.b16 %v4728, %v4726
  %v5005 = vpack.c.b16 %v4729, %v4727
  %v5006 = vpack.c.b16 %v4732, %v4730
  %v5007 = vpack.c.b16 %v4733, %v4731
  %v5008 = vpack.c.b16 %v4736, %v4734
  %v5009 = vpack.c.b16 %v4737, %v4735
  %v5010 = vpack.c.b16 %v4740, %v4738
  %v5011 = vpack.c.b16 %v4741, %v4739
  %v5012 = vpack.c.b16 %v4744, %v4742
  %v5013 = vpack.c.b16 %v4745, %v4743
  %v5014 = vpack.c.b16 %v4748, %v4746
  %v5015 = vpack.c.b16 %v4749, %v4747
  %v5016 = vpack.c.b16 %v4752, %v4750
  %v5017 = vpack.c.b16 %v4753, %v4751
  %v5018 = vpack.c.b16 %v4756, %v4754
  %v5019 = vpack.c.b16 %v4757, %v4755
  %v5020 = vpack.c.b16 %v4760, %v4758
  %v5021 = vpack.c.b16 %v4761, %v4759
  %v5022 = vpack.c.b16 %v4764, %v4762
  %v5023 = vpack.c.b16 %v4765, %v4763
  %v5024 = vpack.c.b16 %v4768, %v4766
  %v5025 = vpack.c.b16 %v4769, %v4767
  %5282 = vmatprep.subr.bf16.mxu0 %v4785
  %5283 = vmatpush1.bf16.msra.mxu0 %v4784
  %5284 = vmatprep.subr.bf16.mxu0 %v4783
  %5285 = vmatpush1.bf16.msra.mxu0 %v4782
  %5286 = vmatprep.subr.bf16.mxu0 %v4781
  %5287 = vmatpush1.bf16.msra.mxu0 %v4780
  %5288 = vmatprep.subr.bf16.mxu0 %v4779
  %5289 = vmatpush1.bf16.msra.mxu0 %v4778
  %5290 = vmatprep.subr.bf16.mxu0 %v4777
  %5291 = vmatpush1.bf16.msra.mxu0 %v4776
  %5292 = vmatprep.subr.bf16.mxu0 %v4775
  %5293 = vmatpush1.bf16.msra.mxu0 %v4774
  %5294 = vmatprep.subr.bf16.mxu0 %v4773
  %5295 = vmatpush1.bf16.msra.mxu0 %v4772
  %5296 = vmatprep.subr.bf16.mxu0 %v4771
  %5297 = vmatpush1.bf16.msra.mxu0 %v4770
  %5298 = vmatprep.subr.bf16.mxu0 %v4801
  %5299 = vmatpush2.bf16.msra.mxu0 %v4800
  %5300 = vmatprep.subr.bf16.mxu0 %v4799
  %5301 = vmatpush2.bf16.msra.mxu0 %v4798
  %5302 = vmatprep.subr.bf16.mxu0 %v4797
  %5303 = vmatpush2.bf16.msra.mxu0 %v4796
  %5304 = vmatprep.subr.bf16.mxu0 %v4795
  %5305 = vmatpush2.bf16.msra.mxu0 %v4794
  %5306 = vmatprep.subr.bf16.mxu0 %v4793
  %5307 = vmatpush2.bf16.msra.mxu0 %v4792
  %5308 = vmatprep.subr.bf16.mxu0 %v4791
  %5309 = vmatpush2.bf16.msra.mxu0 %v4790
  %5310 = vmatprep.subr.bf16.mxu0 %v4789
  %5311 = vmatpush2.bf16.msra.mxu0 %v4788
  %5312 = vmatprep.subr.bf16.mxu0 %v4787
  %5313 = vmatpush2.bf16.msra.mxu0 %v4786
  %5314 = vmatprep.mubr.bf16.mxu0 %v3715
  %5315 = vmatmul.mubr.bf16.gmra.mxu0 %v3714
  %v5316 = vpop.f32.mrf.mxu0
  %v5317 = vadd.f32 0.0, %v5316
  %v5318 = vpop.f32.mrf.mxu0
  %v5319 = vadd.f32 0.0, %v5318
  %v5320 = vpop.f32.mrf.mxu0
  %v5321 = vadd.f32 0.0, %v5320
  %v5322 = vpop.f32.mrf.mxu0
  %v5323 = vadd.f32 0.0, %v5322
  %5324 = vmatprep.mubr.bf16.mxu0 %v3731
  %5325 = vmatmul.mubr.bf16.gmra.mxu0 %v3730
  %v5326 = vpop.f32.mrf.mxu0
  %v5327 = vadd.f32 0.0, %v5326
  %v5328 = vpop.f32.mrf.mxu0
  %v5329 = vadd.f32 0.0, %v5328
  %v5330 = vpop.f32.mrf.mxu0
  %v5331 = vadd.f32 0.0, %v5330
  %v5332 = vpop.f32.mrf.mxu0
  %v5333 = vadd.f32 0.0, %v5332
  %5334 = vdwg.mxu0
  %5335 = vmatprep.subr.bf16.mxu0 %v4817
  %5336 = vmatpush1.bf16.msra.mxu0 %v4816
  %5337 = vmatprep.subr.bf16.mxu0 %v4815
  %5338 = vmatpush1.bf16.msra.mxu0 %v4814
  %5339 = vmatprep.subr.bf16.mxu0 %v4813
  %5340 = vmatpush1.bf16.msra.mxu0 %v4812
  %5341 = vmatprep.subr.bf16.mxu0 %v4811
  %5342 = vmatpush1.bf16.msra.mxu0 %v4810
  %5343 = vmatprep.subr.bf16.mxu0 %v4809
  %5344 = vmatpush1.bf16.msra.mxu0 %v4808
  %5345 = vmatprep.subr.bf16.mxu0 %v4807
  %5346 = vmatpush1.bf16.msra.mxu0 %v4806
  %5347 = vmatprep.subr.bf16.mxu0 %v4805
  %5348 = vmatpush1.bf16.msra.mxu0 %v4804
  %5349 = vmatprep.subr.bf16.mxu0 %v4803
  %5350 = vmatpush1.bf16.msra.mxu0 %v4802
  %5351 = vmatprep.subr.bf16.mxu0 %v4833
  %5352 = vmatpush2.bf16.msra.mxu0 %v4832
  %5353 = vmatprep.subr.bf16.mxu0 %v4831
  %5354 = vmatpush2.bf16.msra.mxu0 %v4830
  %5355 = vmatprep.subr.bf16.mxu0 %v4829
  %5356 = vmatpush2.bf16.msra.mxu0 %v4828
  %5357 = vmatprep.subr.bf16.mxu0 %v4827
  %5358 = vmatpush2.bf16.msra.mxu0 %v4826
  %5359 = vmatprep.subr.bf16.mxu0 %v4825
  %5360 = vmatpush2.bf16.msra.mxu0 %v4824
  %5361 = vmatprep.subr.bf16.mxu0 %v4823
  %5362 = vmatpush2.bf16.msra.mxu0 %v4822
  %5363 = vmatprep.subr.bf16.mxu0 %v4821
  %5364 = vmatpush2.bf16.msra.mxu0 %v4820
  %5365 = vmatprep.subr.bf16.mxu0 %v4819
  %5366 = vmatpush2.bf16.msra.mxu0 %v4818
  %5367 = vmatprep.mubr.bf16.mxu0 %v3717
  %5368 = vmatmul.mubr.bf16.gmra.mxu0 %v3716
  %v5369 = vpop.f32.mrf.mxu0
  %v5370 = vadd.f32 %v5317, %v5369
  %v5371 = vpop.f32.mrf.mxu0
  %v5372 = vadd.f32 %v5319, %v5371
  %v5373 = vpop.f32.mrf.mxu0
  %v5374 = vadd.f32 %v5321, %v5373
  %v5375 = vpop.f32.mrf.mxu0
  %v5376 = vadd.f32 %v5323, %v5375
  %5377 = vmatprep.mubr.bf16.mxu0 %v3733
  %5378 = vmatmul.mubr.bf16.gmra.mxu0 %v3732
  %v5379 = vpop.f32.mrf.mxu0
  %v5380 = vadd.f32 %v5327, %v5379
  %v5381 = vpop.f32.mrf.mxu0
  %v5382 = vadd.f32 %v5329, %v5381
  %v5383 = vpop.f32.mrf.mxu0
  %v5384 = vadd.f32 %v5331, %v5383
  %v5385 = vpop.f32.mrf.mxu0
  %v5386 = vadd.f32 %v5333, %v5385
  %5387 = vdwg.mxu0
  %5388 = vmatprep.subr.bf16.mxu0 %v4849
  %5389 = vmatpush1.bf16.msra.mxu0 %v4848
  %5390 = vmatprep.subr.bf16.mxu0 %v4847
  %5391 = vmatpush1.bf16.msra.mxu0 %v4846
  %5392 = vmatprep.subr.bf16.mxu0 %v4845
  %5393 = vmatpush1.bf16.msra.mxu0 %v4844
  %5394 = vmatprep.subr.bf16.mxu0 %v4843
  %5395 = vmatpush1.bf16.msra.mxu0 %v4842
  %5396 = vmatprep.subr.bf16.mxu0 %v4841
  %5397 = vmatpush1.bf16.msra.mxu0 %v4840
  %5398 = vmatprep.subr.bf16.mxu0 %v4839
  %5399 = vmatpush1.bf16.msra.mxu0 %v4838
  %5400 = vmatprep.subr.bf16.mxu0 %v4837
  %5401 = vmatpush1.bf16.msra.mxu0 %v4836
  %5402 = vmatprep.subr.bf16.mxu0 %v4835
  %5403 = vmatpush1.bf16.msra.mxu0 %v4834
  %5404 = vmatprep.subr.bf16.mxu0 %v4865
  %5405 = vmatpush2.bf16.msra.mxu0 %v4864
  %5406 = vmatprep.subr.bf16.mxu0 %v4863
  %5407 = vmatpush2.bf16.msra.mxu0 %v4862
  %5408 = vmatprep.subr.bf16.mxu0 %v4861
  %5409 = vmatpush2.bf16.msra.mxu0 %v4860
  %5410 = vmatprep.subr.bf16.mxu0 %v4859
  %5411 = vmatpush2.bf16.msra.mxu0 %v4858
  %5412 = vmatprep.subr.bf16.mxu0 %v4857
  %5413 = vmatpush2.bf16.msra.mxu0 %v4856
  %5414 = vmatprep.subr.bf16.mxu0 %v4855
  %5415 = vmatpush2.bf16.msra.mxu0 %v4854
  %5416 = vmatprep.subr.bf16.mxu0 %v4853
  %5417 = vmatpush2.bf16.msra.mxu0 %v4852
  %5418 = vmatprep.subr.bf16.mxu0 %v4851
  %5419 = vmatpush2.bf16.msra.mxu0 %v4850
  %5420 = vmatprep.mubr.bf16.mxu0 %v3719
  %5421 = vmatmul.mubr.bf16.gmra.mxu0 %v3718
  %v5422 = vpop.f32.mrf.mxu0
  %v5423 = vadd.f32 %v5370, %v5422
  %v5424 = vpop.f32.mrf.mxu0
  %v5425 = vadd.f32 %v5372, %v5424
  %v5426 = vpop.f32.mrf.mxu0
  %v5427 = vadd.f32 %v5374, %v5426
  %v5428 = vpop.f32.mrf.mxu0
  %v5429 = vadd.f32 %v5376, %v5428
  %5430 = vmatprep.mubr.bf16.mxu0 %v3735
  %5431 = vmatmul.mubr.bf16.gmra.mxu0 %v3734
  %v5432 = vpop.f32.mrf.mxu0
  %v5433 = vadd.f32 %v5380, %v5432
  %v5434 = vpop.f32.mrf.mxu0
  %v5435 = vadd.f32 %v5382, %v5434
  %v5436 = vpop.f32.mrf.mxu0
  %v5437 = vadd.f32 %v5384, %v5436
  %v5438 = vpop.f32.mrf.mxu0
  %v5439 = vadd.f32 %v5386, %v5438
  %5440 = vdwg.mxu0
  %5441 = vmatprep.subr.bf16.mxu0 %v4881
  %5442 = vmatpush1.bf16.msra.mxu0 %v4880
  %5443 = vmatprep.subr.bf16.mxu0 %v4879
  %5444 = vmatpush1.bf16.msra.mxu0 %v4878
  %5445 = vmatprep.subr.bf16.mxu0 %v4877
  %5446 = vmatpush1.bf16.msra.mxu0 %v4876
  %5447 = vmatprep.subr.bf16.mxu0 %v4875
  %5448 = vmatpush1.bf16.msra.mxu0 %v4874
  %5449 = vmatprep.subr.bf16.mxu0 %v4873
  %5450 = vmatpush1.bf16.msra.mxu0 %v4872
  %5451 = vmatprep.subr.bf16.mxu0 %v4871
  %5452 = vmatpush1.bf16.msra.mxu0 %v4870
  %5453 = vmatprep.subr.bf16.mxu0 %v4869
  %5454 = vmatpush1.bf16.msra.mxu0 %v4868
  %5455 = vmatprep.subr.bf16.mxu0 %v4867
  %5456 = vmatpush1.bf16.msra.mxu0 %v4866
  %5457 = vmatprep.subr.bf16.mxu0 %v4897
  %5458 = vmatpush2.bf16.msra.mxu0 %v4896
  %5459 = vmatprep.subr.bf16.mxu0 %v4895
  %5460 = vmatpush2.bf16.msra.mxu0 %v4894
  %5461 = vmatprep.subr.bf16.mxu0 %v4893
  %5462 = vmatpush2.bf16.msra.mxu0 %v4892
  %5463 = vmatprep.subr.bf16.mxu0 %v4891
  %5464 = vmatpush2.bf16.msra.mxu0 %v4890
  %5465 = vmatprep.subr.bf16.mxu0 %v4889
  %5466 = vmatpush2.bf16.msra.mxu0 %v4888
  %5467 = vmatprep.subr.bf16.mxu0 %v4887
  %5468 = vmatpush2.bf16.msra.mxu0 %v4886
  %5469 = vmatprep.subr.bf16.mxu0 %v4885
  %5470 = vmatpush2.bf16.msra.mxu0 %v4884
  %5471 = vmatprep.subr.bf16.mxu0 %v4883
  %5472 = vmatpush2.bf16.msra.mxu0 %v4882
  %5473 = vmatprep.mubr.bf16.mxu0 %v3721
  %5474 = vmatmul.mubr.bf16.gmra.mxu0 %v3720
  %v5475 = vpop.f32.mrf.mxu0
  %v5476 = vadd.f32 %v5423, %v5475
  %v5477 = vpop.f32.mrf.mxu0
  %v5478 = vadd.f32 %v5425, %v5477
  %v5479 = vpop.f32.mrf.mxu0
  %v5480 = vadd.f32 %v5427, %v5479
  %v5481 = vpop.f32.mrf.mxu0
  %v5482 = vadd.f32 %v5429, %v5481
  %5483 = vmatprep.mubr.bf16.mxu0 %v3737
  %5484 = vmatmul.mubr.bf16.gmra.mxu0 %v3736
  %v5485 = vpop.f32.mrf.mxu0
  %v5486 = vadd.f32 %v5433, %v5485
  %v5487 = vpop.f32.mrf.mxu0
  %v5488 = vadd.f32 %v5435, %v5487
  %v5489 = vpop.f32.mrf.mxu0
  %v5490 = vadd.f32 %v5437, %v5489
  %v5491 = vpop.f32.mrf.mxu0
  %v5492 = vadd.f32 %v5439, %v5491
  %5493 = vdwg.mxu0
  %5494 = vmatprep.subr.bf16.mxu0 %v4913
  %5495 = vmatpush1.bf16.msra.mxu0 %v4912
  %5496 = vmatprep.subr.bf16.mxu0 %v4911
  %5497 = vmatpush1.bf16.msra.mxu0 %v4910
  %5498 = vmatprep.subr.bf16.mxu0 %v4909
  %5499 = vmatpush1.bf16.msra.mxu0 %v4908
  %5500 = vmatprep.subr.bf16.mxu0 %v4907
  %5501 = vmatpush1.bf16.msra.mxu0 %v4906
  %5502 = vmatprep.subr.bf16.mxu0 %v4905
  %5503 = vmatpush1.bf16.msra.mxu0 %v4904
  %5504 = vmatprep.subr.bf16.mxu0 %v4903
  %5505 = vmatpush1.bf16.msra.mxu0 %v4902
  %5506 = vmatprep.subr.bf16.mxu0 %v4901
  %5507 = vmatpush1.bf16.msra.mxu0 %v4900
  %5508 = vmatprep.subr.bf16.mxu0 %v4899
  %5509 = vmatpush1.bf16.msra.mxu0 %v4898
  %5510 = vmatprep.subr.bf16.mxu0 %v4929
  %5511 = vmatpush2.bf16.msra.mxu0 %v4928
  %5512 = vmatprep.subr.bf16.mxu0 %v4927
  %5513 = vmatpush2.bf16.msra.mxu0 %v4926
  %5514 = vmatprep.subr.bf16.mxu0 %v4925
  %5515 = vmatpush2.bf16.msra.mxu0 %v4924
  %5516 = vmatprep.subr.bf16.mxu0 %v4923
  %5517 = vmatpush2.bf16.msra.mxu0 %v4922
  %5518 = vmatprep.subr.bf16.mxu0 %v4921
  %5519 = vmatpush2.bf16.msra.mxu0 %v4920
  %5520 = vmatprep.subr.bf16.mxu0 %v4919
  %5521 = vmatpush2.bf16.msra.mxu0 %v4918
  %5522 = vmatprep.subr.bf16.mxu0 %v4917
  %5523 = vmatpush2.bf16.msra.mxu0 %v4916
  %5524 = vmatprep.subr.bf16.mxu0 %v4915
  %5525 = vmatpush2.bf16.msra.mxu0 %v4914
  %5526 = vmatprep.mubr.bf16.mxu0 %v3723
  %5527 = vmatmul.mubr.bf16.gmra.mxu0 %v3722
  %v5528 = vpop.f32.mrf.mxu0
  %v5529 = vadd.f32 %v5476, %v5528
  %v5530 = vpop.f32.mrf.mxu0
  %v5531 = vadd.f32 %v5478, %v5530
  %v5532 = vpop.f32.mrf.mxu0
  %v5533 = vadd.f32 %v5480, %v5532
  %v5534 = vpop.f32.mrf.mxu0
  %v5535 = vadd.f32 %v5482, %v5534
  %5536 = vmatprep.mubr.bf16.mxu0 %v3739
  %5537 = vmatmul.mubr.bf16.gmra.mxu0 %v3738
  %v5538 = vpop.f32.mrf.mxu0
  %v5539 = vadd.f32 %v5486, %v5538
  %v5540 = vpop.f32.mrf.mxu0
  %v5541 = vadd.f32 %v5488, %v5540
  %v5542 = vpop.f32.mrf.mxu0
  %v5543 = vadd.f32 %v5490, %v5542
  %v5544 = vpop.f32.mrf.mxu0
  %v5545 = vadd.f32 %v5492, %v5544
  %5546 = vdwg.mxu0
  %5547 = vmatprep.subr.bf16.mxu0 %v4945
  %5548 = vmatpush1.bf16.msra.mxu0 %v4944
  %5549 = vmatprep.subr.bf16.mxu0 %v4943
  %5550 = vmatpush1.bf16.msra.mxu0 %v4942
  %5551 = vmatprep.subr.bf16.mxu0 %v4941
  %5552 = vmatpush1.bf16.msra.mxu0 %v4940
  %5553 = vmatprep.subr.bf16.mxu0 %v4939
  %5554 = vmatpush1.bf16.msra.mxu0 %v4938
  %5555 = vmatprep.subr.bf16.mxu0 %v4937
  %5556 = vmatpush1.bf16.msra.mxu0 %v4936
  %5557 = vmatprep.subr.bf16.mxu0 %v4935
  %5558 = vmatpush1.bf16.msra.mxu0 %v4934
  %5559 = vmatprep.subr.bf16.mxu0 %v4933
  %5560 = vmatpush1.bf16.msra.mxu0 %v4932
  %5561 = vmatprep.subr.bf16.mxu0 %v4931
  %5562 = vmatpush1.bf16.msra.mxu0 %v4930
  %5563 = vmatprep.subr.bf16.mxu0 %v4961
  %5564 = vmatpush2.bf16.msra.mxu0 %v4960
  %5565 = vmatprep.subr.bf16.mxu0 %v4959
  %5566 = vmatpush2.bf16.msra.mxu0 %v4958
  %5567 = vmatprep.subr.bf16.mxu0 %v4957
  %5568 = vmatpush2.bf16.msra.mxu0 %v4956
  %5569 = vmatprep.subr.bf16.mxu0 %v4955
  %5570 = vmatpush2.bf16.msra.mxu0 %v4954
  %5571 = vmatprep.subr.bf16.mxu0 %v4953
  %5572 = vmatpush2.bf16.msra.mxu0 %v4952
  %5573 = vmatprep.subr.bf16.mxu0 %v4951
  %5574 = vmatpush2.bf16.msra.mxu0 %v4950
  %5575 = vmatprep.subr.bf16.mxu0 %v4949
  %5576 = vmatpush2.bf16.msra.mxu0 %v4948
  %5577 = vmatprep.subr.bf16.mxu0 %v4947
  %5578 = vmatpush2.bf16.msra.mxu0 %v4946
  %5579 = vmatprep.mubr.bf16.mxu0 %v3725
  %5580 = vmatmul.mubr.bf16.gmra.mxu0 %v3724
  %v5581 = vpop.f32.mrf.mxu0
  %v5582 = vadd.f32 %v5529, %v5581
  %v5583 = vpop.f32.mrf.mxu0
  %v5584 = vadd.f32 %v5531, %v5583
  %v5585 = vpop.f32.mrf.mxu0
  %v5586 = vadd.f32 %v5533, %v5585
  %v5587 = vpop.f32.mrf.mxu0
  %v5588 = vadd.f32 %v5535, %v5587
  %5589 = vmatprep.mubr.bf16.mxu0 %v3741
  %5590 = vmatmul.mubr.bf16.gmra.mxu0 %v3740
  %v5591 = vpop.f32.mrf.mxu0
  %v5592 = vadd.f32 %v5539, %v5591
  %v5593 = vpop.f32.mrf.mxu0
  %v5594 = vadd.f32 %v5541, %v5593
  %v5595 = vpop.f32.mrf.mxu0
  %v5596 = vadd.f32 %v5543, %v5595
  %v5597 = vpop.f32.mrf.mxu0
  %v5598 = vadd.f32 %v5545, %v5597
  %5599 = vdwg.mxu0
  %5600 = vmatprep.subr.bf16.mxu0 %v4977
  %5601 = vmatpush1.bf16.msra.mxu0 %v4976
  %5602 = vmatprep.subr.bf16.mxu0 %v4975
  %5603 = vmatpush1.bf16.msra.mxu0 %v4974
  %5604 = vmatprep.subr.bf16.mxu0 %v4973
  %5605 = vmatpush1.bf16.msra.mxu0 %v4972
  %5606 = vmatprep.subr.bf16.mxu0 %v4971
  %5607 = vmatpush1.bf16.msra.mxu0 %v4970
  %5608 = vmatprep.subr.bf16.mxu0 %v4969
  %5609 = vmatpush1.bf16.msra.mxu0 %v4968
  %5610 = vmatprep.subr.bf16.mxu0 %v4967
  %5611 = vmatpush1.bf16.msra.mxu0 %v4966
  %5612 = vmatprep.subr.bf16.mxu0 %v4965
  %5613 = vmatpush1.bf16.msra.mxu0 %v4964
  %5614 = vmatprep.subr.bf16.mxu0 %v4963
  %5615 = vmatpush1.bf16.msra.mxu0 %v4962
  %5616 = vmatprep.subr.bf16.mxu0 %v4993
  %5617 = vmatpush2.bf16.msra.mxu0 %v4992
  %5618 = vmatprep.subr.bf16.mxu0 %v4991
  %5619 = vmatpush2.bf16.msra.mxu0 %v4990
  %5620 = vmatprep.subr.bf16.mxu0 %v4989
  %5621 = vmatpush2.bf16.msra.mxu0 %v4988
  %5622 = vmatprep.subr.bf16.mxu0 %v4987
  %5623 = vmatpush2.bf16.msra.mxu0 %v4986
  %5624 = vmatprep.subr.bf16.mxu0 %v4985
  %5625 = vmatpush2.bf16.msra.mxu0 %v4984
  %5626 = vmatprep.subr.bf16.mxu0 %v4983
  %5627 = vmatpush2.bf16.msra.mxu0 %v4982
  %5628 = vmatprep.subr.bf16.mxu0 %v4981
  %5629 = vmatpush2.bf16.msra.mxu0 %v4980
  %5630 = vmatprep.subr.bf16.mxu0 %v4979
  %5631 = vmatpush2.bf16.msra.mxu0 %v4978
  %5632 = vmatprep.mubr.bf16.mxu0 %v3727
  %5633 = vmatmul.mubr.bf16.gmra.mxu0 %v3726
  %v5634 = vpop.f32.mrf.mxu0
  %v5635 = vadd.f32 %v5582, %v5634
  %v5636 = vpop.f32.mrf.mxu0
  %v5637 = vadd.f32 %v5584, %v5636
  %v5638 = vpop.f32.mrf.mxu0
  %v5639 = vadd.f32 %v5586, %v5638
  %v5640 = vpop.f32.mrf.mxu0
  %v5641 = vadd.f32 %v5588, %v5640
  %5642 = vmatprep.mubr.bf16.mxu0 %v3743
  %5643 = vmatmul.mubr.bf16.gmra.mxu0 %v3742
  %v5644 = vpop.f32.mrf.mxu0
  %v5645 = vadd.f32 %v5592, %v5644
  %v5646 = vpop.f32.mrf.mxu0
  %v5647 = vadd.f32 %v5594, %v5646
  %v5648 = vpop.f32.mrf.mxu0
  %v5649 = vadd.f32 %v5596, %v5648
  %v5650 = vpop.f32.mrf.mxu0
  %v5651 = vadd.f32 %v5598, %v5650
  %5652 = vdwg.mxu0
  %5653 = vmatprep.subr.bf16.mxu0 %v5009
  %5654 = vmatpush1.bf16.msra.mxu0 %v5008
  %5655 = vmatprep.subr.bf16.mxu0 %v5007
  %5656 = vmatpush1.bf16.msra.mxu0 %v5006
  %5657 = vmatprep.subr.bf16.mxu0 %v5005
  %5658 = vmatpush1.bf16.msra.mxu0 %v5004
  %5659 = vmatprep.subr.bf16.mxu0 %v5003
  %5660 = vmatpush1.bf16.msra.mxu0 %v5002
  %5661 = vmatprep.subr.bf16.mxu0 %v5001
  %5662 = vmatpush1.bf16.msra.mxu0 %v5000
  %5663 = vmatprep.subr.bf16.mxu0 %v4999
  %5664 = vmatpush1.bf16.msra.mxu0 %v4998
  %5665 = vmatprep.subr.bf16.mxu0 %v4997
  %5666 = vmatpush1.bf16.msra.mxu0 %v4996
  %5667 = vmatprep.subr.bf16.mxu0 %v4995
  %5668 = vmatpush1.bf16.msra.mxu0 %v4994
  %5669 = vmatprep.subr.bf16.mxu0 %v5025
  %5670 = vmatpush2.bf16.msra.mxu0 %v5024
  %5671 = vmatprep.subr.bf16.mxu0 %v5023
  %5672 = vmatpush2.bf16.msra.mxu0 %v5022
  %5673 = vmatprep.subr.bf16.mxu0 %v5021
  %5674 = vmatpush2.bf16.msra.mxu0 %v5020
  %5675 = vmatprep.subr.bf16.mxu0 %v5019
  %5676 = vmatpush2.bf16.msra.mxu0 %v5018
  %5677 = vmatprep.subr.bf16.mxu0 %v5017
  %5678 = vmatpush2.bf16.msra.mxu0 %v5016
  %5679 = vmatprep.subr.bf16.mxu0 %v5015
  %5680 = vmatpush2.bf16.msra.mxu0 %v5014
  %5681 = vmatprep.subr.bf16.mxu0 %v5013
  %5682 = vmatpush2.bf16.msra.mxu0 %v5012
  %5683 = vmatprep.subr.bf16.mxu0 %v5011
  %5684 = vmatpush2.bf16.msra.mxu0 %v5010
  %5685 = vmatprep.mubr.bf16.mxu0 %v3729
  %5686 = vmatmul.mubr.bf16.gmra.mxu0 %v3728
  %v5687 = vpop.f32.mrf.mxu0
  %v5688 = vadd.f32 %v5635, %v5687
  %v5689 = vpop.f32.mrf.mxu0
  %v5690 = vadd.f32 %v5637, %v5689
  %v5691 = vpop.f32.mrf.mxu0
  %v5692 = vadd.f32 %v5639, %v5691
  %v5693 = vpop.f32.mrf.mxu0
  %v5694 = vadd.f32 %v5641, %v5693
  %5695 = vmatprep.mubr.bf16.mxu0 %v3745
  %5696 = vmatmul.mubr.bf16.gmra.mxu0 %v3744
  %v5697 = vpop.f32.mrf.mxu0
  %v5698 = vadd.f32 %v5645, %v5697
  %v5699 = vpop.f32.mrf.mxu0
  %v5700 = vadd.f32 %v5647, %v5699
  %v5701 = vpop.f32.mrf.mxu0
  %v5702 = vadd.f32 %v5649, %v5701
  %v5703 = vpop.f32.mrf.mxu0
  %v5704 = vadd.f32 %v5651, %v5703
  %5705 = vdwg.mxu0
  %v5706 = vld [vmem:[%s6] sm:$0x3]
  %v5707 = vld [vmem:[%s7] sm:$0x3]
  %v5708 = vadd.f32 %v5688, %v5692
  %v5709 = vadd.f32 %v5708, %v5698
  %v5710 = vadd.f32 %v5709, %v5702
  %v5711 = vrot.slane %v5710, 4
  %v5712 = vadd.f32 %v5710, %v5711
  %v5713 = vrot.slane %v5712, 2
  %v5714 = vadd.f32 %v5712, %v5713
  %v5715 = vrot.slane %v5714, 1
  %v5716 = vadd.f32 %v5714, %v5715
  %v5717 = vadd.f32 %v5690, %v5694
  %v5718 = vadd.f32 %v5717, %v5700
  %v5719 = vadd.f32 %v5718, %v5704
  %v5720 = vrot.slane %v5719, 4
  %v5721 = vadd.f32 %v5719, %v5720
  %v5722 = vrot.slane %v5721, 2
  %v5723 = vadd.f32 %v5721, %v5722
  %v5724 = vrot.slane %v5723, 1
  %v5725 = vadd.f32 %v5723, %v5724
  %v5726 = vmul.f32 %v5716, 0.03125
  %v5727 = vmul.f32 %v5725, 0.03125
  %v5728 = vmul.f32 %v5688, %v5688
  %v5729 = vmul.f32 %v5690, %v5690
  %v5730 = vmul.f32 %v5692, %v5692
  %v5731 = vmul.f32 %v5694, %v5694
  %v5732 = vmul.f32 %v5698, %v5698
  %v5733 = vmul.f32 %v5700, %v5700
  %v5734 = vmul.f32 %v5702, %v5702
  %v5735 = vmul.f32 %v5704, %v5704
  %v5736 = vadd.f32 %v5728, %v5730
  %v5737 = vadd.f32 %v5736, %v5732
  %v5738 = vadd.f32 %v5737, %v5734
  %v5739 = vrot.slane %v5738, 4
  %v5740 = vadd.f32 %v5738, %v5739
  %v5741 = vrot.slane %v5740, 2
  %v5742 = vadd.f32 %v5740, %v5741
  %v5743 = vrot.slane %v5742, 1
  %v5744 = vadd.f32 %v5742, %v5743
  %v5745 = vadd.f32 %v5729, %v5731
  %v5746 = vadd.f32 %v5745, %v5733
  %v5747 = vadd.f32 %v5746, %v5735
  %v5748 = vrot.slane %v5747, 4
  %v5749 = vadd.f32 %v5747, %v5748
  %v5750 = vrot.slane %v5749, 2
  %v5751 = vadd.f32 %v5749, %v5750
  %v5752 = vrot.slane %v5751, 1
  %v5753 = vadd.f32 %v5751, %v5752
  %v5754 = vmul.f32 %v5744, 0.03125
  %v5755 = vmul.f32 %v5753, 0.03125
  %v5756 = vmul.f32 %v5726, %v5726
  %v5757 = vmul.f32 %v5727, %v5727
  %v5758 = vsub.f32 %v5754, %v5756
  %v5759 = vsub.f32 %v5755, %v5757
  %v5760 = vmax.f32 %v5758, 0.0
  %v5761 = vmax.f32 %v5759, 0.0
  %v5762 = vadd.f32 %v5760, 1e-05
  %v5763 = vadd.f32 %v5761, 1e-05
  %v5764 = vrsqrt.pop %v5762
  %v5765 = vrsqrt.pop %v5763
  %v5767 = vlaneseq
  %v5768 = vshrl.u32 %v5767, 7
  %v5769 = vsub.s32 0, %v5768
  %v5770 = vrot.slane %v5706, %v5769
  %v5771 = vlaneseq
  %v5772 = vshrl.u32 %v5771, 7
  %v5773 = vsub.s32 1, %v5772
  %v5774 = vrot.slane %v5706, %v5773
  %v5777 = vmul.f32 %v5764, %v5770
  %v5778 = vmul.f32 %v5765, %v5774
  %v5779 = vmul.f32 %v5726, %v5777
  %v5780 = vmul.f32 %v5727, %v5778
  %v5783 = vcombine.low %v5779, %v5780
  %v5785 = vunpack.c.l.s4 1966171168
  %v5786 = vunpack.c.0.s8 %v5785
  %v5787 = vlaneseq
  %v5788 = vshrl.u32 %v5787, 7
  %v5789 = vsub.s32 %v5786, %v5788
  %v5790 = vrot.slane %v5783, %v5789
  %v5792 = vunpack.c.l.s4 1966171168
  %v5793 = vunpack.c.0.s8 %v5792
  %v5794 = vlaneseq
  %v5795 = vshrl.u32 %v5794, 7
  %v5796 = vsub.s32 %v5793, %v5795
  %v5797 = vrot.slane %v5790, %v5796
  %v5799 = vsub.f32 %v5707, %v5797
  %v5800 = vlaneseq
  %v5801 = vshrl.u32 %v5800, 7
  %v5802 = vsub.s32 0, %v5801
  %v5803 = vrot.slane %v5777, %v5802
  %v5804 = vlaneseq
  %v5805 = vshrl.u32 %v5804, 7
  %v5806 = vsub.s32 0, %v5805
  %v5807 = vrot.slane %v5778, %v5806
  %v5808 = vmul.f32 %v5688, %v5803
  %v5809 = vmul.f32 %v5690, %v5807
  %v5810 = vmul.f32 %v5692, %v5803
  %v5811 = vmul.f32 %v5694, %v5807
  %v5812 = vmul.f32 %v5698, %v5803
  %v5813 = vmul.f32 %v5700, %v5807
  %v5814 = vmul.f32 %v5702, %v5803
  %v5815 = vmul.f32 %v5704, %v5807
  %v5817 = vlaneseq
  %v5818 = vshrl.u32 %v5817, 7
  %v5819 = vsub.s32 0, %v5818
  %v5820 = vrot.slane %v5799, %v5819
  %v5821 = vlaneseq
  %v5822 = vshrl.u32 %v5821, 7
  %v5823 = vsub.s32 1, %v5822
  %v5824 = vrot.slane %v5799, %v5823
  %v5827 = vadd.f32 %v5808, %v5820
  %v5828 = vadd.f32 %v5809, %v5824
  %v5829 = vadd.f32 %v5810, %v5820
  %v5830 = vadd.f32 %v5811, %v5824
  %v5831 = vadd.f32 %v5812, %v5820
  %v5832 = vadd.f32 %v5813, %v5824
  %v5833 = vadd.f32 %v5814, %v5820
  %v5834 = vadd.f32 %v5815, %v5824
  %vm5835 = vcmp.gt.f32.partialorder %v5827, 0.0
  %vm5836 = vcmp.gt.f32.partialorder %v5828, 0.0
  %vm5837 = vcmp.gt.f32.partialorder %v5829, 0.0
  %vm5838 = vcmp.gt.f32.partialorder %v5830, 0.0
  %vm5839 = vcmp.gt.f32.partialorder %v5831, 0.0
  %vm5840 = vcmp.gt.f32.partialorder %v5832, 0.0
  %vm5841 = vcmp.gt.f32.partialorder %v5833, 0.0
  %vm5842 = vcmp.gt.f32.partialorder %v5834, 0.0
  %v5843 = vmul.f32 %v5827, 0.05
  %v5844 = vmul.f32 %v5828, 0.05
  %v5845 = vmul.f32 %v5829, 0.05
  %v5846 = vmul.f32 %v5830, 0.05
  %v5847 = vmul.f32 %v5831, 0.05
  %v5848 = vmul.f32 %v5832, 0.05
  %v5849 = vmul.f32 %v5833, 0.05
  %v5850 = vmul.f32 %v5834, 0.05
  %v5851 = vsel %vm5835, %v5827, %v5843
  %v5852 = vsel %vm5836, %v5828, %v5844
  %v5853 = vsel %vm5837, %v5829, %v5845
  %v5854 = vsel %vm5838, %v5830, %v5846
  %v5855 = vsel %vm5839, %v5831, %v5847
  %v5856 = vsel %vm5840, %v5832, %v5848
  %v5857 = vsel %vm5841, %v5833, %v5849
  %v5858 = vsel %vm5842, %v5834, %v5850
  %v5859 = vld [vmem:[%s9] sm:$0xff]
  %v5860 = vld [vmem:[%s9 + $0x8] sm:$0xff]
  %v5861 = vld [vmem:[%s9 + $0x10] sm:$0xff]
  %v5862 = vld [vmem:[%s9 + $0x18] sm:$0xff]
  %v5863 = vld [vmem:[%s9 + $0x20] sm:$0xff]
  %v5864 = vld [vmem:[%s9 + $0x28] sm:$0xff]
  %v5865 = vld [vmem:[%s9 + $0x30] sm:$0xff]
  %v5866 = vld [vmem:[%s9 + $0x38] sm:$0xff]
  %v5867 = vmul.f32 %v5851, %v5859
  %v5868 = vmul.f32 %v5852, %v5860
  %v5869 = vmul.f32 %v5853, %v5861
  %v5870 = vmul.f32 %v5854, %v5862
  %v5871 = vmul.f32 %v5855, %v5863
  %v5872 = vmul.f32 %v5856, %v5864
  %v5873 = vmul.f32 %v5857, %v5865
  %v5874 = vmul.f32 %v5858, %v5866
  %v5875 = vld [vmem:[%s10] sm:$0x3]
  %vm5876 = vcmask 261120
  %v5878 = vsel %vm5876, %v5875, 0
  %5880 = vmatprep.subr.mxu0 0.0
  %5881 = vmatpush1.msra.mxu0 0.0
  %5882 = vmatprep.subr.mxu0 0.0
  %5883 = vmatpush1.msra.mxu0 0.0
  %5884 = vmatprep.subr.mxu0 0.0
  %5885 = vmatpush1.msra.mxu0 0.0
  %5886 = vmatprep.subr.mxu0 0.0
  %5887 = vmatpush1.msra.mxu0 0.0
  %5888 = vmatprep.subr.mxu0 0.0
  %5889 = vmatpush1.msra.mxu0 0.0
  %5890 = vmatprep.subr.mxu0 0.0
  %5891 = vmatpush1.msra.mxu0 0.0
  %5892 = vmatprep.subr.mxu0 0.0
  %5893 = vmatpush1.msra.mxu0 0.0
  %5894 = vmatprep.subr.mxu0 0.0
  %5895 = vmatpush1.msra.mxu0 0.0
  %5896 = vmatprep.subr.mxu0 0.0
  %5897 = vmatpush1.msra.mxu0 0.0
  %5898 = vmatprep.subr.mxu0 0.0
  %5899 = vmatpush1.msra.mxu0 0.0
  %5900 = vmatprep.subr.mxu0 0.0
  %5901 = vmatpush1.msra.mxu0 0.0
  %5902 = vmatprep.subr.mxu0 0.0
  %5903 = vmatpush1.msra.mxu0 0.0
  %5904 = vmatprep.subr.mxu0 %v5874
  %5905 = vmatpush1.msra.mxu0 %v5873
  %5906 = vmatprep.subr.mxu0 %v5872
  %5907 = vmatpush1.msra.mxu0 %v5871
  %5908 = vmatprep.subr.mxu0 %v5870
  %5909 = vmatpush1.msra.mxu0 %v5869
  %5910 = vmatprep.subr.mxu0 %v5868
  %5911 = vmatpush1.msra.mxu0 %v5867
  %5912 = vmatprep.subr.mxu0 0.0
  %5913 = vmatpush2.msra.mxu0 0.0
  %5914 = vmatprep.subr.mxu0 0.0
  %5915 = vmatpush2.msra.mxu0 0.0
  %5916 = vmatprep.subr.mxu0 0.0
  %5917 = vmatpush2.msra.mxu0 0.0
  %5918 = vmatprep.subr.mxu0 0.0
  %5919 = vmatpush2.msra.mxu0 0.0
  %5920 = vmatprep.subr.mxu0 0.0
  %5921 = vmatpush2.msra.mxu0 0.0
  %5922 = vmatprep.subr.mxu0 0.0
  %5923 = vmatpush2.msra.mxu0 0.0
  %5924 = vmatprep.subr.mxu0 0.0
  %5925 = vmatpush2.msra.mxu0 0.0
  %5926 = vmatprep.subr.mxu0 0.0
  %5927 = vmatpush2.msra.mxu0 0.0
  %5928 = vmatprep.subr.mxu0 0.0
  %5929 = vmatpush2.msra.mxu0 0.0
  %5930 = vmatprep.subr.mxu0 0.0
  %5931 = vmatpush2.msra.mxu0 0.0
  %5932 = vmatprep.subr.mxu0 0.0
  %5933 = vmatpush2.msra.mxu0 0.0
  %5934 = vmatprep.subr.mxu0 0.0
  %5935 = vmatpush2.msra.mxu0 0.0
  %5936 = vmatprep.subr.mxu0 0.0
  %5937 = vmatpush2.msra.mxu0 0.0
  %5938 = vmatprep.subr.mxu0 0.0
  %5939 = vmatpush2.msra.mxu0 0.0
  %5940 = vmatprep.subr.mxu0 0.0
  %5941 = vmatpush2.msra.mxu0 0.0
  %5942 = vmatprep.subr.mxu0 0.0
  %5943 = vmatpush2.msra.mxu0 0.0
  %5944 = vmatprep.mubr.f32.mxu0 0.0
  %5945 = vmatmul.mubr.f32.gmra.mxu0 %v5878
  %v5946 = vpop.f32.mrf.mxu0
  %v5947 = vadd.f32 0.0, %v5946
  %v5948 = vpop.f32.mrf.mxu0
  %v5949 = vadd.f32 0.0, %v5948
  %5950 = vdwg.mxu0
  %vm5951 = vcmask 1041408
  %v5952 = vsel %vm5951, %v5947, 0.0
  %v5953 = vsel %vm5951, %v5949, 0.0
  %v5954 = vadd.f32 %v5952, %v5953
  %5955 = vadd.xlane.f32.xlu0 %v5954
  %v5956 = vpop.xlane.xlu0 %5955
  %vm5957 = vcmask 1024
  %5958 = vst.msk [vmem:[%s11] sm:$0x3] %vm5957, %v5956
  // Predicated region
  $region46: #{d2_forward.1} parent=0 // pred_check
    _
  $region47: #{d2_forward.1} parent=0 // pred_check_branch
    %5960 = sbr.rel (0) target = $region49
  $region48: #{d2_forward.1} parent=0 // pred_region
    _
  $region49: #{d2_forward.1} parent=0 // pred_fallthru
    _
  // Predicated region
  $region50: #{d2_forward.1} parent=0 // pred_check
    _
  $region51: #{d2_forward.1} parent=0 // pred_check_branch
    %5962 = sbr.rel (0) target = $region53
  $region52: #{d2_forward.1} parent=0 // pred_region
    _
  $region53: #{d2_forward.1} parent=0 // pred_fallthru
    _

</llo_original>
